<compile_context>
chip_gen: v7x
topology: tpu7x:2x2x1
jax: 0.10.0
libtpu: 0.0.40
codegen_flags: <defaults>
</compile_context>

<pallas_src>
import functools

import jax
import jax.numpy as jnp
from jax.experimental import pallas as pl
from jax.experimental.pallas import tpu as pltpu

EPS = 1e-5


def _residual_block_kernel(x_ref, w1_ref, w2_ref, gb_ref, o_ref, pad_ref, *,
                           mxu_dtype):
    """Fused conv3x3 -> BN -> ReLU -> conv3x3 -> BN -> (+x), NHWC layout.

    x_ref  : (N, H, W, C)       f32 activation (single copy of x)
    w1_ref : (9, C, C)          conv1 weights, tap k = dy*3 + dx, [ci, co]
    w2_ref : (9, C, C)          conv2 weights, same packing
    gb_ref : (4, 1, 1, 1, C)    rows: gamma1, beta1, gamma2, beta2
    o_ref  : (N, H, W, C)       f32 output
    pad_ref: (N, H+2, W+2, C)   f32 VMEM scratch, reused for both convs
    """
    N, H, W, C = x_ref.shape
    inv_n = 1.0 / float(N * H * W)

    def conv3x3(w_ref):
        # 3 sublane-shifted slab materializations (dx), 3 cheap H slices each.
        acc = jnp.zeros((N, H, W, C), jnp.float32)
        for dx in range(3):
            slab = pad_ref[:, :, dx:dx + W, :].astype(mxu_dtype)  # (N,H+2,W,C)
            for dy in range(3):
                acc = acc + jnp.einsum(
                    'nhwc,cd->nhwd', slab[:, dy:dy + H, :, :],
                    w_ref[dy * 3 + dx],
                    preferred_element_type=jnp.float32)
        return acc  # conv bias omitted: cancelled by training-mode BN.

    def batchnorm(v, gamma, beta):
        # One reduction sweep (sum + sum of squares), one elementwise pass.
        s1 = jnp.sum(v, axis=(0, 1, 2), keepdims=True)
        s2 = jnp.sum(v * v, axis=(0, 1, 2), keepdims=True)
        mu = s1 * inv_n
        var = s2 * inv_n - mu * mu            # biased variance
        scale = gamma * jax.lax.rsqrt(var + EPS)
        bias = beta - mu * scale
        return v * scale + bias

    # Zero only the 1-pixel halo of the padded scratch (4 thin stores); the
    # interior is fully overwritten below, and the halo stays valid for conv2.
    zeros_w = jnp.zeros((N, H + 2, 1, C), jnp.float32)
    zeros_h = jnp.zeros((N, 1, W + 2, C), jnp.float32)
    pad_ref[:, :, 0:1, :] = zeros_w
    pad_ref[:, :, W + 1:W + 2, :] = zeros_w
    pad_ref[:, 0:1, :, :] = zeros_h
    pad_ref[:, H + 1:H + 2, :, :] = zeros_h

    # conv1 -> bn1 -> relu
    pad_ref[:, 1:H + 1, 1:W + 1, :] = x_ref[...]
    r1 = conv3x3(w1_ref)
    r1 = jnp.maximum(batchnorm(r1, gb_ref[0], gb_ref[1]), 0.0)

    # conv2 -> bn2 (reuse the same padded scratch; halo is still zero)
    pad_ref[:, 1:H + 1, 1:W + 1, :] = r1
    r2 = batchnorm(conv3x3(w2_ref), gb_ref[2], gb_ref[3])

    # residual add
    o_ref[...] = (x_ref[...] + r2).astype(o_ref.dtype)


def _padded_vmem_bytes(shape, itemsize=4):
    """Bytes a tensor occupies in VMEM with (8, 128) tile padding."""
    rows = -(-shape[-2] // 8) * 8
    lanes = -(-shape[-1] // 128) * 128
    lead = 1
    for d in shape[:-2]:
        lead *= d
    return lead * rows * lanes * itemsize


def residual_block_pallas_nhwc(x_nhwc, params):
    """x_nhwc: (N, H, W, C) float32. Returns (N, H, W, C) float32."""
    w1, b1, g1, be1, w2, b2, g2, be2 = params
    N, H, W, C = x_nhwc.shape

    # Conv biases are intentionally unused: a per-channel constant added
    # before training-mode BatchNorm is exactly removed by the mean subtract.
    del b1, b2

    # Feed the MXU bf16 at realistic channel counts; keep f32 at tiny C.
    mxu_dtype = jnp.bfloat16 if C >= 64 else jnp.float32

    def repack(w):  # (Cout, Cin, 3, 3) -> (9, Cin, Cout), tap k = dy*3 + dx
        return jnp.transpose(w, (2, 3, 1, 0)).reshape(9, C, C).astype(mxu_dtype)

    # All per-channel BN params in one small input (single DMA).
    gb = (jnp.stack([g1, be1, g2, be2])
          .astype(jnp.float32).reshape(4, 1, 1, 1, C))

    pad_shape = (N, H + 2, W + 2, C)
    vmem_limit = int(min(56 * 2**20,
                         max(32 * 2**20, 24 * _padded_vmem_bytes(pad_shape))))

    vmem = pl.BlockSpec(memory_space=pltpu.MemorySpace.VMEM)
    kernel = functools.partial(_residual_block_kernel, mxu_dtype=mxu_dtype)

    return pl.pallas_call(
        kernel,
        out_shape=jax.ShapeDtypeStruct((N, H, W, C), jnp.float32),
        in_specs=[vmem] * 4,
        out_specs=vmem,
        scratch_shapes=[pltpu.VMEM(pad_shape, jnp.float32)],
        compiler_params=pltpu.CompilerParams(vmem_limit_bytes=vmem_limit),
    )(x_nhwc.astype(jnp.float32), repack(w1), repack(w2), gb)


def residual_block_pallas(x_nchw, params):
    """PyTorch-layout entry point: (N, C, H, W) -> (N, C, H, W)."""
    x = jnp.transpose(x_nchw, (0, 2, 3, 1))
    out = residual_block_pallas_nhwc(x, params)
    return jnp.transpose(out, (0, 3, 1, 2))


def residual_block_ref(x_nchw, params):
    """Pure-JAX reference (mirrors the PyTorch module, training-mode BN)."""
    w1, b1, g1, be1, w2, b2, g2, be2 = params

    def conv(x, w, b):
        y = jax.lax.conv_general_dilated(
            x, w, window_strides=(1, 1), padding='SAME',
            dimension_numbers=('NCHW', 'OIHW', 'NCHW'))
        return y + b[None, :, None, None]

    def bn(v, gamma, beta):
        mu = jnp.mean(v, axis=(0, 2, 3), keepdims=True)
        var = jnp.mean((v - mu) ** 2, axis=(0, 2, 3), keepdims=True)
        return ((v - mu) / jnp.sqrt(var + EPS)
                * gamma[None, :, None, None] + beta[None, :, None, None])

    r = conv(x_nchw, w1, b1)
    r = jnp.maximum(bn(r, g1, be1), 0.0)
    r = conv(r, w2, b2)
    r = bn(r, g2, be2)
    return x_nchw + r


def init_params(key, channels):
    ks = jax.random.split(key, 8)
    w1 = 0.1 * jax.random.normal(ks[0], (channels, channels, 3, 3), jnp.float32)
    b1 = 0.1 * jax.random.normal(ks[1], (channels,), jnp.float32)
    g1 = 1.0 + 0.1 * jax.random.normal(ks[2], (channels,), jnp.float32)
    be1 = 0.1 * jax.random.normal(ks[3], (channels,), jnp.float32)
    w2 = 0.1 * jax.random.normal(ks[4], (channels, channels, 3, 3), jnp.float32)
    b2 = 0.1 * jax.random.normal(ks[5], (channels,), jnp.float32)
    g2 = 1.0 + 0.1 * jax.random.normal(ks[6], (channels,), jnp.float32)
    be2 = 0.1 * jax.random.normal(ks[7], (channels,), jnp.float32)
    return (w1, b1, g1, be1, w2, b2, g2, be2)


if __name__ == "__main__":
    key = jax.random.PRNGKey(0)
    k_x, k_p = jax.random.split(key)

    N, C, H, W = 2, 4, 16, 16
    x = jax.random.normal(k_x, (N, C, H, W), jnp.float32)
    params = init_params(k_p, C)

    out = residual_block_pallas(x, params)
    out = jax.block_until_ready(out)

    ref = residual_block_ref(x, params)
    assert out.shape == (N, C, H, W)
    assert jnp.allclose(out, ref, atol=1e-4, rtol=1e-4), (
        f"max abs err {jnp.max(jnp.abs(out - ref))}")

    print("KERNEL_OK")
</pallas_src>

<mosaic_0001>
module attributes {stable_mosaic.version = 11 : i64} {
  func.func @_residual_block_kernel(%arg0: memref<2x16x16x4xf32, #tpu.memory_space<vmem>>, %arg1: memref<9x4x4xf32, #tpu.memory_space<vmem>>, %arg2: memref<9x4x4xf32, #tpu.memory_space<vmem>>, %arg3: memref<4x1x1x1x4xf32, #tpu.memory_space<vmem>>, %arg4: memref<2x16x16x4xf32, #tpu.memory_space<vmem>>, %arg5: memref<2x18x18x4xf32, #tpu.memory_space<vmem>>) attributes {dimension_semantics = [], scalar_prefetch = 0 : i64, scratch_operands = 1 : i64, tpu.core_type = #tpu.core_type<tc>} {
    %cst = arith.constant 0.000000e+00 : f32
    %0 = vector.broadcast %cst : f32 to vector<2x18x1x4xf32>
    %cst_0 = arith.constant 0.000000e+00 : f32
    %1 = vector.broadcast %cst_0 : f32 to vector<2x1x18x4xf32>
    %c0 = arith.constant 0 : index
    %c0_1 = arith.constant 0 : index
    %c0_2 = arith.constant 0 : index
    %c0_3 = arith.constant 0 : index
    %2 = vector.load %arg5[%c0, %c0_1, %c0_2, %c0_3] : memref<2x18x18x4xf32, #tpu.memory_space<vmem>>, vector<2x18x1x4xf32>
    tpu.vector_store %arg5[%c0, %c0_1, %c0_2, %c0_3], %0 {strides = array<i32>} : memref<2x18x18x4xf32, #tpu.memory_space<vmem>>, vector<2x18x1x4xf32>,
    %c0_4 = arith.constant 0 : index
    %c0_5 = arith.constant 0 : index
    %c17 = arith.constant 17 : index
    %c0_6 = arith.constant 0 : index
    %3 = vector.load %arg5[%c0_4, %c0_5, %c17, %c0_6] : memref<2x18x18x4xf32, #tpu.memory_space<vmem>>, vector<2x18x1x4xf32>
    tpu.vector_store %arg5[%c0_4, %c0_5, %c17, %c0_6], %0 {strides = array<i32>} : memref<2x18x18x4xf32, #tpu.memory_space<vmem>>, vector<2x18x1x4xf32>,
    %c0_7 = arith.constant 0 : index
    %c0_8 = arith.constant 0 : index
    %c0_9 = arith.constant 0 : index
    %c0_10 = arith.constant 0 : index
    %4 = vector.load %arg5[%c0_7, %c0_8, %c0_9, %c0_10] : memref<2x18x18x4xf32, #tpu.memory_space<vmem>>, vector<2x1x18x4xf32>
    tpu.vector_store %arg5[%c0_7, %c0_8, %c0_9, %c0_10], %1 {strides = array<i32>} : memref<2x18x18x4xf32, #tpu.memory_space<vmem>>, vector<2x1x18x4xf32>,
    %c0_11 = arith.constant 0 : index
    %c17_12 = arith.constant 17 : index
    %c0_13 = arith.constant 0 : index
    %c0_14 = arith.constant 0 : index
    %5 = vector.load %arg5[%c0_11, %c17_12, %c0_13, %c0_14] : memref<2x18x18x4xf32, #tpu.memory_space<vmem>>, vector<2x1x18x4xf32>
    tpu.vector_store %arg5[%c0_11, %c17_12, %c0_13, %c0_14], %1 {strides = array<i32>} : memref<2x18x18x4xf32, #tpu.memory_space<vmem>>, vector<2x1x18x4xf32>,
    %c0_15 = arith.constant 0 : index
    %c0_16 = arith.constant 0 : index
    %c0_17 = arith.constant 0 : index
    %c0_18 = arith.constant 0 : index
    %6 = vector.load %arg0[%c0_15, %c0_16, %c0_17, %c0_18] : memref<2x16x16x4xf32, #tpu.memory_space<vmem>>, vector<2x16x16x4xf32>
    %c0_19 = arith.constant 0 : index
    %c1 = arith.constant 1 : index
    %c1_20 = arith.constant 1 : index
    %c0_21 = arith.constant 0 : index
    %7 = vector.load %arg5[%c0_19, %c1, %c1_20, %c0_21] : memref<2x18x18x4xf32, #tpu.memory_space<vmem>>, vector<2x16x16x4xf32>
    tpu.vector_store %arg5[%c0_19, %c1, %c1_20, %c0_21], %6 {strides = array<i32>} : memref<2x18x18x4xf32, #tpu.memory_space<vmem>>, vector<2x16x16x4xf32>,
    %cst_22 = arith.constant 0.000000e+00 : f32
    %8 = vector.broadcast %cst_22 : f32 to vector<2x16x16x4xf32>
    %c0_23 = arith.constant 0 : index
    %c0_24 = arith.constant 0 : index
    %c0_25 = arith.constant 0 : index
    %c0_26 = arith.constant 0 : index
    %9 = vector.load %arg5[%c0_23, %c0_24, %c0_25, %c0_26] : memref<2x18x18x4xf32, #tpu.memory_space<vmem>>, vector<2x18x16x4xf32>
    %10 = vector.extract_strided_slice %9 {offsets = [0, 0, 0, 0], sizes = [2, 16, 16, 4], strides = [1, 1, 1, 1]} : vector<2x18x16x4xf32> to vector<2x16x16x4xf32>
    %c0_27 = arith.constant 0 : index
    %c0_28 = arith.constant 0 : index
    %c0_29 = arith.constant 0 : index
    %11 = vector.load %arg1[%c0_27, %c0_28, %c0_29] : memref<9x4x4xf32, #tpu.memory_space<vmem>>, vector<1x4x4xf32>
    %12 = vector.shape_cast %11 : vector<1x4x4xf32> to vector<4x4xf32>
    "tpu.trace_start"() <{level = 10 : i32, message = "nhwc,cd->nhwd"}> : () -> ()
    %cst_30 = arith.constant dense<0.000000e+00> : vector<2x16x16x4xf32>
    %13 = tpu.matmul %10, %12, %cst_30 {dimension_numbers = #tpu.dot_dimension_numbers<[3], [0], [0, 1, 2], [1], [0, 0, 0, 1, 0, 2, 1, 1], [], []>} : vector<2x16x16x4xf32>, vector<4x4xf32>, vector<2x16x16x4xf32> -> vector<2x16x16x4xf32>
    "tpu.trace_stop"() : () -> ()
    %14 = arith.addf %8, %13 : vector<2x16x16x4xf32>
    %15 = vector.extract_strided_slice %9 {offsets = [0, 1, 0, 0], sizes = [2, 16, 16, 4], strides = [1, 1, 1, 1]} : vector<2x18x16x4xf32> to vector<2x16x16x4xf32>
    %c3 = arith.constant 3 : index
    %c0_31 = arith.constant 0 : index
    %c0_32 = arith.constant 0 : index
    %16 = vector.load %arg1[%c3, %c0_31, %c0_32] : memref<9x4x4xf32, #tpu.memory_space<vmem>>, vector<1x4x4xf32>
    %17 = vector.shape_cast %16 : vector<1x4x4xf32> to vector<4x4xf32>
    "tpu.trace_start"() <{level = 10 : i32, message = "nhwc,cd->nhwd"}> : () -> ()
    %cst_33 = arith.constant dense<0.000000e+00> : vector<2x16x16x4xf32>
    %18 = tpu.matmul %15, %17, %cst_33 {dimension_numbers = #tpu.dot_dimension_numbers<[3], [0], [0, 1, 2], [1], [0, 0, 0, 1, 0, 2, 1, 1], [], []>} : vector<2x16x16x4xf32>, vector<4x4xf32>, vector<2x16x16x4xf32> -> vector<2x16x16x4xf32>
    "tpu.trace_stop"() : () -> ()
    %19 = arith.addf %14, %18 : vector<2x16x16x4xf32>
    %20 = vector.extract_strided_slice %9 {offsets = [0, 2, 0, 0], sizes = [2, 16, 16, 4], strides = [1, 1, 1, 1]} : vector<2x18x16x4xf32> to vector<2x16x16x4xf32>
    %c6 = arith.constant 6 : index
    %c0_34 = arith.constant 0 : index
    %c0_35 = arith.constant 0 : index
    %21 = vector.load %arg1[%c6, %c0_34, %c0_35] : memref<9x4x4xf32, #tpu.memory_space<vmem>>, vector<1x4x4xf32>
    %22 = vector.shape_cast %21 : vector<1x4x4xf32> to vector<4x4xf32>
    "tpu.trace_start"() <{level = 10 : i32, message = "nhwc,cd->nhwd"}> : () -> ()
    %cst_36 = arith.constant dense<0.000000e+00> : vector<2x16x16x4xf32>
    %23 = tpu.matmul %20, %22, %cst_36 {dimension_numbers = #tpu.dot_dimension_numbers<[3], [0], [0, 1, 2], [1], [0, 0, 0, 1, 0, 2, 1, 1], [], []>} : vector<2x16x16x4xf32>, vector<4x4xf32>, vector<2x16x16x4xf32> -> vector<2x16x16x4xf32>
    "tpu.trace_stop"() : () -> ()
    %24 = arith.addf %19, %23 : vector<2x16x16x4xf32>
    %c0_37 = arith.constant 0 : index
    %c0_38 = arith.constant 0 : index
    %c1_39 = arith.constant 1 : index
    %c0_40 = arith.constant 0 : index
    %25 = vector.load %arg5[%c0_37, %c0_38, %c1_39, %c0_40] : memref<2x18x18x4xf32, #tpu.memory_space<vmem>>, vector<2x18x16x4xf32>
    %26 = vector.extract_strided_slice %25 {offsets = [0, 0, 0, 0], sizes = [2, 16, 16, 4], strides = [1, 1, 1, 1]} : vector<2x18x16x4xf32> to vector<2x16x16x4xf32>
    %c1_41 = arith.constant 1 : index
    %c0_42 = arith.constant 0 : index
    %c0_43 = arith.constant 0 : index
    %27 = vector.load %arg1[%c1_41, %c0_42, %c0_43] : memref<9x4x4xf32, #tpu.memory_space<vmem>>, vector<1x4x4xf32>
    %28 = vector.shape_cast %27 : vector<1x4x4xf32> to vector<4x4xf32>
    "tpu.trace_start"() <{level = 10 : i32, message = "nhwc,cd->nhwd"}> : () -> ()
    %cst_44 = arith.constant dense<0.000000e+00> : vector<2x16x16x4xf32>
    %29 = tpu.matmul %26, %28, %cst_44 {dimension_numbers = #tpu.dot_dimension_numbers<[3], [0], [0, 1, 2], [1], [0, 0, 0, 1, 0, 2, 1, 1], [], []>} : vector<2x16x16x4xf32>, vector<4x4xf32>, vector<2x16x16x4xf32> -> vector<2x16x16x4xf32>
    "tpu.trace_stop"() : () -> ()
    %30 = arith.addf %24, %29 : vector<2x16x16x4xf32>
    %31 = vector.extract_strided_slice %25 {offsets = [0, 1, 0, 0], sizes = [2, 16, 16, 4], strides = [1, 1, 1, 1]} : vector<2x18x16x4xf32> to vector<2x16x16x4xf32>
    %c4 = arith.constant 4 : index
    %c0_45 = arith.constant 0 : index
    %c0_46 = arith.constant 0 : index
    %32 = vector.load %arg1[%c4, %c0_45, %c0_46] : memref<9x4x4xf32, #tpu.memory_space<vmem>>, vector<1x4x4xf32>
    %33 = vector.shape_cast %32 : vector<1x4x4xf32> to vector<4x4xf32>
    "tpu.trace_start"() <{level = 10 : i32, message = "nhwc,cd->nhwd"}> : () -> ()
    %cst_47 = arith.constant dense<0.000000e+00> : vector<2x16x16x4xf32>
    %34 = tpu.matmul %31, %33, %cst_47 {dimension_numbers = #tpu.dot_dimension_numbers<[3], [0], [0, 1, 2], [1], [0, 0, 0, 1, 0, 2, 1, 1], [], []>} : vector<2x16x16x4xf32>, vector<4x4xf32>, vector<2x16x16x4xf32> -> vector<2x16x16x4xf32>
    "tpu.trace_stop"() : () -> ()
    %35 = arith.addf %30, %34 : vector<2x16x16x4xf32>
    %36 = vector.extract_strided_slice %25 {offsets = [0, 2, 0, 0], sizes = [2, 16, 16, 4], strides = [1, 1, 1, 1]} : vector<2x18x16x4xf32> to vector<2x16x16x4xf32>
    %c7 = arith.constant 7 : index
    %c0_48 = arith.constant 0 : index
    %c0_49 = arith.constant 0 : index
    %37 = vector.load %arg1[%c7, %c0_48, %c0_49] : memref<9x4x4xf32, #tpu.memory_space<vmem>>, vector<1x4x4xf32>
    %38 = vector.shape_cast %37 : vector<1x4x4xf32> to vector<4x4xf32>
    "tpu.trace_start"() <{level = 10 : i32, message = "nhwc,cd->nhwd"}> : () -> ()
    %cst_50 = arith.constant dense<0.000000e+00> : vector<2x16x16x4xf32>
    %39 = tpu.matmul %36, %38, %cst_50 {dimension_numbers = #tpu.dot_dimension_numbers<[3], [0], [0, 1, 2], [1], [0, 0, 0, 1, 0, 2, 1, 1], [], []>} : vector<2x16x16x4xf32>, vector<4x4xf32>, vector<2x16x16x4xf32> -> vector<2x16x16x4xf32>
    "tpu.trace_stop"() : () -> ()
    %40 = arith.addf %35, %39 : vector<2x16x16x4xf32>
    %c0_51 = arith.constant 0 : index
    %c0_52 = arith.constant 0 : index
    %c2 = arith.constant 2 : index
    %c0_53 = arith.constant 0 : index
    %41 = vector.load %arg5[%c0_51, %c0_52, %c2, %c0_53] : memref<2x18x18x4xf32, #tpu.memory_space<vmem>>, vector<2x18x16x4xf32>
    %42 = vector.extract_strided_slice %41 {offsets = [0, 0, 0, 0], sizes = [2, 16, 16, 4], strides = [1, 1, 1, 1]} : vector<2x18x16x4xf32> to vector<2x16x16x4xf32>
    %c2_54 = arith.constant 2 : index
    %c0_55 = arith.constant 0 : index
    %c0_56 = arith.constant 0 : index
    %43 = vector.load %arg1[%c2_54, %c0_55, %c0_56] : memref<9x4x4xf32, #tpu.memory_space<vmem>>, vector<1x4x4xf32>
    %44 = vector.shape_cast %43 : vector<1x4x4xf32> to vector<4x4xf32>
    "tpu.trace_start"() <{level = 10 : i32, message = "nhwc,cd->nhwd"}> : () -> ()
    %cst_57 = arith.constant dense<0.000000e+00> : vector<2x16x16x4xf32>
    %45 = tpu.matmul %42, %44, %cst_57 {dimension_numbers = #tpu.dot_dimension_numbers<[3], [0], [0, 1, 2], [1], [0, 0, 0, 1, 0, 2, 1, 1], [], []>} : vector<2x16x16x4xf32>, vector<4x4xf32>, vector<2x16x16x4xf32> -> vector<2x16x16x4xf32>
    "tpu.trace_stop"() : () -> ()
    %46 = arith.addf %40, %45 : vector<2x16x16x4xf32>
    %47 = vector.extract_strided_slice %41 {offsets = [0, 1, 0, 0], sizes = [2, 16, 16, 4], strides = [1, 1, 1, 1]} : vector<2x18x16x4xf32> to vector<2x16x16x4xf32>
    %c5 = arith.constant 5 : index
    %c0_58 = arith.constant 0 : index
    %c0_59 = arith.constant 0 : index
    %48 = vector.load %arg1[%c5, %c0_58, %c0_59] : memref<9x4x4xf32, #tpu.memory_space<vmem>>, vector<1x4x4xf32>
    %49 = vector.shape_cast %48 : vector<1x4x4xf32> to vector<4x4xf32>
    "tpu.trace_start"() <{level = 10 : i32, message = "nhwc,cd->nhwd"}> : () -> ()
    %cst_60 = arith.constant dense<0.000000e+00> : vector<2x16x16x4xf32>
    %50 = tpu.matmul %47, %49, %cst_60 {dimension_numbers = #tpu.dot_dimension_numbers<[3], [0], [0, 1, 2], [1], [0, 0, 0, 1, 0, 2, 1, 1], [], []>} : vector<2x16x16x4xf32>, vector<4x4xf32>, vector<2x16x16x4xf32> -> vector<2x16x16x4xf32>
    "tpu.trace_stop"() : () -> ()
    %51 = arith.addf %46, %50 : vector<2x16x16x4xf32>
    %52 = vector.extract_strided_slice %41 {offsets = [0, 2, 0, 0], sizes = [2, 16, 16, 4], strides = [1, 1, 1, 1]} : vector<2x18x16x4xf32> to vector<2x16x16x4xf32>
    %c8 = arith.constant 8 : index
    %c0_61 = arith.constant 0 : index
    %c0_62 = arith.constant 0 : index
    %53 = vector.load %arg1[%c8, %c0_61, %c0_62] : memref<9x4x4xf32, #tpu.memory_space<vmem>>, vector<1x4x4xf32>
    %54 = vector.shape_cast %53 : vector<1x4x4xf32> to vector<4x4xf32>
    "tpu.trace_start"() <{level = 10 : i32, message = "nhwc,cd->nhwd"}> : () -> ()
    %cst_63 = arith.constant dense<0.000000e+00> : vector<2x16x16x4xf32>
    %55 = tpu.matmul %52, %54, %cst_63 {dimension_numbers = #tpu.dot_dimension_numbers<[3], [0], [0, 1, 2], [1], [0, 0, 0, 1, 0, 2, 1, 1], [], []>} : vector<2x16x16x4xf32>, vector<4x4xf32>, vector<2x16x16x4xf32> -> vector<2x16x16x4xf32>
    "tpu.trace_stop"() : () -> ()
    %56 = arith.addf %51, %55 : vector<2x16x16x4xf32>
    %c0_64 = arith.constant 0 : index
    %c0_65 = arith.constant 0 : index
    %c0_66 = arith.constant 0 : index
    %c0_67 = arith.constant 0 : index
    %c0_68 = arith.constant 0 : index
    %57 = vector.load %arg3[%c0_64, %c0_65, %c0_66, %c0_67, %c0_68] : memref<4x1x1x1x4xf32, #tpu.memory_space<vmem>>, vector<1x1x1x1x4xf32>
    %58 = vector.shape_cast %57 : vector<1x1x1x1x4xf32> to vector<1x1x1x4xf32>
    %c1_69 = arith.constant 1 : index
    %c0_70 = arith.constant 0 : index
    %c0_71 = arith.constant 0 : index
    %c0_72 = arith.constant 0 : index
    %c0_73 = arith.constant 0 : index
    %59 = vector.load %arg3[%c1_69, %c0_70, %c0_71, %c0_72, %c0_73] : memref<4x1x1x1x4xf32, #tpu.memory_space<vmem>>, vector<1x1x1x1x4xf32>
    %60 = vector.shape_cast %59 : vector<1x1x1x1x4xf32> to vector<1x1x1x4xf32>
    %cst_74 = arith.constant dense<0.000000e+00> : vector<4xf32>
    %61 = vector.multi_reduction <add>, %56, %cst_74 [0, 1, 2] : vector<2x16x16x4xf32> to vector<4xf32>
    %62 = vector.shape_cast %61 : vector<4xf32> to vector<1x1x1x4xf32>
    %63 = arith.mulf %56, %56 : vector<2x16x16x4xf32>
    %cst_75 = arith.constant dense<0.000000e+00> : vector<4xf32>
    %64 = vector.multi_reduction <add>, %63, %cst_75 [0, 1, 2] : vector<2x16x16x4xf32> to vector<4xf32>
    %65 = vector.shape_cast %64 : vector<4xf32> to vector<1x1x1x4xf32>
    %cst_76 = arith.constant 0.001953125 : f32
    %66 = vector.broadcast %cst_76 : f32 to vector<1x1x1x4xf32>
    %67 = arith.mulf %62, %66 : vector<1x1x1x4xf32>
    %cst_77 = arith.constant 0.001953125 : f32
    %68 = vector.broadcast %cst_77 : f32 to vector<1x1x1x4xf32>
    %69 = arith.mulf %65, %68 : vector<1x1x1x4xf32>
    %70 = arith.mulf %67, %67 : vector<1x1x1x4xf32>
    %71 = arith.subf %69, %70 : vector<1x1x1x4xf32>
    %cst_78 = arith.constant 9.99999974E-6 : f32
    %72 = vector.broadcast %cst_78 : f32 to vector<1x1x1x4xf32>
    %73 = arith.addf %71, %72 : vector<1x1x1x4xf32>
    %74 = math.rsqrt %73 : vector<1x1x1x4xf32>
    %75 = arith.mulf %58, %74 : vector<1x1x1x4xf32>
    %76 = arith.mulf %67, %75 : vector<1x1x1x4xf32>
    %77 = arith.subf %60, %76 : vector<1x1x1x4xf32>
    %78 = vector.broadcast %75 : vector<1x1x1x4xf32> to vector<2x16x16x4xf32>
    %79 = arith.mulf %56, %78 : vector<2x16x16x4xf32>
    %80 = vector.broadcast %77 : vector<1x1x1x4xf32> to vector<2x16x16x4xf32>
    %81 = arith.addf %79, %80 : vector<2x16x16x4xf32>
    %cst_79 = arith.constant 0.000000e+00 : f32
    %82 = vector.broadcast %cst_79 : f32 to vector<2x16x16x4xf32>
    %83 = arith.maximumf %81, %82 : vector<2x16x16x4xf32>
    %c0_80 = arith.constant 0 : index
    %c1_81 = arith.constant 1 : index
    %c1_82 = arith.constant 1 : index
    %c0_83 = arith.constant 0 : index
    %84 = vector.load %arg5[%c0_80, %c1_81, %c1_82, %c0_83] : memref<2x18x18x4xf32, #tpu.memory_space<vmem>>, vector<2x16x16x4xf32>
    tpu.vector_store %arg5[%c0_80, %c1_81, %c1_82, %c0_83], %83 {strides = array<i32>} : memref<2x18x18x4xf32, #tpu.memory_space<vmem>>, vector<2x16x16x4xf32>,
    %cst_84 = arith.constant 0.000000e+00 : f32
    %85 = vector.broadcast %cst_84 : f32 to vector<2x16x16x4xf32>
    %c0_85 = arith.constant 0 : index
    %c0_86 = arith.constant 0 : index
    %c0_87 = arith.constant 0 : index
    %c0_88 = arith.constant 0 : index
    %86 = vector.load %arg5[%c0_85, %c0_86, %c0_87, %c0_88] : memref<2x18x18x4xf32, #tpu.memory_space<vmem>>, vector<2x18x16x4xf32>
    %87 = vector.extract_strided_slice %86 {offsets = [0, 0, 0, 0], sizes = [2, 16, 16, 4], strides = [1, 1, 1, 1]} : vector<2x18x16x4xf32> to vector<2x16x16x4xf32>
    %c0_89 = arith.constant 0 : index
    %c0_90 = arith.constant 0 : index
    %c0_91 = arith.constant 0 : index
    %88 = vector.load %arg2[%c0_89, %c0_90, %c0_91] : memref<9x4x4xf32, #tpu.memory_space<vmem>>, vector<1x4x4xf32>
    %89 = vector.shape_cast %88 : vector<1x4x4xf32> to vector<4x4xf32>
    "tpu.trace_start"() <{level = 10 : i32, message = "nhwc,cd->nhwd"}> : () -> ()
    %cst_92 = arith.constant dense<0.000000e+00> : vector<2x16x16x4xf32>
    %90 = tpu.matmul %87, %89, %cst_92 {dimension_numbers = #tpu.dot_dimension_numbers<[3], [0], [0, 1, 2], [1], [0, 0, 0, 1, 0, 2, 1, 1], [], []>} : vector<2x16x16x4xf32>, vector<4x4xf32>, vector<2x16x16x4xf32> -> vector<2x16x16x4xf32>
    "tpu.trace_stop"() : () -> ()
    %91 = arith.addf %85, %90 : vector<2x16x16x4xf32>
    %92 = vector.extract_strided_slice %86 {offsets = [0, 1, 0, 0], sizes = [2, 16, 16, 4], strides = [1, 1, 1, 1]} : vector<2x18x16x4xf32> to vector<2x16x16x4xf32>
    %c3_93 = arith.constant 3 : index
    %c0_94 = arith.constant 0 : index
    %c0_95 = arith.constant 0 : index
    %93 = vector.load %arg2[%c3_93, %c0_94, %c0_95] : memref<9x4x4xf32, #tpu.memory_space<vmem>>, vector<1x4x4xf32>
    %94 = vector.shape_cast %93 : vector<1x4x4xf32> to vector<4x4xf32>
    "tpu.trace_start"() <{level = 10 : i32, message = "nhwc,cd->nhwd"}> : () -> ()
    %cst_96 = arith.constant dense<0.000000e+00> : vector<2x16x16x4xf32>
    %95 = tpu.matmul %92, %94, %cst_96 {dimension_numbers = #tpu.dot_dimension_numbers<[3], [0], [0, 1, 2], [1], [0, 0, 0, 1, 0, 2, 1, 1], [], []>} : vector<2x16x16x4xf32>, vector<4x4xf32>, vector<2x16x16x4xf32> -> vector<2x16x16x4xf32>
    "tpu.trace_stop"() : () -> ()
    %96 = arith.addf %91, %95 : vector<2x16x16x4xf32>
    %97 = vector.extract_strided_slice %86 {offsets = [0, 2, 0, 0], sizes = [2, 16, 16, 4], strides = [1, 1, 1, 1]} : vector<2x18x16x4xf32> to vector<2x16x16x4xf32>
    %c6_97 = arith.constant 6 : index
    %c0_98 = arith.constant 0 : index
    %c0_99 = arith.constant 0 : index
    %98 = vector.load %arg2[%c6_97, %c0_98, %c0_99] : memref<9x4x4xf32, #tpu.memory_space<vmem>>, vector<1x4x4xf32>
    %99 = vector.shape_cast %98 : vector<1x4x4xf32> to vector<4x4xf32>
    "tpu.trace_start"() <{level = 10 : i32, message = "nhwc,cd->nhwd"}> : () -> ()
    %cst_100 = arith.constant dense<0.000000e+00> : vector<2x16x16x4xf32>
    %100 = tpu.matmul %97, %99, %cst_100 {dimension_numbers = #tpu.dot_dimension_numbers<[3], [0], [0, 1, 2], [1], [0, 0, 0, 1, 0, 2, 1, 1], [], []>} : vector<2x16x16x4xf32>, vector<4x4xf32>, vector<2x16x16x4xf32> -> vector<2x16x16x4xf32>
    "tpu.trace_stop"() : () -> ()
    %101 = arith.addf %96, %100 : vector<2x16x16x4xf32>
    %c0_101 = arith.constant 0 : index
    %c0_102 = arith.constant 0 : index
    %c1_103 = arith.constant 1 : index
    %c0_104 = arith.constant 0 : index
    %102 = vector.load %arg5[%c0_101, %c0_102, %c1_103, %c0_104] : memref<2x18x18x4xf32, #tpu.memory_space<vmem>>, vector<2x18x16x4xf32>
    %103 = vector.extract_strided_slice %102 {offsets = [0, 0, 0, 0], sizes = [2, 16, 16, 4], strides = [1, 1, 1, 1]} : vector<2x18x16x4xf32> to vector<2x16x16x4xf32>
    %c1_105 = arith.constant 1 : index
    %c0_106 = arith.constant 0 : index
    %c0_107 = arith.constant 0 : index
    %104 = vector.load %arg2[%c1_105, %c0_106, %c0_107] : memref<9x4x4xf32, #tpu.memory_space<vmem>>, vector<1x4x4xf32>
    %105 = vector.shape_cast %104 : vector<1x4x4xf32> to vector<4x4xf32>
    "tpu.trace_start"() <{level = 10 : i32, message = "nhwc,cd->nhwd"}> : () -> ()
    %cst_108 = arith.constant dense<0.000000e+00> : vector<2x16x16x4xf32>
    %106 = tpu.matmul %103, %105, %cst_108 {dimension_numbers = #tpu.dot_dimension_numbers<[3], [0], [0, 1, 2], [1], [0, 0, 0, 1, 0, 2, 1, 1], [], []>} : vector<2x16x16x4xf32>, vector<4x4xf32>, vector<2x16x16x4xf32> -> vector<2x16x16x4xf32>
    "tpu.trace_stop"() : () -> ()
    %107 = arith.addf %101, %106 : vector<2x16x16x4xf32>
    %108 = vector.extract_strided_slice %102 {offsets = [0, 1, 0, 0], sizes = [2, 16, 16, 4], strides = [1, 1, 1, 1]} : vector<2x18x16x4xf32> to vector<2x16x16x4xf32>
    %c4_109 = arith.constant 4 : index
    %c0_110 = arith.constant 0 : index
    %c0_111 = arith.constant 0 : index
    %109 = vector.load %arg2[%c4_109, %c0_110, %c0_111] : memref<9x4x4xf32, #tpu.memory_space<vmem>>, vector<1x4x4xf32>
    %110 = vector.shape_cast %109 : vector<1x4x4xf32> to vector<4x4xf32>
    "tpu.trace_start"() <{level = 10 : i32, message = "nhwc,cd->nhwd"}> : () -> ()
    %cst_112 = arith.constant dense<0.000000e+00> : vector<2x16x16x4xf32>
    %111 = tpu.matmul %108, %110, %cst_112 {dimension_numbers = #tpu.dot_dimension_numbers<[3], [0], [0, 1, 2], [1], [0, 0, 0, 1, 0, 2, 1, 1], [], []>} : vector<2x16x16x4xf32>, vector<4x4xf32>, vector<2x16x16x4xf32> -> vector<2x16x16x4xf32>
    "tpu.trace_stop"() : () -> ()
    %112 = arith.addf %107, %111 : vector<2x16x16x4xf32>
    %113 = vector.extract_strided_slice %102 {offsets = [0, 2, 0, 0], sizes = [2, 16, 16, 4], strides = [1, 1, 1, 1]} : vector<2x18x16x4xf32> to vector<2x16x16x4xf32>
    %c7_113 = arith.constant 7 : index
    %c0_114 = arith.constant 0 : index
    %c0_115 = arith.constant 0 : index
    %114 = vector.load %arg2[%c7_113, %c0_114, %c0_115] : memref<9x4x4xf32, #tpu.memory_space<vmem>>, vector<1x4x4xf32>
    %115 = vector.shape_cast %114 : vector<1x4x4xf32> to vector<4x4xf32>
    "tpu.trace_start"() <{level = 10 : i32, message = "nhwc,cd->nhwd"}> : () -> ()
    %cst_116 = arith.constant dense<0.000000e+00> : vector<2x16x16x4xf32>
    %116 = tpu.matmul %113, %115, %cst_116 {dimension_numbers = #tpu.dot_dimension_numbers<[3], [0], [0, 1, 2], [1], [0, 0, 0, 1, 0, 2, 1, 1], [], []>} : vector<2x16x16x4xf32>, vector<4x4xf32>, vector<2x16x16x4xf32> -> vector<2x16x16x4xf32>
    "tpu.trace_stop"() : () -> ()
    %117 = arith.addf %112, %116 : vector<2x16x16x4xf32>
    %c0_117 = arith.constant 0 : index
    %c0_118 = arith.constant 0 : index
    %c2_119 = arith.constant 2 : index
    %c0_120 = arith.constant 0 : index
    %118 = vector.load %arg5[%c0_117, %c0_118, %c2_119, %c0_120] : memref<2x18x18x4xf32, #tpu.memory_space<vmem>>, vector<2x18x16x4xf32>
    %119 = vector.extract_strided_slice %118 {offsets = [0, 0, 0, 0], sizes = [2, 16, 16, 4], strides = [1, 1, 1, 1]} : vector<2x18x16x4xf32> to vector<2x16x16x4xf32>
    %c2_121 = arith.constant 2 : index
    %c0_122 = arith.constant 0 : index
    %c0_123 = arith.constant 0 : index
    %120 = vector.load %arg2[%c2_121, %c0_122, %c0_123] : memref<9x4x4xf32, #tpu.memory_space<vmem>>, vector<1x4x4xf32>
    %121 = vector.shape_cast %120 : vector<1x4x4xf32> to vector<4x4xf32>
    "tpu.trace_start"() <{level = 10 : i32, message = "nhwc,cd->nhwd"}> : () -> ()
    %cst_124 = arith.constant dense<0.000000e+00> : vector<2x16x16x4xf32>
    %122 = tpu.matmul %119, %121, %cst_124 {dimension_numbers = #tpu.dot_dimension_numbers<[3], [0], [0, 1, 2], [1], [0, 0, 0, 1, 0, 2, 1, 1], [], []>} : vector<2x16x16x4xf32>, vector<4x4xf32>, vector<2x16x16x4xf32> -> vector<2x16x16x4xf32>
    "tpu.trace_stop"() : () -> ()
    %123 = arith.addf %117, %122 : vector<2x16x16x4xf32>
    %124 = vector.extract_strided_slice %118 {offsets = [0, 1, 0, 0], sizes = [2, 16, 16, 4], strides = [1, 1, 1, 1]} : vector<2x18x16x4xf32> to vector<2x16x16x4xf32>
    %c5_125 = arith.constant 5 : index
    %c0_126 = arith.constant 0 : index
    %c0_127 = arith.constant 0 : index
    %125 = vector.load %arg2[%c5_125, %c0_126, %c0_127] : memref<9x4x4xf32, #tpu.memory_space<vmem>>, vector<1x4x4xf32>
    %126 = vector.shape_cast %125 : vector<1x4x4xf32> to vector<4x4xf32>
    "tpu.trace_start"() <{level = 10 : i32, message = "nhwc,cd->nhwd"}> : () -> ()
    %cst_128 = arith.constant dense<0.000000e+00> : vector<2x16x16x4xf32>
    %127 = tpu.matmul %124, %126, %cst_128 {dimension_numbers = #tpu.dot_dimension_numbers<[3], [0], [0, 1, 2], [1], [0, 0, 0, 1, 0, 2, 1, 1], [], []>} : vector<2x16x16x4xf32>, vector<4x4xf32>, vector<2x16x16x4xf32> -> vector<2x16x16x4xf32>
    "tpu.trace_stop"() : () -> ()
    %128 = arith.addf %123, %127 : vector<2x16x16x4xf32>
    %129 = vector.extract_strided_slice %118 {offsets = [0, 2, 0, 0], sizes = [2, 16, 16, 4], strides = [1, 1, 1, 1]} : vector<2x18x16x4xf32> to vector<2x16x16x4xf32>
    %c8_129 = arith.constant 8 : index
    %c0_130 = arith.constant 0 : index
    %c0_131 = arith.constant 0 : index
    %130 = vector.load %arg2[%c8_129, %c0_130, %c0_131] : memref<9x4x4xf32, #tpu.memory_space<vmem>>, vector<1x4x4xf32>
    %131 = vector.shape_cast %130 : vector<1x4x4xf32> to vector<4x4xf32>
    "tpu.trace_start"() <{level = 10 : i32, message = "nhwc,cd->nhwd"}> : () -> ()
    %cst_132 = arith.constant dense<0.000000e+00> : vector<2x16x16x4xf32>
    %132 = tpu.matmul %129, %131, %cst_132 {dimension_numbers = #tpu.dot_dimension_numbers<[3], [0], [0, 1, 2], [1], [0, 0, 0, 1, 0, 2, 1, 1], [], []>} : vector<2x16x16x4xf32>, vector<4x4xf32>, vector<2x16x16x4xf32> -> vector<2x16x16x4xf32>
    "tpu.trace_stop"() : () -> ()
    %133 = arith.addf %128, %132 : vector<2x16x16x4xf32>
    %c2_133 = arith.constant 2 : index
    %c0_134 = arith.constant 0 : index
    %c0_135 = arith.constant 0 : index
    %c0_136 = arith.constant 0 : index
    %c0_137 = arith.constant 0 : index
    %134 = vector.load %arg3[%c2_133, %c0_134, %c0_135, %c0_136, %c0_137] : memref<4x1x1x1x4xf32, #tpu.memory_space<vmem>>, vector<1x1x1x1x4xf32>
    %135 = vector.shape_cast %134 : vector<1x1x1x1x4xf32> to vector<1x1x1x4xf32>
    %c3_138 = arith.constant 3 : index
    %c0_139 = arith.constant 0 : index
    %c0_140 = arith.constant 0 : index
    %c0_141 = arith.constant 0 : index
    %c0_142 = arith.constant 0 : index
    %136 = vector.load %arg3[%c3_138, %c0_139, %c0_140, %c0_141, %c0_142] : memref<4x1x1x1x4xf32, #tpu.memory_space<vmem>>, vector<1x1x1x1x4xf32>
    %137 = vector.shape_cast %136 : vector<1x1x1x1x4xf32> to vector<1x1x1x4xf32>
    %cst_143 = arith.constant dense<0.000000e+00> : vector<4xf32>
    %138 = vector.multi_reduction <add>, %133, %cst_143 [0, 1, 2] : vector<2x16x16x4xf32> to vector<4xf32>
    %139 = vector.shape_cast %138 : vector<4xf32> to vector<1x1x1x4xf32>
    %140 = arith.mulf %133, %133 : vector<2x16x16x4xf32>
    %cst_144 = arith.constant dense<0.000000e+00> : vector<4xf32>
    %141 = vector.multi_reduction <add>, %140, %cst_144 [0, 1, 2] : vector<2x16x16x4xf32> to vector<4xf32>
    %142 = vector.shape_cast %141 : vector<4xf32> to vector<1x1x1x4xf32>
    %cst_145 = arith.constant 0.001953125 : f32
    %143 = vector.broadcast %cst_145 : f32 to vector<1x1x1x4xf32>
    %144 = arith.mulf %139, %143 : vector<1x1x1x4xf32>
    %cst_146 = arith.constant 0.001953125 : f32
    %145 = vector.broadcast %cst_146 : f32 to vector<1x1x1x4xf32>
    %146 = arith.mulf %142, %145 : vector<1x1x1x4xf32>
    %147 = arith.mulf %144, %144 : vector<1x1x1x4xf32>
    %148 = arith.subf %146, %147 : vector<1x1x1x4xf32>
    %cst_147 = arith.constant 9.99999974E-6 : f32
    %149 = vector.broadcast %cst_147 : f32 to vector<1x1x1x4xf32>
    %150 = arith.addf %148, %149 : vector<1x1x1x4xf32>
    %151 = math.rsqrt %150 : vector<1x1x1x4xf32>
    %152 = arith.mulf %135, %151 : vector<1x1x1x4xf32>
    %153 = arith.mulf %144, %152 : vector<1x1x1x4xf32>
    %154 = arith.subf %137, %153 : vector<1x1x1x4xf32>
    %155 = vector.broadcast %152 : vector<1x1x1x4xf32> to vector<2x16x16x4xf32>
    %156 = arith.mulf %133, %155 : vector<2x16x16x4xf32>
    %157 = vector.broadcast %154 : vector<1x1x1x4xf32> to vector<2x16x16x4xf32>
    %158 = arith.addf %156, %157 : vector<2x16x16x4xf32>
    %c0_148 = arith.constant 0 : index
    %c0_149 = arith.constant 0 : index
    %c0_150 = arith.constant 0 : index
    %c0_151 = arith.constant 0 : index
    %159 = vector.load %arg0[%c0_148, %c0_149, %c0_150, %c0_151] : memref<2x16x16x4xf32, #tpu.memory_space<vmem>>, vector<2x16x16x4xf32>
    %160 = arith.addf %159, %158 : vector<2x16x16x4xf32>
    %c0_152 = arith.constant 0 : index
    %c0_153 = arith.constant 0 : index
    %c0_154 = arith.constant 0 : index
    %c0_155 = arith.constant 0 : index
    %161 = vector.load %arg4[%c0_152, %c0_153, %c0_154, %c0_155] : memref<2x16x16x4xf32, #tpu.memory_space<vmem>>, vector<2x16x16x4xf32>
    tpu.vector_store %arg4[%c0_152, %c0_153, %c0_154, %c0_155], %160 {strides = array<i32>} : memref<2x16x16x4xf32, #tpu.memory_space<vmem>>, vector<2x16x16x4xf32>,
    return
  }
}

</mosaic_0001>

<llo_original>
// kernel: tpu_custom_call.1
$region0: #{tpu_custom_call.1}
  #allocation0 [shape = 'u32[]', space=smem, size = 0x4, offset = 0x4, fixed_abs, tag = 'smem constant byte address 0x4 - core index']
  #allocation1 [shape = 'u32[144,128]{1,0:T(1,128)}', space=vmem, size = 0x12000, scoped, tag = 'internal scratch']
  #allocation2 [shape = 'f32[2,18,18,4]{3,2,1,0:T(8,128)}', space=vmem, size = 0x6c000, scoped, tag = 'scratch operand']
  %s0 = inlined_call_operand.vmem [shape: f32[2,16,16,4], index: 0, kind: input, shape index: {}]
  %s1 = inlined_call_operand.vmem [shape: f32[9,4,4], index: 1, kind: input, shape index: {}]
  %s2 = inlined_call_operand.vmem [shape: f32[9,4,4], index: 2, kind: input, shape index: {}]
  %s3 = inlined_call_operand.vmem [shape: f32[4,1,1,1,4], index: 3, kind: input, shape index: {}]
  %s4 = inlined_call_operand.vmem [shape: f32[2,16,16,4], index: 4, kind: output, shape index: {}]
  %s5 = sld [smem:[#allocation0]]
  $region26: #{tpu_custom_call.1} parent=0
    _
  %s7 = ssub.s32 1, %s5
  %s8 = scalar_select 0, %s7, %s5
  // Predicated region
  $region2: #{tpu_custom_call.1} parent=0 // pred_check
    _
  $region3: #{tpu_custom_call.1} parent=0 // pred_check_branch
    %10 = sbr.rel (0) target = $region5
  $region4: #{tpu_custom_call.1} parent=0 // pred_region
    _
  $region5: #{tpu_custom_call.1} parent=0 // pred_fallthru
    _
  // Predicated region
  $region6: #{tpu_custom_call.1} parent=0 // pred_check
    _
  $region7: #{tpu_custom_call.1} parent=0 // pred_check_branch
    %12 = sbr.rel (0) target = $region9
  $region8: #{tpu_custom_call.1} parent=0 // pred_region
    _
  $region9: #{tpu_custom_call.1} parent=0 // pred_fallthru
    _
  // Predicated region
  $region10: #{tpu_custom_call.1} parent=0 // pred_check
    _
  $region11: #{tpu_custom_call.1} parent=0 // pred_check_branch
    %14 = sbr.rel (0) target = $region13
  $region12: #{tpu_custom_call.1} parent=0 // pred_region
    _
  $region13: #{tpu_custom_call.1} parent=0 // pred_fallthru
    _
  // Predicated region
  $region14: #{tpu_custom_call.1} parent=0 // pred_check
    _
  $region15: #{tpu_custom_call.1} parent=0 // pred_check_branch
    %16 = sbr.rel (0) target = $region17
  $region16: #{tpu_custom_call.1} parent=0 // pred_region
    _
  $region17: #{tpu_custom_call.1} parent=0 // pred_fallthru
    _
  %vm17 = vcmask 24576
  %18 = vst.msk [vmem:[#allocation2] sm:$0x1] %vm17, 0.0
  %19 = vst.msk [vmem:[#allocation2 + $0x18] sm:$0x1] %vm17, 0.0
  %20 = vst.msk [vmem:[#allocation2 + $0x30] sm:$0x1] %vm17, 0.0
  %21 = vst.msk [vmem:[#allocation2 + $0x48] sm:$0x1] %vm17, 0.0
  %22 = vst.msk [vmem:[#allocation2 + $0x60] sm:$0x1] %vm17, 0.0
  %23 = vst.msk [vmem:[#allocation2 + $0x78] sm:$0x1] %vm17, 0.0
  %24 = vst.msk [vmem:[#allocation2 + $0x90] sm:$0x1] %vm17, 0.0
  %25 = vst.msk [vmem:[#allocation2 + $0xa8] sm:$0x1] %vm17, 0.0
  %26 = vst.msk [vmem:[#allocation2 + $0xc0] sm:$0x1] %vm17, 0.0
  %27 = vst.msk [vmem:[#allocation2 + $0xd8] sm:$0x1] %vm17, 0.0
  %28 = vst.msk [vmem:[#allocation2 + $0xf0] sm:$0x1] %vm17, 0.0
  %29 = vst.msk [vmem:[#allocation2 + $0x108] sm:$0x1] %vm17, 0.0
  %30 = vst.msk [vmem:[#allocation2 + $0x120] sm:$0x1] %vm17, 0.0
  %31 = vst.msk [vmem:[#allocation2 + $0x138] sm:$0x1] %vm17, 0.0
  %32 = vst.msk [vmem:[#allocation2 + $0x150] sm:$0x1] %vm17, 0.0
  %33 = vst.msk [vmem:[#allocation2 + $0x168] sm:$0x1] %vm17, 0.0
  %34 = vst.msk [vmem:[#allocation2 + $0x180] sm:$0x1] %vm17, 0.0
  %35 = vst.msk [vmem:[#allocation2 + $0x198] sm:$0x1] %vm17, 0.0
  %36 = vst.msk [vmem:[#allocation2 + $0x1b0] sm:$0x1] %vm17, 0.0
  %37 = vst.msk [vmem:[#allocation2 + $0x1c8] sm:$0x1] %vm17, 0.0
  %38 = vst.msk [vmem:[#allocation2 + $0x1e0] sm:$0x1] %vm17, 0.0
  %39 = vst.msk [vmem:[#allocation2 + $0x1f8] sm:$0x1] %vm17, 0.0
  %40 = vst.msk [vmem:[#allocation2 + $0x210] sm:$0x1] %vm17, 0.0
  %41 = vst.msk [vmem:[#allocation2 + $0x228] sm:$0x1] %vm17, 0.0
  %42 = vst.msk [vmem:[#allocation2 + $0x240] sm:$0x1] %vm17, 0.0
  %43 = vst.msk [vmem:[#allocation2 + $0x258] sm:$0x1] %vm17, 0.0
  %44 = vst.msk [vmem:[#allocation2 + $0x270] sm:$0x1] %vm17, 0.0
  %45 = vst.msk [vmem:[#allocation2 + $0x288] sm:$0x1] %vm17, 0.0
  %46 = vst.msk [vmem:[#allocation2 + $0x2a0] sm:$0x1] %vm17, 0.0
  %47 = vst.msk [vmem:[#allocation2 + $0x2b8] sm:$0x1] %vm17, 0.0
  %48 = vst.msk [vmem:[#allocation2 + $0x2d0] sm:$0x1] %vm17, 0.0
  %49 = vst.msk [vmem:[#allocation2 + $0x2e8] sm:$0x1] %vm17, 0.0
  %50 = vst.msk [vmem:[#allocation2 + $0x300] sm:$0x1] %vm17, 0.0
  %51 = vst.msk [vmem:[#allocation2 + $0x318] sm:$0x1] %vm17, 0.0
  %52 = vst.msk [vmem:[#allocation2 + $0x330] sm:$0x1] %vm17, 0.0
  %53 = vst.msk [vmem:[#allocation2 + $0x348] sm:$0x1] %vm17, 0.0
  %54 = vst.msk [vmem:[#allocation2 + $0x11] sm:$0x1] %vm17, 0.0
  %55 = vst.msk [vmem:[#allocation2 + $0x29] sm:$0x1] %vm17, 0.0
  %56 = vst.msk [vmem:[#allocation2 + $0x41] sm:$0x1] %vm17, 0.0
  %57 = vst.msk [vmem:[#allocation2 + $0x59] sm:$0x1] %vm17, 0.0
  %58 = vst.msk [vmem:[#allocation2 + $0x71] sm:$0x1] %vm17, 0.0
  %59 = vst.msk [vmem:[#allocation2 + $0x89] sm:$0x1] %vm17, 0.0
  %60 = vst.msk [vmem:[#allocation2 + $0xa1] sm:$0x1] %vm17, 0.0
  %61 = vst.msk [vmem:[#allocation2 + $0xb9] sm:$0x1] %vm17, 0.0
  %62 = vst.msk [vmem:[#allocation2 + $0xd1] sm:$0x1] %vm17, 0.0
  %63 = vst.msk [vmem:[#allocation2 + $0xe9] sm:$0x1] %vm17, 0.0
  %64 = vst.msk [vmem:[#allocation2 + $0x101] sm:$0x1] %vm17, 0.0
  %65 = vst.msk [vmem:[#allocation2 + $0x119] sm:$0x1] %vm17, 0.0
  %66 = vst.msk [vmem:[#allocation2 + $0x131] sm:$0x1] %vm17, 0.0
  %67 = vst.msk [vmem:[#allocation2 + $0x149] sm:$0x1] %vm17, 0.0
  %68 = vst.msk [vmem:[#allocation2 + $0x161] sm:$0x1] %vm17, 0.0
  %69 = vst.msk [vmem:[#allocation2 + $0x179] sm:$0x1] %vm17, 0.0
  %70 = vst.msk [vmem:[#allocation2 + $0x191] sm:$0x1] %vm17, 0.0
  %71 = vst.msk [vmem:[#allocation2 + $0x1a9] sm:$0x1] %vm17, 0.0
  %72 = vst.msk [vmem:[#allocation2 + $0x1c1] sm:$0x1] %vm17, 0.0
  %73 = vst.msk [vmem:[#allocation2 + $0x1d9] sm:$0x1] %vm17, 0.0
  %74 = vst.msk [vmem:[#allocation2 + $0x1f1] sm:$0x1] %vm17, 0.0
  %75 = vst.msk [vmem:[#allocation2 + $0x209] sm:$0x1] %vm17, 0.0
  %76 = vst.msk [vmem:[#allocation2 + $0x221] sm:$0x1] %vm17, 0.0
  %77 = vst.msk [vmem:[#allocation2 + $0x239] sm:$0x1] %vm17, 0.0
  %78 = vst.msk [vmem:[#allocation2 + $0x251] sm:$0x1] %vm17, 0.0
  %79 = vst.msk [vmem:[#allocation2 + $0x269] sm:$0x1] %vm17, 0.0
  %80 = vst.msk [vmem:[#allocation2 + $0x281] sm:$0x1] %vm17, 0.0
  %81 = vst.msk [vmem:[#allocation2 + $0x299] sm:$0x1] %vm17, 0.0
  %82 = vst.msk [vmem:[#allocation2 + $0x2b1] sm:$0x1] %vm17, 0.0
  %83 = vst.msk [vmem:[#allocation2 + $0x2c9] sm:$0x1] %vm17, 0.0
  %84 = vst.msk [vmem:[#allocation2 + $0x2e1] sm:$0x1] %vm17, 0.0
  %85 = vst.msk [vmem:[#allocation2 + $0x2f9] sm:$0x1] %vm17, 0.0
  %86 = vst.msk [vmem:[#allocation2 + $0x311] sm:$0x1] %vm17, 0.0
  %87 = vst.msk [vmem:[#allocation2 + $0x329] sm:$0x1] %vm17, 0.0
  %88 = vst.msk [vmem:[#allocation2 + $0x341] sm:$0x1] %vm17, 0.0
  %89 = vst.msk [vmem:[#allocation2 + $0x359] sm:$0x1] %vm17, 0.0
  %vm90 = vcmask 31744
  %91 = vst.msk [vmem:[#allocation2] sm:$0xff] %vm90, 0.0
  %92 = vst.msk [vmem:[#allocation2 + $0x8] sm:$0xff] %vm90, 0.0
  %vm93 = vcmask 25600
  %94 = vst.msk [vmem:[#allocation2 + $0x10] sm:$0x3] %vm93, 0.0
  %95 = vst.msk [vmem:[#allocation2 + $0x1b0] sm:$0xff] %vm90, 0.0
  %96 = vst.msk [vmem:[#allocation2 + $0x1b8] sm:$0xff] %vm90, 0.0
  %97 = vst.msk [vmem:[#allocation2 + $0x1c0] sm:$0x3] %vm93, 0.0
  %s98 = scalar_lea.vmem [#allocation2], 408
  %99 = vst.msk [vmem:[%s98] sm:$0xff] %vm90, 0.0
  %100 = vst.msk [vmem:[%s98 + $0x8] sm:$0xff] %vm90, 0.0
  %101 = vst.msk [vmem:[%s98 + $0x10] sm:$0x3] %vm93, 0.0
  %102 = vst.msk [vmem:[%s98 + $0x1b0] sm:$0xff] %vm90, 0.0
  %103 = vst.msk [vmem:[%s98 + $0x1b8] sm:$0xff] %vm90, 0.0
  %104 = vst.msk [vmem:[%s98 + $0x1c0] sm:$0x3] %vm93, 0.0
  %v105 = vld [vmem:[%s0] sm:$0xff]
  %v106 = vld [vmem:[%s0 + $0x8] sm:$0xff]
  %v107 = vld [vmem:[%s0 + $0x10] sm:$0xff]
  %v108 = vld [vmem:[%s0 + $0x18] sm:$0xff]
  %v109 = vld [vmem:[%s0 + $0x20] sm:$0xff]
  %v110 = vld [vmem:[%s0 + $0x28] sm:$0xff]
  %v111 = vld [vmem:[%s0 + $0x30] sm:$0xff]
  %v112 = vld [vmem:[%s0 + $0x38] sm:$0xff]
  %v113 = vld [vmem:[%s0 + $0x40] sm:$0xff]
  %v114 = vld [vmem:[%s0 + $0x48] sm:$0xff]
  %v115 = vld [vmem:[%s0 + $0x50] sm:$0xff]
  %v116 = vld [vmem:[%s0 + $0x58] sm:$0xff]
  %v117 = vld [vmem:[%s0 + $0x60] sm:$0xff]
  %v118 = vld [vmem:[%s0 + $0x68] sm:$0xff]
  %v119 = vld [vmem:[%s0 + $0x70] sm:$0xff]
  %v120 = vld [vmem:[%s0 + $0x78] sm:$0xff]
  %v121 = vld [vmem:[%s0 + $0x80] sm:$0xff]
  %v122 = vld [vmem:[%s0 + $0x88] sm:$0xff]
  %v123 = vld [vmem:[%s0 + $0x90] sm:$0xff]
  %v124 = vld [vmem:[%s0 + $0x98] sm:$0xff]
  %v125 = vld [vmem:[%s0 + $0xa0] sm:$0xff]
  %v126 = vld [vmem:[%s0 + $0xa8] sm:$0xff]
  %v127 = vld [vmem:[%s0 + $0xb0] sm:$0xff]
  %v128 = vld [vmem:[%s0 + $0xb8] sm:$0xff]
  %v129 = vld [vmem:[%s0 + $0xc0] sm:$0xff]
  %v130 = vld [vmem:[%s0 + $0xc8] sm:$0xff]
  %v131 = vld [vmem:[%s0 + $0xd0] sm:$0xff]
  %v132 = vld [vmem:[%s0 + $0xd8] sm:$0xff]
  %v133 = vld [vmem:[%s0 + $0xe0] sm:$0xff]
  %v134 = vld [vmem:[%s0 + $0xe8] sm:$0xff]
  %v135 = vld [vmem:[%s0 + $0xf0] sm:$0xff]
  %v136 = vld [vmem:[%s0 + $0xf8] sm:$0xff]
  %v137 = vld [vmem:[%s0 + $0x100] sm:$0xff]
  %v138 = vld [vmem:[%s0 + $0x108] sm:$0xff]
  %v139 = vld [vmem:[%s0 + $0x110] sm:$0xff]
  %v140 = vld [vmem:[%s0 + $0x118] sm:$0xff]
  %v141 = vld [vmem:[%s0 + $0x120] sm:$0xff]
  %v142 = vld [vmem:[%s0 + $0x128] sm:$0xff]
  %v143 = vld [vmem:[%s0 + $0x130] sm:$0xff]
  %v144 = vld [vmem:[%s0 + $0x138] sm:$0xff]
  %v145 = vld [vmem:[%s0 + $0x140] sm:$0xff]
  %v146 = vld [vmem:[%s0 + $0x148] sm:$0xff]
  %v147 = vld [vmem:[%s0 + $0x150] sm:$0xff]
  %v148 = vld [vmem:[%s0 + $0x158] sm:$0xff]
  %v149 = vld [vmem:[%s0 + $0x160] sm:$0xff]
  %v150 = vld [vmem:[%s0 + $0x168] sm:$0xff]
  %v151 = vld [vmem:[%s0 + $0x170] sm:$0xff]
  %v152 = vld [vmem:[%s0 + $0x178] sm:$0xff]
  %v153 = vld [vmem:[%s0 + $0x180] sm:$0xff]
  %v154 = vld [vmem:[%s0 + $0x188] sm:$0xff]
  %v155 = vld [vmem:[%s0 + $0x190] sm:$0xff]
  %v156 = vld [vmem:[%s0 + $0x198] sm:$0xff]
  %v157 = vld [vmem:[%s0 + $0x1a0] sm:$0xff]
  %v158 = vld [vmem:[%s0 + $0x1a8] sm:$0xff]
  %v159 = vld [vmem:[%s0 + $0x1b0] sm:$0xff]
  %v160 = vld [vmem:[%s0 + $0x1b8] sm:$0xff]
  %v161 = vld [vmem:[%s0 + $0x1c0] sm:$0xff]
  %v162 = vld [vmem:[%s0 + $0x1c8] sm:$0xff]
  %v163 = vld [vmem:[%s0 + $0x1d0] sm:$0xff]
  %v164 = vld [vmem:[%s0 + $0x1d8] sm:$0xff]
  %v165 = vld [vmem:[%s0 + $0x1e0] sm:$0xff]
  %v166 = vld [vmem:[%s0 + $0x1e8] sm:$0xff]
  %v167 = vld [vmem:[%s0 + $0x1f0] sm:$0xff]
  %v168 = vld [vmem:[%s0 + $0x1f8] sm:$0xff]
  %s169 = scalar_lea.vmem [#allocation2], 24
  %170 = vst.msk [vmem:[%s169 + $0x1] sm:$0xff] %vm90, %v105
  %171 = vst.msk [vmem:[%s169 + $0x9] sm:$0xff] %vm90, %v106
  %172 = vst.msk [vmem:[%s169 + $0x19] sm:$0xff] %vm90, %v107
  %173 = vst.msk [vmem:[%s169 + $0x21] sm:$0xff] %vm90, %v108
  %174 = vst.msk [vmem:[%s169 + $0x31] sm:$0xff] %vm90, %v109
  %175 = vst.msk [vmem:[%s169 + $0x39] sm:$0xff] %vm90, %v110
  %176 = vst.msk [vmem:[%s169 + $0x49] sm:$0xff] %vm90, %v111
  %177 = vst.msk [vmem:[%s169 + $0x51] sm:$0xff] %vm90, %v112
  %178 = vst.msk [vmem:[%s169 + $0x61] sm:$0xff] %vm90, %v113
  %179 = vst.msk [vmem:[%s169 + $0x69] sm:$0xff] %vm90, %v114
  %180 = vst.msk [vmem:[%s169 + $0x79] sm:$0xff] %vm90, %v115
  %181 = vst.msk [vmem:[%s169 + $0x81] sm:$0xff] %vm90, %v116
  %182 = vst.msk [vmem:[%s169 + $0x91] sm:$0xff] %vm90, %v117
  %183 = vst.msk [vmem:[%s169 + $0x99] sm:$0xff] %vm90, %v118
  %184 = vst.msk [vmem:[%s169 + $0xa9] sm:$0xff] %vm90, %v119
  %185 = vst.msk [vmem:[%s169 + $0xb1] sm:$0xff] %vm90, %v120
  %186 = vst.msk [vmem:[%s169 + $0xc1] sm:$0xff] %vm90, %v121
  %187 = vst.msk [vmem:[%s169 + $0xc9] sm:$0xff] %vm90, %v122
  %188 = vst.msk [vmem:[%s169 + $0xd9] sm:$0xff] %vm90, %v123
  %189 = vst.msk [vmem:[%s169 + $0xe1] sm:$0xff] %vm90, %v124
  %190 = vst.msk [vmem:[%s169 + $0xf1] sm:$0xff] %vm90, %v125
  %191 = vst.msk [vmem:[%s169 + $0xf9] sm:$0xff] %vm90, %v126
  %192 = vst.msk [vmem:[%s169 + $0x109] sm:$0xff] %vm90, %v127
  %193 = vst.msk [vmem:[%s169 + $0x111] sm:$0xff] %vm90, %v128
  %194 = vst.msk [vmem:[%s169 + $0x121] sm:$0xff] %vm90, %v129
  %195 = vst.msk [vmem:[%s169 + $0x129] sm:$0xff] %vm90, %v130
  %196 = vst.msk [vmem:[%s169 + $0x139] sm:$0xff] %vm90, %v131
  %197 = vst.msk [vmem:[%s169 + $0x141] sm:$0xff] %vm90, %v132
  %198 = vst.msk [vmem:[%s169 + $0x151] sm:$0xff] %vm90, %v133
  %199 = vst.msk [vmem:[%s169 + $0x159] sm:$0xff] %vm90, %v134
  %200 = vst.msk [vmem:[%s169 + $0x169] sm:$0xff] %vm90, %v135
  %201 = vst.msk [vmem:[%s169 + $0x171] sm:$0xff] %vm90, %v136
  %202 = vst.msk [vmem:[%s169 + $0x1b1] sm:$0xff] %vm90, %v137
  %203 = vst.msk [vmem:[%s169 + $0x1b9] sm:$0xff] %vm90, %v138
  %204 = vst.msk [vmem:[%s169 + $0x1c9] sm:$0xff] %vm90, %v139
  %205 = vst.msk [vmem:[%s169 + $0x1d1] sm:$0xff] %vm90, %v140
  %206 = vst.msk [vmem:[%s169 + $0x1e1] sm:$0xff] %vm90, %v141
  %207 = vst.msk [vmem:[%s169 + $0x1e9] sm:$0xff] %vm90, %v142
  %208 = vst.msk [vmem:[%s169 + $0x1f9] sm:$0xff] %vm90, %v143
  %209 = vst.msk [vmem:[%s169 + $0x201] sm:$0xff] %vm90, %v144
  %210 = vst.msk [vmem:[%s169 + $0x211] sm:$0xff] %vm90, %v145
  %211 = vst.msk [vmem:[%s169 + $0x219] sm:$0xff] %vm90, %v146
  %212 = vst.msk [vmem:[%s169 + $0x229] sm:$0xff] %vm90, %v147
  %213 = vst.msk [vmem:[%s169 + $0x231] sm:$0xff] %vm90, %v148
  %214 = vst.msk [vmem:[%s169 + $0x241] sm:$0xff] %vm90, %v149
  %215 = vst.msk [vmem:[%s169 + $0x249] sm:$0xff] %vm90, %v150
  %216 = vst.msk [vmem:[%s169 + $0x259] sm:$0xff] %vm90, %v151
  %217 = vst.msk [vmem:[%s169 + $0x261] sm:$0xff] %vm90, %v152
  %218 = vst.msk [vmem:[%s169 + $0x271] sm:$0xff] %vm90, %v153
  %219 = vst.msk [vmem:[%s169 + $0x279] sm:$0xff] %vm90, %v154
  %220 = vst.msk [vmem:[%s169 + $0x289] sm:$0xff] %vm90, %v155
  %221 = vst.msk [vmem:[%s169 + $0x291] sm:$0xff] %vm90, %v156
  %222 = vst.msk [vmem:[%s169 + $0x2a1] sm:$0xff] %vm90, %v157
  %223 = vst.msk [vmem:[%s169 + $0x2a9] sm:$0xff] %vm90, %v158
  %224 = vst.msk [vmem:[%s169 + $0x2b9] sm:$0xff] %vm90, %v159
  %225 = vst.msk [vmem:[%s169 + $0x2c1] sm:$0xff] %vm90, %v160
  %226 = vst.msk [vmem:[%s169 + $0x2d1] sm:$0xff] %vm90, %v161
  %227 = vst.msk [vmem:[%s169 + $0x2d9] sm:$0xff] %vm90, %v162
  %228 = vst.msk [vmem:[%s169 + $0x2e9] sm:$0xff] %vm90, %v163
  %229 = vst.msk [vmem:[%s169 + $0x2f1] sm:$0xff] %vm90, %v164
  %230 = vst.msk [vmem:[%s169 + $0x301] sm:$0xff] %vm90, %v165
  %231 = vst.msk [vmem:[%s169 + $0x309] sm:$0xff] %vm90, %v166
  %232 = vst.msk [vmem:[%s169 + $0x319] sm:$0xff] %vm90, %v167
  %233 = vst.msk [vmem:[%s169 + $0x321] sm:$0xff] %vm90, %v168
  %v234 = vld [vmem:[#allocation2] sm:$0xff]
  %v235 = vld [vmem:[#allocation2 + $0x8] sm:$0xff]
  %v236 = vld [vmem:[#allocation2 + $0x18] sm:$0xff]
  %v237 = vld [vmem:[#allocation2 + $0x20] sm:$0xff]
  %v238 = vld [vmem:[#allocation2 + $0x30] sm:$0xff]
  %v239 = vld [vmem:[#allocation2 + $0x38] sm:$0xff]
  %v240 = vld [vmem:[#allocation2 + $0x48] sm:$0xff]
  %v241 = vld [vmem:[#allocation2 + $0x50] sm:$0xff]
  %v242 = vld [vmem:[#allocation2 + $0x60] sm:$0xff]
  %v243 = vld [vmem:[#allocation2 + $0x68] sm:$0xff]
  %v244 = vld [vmem:[#allocation2 + $0x78] sm:$0xff]
  %v245 = vld [vmem:[#allocation2 + $0x80] sm:$0xff]
  %v246 = vld [vmem:[#allocation2 + $0x90] sm:$0xff]
  %v247 = vld [vmem:[#allocation2 + $0x98] sm:$0xff]
  %v248 = vld [vmem:[#allocation2 + $0xa8] sm:$0xff]
  %v249 = vld [vmem:[#allocation2 + $0xb0] sm:$0xff]
  %v250 = vld [vmem:[#allocation2 + $0xc0] sm:$0xff]
  %v251 = vld [vmem:[#allocation2 + $0xc8] sm:$0xff]
  %v252 = vld [vmem:[#allocation2 + $0xd8] sm:$0xff]
  %v253 = vld [vmem:[#allocation2 + $0xe0] sm:$0xff]
  %v254 = vld [vmem:[#allocation2 + $0xf0] sm:$0xff]
  %v255 = vld [vmem:[#allocation2 + $0xf8] sm:$0xff]
  %v256 = vld [vmem:[#allocation2 + $0x108] sm:$0xff]
  %v257 = vld [vmem:[#allocation2 + $0x110] sm:$0xff]
  %v258 = vld [vmem:[#allocation2 + $0x120] sm:$0xff]
  %v259 = vld [vmem:[#allocation2 + $0x128] sm:$0xff]
  %v260 = vld [vmem:[#allocation2 + $0x138] sm:$0xff]
  %v261 = vld [vmem:[#allocation2 + $0x140] sm:$0xff]
  %v262 = vld [vmem:[#allocation2 + $0x150] sm:$0xff]
  %v263 = vld [vmem:[#allocation2 + $0x158] sm:$0xff]
  %v264 = vld [vmem:[#allocation2 + $0x168] sm:$0xff]
  %v265 = vld [vmem:[#allocation2 + $0x170] sm:$0xff]
  %v266 = vld [vmem:[#allocation2 + $0x180] sm:$0xff]
  %v267 = vld [vmem:[#allocation2 + $0x188] sm:$0xff]
  %v268 = vld [vmem:[#allocation2 + $0x198] sm:$0xff]
  %v269 = vld [vmem:[#allocation2 + $0x1a0] sm:$0xff]
  %v270 = vld [vmem:[#allocation2 + $0x1b0] sm:$0xff]
  %v271 = vld [vmem:[#allocation2 + $0x1b8] sm:$0xff]
  %v272 = vld [vmem:[#allocation2 + $0x1c8] sm:$0xff]
  %v273 = vld [vmem:[#allocation2 + $0x1d0] sm:$0xff]
  %v274 = vld [vmem:[#allocation2 + $0x1e0] sm:$0xff]
  %v275 = vld [vmem:[#allocation2 + $0x1e8] sm:$0xff]
  %v276 = vld [vmem:[#allocation2 + $0x1f8] sm:$0xff]
  %v277 = vld [vmem:[#allocation2 + $0x200] sm:$0xff]
  %v278 = vld [vmem:[#allocation2 + $0x210] sm:$0xff]
  %v279 = vld [vmem:[#allocation2 + $0x218] sm:$0xff]
  %v280 = vld [vmem:[#allocation2 + $0x228] sm:$0xff]
  %v281 = vld [vmem:[#allocation2 + $0x230] sm:$0xff]
  %v282 = vld [vmem:[#allocation2 + $0x240] sm:$0xff]
  %v283 = vld [vmem:[#allocation2 + $0x248] sm:$0xff]
  %v284 = vld [vmem:[#allocation2 + $0x258] sm:$0xff]
  %v285 = vld [vmem:[#allocation2 + $0x260] sm:$0xff]
  %v286 = vld [vmem:[#allocation2 + $0x270] sm:$0xff]
  %v287 = vld [vmem:[#allocation2 + $0x278] sm:$0xff]
  %v288 = vld [vmem:[#allocation2 + $0x288] sm:$0xff]
  %v289 = vld [vmem:[#allocation2 + $0x290] sm:$0xff]
  %v290 = vld [vmem:[#allocation2 + $0x2a0] sm:$0xff]
  %v291 = vld [vmem:[#allocation2 + $0x2a8] sm:$0xff]
  %v292 = vld [vmem:[#allocation2 + $0x2b8] sm:$0xff]
  %v293 = vld [vmem:[#allocation2 + $0x2c0] sm:$0xff]
  %v294 = vld [vmem:[#allocation2 + $0x2d0] sm:$0xff]
  %v295 = vld [vmem:[#allocation2 + $0x2d8] sm:$0xff]
  %v296 = vld [vmem:[#allocation2 + $0x2e8] sm:$0xff]
  %v297 = vld [vmem:[#allocation2 + $0x2f0] sm:$0xff]
  %v298 = vld [vmem:[#allocation2 + $0x300] sm:$0xff]
  %v299 = vld [vmem:[#allocation2 + $0x308] sm:$0xff]
  %v300 = vld [vmem:[#allocation2 + $0x318] sm:$0xff]
  %v301 = vld [vmem:[#allocation2 + $0x320] sm:$0xff]
  %v302 = vld [vmem:[#allocation2 + $0x330] sm:$0xff]
  %v303 = vld [vmem:[#allocation2 + $0x338] sm:$0xff]
  %v304 = vld [vmem:[#allocation2 + $0x348] sm:$0xff]
  %v305 = vld [vmem:[#allocation2 + $0x350] sm:$0xff]
  %v306 = vld [vmem:[%s1] sm:$0xf]
  %s307 = scalar_lea.vmem %s1, 12
  %v308 = vld [vmem:[%s307] sm:$0xf]
  %v310 = vsel %vm90, %v236, 0
  %v313 = vsel %vm90, %v237, 0
  %v316 = vsel %vm90, %v238, 0
  %v319 = vsel %vm90, %v239, 0
  %v322 = vsel %vm90, %v240, 0
  %v325 = vsel %vm90, %v241, 0
  %v328 = vsel %vm90, %v242, 0
  %v331 = vsel %vm90, %v243, 0
  %v334 = vsel %vm90, %v244, 0
  %v337 = vsel %vm90, %v245, 0
  %v340 = vsel %vm90, %v246, 0
  %v343 = vsel %vm90, %v247, 0
  %v346 = vsel %vm90, %v248, 0
  %v349 = vsel %vm90, %v249, 0
  %v352 = vsel %vm90, %v250, 0
  %v355 = vsel %vm90, %v251, 0
  %v358 = vsel %vm90, %v252, 0
  %v361 = vsel %vm90, %v253, 0
  %v364 = vsel %vm90, %v254, 0
  %v367 = vsel %vm90, %v255, 0
  %v370 = vsel %vm90, %v256, 0
  %v373 = vsel %vm90, %v257, 0
  %v376 = vsel %vm90, %v258, 0
  %v379 = vsel %vm90, %v259, 0
  %v382 = vsel %vm90, %v260, 0
  %v385 = vsel %vm90, %v261, 0
  %v388 = vsel %vm90, %v262, 0
  %v391 = vsel %vm90, %v263, 0
  %v394 = vsel %vm90, %v264, 0
  %v397 = vsel %vm90, %v265, 0
  %v400 = vsel %vm90, %v266, 0
  %v403 = vsel %vm90, %v267, 0
  %v406 = vsel %vm90, %v272, 0
  %v409 = vsel %vm90, %v273, 0
  %v412 = vsel %vm90, %v274, 0
  %v415 = vsel %vm90, %v275, 0
  %v418 = vsel %vm90, %v276, 0
  %v421 = vsel %vm90, %v277, 0
  %v424 = vsel %vm90, %v278, 0
  %v427 = vsel %vm90, %v279, 0
  %v430 = vsel %vm90, %v280, 0
  %v433 = vsel %vm90, %v281, 0
  %v436 = vsel %vm90, %v282, 0
  %v439 = vsel %vm90, %v283, 0
  %v442 = vsel %vm90, %v284, 0
  %v445 = vsel %vm90, %v285, 0
  %v448 = vsel %vm90, %v286, 0
  %v451 = vsel %vm90, %v287, 0
  %v454 = vsel %vm90, %v288, 0
  %v457 = vsel %vm90, %v289, 0
  %v460 = vsel %vm90, %v290, 0
  %v463 = vsel %vm90, %v291, 0
  %v466 = vsel %vm90, %v292, 0
  %v469 = vsel %vm90, %v293, 0
  %v472 = vsel %vm90, %v294, 0
  %v475 = vsel %vm90, %v295, 0
  %v478 = vsel %vm90, %v296, 0
  %v481 = vsel %vm90, %v297, 0
  %v484 = vsel %vm90, %v298, 0
  %v487 = vsel %vm90, %v299, 0
  %v490 = vsel %vm90, %v300, 0
  %v493 = vsel %vm90, %v301, 0
  %v496 = vsel %vm90, %v302, 0
  %v499 = vsel %vm90, %v303, 0
  %vm501 = vcmask 1043456
  %v503 = vsel %vm501, %v308, 0
  %505 = vmatprep.subr.mxu0 0.0
  %506 = vmatpush1.msra.mxu0 %v503
  %507 = vmatprep.subr.mxu0 0.0
  %508 = vmatpush1.msra.mxu0 0.0
  %509 = vmatprep.subr.mxu0 0.0
  %510 = vmatpush1.msra.mxu0 0.0
  %511 = vmatprep.subr.mxu0 0.0
  %512 = vmatpush1.msra.mxu0 0.0
  %513 = vmatprep.subr.mxu0 0.0
  %514 = vmatpush1.msra.mxu0 0.0
  %515 = vmatprep.subr.mxu0 0.0
  %516 = vmatpush1.msra.mxu0 0.0
  %517 = vmatprep.subr.mxu0 0.0
  %518 = vmatpush1.msra.mxu0 0.0
  %519 = vmatprep.subr.mxu0 0.0
  %520 = vmatpush1.msra.mxu0 0.0
  %521 = vmatprep.subr.mxu0 0.0
  %522 = vmatpush1.msra.mxu0 0.0
  %523 = vmatprep.subr.mxu0 0.0
  %524 = vmatpush1.msra.mxu0 0.0
  %525 = vmatprep.subr.mxu0 0.0
  %526 = vmatpush1.msra.mxu0 0.0
  %527 = vmatprep.subr.mxu0 0.0
  %528 = vmatpush1.msra.mxu0 0.0
  %529 = vmatprep.subr.mxu0 0.0
  %530 = vmatpush1.msra.mxu0 0.0
  %531 = vmatprep.subr.mxu0 0.0
  %532 = vmatpush1.msra.mxu0 0.0
  %533 = vmatprep.subr.mxu0 0.0
  %534 = vmatpush1.msra.mxu0 0.0
  %535 = vmatprep.subr.mxu0 0.0
  %536 = vmatpush1.msra.mxu0 0.0
  %537 = vmatprep.subr.mxu0 0.0
  %538 = vmatpush1.msra.mxu0 0.0
  %539 = vmatprep.subr.mxu0 0.0
  %540 = vmatpush1.msra.mxu0 0.0
  %541 = vmatprep.subr.mxu0 0.0
  %542 = vmatpush1.msra.mxu0 0.0
  %543 = vmatprep.subr.mxu0 0.0
  %544 = vmatpush1.msra.mxu0 0.0
  %545 = vmatprep.subr.mxu0 0.0
  %546 = vmatpush1.msra.mxu0 0.0
  %547 = vmatprep.subr.mxu0 0.0
  %548 = vmatpush1.msra.mxu0 0.0
  %549 = vmatprep.subr.mxu0 0.0
  %550 = vmatpush1.msra.mxu0 0.0
  %551 = vmatprep.subr.mxu0 0.0
  %552 = vmatpush1.msra.mxu0 0.0
  %553 = vmatprep.subr.mxu0 0.0
  %554 = vmatpush1.msra.mxu0 0.0
  %555 = vmatprep.subr.mxu0 0.0
  %556 = vmatpush1.msra.mxu0 0.0
  %557 = vmatprep.subr.mxu0 0.0
  %558 = vmatpush1.msra.mxu0 0.0
  %559 = vmatprep.subr.mxu0 0.0
  %560 = vmatpush1.msra.mxu0 0.0
  %561 = vmatprep.subr.mxu0 0.0
  %562 = vmatpush1.msra.mxu0 0.0
  %563 = vmatprep.subr.mxu0 0.0
  %564 = vmatpush1.msra.mxu0 0.0
  %565 = vmatprep.subr.mxu0 0.0
  %566 = vmatpush1.msra.mxu0 0.0
  %567 = vmatprep.subr.mxu0 0.0
  %568 = vmatpush1.msra.mxu0 0.0
  %569 = vmatprep.mubr.f32.mxu0 0.0
  %570 = vmatmul.mubr.f32.gmra.mrb[0].mxu0 %v310
  %v571 = vpop.f32.mrb[0].mxu0
  %v572 = vadd.f32 0.0, %v571
  %v573 = vpop.f32.mrb[0].mxu0
  %574 = vmatprep.mubr.f32.mxu0 0.0
  %575 = vmatmul.mubr.f32.gmra.mrb[0].mxu0 %v313
  %v576 = vpop.f32.mrb[0].mxu0
  %v577 = vadd.f32 0.0, %v576
  %v578 = vpop.f32.mrb[0].mxu0
  %579 = vmatprep.mubr.f32.mxu0 0.0
  %580 = vmatmul.mubr.f32.gmra.mrb[0].mxu0 %v316
  %v581 = vpop.f32.mrb[0].mxu0
  %v582 = vadd.f32 0.0, %v581
  %v583 = vpop.f32.mrb[0].mxu0
  %584 = vmatprep.mubr.f32.mxu0 0.0
  %585 = vmatmul.mubr.f32.gmra.mrb[0].mxu0 %v319
  %v586 = vpop.f32.mrb[0].mxu0
  %v587 = vadd.f32 0.0, %v586
  %v588 = vpop.f32.mrb[0].mxu0
  %589 = vmatprep.mubr.f32.mxu0 0.0
  %590 = vmatmul.mubr.f32.gmra.mrb[0].mxu0 %v322
  %v591 = vpop.f32.mrb[0].mxu0
  %v592 = vadd.f32 0.0, %v591
  %v593 = vpop.f32.mrb[0].mxu0
  %594 = vmatprep.mubr.f32.mxu0 0.0
  %595 = vmatmul.mubr.f32.gmra.mrb[0].mxu0 %v325
  %v596 = vpop.f32.mrb[0].mxu0
  %v597 = vadd.f32 0.0, %v596
  %v598 = vpop.f32.mrb[0].mxu0
  %599 = vmatprep.mubr.f32.mxu0 0.0
  %600 = vmatmul.mubr.f32.gmra.mrb[0].mxu0 %v328
  %v601 = vpop.f32.mrb[0].mxu0
  %v602 = vadd.f32 0.0, %v601
  %v603 = vpop.f32.mrb[0].mxu0
  %604 = vmatprep.mubr.f32.mxu0 0.0
  %605 = vmatmul.mubr.f32.gmra.mrb[0].mxu0 %v331
  %v606 = vpop.f32.mrb[0].mxu0
  %v607 = vadd.f32 0.0, %v606
  %v608 = vpop.f32.mrb[0].mxu0
  %609 = vmatprep.mubr.f32.mxu0 0.0
  %610 = vmatmul.mubr.f32.gmra.mrb[0].mxu0 %v334
  %v611 = vpop.f32.mrb[0].mxu0
  %v612 = vadd.f32 0.0, %v611
  %v613 = vpop.f32.mrb[0].mxu0
  %614 = vmatprep.mubr.f32.mxu0 0.0
  %615 = vmatmul.mubr.f32.gmra.mrb[0].mxu0 %v337
  %v616 = vpop.f32.mrb[0].mxu0
  %v617 = vadd.f32 0.0, %v616
  %v618 = vpop.f32.mrb[0].mxu0
  %619 = vmatprep.mubr.f32.mxu0 0.0
  %620 = vmatmul.mubr.f32.gmra.mrb[0].mxu0 %v340
  %v621 = vpop.f32.mrb[0].mxu0
  %v622 = vadd.f32 0.0, %v621
  %v623 = vpop.f32.mrb[0].mxu0
  %624 = vmatprep.mubr.f32.mxu0 0.0
  %625 = vmatmul.mubr.f32.gmra.mrb[0].mxu0 %v343
  %v626 = vpop.f32.mrb[0].mxu0
  %v627 = vadd.f32 0.0, %v626
  %v628 = vpop.f32.mrb[0].mxu0
  %629 = vmatprep.mubr.f32.mxu0 0.0
  %630 = vmatmul.mubr.f32.gmra.mrb[0].mxu0 %v346
  %v631 = vpop.f32.mrb[0].mxu0
  %v632 = vadd.f32 0.0, %v631
  %v633 = vpop.f32.mrb[0].mxu0
  %634 = vmatprep.mubr.f32.mxu0 0.0
  %635 = vmatmul.mubr.f32.gmra.mrb[0].mxu0 %v349
  %v636 = vpop.f32.mrb[0].mxu0
  %v637 = vadd.f32 0.0, %v636
  %v638 = vpop.f32.mrb[0].mxu0
  %639 = vmatprep.mubr.f32.mxu0 0.0
  %640 = vmatmul.mubr.f32.gmra.mrb[0].mxu0 %v352
  %v641 = vpop.f32.mrb[0].mxu0
  %v642 = vadd.f32 0.0, %v641
  %v643 = vpop.f32.mrb[0].mxu0
  %644 = vmatprep.mubr.f32.mxu0 0.0
  %645 = vmatmul.mubr.f32.gmra.mrb[0].mxu0 %v355
  %v646 = vpop.f32.mrb[0].mxu0
  %v647 = vadd.f32 0.0, %v646
  %v648 = vpop.f32.mrb[0].mxu0
  %649 = vmatprep.mubr.f32.mxu0 0.0
  %650 = vmatmul.mubr.f32.gmra.mrb[0].mxu0 %v358
  %v651 = vpop.f32.mrb[0].mxu0
  %v652 = vadd.f32 0.0, %v651
  %v653 = vpop.f32.mrb[0].mxu0
  %654 = vmatprep.mubr.f32.mxu0 0.0
  %655 = vmatmul.mubr.f32.gmra.mrb[0].mxu0 %v361
  %v656 = vpop.f32.mrb[0].mxu0
  %v657 = vadd.f32 0.0, %v656
  %v658 = vpop.f32.mrb[0].mxu0
  %659 = vmatprep.mubr.f32.mxu0 0.0
  %660 = vmatmul.mubr.f32.gmra.mrb[0].mxu0 %v364
  %v661 = vpop.f32.mrb[0].mxu0
  %v662 = vadd.f32 0.0, %v661
  %v663 = vpop.f32.mrb[0].mxu0
  %664 = vmatprep.mubr.f32.mxu0 0.0
  %665 = vmatmul.mubr.f32.gmra.mrb[0].mxu0 %v367
  %v666 = vpop.f32.mrb[0].mxu0
  %v667 = vadd.f32 0.0, %v666
  %v668 = vpop.f32.mrb[0].mxu0
  %669 = vmatprep.mubr.f32.mxu0 0.0
  %670 = vmatmul.mubr.f32.gmra.mrb[0].mxu0 %v370
  %v671 = vpop.f32.mrb[0].mxu0
  %v672 = vadd.f32 0.0, %v671
  %v673 = vpop.f32.mrb[0].mxu0
  %674 = vmatprep.mubr.f32.mxu0 0.0
  %675 = vmatmul.mubr.f32.gmra.mrb[0].mxu0 %v373
  %v676 = vpop.f32.mrb[0].mxu0
  %v677 = vadd.f32 0.0, %v676
  %v678 = vpop.f32.mrb[0].mxu0
  %679 = vmatprep.mubr.f32.mxu0 0.0
  %680 = vmatmul.mubr.f32.gmra.mrb[0].mxu0 %v376
  %v681 = vpop.f32.mrb[0].mxu0
  %v682 = vadd.f32 0.0, %v681
  %v683 = vpop.f32.mrb[0].mxu0
  %684 = vmatprep.mubr.f32.mxu0 0.0
  %685 = vmatmul.mubr.f32.gmra.mrb[0].mxu0 %v379
  %v686 = vpop.f32.mrb[0].mxu0
  %v687 = vadd.f32 0.0, %v686
  %v688 = vpop.f32.mrb[0].mxu0
  %689 = vmatprep.mubr.f32.mxu0 0.0
  %690 = vmatmul.mubr.f32.gmra.mrb[0].mxu0 %v382
  %v691 = vpop.f32.mrb[0].mxu0
  %v692 = vadd.f32 0.0, %v691
  %v693 = vpop.f32.mrb[0].mxu0
  %694 = vmatprep.mubr.f32.mxu0 0.0
  %695 = vmatmul.mubr.f32.gmra.mrb[0].mxu0 %v385
  %v696 = vpop.f32.mrb[0].mxu0
  %v697 = vadd.f32 0.0, %v696
  %v698 = vpop.f32.mrb[0].mxu0
  %699 = vmatprep.mubr.f32.mxu0 0.0
  %700 = vmatmul.mubr.f32.gmra.mrb[0].mxu0 %v388
  %v701 = vpop.f32.mrb[0].mxu0
  %v702 = vadd.f32 0.0, %v701
  %v703 = vpop.f32.mrb[0].mxu0
  %704 = vmatprep.mubr.f32.mxu0 0.0
  %705 = vmatmul.mubr.f32.gmra.mrb[0].mxu0 %v391
  %v706 = vpop.f32.mrb[0].mxu0
  %v707 = vadd.f32 0.0, %v706
  %v708 = vpop.f32.mrb[0].mxu0
  %709 = vmatprep.mubr.f32.mxu0 0.0
  %710 = vmatmul.mubr.f32.gmra.mrb[0].mxu0 %v394
  %v711 = vpop.f32.mrb[0].mxu0
  %v712 = vadd.f32 0.0, %v711
  %v713 = vpop.f32.mrb[0].mxu0
  %714 = vmatprep.mubr.f32.mxu0 0.0
  %715 = vmatmul.mubr.f32.gmra.mrb[0].mxu0 %v397
  %v716 = vpop.f32.mrb[0].mxu0
  %v717 = vadd.f32 0.0, %v716
  %v718 = vpop.f32.mrb[0].mxu0
  %719 = vmatprep.mubr.f32.mxu0 0.0
  %720 = vmatmul.mubr.f32.gmra.mrb[0].mxu0 %v400
  %v721 = vpop.f32.mrb[0].mxu0
  %v722 = vadd.f32 0.0, %v721
  %v723 = vpop.f32.mrb[0].mxu0
  %724 = vmatprep.mubr.f32.mxu0 0.0
  %725 = vmatmul.mubr.f32.gmra.mrb[0].mxu0 %v403
  %v726 = vpop.f32.mrb[0].mxu0
  %v727 = vadd.f32 0.0, %v726
  %v728 = vpop.f32.mrb[0].mxu0
  %729 = vmatprep.mubr.f32.mxu0 0.0
  %730 = vmatmul.mubr.f32.gmra.mrb[0].mxu0 %v406
  %v731 = vpop.f32.mrb[0].mxu0
  %v732 = vadd.f32 0.0, %v731
  %v733 = vpop.f32.mrb[0].mxu0
  %734 = vmatprep.mubr.f32.mxu0 0.0
  %735 = vmatmul.mubr.f32.gmra.mrb[0].mxu0 %v409
  %v736 = vpop.f32.mrb[0].mxu0
  %v737 = vadd.f32 0.0, %v736
  %v738 = vpop.f32.mrb[0].mxu0
  %739 = vmatprep.mubr.f32.mxu0 0.0
  %740 = vmatmul.mubr.f32.gmra.mrb[0].mxu0 %v412
  %v741 = vpop.f32.mrb[0].mxu0
  %v742 = vadd.f32 0.0, %v741
  %v743 = vpop.f32.mrb[0].mxu0
  %744 = vmatprep.mubr.f32.mxu0 0.0
  %745 = vmatmul.mubr.f32.gmra.mrb[0].mxu0 %v415
  %v746 = vpop.f32.mrb[0].mxu0
  %v747 = vadd.f32 0.0, %v746
  %v748 = vpop.f32.mrb[0].mxu0
  %749 = vmatprep.mubr.f32.mxu0 0.0
  %750 = vmatmul.mubr.f32.gmra.mrb[0].mxu0 %v418
  %v751 = vpop.f32.mrb[0].mxu0
  %v752 = vadd.f32 0.0, %v751
  %v753 = vpop.f32.mrb[0].mxu0
  %754 = vmatprep.mubr.f32.mxu0 0.0
  %755 = vmatmul.mubr.f32.gmra.mrb[0].mxu0 %v421
  %v756 = vpop.f32.mrb[0].mxu0
  %v757 = vadd.f32 0.0, %v756
  %v758 = vpop.f32.mrb[0].mxu0
  %759 = vmatprep.mubr.f32.mxu0 0.0
  %760 = vmatmul.mubr.f32.gmra.mrb[0].mxu0 %v424
  %v761 = vpop.f32.mrb[0].mxu0
  %v762 = vadd.f32 0.0, %v761
  %v763 = vpop.f32.mrb[0].mxu0
  %764 = vmatprep.mubr.f32.mxu0 0.0
  %765 = vmatmul.mubr.f32.gmra.mrb[0].mxu0 %v427
  %v766 = vpop.f32.mrb[0].mxu0
  %v767 = vadd.f32 0.0, %v766
  %v768 = vpop.f32.mrb[0].mxu0
  %769 = vmatprep.mubr.f32.mxu0 0.0
  %770 = vmatmul.mubr.f32.gmra.mrb[0].mxu0 %v430
  %v771 = vpop.f32.mrb[0].mxu0
  %v772 = vadd.f32 0.0, %v771
  %v773 = vpop.f32.mrb[0].mxu0
  %774 = vmatprep.mubr.f32.mxu0 0.0
  %775 = vmatmul.mubr.f32.gmra.mrb[0].mxu0 %v433
  %v776 = vpop.f32.mrb[0].mxu0
  %v777 = vadd.f32 0.0, %v776
  %v778 = vpop.f32.mrb[0].mxu0
  %779 = vmatprep.mubr.f32.mxu0 0.0
  %780 = vmatmul.mubr.f32.gmra.mrb[0].mxu0 %v436
  %v781 = vpop.f32.mrb[0].mxu0
  %v782 = vadd.f32 0.0, %v781
  %v783 = vpop.f32.mrb[0].mxu0
  %784 = vmatprep.mubr.f32.mxu0 0.0
  %785 = vmatmul.mubr.f32.gmra.mrb[0].mxu0 %v439
  %v786 = vpop.f32.mrb[0].mxu0
  %v787 = vadd.f32 0.0, %v786
  %v788 = vpop.f32.mrb[0].mxu0
  %789 = vmatprep.mubr.f32.mxu0 0.0
  %790 = vmatmul.mubr.f32.gmra.mrb[0].mxu0 %v442
  %v791 = vpop.f32.mrb[0].mxu0
  %v792 = vadd.f32 0.0, %v791
  %v793 = vpop.f32.mrb[0].mxu0
  %794 = vmatprep.mubr.f32.mxu0 0.0
  %795 = vmatmul.mubr.f32.gmra.mrb[0].mxu0 %v445
  %v796 = vpop.f32.mrb[0].mxu0
  %v797 = vadd.f32 0.0, %v796
  %v798 = vpop.f32.mrb[0].mxu0
  %799 = vmatprep.mubr.f32.mxu0 0.0
  %800 = vmatmul.mubr.f32.gmra.mrb[0].mxu0 %v448
  %v801 = vpop.f32.mrb[0].mxu0
  %v802 = vadd.f32 0.0, %v801
  %v803 = vpop.f32.mrb[0].mxu0
  %804 = vmatprep.mubr.f32.mxu0 0.0
  %805 = vmatmul.mubr.f32.gmra.mrb[0].mxu0 %v451
  %v806 = vpop.f32.mrb[0].mxu0
  %v807 = vadd.f32 0.0, %v806
  %v808 = vpop.f32.mrb[0].mxu0
  %809 = vmatprep.mubr.f32.mxu0 0.0
  %810 = vmatmul.mubr.f32.gmra.mrb[0].mxu0 %v454
  %v811 = vpop.f32.mrb[0].mxu0
  %v812 = vadd.f32 0.0, %v811
  %v813 = vpop.f32.mrb[0].mxu0
  %814 = vmatprep.mubr.f32.mxu0 0.0
  %815 = vmatmul.mubr.f32.gmra.mrb[0].mxu0 %v457
  %v816 = vpop.f32.mrb[0].mxu0
  %v817 = vadd.f32 0.0, %v816
  %v818 = vpop.f32.mrb[0].mxu0
  %819 = vmatprep.mubr.f32.mxu0 0.0
  %820 = vmatmul.mubr.f32.gmra.mrb[0].mxu0 %v460
  %v821 = vpop.f32.mrb[0].mxu0
  %v822 = vadd.f32 0.0, %v821
  %v823 = vpop.f32.mrb[0].mxu0
  %824 = vmatprep.mubr.f32.mxu0 0.0
  %825 = vmatmul.mubr.f32.gmra.mrb[0].mxu0 %v463
  %v826 = vpop.f32.mrb[0].mxu0
  %v827 = vadd.f32 0.0, %v826
  %v828 = vpop.f32.mrb[0].mxu0
  %829 = vmatprep.mubr.f32.mxu0 0.0
  %830 = vmatmul.mubr.f32.gmra.mrb[0].mxu0 %v466
  %v831 = vpop.f32.mrb[0].mxu0
  %v832 = vadd.f32 0.0, %v831
  %v833 = vpop.f32.mrb[0].mxu0
  %834 = vmatprep.mubr.f32.mxu0 0.0
  %835 = vmatmul.mubr.f32.gmra.mrb[0].mxu0 %v469
  %v836 = vpop.f32.mrb[0].mxu0
  %v837 = vadd.f32 0.0, %v836
  %v838 = vpop.f32.mrb[0].mxu0
  %839 = vmatprep.mubr.f32.mxu0 0.0
  %840 = vmatmul.mubr.f32.gmra.mrb[0].mxu0 %v472
  %v841 = vpop.f32.mrb[0].mxu0
  %v842 = vadd.f32 0.0, %v841
  %v843 = vpop.f32.mrb[0].mxu0
  %844 = vmatprep.mubr.f32.mxu0 0.0
  %845 = vmatmul.mubr.f32.gmra.mrb[0].mxu0 %v475
  %v846 = vpop.f32.mrb[0].mxu0
  %v847 = vadd.f32 0.0, %v846
  %v848 = vpop.f32.mrb[0].mxu0
  %849 = vmatprep.mubr.f32.mxu0 0.0
  %850 = vmatmul.mubr.f32.gmra.mrb[0].mxu0 %v478
  %v851 = vpop.f32.mrb[0].mxu0
  %v852 = vadd.f32 0.0, %v851
  %v853 = vpop.f32.mrb[0].mxu0
  %854 = vmatprep.mubr.f32.mxu0 0.0
  %855 = vmatmul.mubr.f32.gmra.mrb[0].mxu0 %v481
  %v856 = vpop.f32.mrb[0].mxu0
  %v857 = vadd.f32 0.0, %v856
  %v858 = vpop.f32.mrb[0].mxu0
  %859 = vmatprep.mubr.f32.mxu0 0.0
  %860 = vmatmul.mubr.f32.gmra.mrb[0].mxu0 %v484
  %v861 = vpop.f32.mrb[0].mxu0
  %v862 = vadd.f32 0.0, %v861
  %v863 = vpop.f32.mrb[0].mxu0
  %864 = vmatprep.mubr.f32.mxu0 0.0
  %865 = vmatmul.mubr.f32.gmra.mrb[0].mxu0 %v487
  %v866 = vpop.f32.mrb[0].mxu0
  %v867 = vadd.f32 0.0, %v866
  %v868 = vpop.f32.mrb[0].mxu0
  %869 = vmatprep.mubr.f32.mxu0 0.0
  %870 = vmatmul.mubr.f32.gmra.mrb[0].mxu0 %v490
  %v871 = vpop.f32.mrb[0].mxu0
  %v872 = vadd.f32 0.0, %v871
  %v873 = vpop.f32.mrb[0].mxu0
  %874 = vmatprep.mubr.f32.mxu0 0.0
  %875 = vmatmul.mubr.f32.gmra.mrb[0].mxu0 %v493
  %v876 = vpop.f32.mrb[0].mxu0
  %v877 = vadd.f32 0.0, %v876
  %v878 = vpop.f32.mrb[0].mxu0
  %879 = vmatprep.mubr.f32.mxu0 0.0
  %880 = vmatmul.mubr.f32.gmra.mrb[0].mxu0 %v496
  %v881 = vpop.f32.mrb[0].mxu0
  %v882 = vadd.f32 0.0, %v881
  %v883 = vpop.f32.mrb[0].mxu0
  %884 = vmatprep.mubr.f32.mxu0 0.0
  %885 = vmatmul.mubr.f32.gmra.mrb[0].mxu0 %v499
  %v886 = vpop.f32.mrb[0].mxu0
  %v887 = vadd.f32 0.0, %v886
  %v888 = vpop.f32.mrb[0].mxu0
  %889 = vdwg.mxu0
  %v891 = vsel %vm90, %v234, 0
  %v894 = vsel %vm90, %v235, 0
  %v897 = vsel %vm90, %v270, 0
  %v900 = vsel %vm90, %v271, 0
  %v903 = vsel %vm501, %v306, 0
  %905 = vmatprep.subr.mxu0 0.0
  %906 = vmatpush1.msra.mxu0 %v903
  %907 = vmatprep.subr.mxu0 0.0
  %908 = vmatpush1.msra.mxu0 0.0
  %909 = vmatprep.subr.mxu0 0.0
  %910 = vmatpush1.msra.mxu0 0.0
  %911 = vmatprep.subr.mxu0 0.0
  %912 = vmatpush1.msra.mxu0 0.0
  %913 = vmatprep.subr.mxu0 0.0
  %914 = vmatpush1.msra.mxu0 0.0
  %915 = vmatprep.subr.mxu0 0.0
  %916 = vmatpush1.msra.mxu0 0.0
  %917 = vmatprep.subr.mxu0 0.0
  %918 = vmatpush1.msra.mxu0 0.0
  %919 = vmatprep.subr.mxu0 0.0
  %920 = vmatpush1.msra.mxu0 0.0
  %921 = vmatprep.subr.mxu0 0.0
  %922 = vmatpush1.msra.mxu0 0.0
  %923 = vmatprep.subr.mxu0 0.0
  %924 = vmatpush1.msra.mxu0 0.0
  %925 = vmatprep.subr.mxu0 0.0
  %926 = vmatpush1.msra.mxu0 0.0
  %927 = vmatprep.subr.mxu0 0.0
  %928 = vmatpush1.msra.mxu0 0.0
  %929 = vmatprep.subr.mxu0 0.0
  %930 = vmatpush1.msra.mxu0 0.0
  %931 = vmatprep.subr.mxu0 0.0
  %932 = vmatpush1.msra.mxu0 0.0
  %933 = vmatprep.subr.mxu0 0.0
  %934 = vmatpush1.msra.mxu0 0.0
  %935 = vmatprep.subr.mxu0 0.0
  %936 = vmatpush1.msra.mxu0 0.0
  %937 = vmatprep.subr.mxu0 0.0
  %938 = vmatpush1.msra.mxu0 0.0
  %939 = vmatprep.subr.mxu0 0.0
  %940 = vmatpush1.msra.mxu0 0.0
  %941 = vmatprep.subr.mxu0 0.0
  %942 = vmatpush1.msra.mxu0 0.0
  %943 = vmatprep.subr.mxu0 0.0
  %944 = vmatpush1.msra.mxu0 0.0
  %945 = vmatprep.subr.mxu0 0.0
  %946 = vmatpush1.msra.mxu0 0.0
  %947 = vmatprep.subr.mxu0 0.0
  %948 = vmatpush1.msra.mxu0 0.0
  %949 = vmatprep.subr.mxu0 0.0
  %950 = vmatpush1.msra.mxu0 0.0
  %951 = vmatprep.subr.mxu0 0.0
  %952 = vmatpush1.msra.mxu0 0.0
  %953 = vmatprep.subr.mxu0 0.0
  %954 = vmatpush1.msra.mxu0 0.0
  %955 = vmatprep.subr.mxu0 0.0
  %956 = vmatpush1.msra.mxu0 0.0
  %957 = vmatprep.subr.mxu0 0.0
  %958 = vmatpush1.msra.mxu0 0.0
  %959 = vmatprep.subr.mxu0 0.0
  %960 = vmatpush1.msra.mxu0 0.0
  %961 = vmatprep.subr.mxu0 0.0
  %962 = vmatpush1.msra.mxu0 0.0
  %963 = vmatprep.subr.mxu0 0.0
  %964 = vmatpush1.msra.mxu0 0.0
  %965 = vmatprep.subr.mxu0 0.0
  %966 = vmatpush1.msra.mxu0 0.0
  %967 = vmatprep.subr.mxu0 0.0
  %968 = vmatpush1.msra.mxu0 0.0
  %969 = vmatprep.mubr.f32.mxu0 0.0
  %970 = vmatmul.mubr.f32.gmra.mrb[0].mxu0 %v891
  %v971 = vpop.f32.mrb[0].mxu0
  %v972 = vadd.f32 %v572, %v971
  %v973 = vpop.f32.mrb[0].mxu0
  %974 = vmatprep.mubr.f32.mxu0 0.0
  %975 = vmatmul.mubr.f32.gmra.mrb[0].mxu0 %v894
  %v976 = vpop.f32.mrb[0].mxu0
  %v977 = vadd.f32 %v577, %v976
  %v978 = vpop.f32.mrb[0].mxu0
  %979 = vmatprep.mubr.f32.mxu0 0.0
  %980 = vmatmul.mubr.f32.gmra.mrb[0].mxu0 %v310
  %v981 = vpop.f32.mrb[0].mxu0
  %v982 = vadd.f32 %v582, %v981
  %v983 = vpop.f32.mrb[0].mxu0
  %984 = vmatprep.mubr.f32.mxu0 0.0
  %985 = vmatmul.mubr.f32.gmra.mrb[0].mxu0 %v313
  %v986 = vpop.f32.mrb[0].mxu0
  %v987 = vadd.f32 %v587, %v986
  %v988 = vpop.f32.mrb[0].mxu0
  %989 = vmatprep.mubr.f32.mxu0 0.0
  %990 = vmatmul.mubr.f32.gmra.mrb[0].mxu0 %v316
  %v991 = vpop.f32.mrb[0].mxu0
  %v992 = vadd.f32 %v592, %v991
  %v993 = vpop.f32.mrb[0].mxu0
  %994 = vmatprep.mubr.f32.mxu0 0.0
  %995 = vmatmul.mubr.f32.gmra.mrb[0].mxu0 %v319
  %v996 = vpop.f32.mrb[0].mxu0
  %v997 = vadd.f32 %v597, %v996
  %v998 = vpop.f32.mrb[0].mxu0
  %999 = vmatprep.mubr.f32.mxu0 0.0
  %1000 = vmatmul.mubr.f32.gmra.mrb[0].mxu0 %v322
  %v1001 = vpop.f32.mrb[0].mxu0
  %v1002 = vadd.f32 %v602, %v1001
  %v1003 = vpop.f32.mrb[0].mxu0
  %1004 = vmatprep.mubr.f32.mxu0 0.0
  %1005 = vmatmul.mubr.f32.gmra.mrb[0].mxu0 %v325
  %v1006 = vpop.f32.mrb[0].mxu0
  %v1007 = vadd.f32 %v607, %v1006
  %v1008 = vpop.f32.mrb[0].mxu0
  %1009 = vmatprep.mubr.f32.mxu0 0.0
  %1010 = vmatmul.mubr.f32.gmra.mrb[0].mxu0 %v328
  %v1011 = vpop.f32.mrb[0].mxu0
  %v1012 = vadd.f32 %v612, %v1011
  %v1013 = vpop.f32.mrb[0].mxu0
  %1014 = vmatprep.mubr.f32.mxu0 0.0
  %1015 = vmatmul.mubr.f32.gmra.mrb[0].mxu0 %v331
  %v1016 = vpop.f32.mrb[0].mxu0
  %v1017 = vadd.f32 %v617, %v1016
  %v1018 = vpop.f32.mrb[0].mxu0
  %1019 = vmatprep.mubr.f32.mxu0 0.0
  %1020 = vmatmul.mubr.f32.gmra.mrb[0].mxu0 %v334
  %v1021 = vpop.f32.mrb[0].mxu0
  %v1022 = vadd.f32 %v622, %v1021
  %v1023 = vpop.f32.mrb[0].mxu0
  %1024 = vmatprep.mubr.f32.mxu0 0.0
  %1025 = vmatmul.mubr.f32.gmra.mrb[0].mxu0 %v337
  %v1026 = vpop.f32.mrb[0].mxu0
  %v1027 = vadd.f32 %v627, %v1026
  %v1028 = vpop.f32.mrb[0].mxu0
  %1029 = vmatprep.mubr.f32.mxu0 0.0
  %1030 = vmatmul.mubr.f32.gmra.mrb[0].mxu0 %v340
  %v1031 = vpop.f32.mrb[0].mxu0
  %v1032 = vadd.f32 %v632, %v1031
  %v1033 = vpop.f32.mrb[0].mxu0
  %1034 = vmatprep.mubr.f32.mxu0 0.0
  %1035 = vmatmul.mubr.f32.gmra.mrb[0].mxu0 %v343
  %v1036 = vpop.f32.mrb[0].mxu0
  %v1037 = vadd.f32 %v637, %v1036
  %v1038 = vpop.f32.mrb[0].mxu0
  %1039 = vmatprep.mubr.f32.mxu0 0.0
  %1040 = vmatmul.mubr.f32.gmra.mrb[0].mxu0 %v346
  %v1041 = vpop.f32.mrb[0].mxu0
  %v1042 = vadd.f32 %v642, %v1041
  %v1043 = vpop.f32.mrb[0].mxu0
  %1044 = vmatprep.mubr.f32.mxu0 0.0
  %1045 = vmatmul.mubr.f32.gmra.mrb[0].mxu0 %v349
  %v1046 = vpop.f32.mrb[0].mxu0
  %v1047 = vadd.f32 %v647, %v1046
  %v1048 = vpop.f32.mrb[0].mxu0
  %1049 = vmatprep.mubr.f32.mxu0 0.0
  %1050 = vmatmul.mubr.f32.gmra.mrb[0].mxu0 %v352
  %v1051 = vpop.f32.mrb[0].mxu0
  %v1052 = vadd.f32 %v652, %v1051
  %v1053 = vpop.f32.mrb[0].mxu0
  %1054 = vmatprep.mubr.f32.mxu0 0.0
  %1055 = vmatmul.mubr.f32.gmra.mrb[0].mxu0 %v355
  %v1056 = vpop.f32.mrb[0].mxu0
  %v1057 = vadd.f32 %v657, %v1056
  %v1058 = vpop.f32.mrb[0].mxu0
  %1059 = vmatprep.mubr.f32.mxu0 0.0
  %1060 = vmatmul.mubr.f32.gmra.mrb[0].mxu0 %v358
  %v1061 = vpop.f32.mrb[0].mxu0
  %v1062 = vadd.f32 %v662, %v1061
  %v1063 = vpop.f32.mrb[0].mxu0
  %1064 = vmatprep.mubr.f32.mxu0 0.0
  %1065 = vmatmul.mubr.f32.gmra.mrb[0].mxu0 %v361
  %v1066 = vpop.f32.mrb[0].mxu0
  %v1067 = vadd.f32 %v667, %v1066
  %v1068 = vpop.f32.mrb[0].mxu0
  %1069 = vmatprep.mubr.f32.mxu0 0.0
  %1070 = vmatmul.mubr.f32.gmra.mrb[0].mxu0 %v364
  %v1071 = vpop.f32.mrb[0].mxu0
  %v1072 = vadd.f32 %v672, %v1071
  %v1073 = vpop.f32.mrb[0].mxu0
  %1074 = vmatprep.mubr.f32.mxu0 0.0
  %1075 = vmatmul.mubr.f32.gmra.mrb[0].mxu0 %v367
  %v1076 = vpop.f32.mrb[0].mxu0
  %v1077 = vadd.f32 %v677, %v1076
  %v1078 = vpop.f32.mrb[0].mxu0
  %1079 = vmatprep.mubr.f32.mxu0 0.0
  %1080 = vmatmul.mubr.f32.gmra.mrb[0].mxu0 %v370
  %v1081 = vpop.f32.mrb[0].mxu0
  %v1082 = vadd.f32 %v682, %v1081
  %v1083 = vpop.f32.mrb[0].mxu0
  %1084 = vmatprep.mubr.f32.mxu0 0.0
  %1085 = vmatmul.mubr.f32.gmra.mrb[0].mxu0 %v373
  %v1086 = vpop.f32.mrb[0].mxu0
  %v1087 = vadd.f32 %v687, %v1086
  %v1088 = vpop.f32.mrb[0].mxu0
  %1089 = vmatprep.mubr.f32.mxu0 0.0
  %1090 = vmatmul.mubr.f32.gmra.mrb[0].mxu0 %v376
  %v1091 = vpop.f32.mrb[0].mxu0
  %v1092 = vadd.f32 %v692, %v1091
  %v1093 = vpop.f32.mrb[0].mxu0
  %1094 = vmatprep.mubr.f32.mxu0 0.0
  %1095 = vmatmul.mubr.f32.gmra.mrb[0].mxu0 %v379
  %v1096 = vpop.f32.mrb[0].mxu0
  %v1097 = vadd.f32 %v697, %v1096
  %v1098 = vpop.f32.mrb[0].mxu0
  %1099 = vmatprep.mubr.f32.mxu0 0.0
  %1100 = vmatmul.mubr.f32.gmra.mrb[0].mxu0 %v382
  %v1101 = vpop.f32.mrb[0].mxu0
  %v1102 = vadd.f32 %v702, %v1101
  %v1103 = vpop.f32.mrb[0].mxu0
  %1104 = vmatprep.mubr.f32.mxu0 0.0
  %1105 = vmatmul.mubr.f32.gmra.mrb[0].mxu0 %v385
  %v1106 = vpop.f32.mrb[0].mxu0
  %v1107 = vadd.f32 %v707, %v1106
  %v1108 = vpop.f32.mrb[0].mxu0
  %1109 = vmatprep.mubr.f32.mxu0 0.0
  %1110 = vmatmul.mubr.f32.gmra.mrb[0].mxu0 %v388
  %v1111 = vpop.f32.mrb[0].mxu0
  %v1112 = vadd.f32 %v712, %v1111
  %v1113 = vpop.f32.mrb[0].mxu0
  %1114 = vmatprep.mubr.f32.mxu0 0.0
  %1115 = vmatmul.mubr.f32.gmra.mrb[0].mxu0 %v391
  %v1116 = vpop.f32.mrb[0].mxu0
  %v1117 = vadd.f32 %v717, %v1116
  %v1118 = vpop.f32.mrb[0].mxu0
  %1119 = vmatprep.mubr.f32.mxu0 0.0
  %1120 = vmatmul.mubr.f32.gmra.mrb[0].mxu0 %v394
  %v1121 = vpop.f32.mrb[0].mxu0
  %v1122 = vadd.f32 %v722, %v1121
  %v1123 = vpop.f32.mrb[0].mxu0
  %1124 = vmatprep.mubr.f32.mxu0 0.0
  %1125 = vmatmul.mubr.f32.gmra.mrb[0].mxu0 %v397
  %v1126 = vpop.f32.mrb[0].mxu0
  %v1127 = vadd.f32 %v727, %v1126
  %v1128 = vpop.f32.mrb[0].mxu0
  %1129 = vmatprep.mubr.f32.mxu0 0.0
  %1130 = vmatmul.mubr.f32.gmra.mrb[0].mxu0 %v897
  %v1131 = vpop.f32.mrb[0].mxu0
  %v1132 = vadd.f32 %v732, %v1131
  %v1133 = vpop.f32.mrb[0].mxu0
  %1134 = vmatprep.mubr.f32.mxu0 0.0
  %1135 = vmatmul.mubr.f32.gmra.mrb[0].mxu0 %v900
  %v1136 = vpop.f32.mrb[0].mxu0
  %v1137 = vadd.f32 %v737, %v1136
  %v1138 = vpop.f32.mrb[0].mxu0
  %1139 = vmatprep.mubr.f32.mxu0 0.0
  %1140 = vmatmul.mubr.f32.gmra.mrb[0].mxu0 %v406
  %v1141 = vpop.f32.mrb[0].mxu0
  %v1142 = vadd.f32 %v742, %v1141
  %v1143 = vpop.f32.mrb[0].mxu0
  %1144 = vmatprep.mubr.f32.mxu0 0.0
  %1145 = vmatmul.mubr.f32.gmra.mrb[0].mxu0 %v409
  %v1146 = vpop.f32.mrb[0].mxu0
  %v1147 = vadd.f32 %v747, %v1146
  %v1148 = vpop.f32.mrb[0].mxu0
  %1149 = vmatprep.mubr.f32.mxu0 0.0
  %1150 = vmatmul.mubr.f32.gmra.mrb[0].mxu0 %v412
  %v1151 = vpop.f32.mrb[0].mxu0
  %v1152 = vadd.f32 %v752, %v1151
  %v1153 = vpop.f32.mrb[0].mxu0
  %1154 = vmatprep.mubr.f32.mxu0 0.0
  %1155 = vmatmul.mubr.f32.gmra.mrb[0].mxu0 %v415
  %v1156 = vpop.f32.mrb[0].mxu0
  %v1157 = vadd.f32 %v757, %v1156
  %v1158 = vpop.f32.mrb[0].mxu0
  %1159 = vmatprep.mubr.f32.mxu0 0.0
  %1160 = vmatmul.mubr.f32.gmra.mrb[0].mxu0 %v418
  %v1161 = vpop.f32.mrb[0].mxu0
  %v1162 = vadd.f32 %v762, %v1161
  %v1163 = vpop.f32.mrb[0].mxu0
  %1164 = vmatprep.mubr.f32.mxu0 0.0
  %1165 = vmatmul.mubr.f32.gmra.mrb[0].mxu0 %v421
  %v1166 = vpop.f32.mrb[0].mxu0
  %v1167 = vadd.f32 %v767, %v1166
  %v1168 = vpop.f32.mrb[0].mxu0
  %1169 = vmatprep.mubr.f32.mxu0 0.0
  %1170 = vmatmul.mubr.f32.gmra.mrb[0].mxu0 %v424
  %v1171 = vpop.f32.mrb[0].mxu0
  %v1172 = vadd.f32 %v772, %v1171
  %v1173 = vpop.f32.mrb[0].mxu0
  %1174 = vmatprep.mubr.f32.mxu0 0.0
  %1175 = vmatmul.mubr.f32.gmra.mrb[0].mxu0 %v427
  %v1176 = vpop.f32.mrb[0].mxu0
  %v1177 = vadd.f32 %v777, %v1176
  %v1178 = vpop.f32.mrb[0].mxu0
  %1179 = vmatprep.mubr.f32.mxu0 0.0
  %1180 = vmatmul.mubr.f32.gmra.mrb[0].mxu0 %v430
  %v1181 = vpop.f32.mrb[0].mxu0
  %v1182 = vadd.f32 %v782, %v1181
  %v1183 = vpop.f32.mrb[0].mxu0
  %1184 = vmatprep.mubr.f32.mxu0 0.0
  %1185 = vmatmul.mubr.f32.gmra.mrb[0].mxu0 %v433
  %v1186 = vpop.f32.mrb[0].mxu0
  %v1187 = vadd.f32 %v787, %v1186
  %v1188 = vpop.f32.mrb[0].mxu0
  %1189 = vmatprep.mubr.f32.mxu0 0.0
  %1190 = vmatmul.mubr.f32.gmra.mrb[0].mxu0 %v436
  %v1191 = vpop.f32.mrb[0].mxu0
  %v1192 = vadd.f32 %v792, %v1191
  %v1193 = vpop.f32.mrb[0].mxu0
  %1194 = vmatprep.mubr.f32.mxu0 0.0
  %1195 = vmatmul.mubr.f32.gmra.mrb[0].mxu0 %v439
  %v1196 = vpop.f32.mrb[0].mxu0
  %v1197 = vadd.f32 %v797, %v1196
  %v1198 = vpop.f32.mrb[0].mxu0
  %1199 = vmatprep.mubr.f32.mxu0 0.0
  %1200 = vmatmul.mubr.f32.gmra.mrb[0].mxu0 %v442
  %v1201 = vpop.f32.mrb[0].mxu0
  %v1202 = vadd.f32 %v802, %v1201
  %v1203 = vpop.f32.mrb[0].mxu0
  %1204 = vmatprep.mubr.f32.mxu0 0.0
  %1205 = vmatmul.mubr.f32.gmra.mrb[0].mxu0 %v445
  %v1206 = vpop.f32.mrb[0].mxu0
  %v1207 = vadd.f32 %v807, %v1206
  %v1208 = vpop.f32.mrb[0].mxu0
  %1209 = vmatprep.mubr.f32.mxu0 0.0
  %1210 = vmatmul.mubr.f32.gmra.mrb[0].mxu0 %v448
  %v1211 = vpop.f32.mrb[0].mxu0
  %v1212 = vadd.f32 %v812, %v1211
  %v1213 = vpop.f32.mrb[0].mxu0
  %1214 = vmatprep.mubr.f32.mxu0 0.0
  %1215 = vmatmul.mubr.f32.gmra.mrb[0].mxu0 %v451
  %v1216 = vpop.f32.mrb[0].mxu0
  %v1217 = vadd.f32 %v817, %v1216
  %v1218 = vpop.f32.mrb[0].mxu0
  %1219 = vmatprep.mubr.f32.mxu0 0.0
  %1220 = vmatmul.mubr.f32.gmra.mrb[0].mxu0 %v454
  %v1221 = vpop.f32.mrb[0].mxu0
  %v1222 = vadd.f32 %v822, %v1221
  %v1223 = vpop.f32.mrb[0].mxu0
  %1224 = vmatprep.mubr.f32.mxu0 0.0
  %1225 = vmatmul.mubr.f32.gmra.mrb[0].mxu0 %v457
  %v1226 = vpop.f32.mrb[0].mxu0
  %v1227 = vadd.f32 %v827, %v1226
  %v1228 = vpop.f32.mrb[0].mxu0
  %1229 = vmatprep.mubr.f32.mxu0 0.0
  %1230 = vmatmul.mubr.f32.gmra.mrb[0].mxu0 %v460
  %v1231 = vpop.f32.mrb[0].mxu0
  %v1232 = vadd.f32 %v832, %v1231
  %v1233 = vpop.f32.mrb[0].mxu0
  %1234 = vmatprep.mubr.f32.mxu0 0.0
  %1235 = vmatmul.mubr.f32.gmra.mrb[0].mxu0 %v463
  %v1236 = vpop.f32.mrb[0].mxu0
  %v1237 = vadd.f32 %v837, %v1236
  %v1238 = vpop.f32.mrb[0].mxu0
  %1239 = vmatprep.mubr.f32.mxu0 0.0
  %1240 = vmatmul.mubr.f32.gmra.mrb[0].mxu0 %v466
  %v1241 = vpop.f32.mrb[0].mxu0
  %v1242 = vadd.f32 %v842, %v1241
  %v1243 = vpop.f32.mrb[0].mxu0
  %1244 = vmatprep.mubr.f32.mxu0 0.0
  %1245 = vmatmul.mubr.f32.gmra.mrb[0].mxu0 %v469
  %v1246 = vpop.f32.mrb[0].mxu0
  %v1247 = vadd.f32 %v847, %v1246
  %v1248 = vpop.f32.mrb[0].mxu0
  %1249 = vmatprep.mubr.f32.mxu0 0.0
  %1250 = vmatmul.mubr.f32.gmra.mrb[0].mxu0 %v472
  %v1251 = vpop.f32.mrb[0].mxu0
  %v1252 = vadd.f32 %v852, %v1251
  %v1253 = vpop.f32.mrb[0].mxu0
  %1254 = vmatprep.mubr.f32.mxu0 0.0
  %1255 = vmatmul.mubr.f32.gmra.mrb[0].mxu0 %v475
  %v1256 = vpop.f32.mrb[0].mxu0
  %v1257 = vadd.f32 %v857, %v1256
  %v1258 = vpop.f32.mrb[0].mxu0
  %1259 = vmatprep.mubr.f32.mxu0 0.0
  %1260 = vmatmul.mubr.f32.gmra.mrb[0].mxu0 %v478
  %v1261 = vpop.f32.mrb[0].mxu0
  %v1262 = vadd.f32 %v862, %v1261
  %v1263 = vpop.f32.mrb[0].mxu0
  %1264 = vmatprep.mubr.f32.mxu0 0.0
  %1265 = vmatmul.mubr.f32.gmra.mrb[0].mxu0 %v481
  %v1266 = vpop.f32.mrb[0].mxu0
  %v1267 = vadd.f32 %v867, %v1266
  %v1268 = vpop.f32.mrb[0].mxu0
  %1269 = vmatprep.mubr.f32.mxu0 0.0
  %1270 = vmatmul.mubr.f32.gmra.mrb[0].mxu0 %v484
  %v1271 = vpop.f32.mrb[0].mxu0
  %v1272 = vadd.f32 %v872, %v1271
  %v1273 = vpop.f32.mrb[0].mxu0
  %1274 = vmatprep.mubr.f32.mxu0 0.0
  %1275 = vmatmul.mubr.f32.gmra.mrb[0].mxu0 %v487
  %v1276 = vpop.f32.mrb[0].mxu0
  %v1277 = vadd.f32 %v877, %v1276
  %v1278 = vpop.f32.mrb[0].mxu0
  %1279 = vmatprep.mubr.f32.mxu0 0.0
  %1280 = vmatmul.mubr.f32.gmra.mrb[0].mxu0 %v490
  %v1281 = vpop.f32.mrb[0].mxu0
  %v1282 = vadd.f32 %v882, %v1281
  %v1283 = vpop.f32.mrb[0].mxu0
  %1284 = vmatprep.mubr.f32.mxu0 0.0
  %1285 = vmatmul.mubr.f32.gmra.mrb[0].mxu0 %v493
  %v1286 = vpop.f32.mrb[0].mxu0
  %v1287 = vadd.f32 %v887, %v1286
  %v1288 = vpop.f32.mrb[0].mxu0
  %1289 = vdwg.mxu0
  %s1290 = scalar_lea.vmem %s1, 24
  %v1291 = vld [vmem:[%s1290] sm:$0xf]
  %v1293 = vsel %vm90, %v268, 0
  %v1296 = vsel %vm90, %v269, 0
  %v1299 = vsel %vm90, %v304, 0
  %v1302 = vsel %vm90, %v305, 0
  %v1305 = vsel %vm501, %v1291, 0
  %1307 = vmatprep.subr.mxu0 0.0
  %1308 = vmatpush1.msra.mxu0 %v1305
  %1309 = vmatprep.subr.mxu0 0.0
  %1310 = vmatpush1.msra.mxu0 0.0
  %1311 = vmatprep.subr.mxu0 0.0
  %1312 = vmatpush1.msra.mxu0 0.0
  %1313 = vmatprep.subr.mxu0 0.0
  %1314 = vmatpush1.msra.mxu0 0.0
  %1315 = vmatprep.subr.mxu0 0.0
  %1316 = vmatpush1.msra.mxu0 0.0
  %1317 = vmatprep.subr.mxu0 0.0
  %1318 = vmatpush1.msra.mxu0 0.0
  %1319 = vmatprep.subr.mxu0 0.0
  %1320 = vmatpush1.msra.mxu0 0.0
  %1321 = vmatprep.subr.mxu0 0.0
  %1322 = vmatpush1.msra.mxu0 0.0
  %1323 = vmatprep.subr.mxu0 0.0
  %1324 = vmatpush1.msra.mxu0 0.0
  %1325 = vmatprep.subr.mxu0 0.0
  %1326 = vmatpush1.msra.mxu0 0.0
  %1327 = vmatprep.subr.mxu0 0.0
  %1328 = vmatpush1.msra.mxu0 0.0
  %1329 = vmatprep.subr.mxu0 0.0
  %1330 = vmatpush1.msra.mxu0 0.0
  %1331 = vmatprep.subr.mxu0 0.0
  %1332 = vmatpush1.msra.mxu0 0.0
  %1333 = vmatprep.subr.mxu0 0.0
  %1334 = vmatpush1.msra.mxu0 0.0
  %1335 = vmatprep.subr.mxu0 0.0
  %1336 = vmatpush1.msra.mxu0 0.0
  %1337 = vmatprep.subr.mxu0 0.0
  %1338 = vmatpush1.msra.mxu0 0.0
  %1339 = vmatprep.subr.mxu0 0.0
  %1340 = vmatpush1.msra.mxu0 0.0
  %1341 = vmatprep.subr.mxu0 0.0
  %1342 = vmatpush1.msra.mxu0 0.0
  %1343 = vmatprep.subr.mxu0 0.0
  %1344 = vmatpush1.msra.mxu0 0.0
  %1345 = vmatprep.subr.mxu0 0.0
  %1346 = vmatpush1.msra.mxu0 0.0
  %1347 = vmatprep.subr.mxu0 0.0
  %1348 = vmatpush1.msra.mxu0 0.0
  %1349 = vmatprep.subr.mxu0 0.0
  %1350 = vmatpush1.msra.mxu0 0.0
  %1351 = vmatprep.subr.mxu0 0.0
  %1352 = vmatpush1.msra.mxu0 0.0
  %1353 = vmatprep.subr.mxu0 0.0
  %1354 = vmatpush1.msra.mxu0 0.0
  %1355 = vmatprep.subr.mxu0 0.0
  %1356 = vmatpush1.msra.mxu0 0.0
  %1357 = vmatprep.subr.mxu0 0.0
  %1358 = vmatpush1.msra.mxu0 0.0
  %1359 = vmatprep.subr.mxu0 0.0
  %1360 = vmatpush1.msra.mxu0 0.0
  %1361 = vmatprep.subr.mxu0 0.0
  %1362 = vmatpush1.msra.mxu0 0.0
  %1363 = vmatprep.subr.mxu0 0.0
  %1364 = vmatpush1.msra.mxu0 0.0
  %1365 = vmatprep.subr.mxu0 0.0
  %1366 = vmatpush1.msra.mxu0 0.0
  %1367 = vmatprep.subr.mxu0 0.0
  %1368 = vmatpush1.msra.mxu0 0.0
  %1369 = vmatprep.subr.mxu0 0.0
  %1370 = vmatpush1.msra.mxu0 0.0
  %1371 = vmatprep.mubr.f32.mxu0 0.0
  %1372 = vmatmul.mubr.f32.gmra.mrb[0].mxu0 %v316
  %v1373 = vpop.f32.mrb[0].mxu0
  %v1374 = vadd.f32 0.0, %v1373
  %v1375 = vpop.f32.mrb[0].mxu0
  %1376 = vmatprep.mubr.f32.mxu0 0.0
  %1377 = vmatmul.mubr.f32.gmra.mrb[0].mxu0 %v319
  %v1378 = vpop.f32.mrb[0].mxu0
  %v1379 = vadd.f32 0.0, %v1378
  %v1380 = vpop.f32.mrb[0].mxu0
  %1381 = vmatprep.mubr.f32.mxu0 0.0
  %1382 = vmatmul.mubr.f32.gmra.mrb[0].mxu0 %v322
  %v1383 = vpop.f32.mrb[0].mxu0
  %v1384 = vadd.f32 0.0, %v1383
  %v1385 = vpop.f32.mrb[0].mxu0
  %1386 = vmatprep.mubr.f32.mxu0 0.0
  %1387 = vmatmul.mubr.f32.gmra.mrb[0].mxu0 %v325
  %v1388 = vpop.f32.mrb[0].mxu0
  %v1389 = vadd.f32 0.0, %v1388
  %v1390 = vpop.f32.mrb[0].mxu0
  %1391 = vmatprep.mubr.f32.mxu0 0.0
  %1392 = vmatmul.mubr.f32.gmra.mrb[0].mxu0 %v328
  %v1393 = vpop.f32.mrb[0].mxu0
  %v1394 = vadd.f32 0.0, %v1393
  %v1395 = vpop.f32.mrb[0].mxu0
  %1396 = vmatprep.mubr.f32.mxu0 0.0
  %1397 = vmatmul.mubr.f32.gmra.mrb[0].mxu0 %v331
  %v1398 = vpop.f32.mrb[0].mxu0
  %v1399 = vadd.f32 0.0, %v1398
  %v1400 = vpop.f32.mrb[0].mxu0
  %1401 = vmatprep.mubr.f32.mxu0 0.0
  %1402 = vmatmul.mubr.f32.gmra.mrb[0].mxu0 %v334
  %v1403 = vpop.f32.mrb[0].mxu0
  %v1404 = vadd.f32 0.0, %v1403
  %v1405 = vpop.f32.mrb[0].mxu0
  %1406 = vmatprep.mubr.f32.mxu0 0.0
  %1407 = vmatmul.mubr.f32.gmra.mrb[0].mxu0 %v337
  %v1408 = vpop.f32.mrb[0].mxu0
  %v1409 = vadd.f32 0.0, %v1408
  %v1410 = vpop.f32.mrb[0].mxu0
  %1411 = vmatprep.mubr.f32.mxu0 0.0
  %1412 = vmatmul.mubr.f32.gmra.mrb[0].mxu0 %v340
  %v1413 = vpop.f32.mrb[0].mxu0
  %v1414 = vadd.f32 0.0, %v1413
  %v1415 = vpop.f32.mrb[0].mxu0
  %1416 = vmatprep.mubr.f32.mxu0 0.0
  %1417 = vmatmul.mubr.f32.gmra.mrb[0].mxu0 %v343
  %v1418 = vpop.f32.mrb[0].mxu0
  %v1419 = vadd.f32 0.0, %v1418
  %v1420 = vpop.f32.mrb[0].mxu0
  %1421 = vmatprep.mubr.f32.mxu0 0.0
  %1422 = vmatmul.mubr.f32.gmra.mrb[0].mxu0 %v346
  %v1423 = vpop.f32.mrb[0].mxu0
  %v1424 = vadd.f32 0.0, %v1423
  %v1425 = vpop.f32.mrb[0].mxu0
  %1426 = vmatprep.mubr.f32.mxu0 0.0
  %1427 = vmatmul.mubr.f32.gmra.mrb[0].mxu0 %v349
  %v1428 = vpop.f32.mrb[0].mxu0
  %v1429 = vadd.f32 0.0, %v1428
  %v1430 = vpop.f32.mrb[0].mxu0
  %1431 = vmatprep.mubr.f32.mxu0 0.0
  %1432 = vmatmul.mubr.f32.gmra.mrb[0].mxu0 %v352
  %v1433 = vpop.f32.mrb[0].mxu0
  %v1434 = vadd.f32 0.0, %v1433
  %v1435 = vpop.f32.mrb[0].mxu0
  %1436 = vmatprep.mubr.f32.mxu0 0.0
  %1437 = vmatmul.mubr.f32.gmra.mrb[0].mxu0 %v355
  %v1438 = vpop.f32.mrb[0].mxu0
  %v1439 = vadd.f32 0.0, %v1438
  %v1440 = vpop.f32.mrb[0].mxu0
  %1441 = vmatprep.mubr.f32.mxu0 0.0
  %1442 = vmatmul.mubr.f32.gmra.mrb[0].mxu0 %v358
  %v1443 = vpop.f32.mrb[0].mxu0
  %v1444 = vadd.f32 0.0, %v1443
  %v1445 = vpop.f32.mrb[0].mxu0
  %1446 = vmatprep.mubr.f32.mxu0 0.0
  %1447 = vmatmul.mubr.f32.gmra.mrb[0].mxu0 %v361
  %v1448 = vpop.f32.mrb[0].mxu0
  %v1449 = vadd.f32 0.0, %v1448
  %v1450 = vpop.f32.mrb[0].mxu0
  %1451 = vmatprep.mubr.f32.mxu0 0.0
  %1452 = vmatmul.mubr.f32.gmra.mrb[0].mxu0 %v364
  %v1453 = vpop.f32.mrb[0].mxu0
  %v1454 = vadd.f32 0.0, %v1453
  %v1455 = vpop.f32.mrb[0].mxu0
  %1456 = vmatprep.mubr.f32.mxu0 0.0
  %1457 = vmatmul.mubr.f32.gmra.mrb[0].mxu0 %v367
  %v1458 = vpop.f32.mrb[0].mxu0
  %v1459 = vadd.f32 0.0, %v1458
  %v1460 = vpop.f32.mrb[0].mxu0
  %1461 = vmatprep.mubr.f32.mxu0 0.0
  %1462 = vmatmul.mubr.f32.gmra.mrb[0].mxu0 %v370
  %v1463 = vpop.f32.mrb[0].mxu0
  %v1464 = vadd.f32 0.0, %v1463
  %v1465 = vpop.f32.mrb[0].mxu0
  %1466 = vmatprep.mubr.f32.mxu0 0.0
  %1467 = vmatmul.mubr.f32.gmra.mrb[0].mxu0 %v373
  %v1468 = vpop.f32.mrb[0].mxu0
  %v1469 = vadd.f32 0.0, %v1468
  %v1470 = vpop.f32.mrb[0].mxu0
  %1471 = vmatprep.mubr.f32.mxu0 0.0
  %1472 = vmatmul.mubr.f32.gmra.mrb[0].mxu0 %v376
  %v1473 = vpop.f32.mrb[0].mxu0
  %v1474 = vadd.f32 0.0, %v1473
  %v1475 = vpop.f32.mrb[0].mxu0
  %1476 = vmatprep.mubr.f32.mxu0 0.0
  %1477 = vmatmul.mubr.f32.gmra.mrb[0].mxu0 %v379
  %v1478 = vpop.f32.mrb[0].mxu0
  %v1479 = vadd.f32 0.0, %v1478
  %v1480 = vpop.f32.mrb[0].mxu0
  %1481 = vmatprep.mubr.f32.mxu0 0.0
  %1482 = vmatmul.mubr.f32.gmra.mrb[0].mxu0 %v382
  %v1483 = vpop.f32.mrb[0].mxu0
  %v1484 = vadd.f32 0.0, %v1483
  %v1485 = vpop.f32.mrb[0].mxu0
  %1486 = vmatprep.mubr.f32.mxu0 0.0
  %1487 = vmatmul.mubr.f32.gmra.mrb[0].mxu0 %v385
  %v1488 = vpop.f32.mrb[0].mxu0
  %v1489 = vadd.f32 0.0, %v1488
  %v1490 = vpop.f32.mrb[0].mxu0
  %1491 = vmatprep.mubr.f32.mxu0 0.0
  %1492 = vmatmul.mubr.f32.gmra.mrb[0].mxu0 %v388
  %v1493 = vpop.f32.mrb[0].mxu0
  %v1494 = vadd.f32 0.0, %v1493
  %v1495 = vpop.f32.mrb[0].mxu0
  %1496 = vmatprep.mubr.f32.mxu0 0.0
  %1497 = vmatmul.mubr.f32.gmra.mrb[0].mxu0 %v391
  %v1498 = vpop.f32.mrb[0].mxu0
  %v1499 = vadd.f32 0.0, %v1498
  %v1500 = vpop.f32.mrb[0].mxu0
  %1501 = vmatprep.mubr.f32.mxu0 0.0
  %1502 = vmatmul.mubr.f32.gmra.mrb[0].mxu0 %v394
  %v1503 = vpop.f32.mrb[0].mxu0
  %v1504 = vadd.f32 0.0, %v1503
  %v1505 = vpop.f32.mrb[0].mxu0
  %1506 = vmatprep.mubr.f32.mxu0 0.0
  %1507 = vmatmul.mubr.f32.gmra.mrb[0].mxu0 %v397
  %v1508 = vpop.f32.mrb[0].mxu0
  %v1509 = vadd.f32 0.0, %v1508
  %v1510 = vpop.f32.mrb[0].mxu0
  %1511 = vmatprep.mubr.f32.mxu0 0.0
  %1512 = vmatmul.mubr.f32.gmra.mrb[0].mxu0 %v400
  %v1513 = vpop.f32.mrb[0].mxu0
  %v1514 = vadd.f32 0.0, %v1513
  %v1515 = vpop.f32.mrb[0].mxu0
  %1516 = vmatprep.mubr.f32.mxu0 0.0
  %1517 = vmatmul.mubr.f32.gmra.mrb[0].mxu0 %v403
  %v1518 = vpop.f32.mrb[0].mxu0
  %v1519 = vadd.f32 0.0, %v1518
  %v1520 = vpop.f32.mrb[0].mxu0
  %1521 = vmatprep.mubr.f32.mxu0 0.0
  %1522 = vmatmul.mubr.f32.gmra.mrb[0].mxu0 %v1293
  %v1523 = vpop.f32.mrb[0].mxu0
  %v1524 = vadd.f32 0.0, %v1523
  %v1525 = vpop.f32.mrb[0].mxu0
  %1526 = vmatprep.mubr.f32.mxu0 0.0
  %1527 = vmatmul.mubr.f32.gmra.mrb[0].mxu0 %v1296
  %v1528 = vpop.f32.mrb[0].mxu0
  %v1529 = vadd.f32 0.0, %v1528
  %v1530 = vpop.f32.mrb[0].mxu0
  %1531 = vmatprep.mubr.f32.mxu0 0.0
  %1532 = vmatmul.mubr.f32.gmra.mrb[0].mxu0 %v412
  %v1533 = vpop.f32.mrb[0].mxu0
  %v1534 = vadd.f32 0.0, %v1533
  %v1535 = vpop.f32.mrb[0].mxu0
  %1536 = vmatprep.mubr.f32.mxu0 0.0
  %1537 = vmatmul.mubr.f32.gmra.mrb[0].mxu0 %v415
  %v1538 = vpop.f32.mrb[0].mxu0
  %v1539 = vadd.f32 0.0, %v1538
  %v1540 = vpop.f32.mrb[0].mxu0
  %1541 = vmatprep.mubr.f32.mxu0 0.0
  %1542 = vmatmul.mubr.f32.gmra.mrb[0].mxu0 %v418
  %v1543 = vpop.f32.mrb[0].mxu0
  %v1544 = vadd.f32 0.0, %v1543
  %v1545 = vpop.f32.mrb[0].mxu0
  %1546 = vmatprep.mubr.f32.mxu0 0.0
  %1547 = vmatmul.mubr.f32.gmra.mrb[0].mxu0 %v421
  %v1548 = vpop.f32.mrb[0].mxu0
  %v1549 = vadd.f32 0.0, %v1548
  %v1550 = vpop.f32.mrb[0].mxu0
  %1551 = vmatprep.mubr.f32.mxu0 0.0
  %1552 = vmatmul.mubr.f32.gmra.mrb[0].mxu0 %v424
  %v1553 = vpop.f32.mrb[0].mxu0
  %v1554 = vadd.f32 0.0, %v1553
  %v1555 = vpop.f32.mrb[0].mxu0
  %1556 = vmatprep.mubr.f32.mxu0 0.0
  %1557 = vmatmul.mubr.f32.gmra.mrb[0].mxu0 %v427
  %v1558 = vpop.f32.mrb[0].mxu0
  %v1559 = vadd.f32 0.0, %v1558
  %v1560 = vpop.f32.mrb[0].mxu0
  %1561 = vmatprep.mubr.f32.mxu0 0.0
  %1562 = vmatmul.mubr.f32.gmra.mrb[0].mxu0 %v430
  %v1563 = vpop.f32.mrb[0].mxu0
  %v1564 = vadd.f32 0.0, %v1563
  %v1565 = vpop.f32.mrb[0].mxu0
  %1566 = vmatprep.mubr.f32.mxu0 0.0
  %1567 = vmatmul.mubr.f32.gmra.mrb[0].mxu0 %v433
  %v1568 = vpop.f32.mrb[0].mxu0
  %v1569 = vadd.f32 0.0, %v1568
  %v1570 = vpop.f32.mrb[0].mxu0
  %1571 = vmatprep.mubr.f32.mxu0 0.0
  %1572 = vmatmul.mubr.f32.gmra.mrb[0].mxu0 %v436
  %v1573 = vpop.f32.mrb[0].mxu0
  %v1574 = vadd.f32 0.0, %v1573
  %v1575 = vpop.f32.mrb[0].mxu0
  %1576 = vmatprep.mubr.f32.mxu0 0.0
  %1577 = vmatmul.mubr.f32.gmra.mrb[0].mxu0 %v439
  %v1578 = vpop.f32.mrb[0].mxu0
  %v1579 = vadd.f32 0.0, %v1578
  %v1580 = vpop.f32.mrb[0].mxu0
  %1581 = vmatprep.mubr.f32.mxu0 0.0
  %1582 = vmatmul.mubr.f32.gmra.mrb[0].mxu0 %v442
  %v1583 = vpop.f32.mrb[0].mxu0
  %v1584 = vadd.f32 0.0, %v1583
  %v1585 = vpop.f32.mrb[0].mxu0
  %1586 = vmatprep.mubr.f32.mxu0 0.0
  %1587 = vmatmul.mubr.f32.gmra.mrb[0].mxu0 %v445
  %v1588 = vpop.f32.mrb[0].mxu0
  %v1589 = vadd.f32 0.0, %v1588
  %v1590 = vpop.f32.mrb[0].mxu0
  %1591 = vmatprep.mubr.f32.mxu0 0.0
  %1592 = vmatmul.mubr.f32.gmra.mrb[0].mxu0 %v448
  %v1593 = vpop.f32.mrb[0].mxu0
  %v1594 = vadd.f32 0.0, %v1593
  %v1595 = vpop.f32.mrb[0].mxu0
  %1596 = vmatprep.mubr.f32.mxu0 0.0
  %1597 = vmatmul.mubr.f32.gmra.mrb[0].mxu0 %v451
  %v1598 = vpop.f32.mrb[0].mxu0
  %v1599 = vadd.f32 0.0, %v1598
  %v1600 = vpop.f32.mrb[0].mxu0
  %1601 = vmatprep.mubr.f32.mxu0 0.0
  %1602 = vmatmul.mubr.f32.gmra.mrb[0].mxu0 %v454
  %v1603 = vpop.f32.mrb[0].mxu0
  %v1604 = vadd.f32 0.0, %v1603
  %v1605 = vpop.f32.mrb[0].mxu0
  %1606 = vmatprep.mubr.f32.mxu0 0.0
  %1607 = vmatmul.mubr.f32.gmra.mrb[0].mxu0 %v457
  %v1608 = vpop.f32.mrb[0].mxu0
  %v1609 = vadd.f32 0.0, %v1608
  %v1610 = vpop.f32.mrb[0].mxu0
  %1611 = vmatprep.mubr.f32.mxu0 0.0
  %1612 = vmatmul.mubr.f32.gmra.mrb[0].mxu0 %v460
  %v1613 = vpop.f32.mrb[0].mxu0
  %v1614 = vadd.f32 0.0, %v1613
  %v1615 = vpop.f32.mrb[0].mxu0
  %1616 = vmatprep.mubr.f32.mxu0 0.0
  %1617 = vmatmul.mubr.f32.gmra.mrb[0].mxu0 %v463
  %v1618 = vpop.f32.mrb[0].mxu0
  %v1619 = vadd.f32 0.0, %v1618
  %v1620 = vpop.f32.mrb[0].mxu0
  %1621 = vmatprep.mubr.f32.mxu0 0.0
  %1622 = vmatmul.mubr.f32.gmra.mrb[0].mxu0 %v466
  %v1623 = vpop.f32.mrb[0].mxu0
  %v1624 = vadd.f32 0.0, %v1623
  %v1625 = vpop.f32.mrb[0].mxu0
  %1626 = vmatprep.mubr.f32.mxu0 0.0
  %1627 = vmatmul.mubr.f32.gmra.mrb[0].mxu0 %v469
  %v1628 = vpop.f32.mrb[0].mxu0
  %v1629 = vadd.f32 0.0, %v1628
  %v1630 = vpop.f32.mrb[0].mxu0
  %1631 = vmatprep.mubr.f32.mxu0 0.0
  %1632 = vmatmul.mubr.f32.gmra.mrb[0].mxu0 %v472
  %v1633 = vpop.f32.mrb[0].mxu0
  %v1634 = vadd.f32 0.0, %v1633
  %v1635 = vpop.f32.mrb[0].mxu0
  %1636 = vmatprep.mubr.f32.mxu0 0.0
  %1637 = vmatmul.mubr.f32.gmra.mrb[0].mxu0 %v475
  %v1638 = vpop.f32.mrb[0].mxu0
  %v1639 = vadd.f32 0.0, %v1638
  %v1640 = vpop.f32.mrb[0].mxu0
  %1641 = vmatprep.mubr.f32.mxu0 0.0
  %1642 = vmatmul.mubr.f32.gmra.mrb[0].mxu0 %v478
  %v1643 = vpop.f32.mrb[0].mxu0
  %v1644 = vadd.f32 0.0, %v1643
  %v1645 = vpop.f32.mrb[0].mxu0
  %1646 = vmatprep.mubr.f32.mxu0 0.0
  %1647 = vmatmul.mubr.f32.gmra.mrb[0].mxu0 %v481
  %v1648 = vpop.f32.mrb[0].mxu0
  %v1649 = vadd.f32 0.0, %v1648
  %v1650 = vpop.f32.mrb[0].mxu0
  %1651 = vmatprep.mubr.f32.mxu0 0.0
  %1652 = vmatmul.mubr.f32.gmra.mrb[0].mxu0 %v484
  %v1653 = vpop.f32.mrb[0].mxu0
  %v1654 = vadd.f32 0.0, %v1653
  %v1655 = vpop.f32.mrb[0].mxu0
  %1656 = vmatprep.mubr.f32.mxu0 0.0
  %1657 = vmatmul.mubr.f32.gmra.mrb[0].mxu0 %v487
  %v1658 = vpop.f32.mrb[0].mxu0
  %v1659 = vadd.f32 0.0, %v1658
  %v1660 = vpop.f32.mrb[0].mxu0
  %1661 = vmatprep.mubr.f32.mxu0 0.0
  %1662 = vmatmul.mubr.f32.gmra.mrb[0].mxu0 %v490
  %v1663 = vpop.f32.mrb[0].mxu0
  %v1664 = vadd.f32 0.0, %v1663
  %v1665 = vpop.f32.mrb[0].mxu0
  %1666 = vmatprep.mubr.f32.mxu0 0.0
  %1667 = vmatmul.mubr.f32.gmra.mrb[0].mxu0 %v493
  %v1668 = vpop.f32.mrb[0].mxu0
  %v1669 = vadd.f32 0.0, %v1668
  %v1670 = vpop.f32.mrb[0].mxu0
  %1671 = vmatprep.mubr.f32.mxu0 0.0
  %1672 = vmatmul.mubr.f32.gmra.mrb[0].mxu0 %v496
  %v1673 = vpop.f32.mrb[0].mxu0
  %v1674 = vadd.f32 0.0, %v1673
  %v1675 = vpop.f32.mrb[0].mxu0
  %1676 = vmatprep.mubr.f32.mxu0 0.0
  %1677 = vmatmul.mubr.f32.gmra.mrb[0].mxu0 %v499
  %v1678 = vpop.f32.mrb[0].mxu0
  %v1679 = vadd.f32 0.0, %v1678
  %v1680 = vpop.f32.mrb[0].mxu0
  %1681 = vmatprep.mubr.f32.mxu0 0.0
  %1682 = vmatmul.mubr.f32.gmra.mrb[0].mxu0 %v1299
  %v1683 = vpop.f32.mrb[0].mxu0
  %v1684 = vadd.f32 0.0, %v1683
  %v1685 = vpop.f32.mrb[0].mxu0
  %1686 = vmatprep.mubr.f32.mxu0 0.0
  %1687 = vmatmul.mubr.f32.gmra.mrb[0].mxu0 %v1302
  %v1688 = vpop.f32.mrb[0].mxu0
  %v1689 = vadd.f32 0.0, %v1688
  %v1690 = vpop.f32.mrb[0].mxu0
  %1691 = vdwg.mxu0
  %v1692 = vadd.f32 %v972, %v1374
  %v1693 = vadd.f32 %v977, %v1379
  %v1694 = vadd.f32 %v982, %v1384
  %v1695 = vadd.f32 %v987, %v1389
  %v1696 = vadd.f32 %v992, %v1394
  %v1697 = vadd.f32 %v997, %v1399
  %v1698 = vadd.f32 %v1002, %v1404
  %v1699 = vadd.f32 %v1007, %v1409
  %v1700 = vadd.f32 %v1012, %v1414
  %v1701 = vadd.f32 %v1017, %v1419
  %v1702 = vadd.f32 %v1022, %v1424
  %v1703 = vadd.f32 %v1027, %v1429
  %v1704 = vadd.f32 %v1032, %v1434
  %v1705 = vadd.f32 %v1037, %v1439
  %v1706 = vadd.f32 %v1042, %v1444
  %v1707 = vadd.f32 %v1047, %v1449
  %v1708 = vadd.f32 %v1052, %v1454
  %v1709 = vadd.f32 %v1057, %v1459
  %v1710 = vadd.f32 %v1062, %v1464
  %v1711 = vadd.f32 %v1067, %v1469
  %v1712 = vadd.f32 %v1072, %v1474
  %v1713 = vadd.f32 %v1077, %v1479
  %v1714 = vadd.f32 %v1082, %v1484
  %v1715 = vadd.f32 %v1087, %v1489
  %v1716 = vadd.f32 %v1092, %v1494
  %v1717 = vadd.f32 %v1097, %v1499
  %v1718 = vadd.f32 %v1102, %v1504
  %v1719 = vadd.f32 %v1107, %v1509
  %v1720 = vadd.f32 %v1112, %v1514
  %v1721 = vadd.f32 %v1117, %v1519
  %v1722 = vadd.f32 %v1122, %v1524
  %v1723 = vadd.f32 %v1127, %v1529
  %v1724 = vadd.f32 %v1132, %v1534
  %v1725 = vadd.f32 %v1137, %v1539
  %v1726 = vadd.f32 %v1142, %v1544
  %v1727 = vadd.f32 %v1147, %v1549
  %v1728 = vadd.f32 %v1152, %v1554
  %v1729 = vadd.f32 %v1157, %v1559
  %v1730 = vadd.f32 %v1162, %v1564
  %v1731 = vadd.f32 %v1167, %v1569
  %v1732 = vadd.f32 %v1172, %v1574
  %v1733 = vadd.f32 %v1177, %v1579
  %v1734 = vadd.f32 %v1182, %v1584
  %v1735 = vadd.f32 %v1187, %v1589
  %v1736 = vadd.f32 %v1192, %v1594
  %v1737 = vadd.f32 %v1197, %v1599
  %v1738 = vadd.f32 %v1202, %v1604
  %v1739 = vadd.f32 %v1207, %v1609
  %v1740 = vadd.f32 %v1212, %v1614
  %v1741 = vadd.f32 %v1217, %v1619
  %v1742 = vadd.f32 %v1222, %v1624
  %v1743 = vadd.f32 %v1227, %v1629
  %v1744 = vadd.f32 %v1232, %v1634
  %v1745 = vadd.f32 %v1237, %v1639
  %v1746 = vadd.f32 %v1242, %v1644
  %v1747 = vadd.f32 %v1247, %v1649
  %v1748 = vadd.f32 %v1252, %v1654
  %v1749 = vadd.f32 %v1257, %v1659
  %v1750 = vadd.f32 %v1262, %v1664
  %v1751 = vadd.f32 %v1267, %v1669
  %v1752 = vadd.f32 %v1272, %v1674
  %v1753 = vadd.f32 %v1277, %v1679
  %v1754 = vadd.f32 %v1282, %v1684
  %v1755 = vadd.f32 %v1287, %v1689
  %v1756 = vld [vmem:[#allocation2 + $0x1] sm:$0xff]
  %v1757 = vld [vmem:[#allocation2 + $0x9] sm:$0xff]
  %v1758 = vld [vmem:[#allocation2 + $0x19] sm:$0xff]
  %v1759 = vld [vmem:[#allocation2 + $0x21] sm:$0xff]
  %v1760 = vld [vmem:[#allocation2 + $0x31] sm:$0xff]
  %v1761 = vld [vmem:[#allocation2 + $0x39] sm:$0xff]
  %v1762 = vld [vmem:[#allocation2 + $0x49] sm:$0xff]
  %v1763 = vld [vmem:[#allocation2 + $0x51] sm:$0xff]
  %v1764 = vld [vmem:[#allocation2 + $0x61] sm:$0xff]
  %v1765 = vld [vmem:[#allocation2 + $0x69] sm:$0xff]
  %v1766 = vld [vmem:[#allocation2 + $0x79] sm:$0xff]
  %v1767 = vld [vmem:[#allocation2 + $0x81] sm:$0xff]
  %v1768 = vld [vmem:[#allocation2 + $0x91] sm:$0xff]
  %v1769 = vld [vmem:[#allocation2 + $0x99] sm:$0xff]
  %v1770 = vld [vmem:[#allocation2 + $0xa9] sm:$0xff]
  %v1771 = vld [vmem:[#allocation2 + $0xb1] sm:$0xff]
  %v1772 = vld [vmem:[#allocation2 + $0xc1] sm:$0xff]
  %v1773 = vld [vmem:[#allocation2 + $0xc9] sm:$0xff]
  %v1774 = vld [vmem:[#allocation2 + $0xd9] sm:$0xff]
  %v1775 = vld [vmem:[#allocation2 + $0xe1] sm:$0xff]
  %v1776 = vld [vmem:[#allocation2 + $0xf1] sm:$0xff]
  %v1777 = vld [vmem:[#allocation2 + $0xf9] sm:$0xff]
  %v1778 = vld [vmem:[#allocation2 + $0x109] sm:$0xff]
  %v1779 = vld [vmem:[#allocation2 + $0x111] sm:$0xff]
  %v1780 = vld [vmem:[#allocation2 + $0x121] sm:$0xff]
  %v1781 = vld [vmem:[#allocation2 + $0x129] sm:$0xff]
  %v1782 = vld [vmem:[#allocation2 + $0x139] sm:$0xff]
  %v1783 = vld [vmem:[#allocation2 + $0x141] sm:$0xff]
  %v1784 = vld [vmem:[#allocation2 + $0x151] sm:$0xff]
  %v1785 = vld [vmem:[#allocation2 + $0x159] sm:$0xff]
  %v1786 = vld [vmem:[#allocation2 + $0x169] sm:$0xff]
  %v1787 = vld [vmem:[#allocation2 + $0x171] sm:$0xff]
  %v1788 = vld [vmem:[#allocation2 + $0x181] sm:$0xff]
  %v1789 = vld [vmem:[#allocation2 + $0x189] sm:$0xff]
  %v1790 = vld [vmem:[#allocation2 + $0x199] sm:$0xff]
  %v1791 = vld [vmem:[#allocation2 + $0x1a1] sm:$0xff]
  %v1792 = vld [vmem:[#allocation2 + $0x1b1] sm:$0xff]
  %v1793 = vld [vmem:[#allocation2 + $0x1b9] sm:$0xff]
  %v1794 = vld [vmem:[#allocation2 + $0x1c9] sm:$0xff]
  %v1795 = vld [vmem:[#allocation2 + $0x1d1] sm:$0xff]
  %v1796 = vld [vmem:[#allocation2 + $0x1e1] sm:$0xff]
  %v1797 = vld [vmem:[#allocation2 + $0x1e9] sm:$0xff]
  %v1798 = vld [vmem:[#allocation2 + $0x1f9] sm:$0xff]
  %v1799 = vld [vmem:[#allocation2 + $0x201] sm:$0xff]
  %v1800 = vld [vmem:[#allocation2 + $0x211] sm:$0xff]
  %v1801 = vld [vmem:[#allocation2 + $0x219] sm:$0xff]
  %v1802 = vld [vmem:[#allocation2 + $0x229] sm:$0xff]
  %v1803 = vld [vmem:[#allocation2 + $0x231] sm:$0xff]
  %v1804 = vld [vmem:[#allocation2 + $0x241] sm:$0xff]
  %v1805 = vld [vmem:[#allocation2 + $0x249] sm:$0xff]
  %v1806 = vld [vmem:[#allocation2 + $0x259] sm:$0xff]
  %v1807 = vld [vmem:[#allocation2 + $0x261] sm:$0xff]
  %v1808 = vld [vmem:[#allocation2 + $0x271] sm:$0xff]
  %v1809 = vld [vmem:[#allocation2 + $0x279] sm:$0xff]
  %v1810 = vld [vmem:[#allocation2 + $0x289] sm:$0xff]
  %v1811 = vld [vmem:[#allocation2 + $0x291] sm:$0xff]
  %v1812 = vld [vmem:[#allocation2 + $0x2a1] sm:$0xff]
  %v1813 = vld [vmem:[#allocation2 + $0x2a9] sm:$0xff]
  %v1814 = vld [vmem:[#allocation2 + $0x2b9] sm:$0xff]
  %v1815 = vld [vmem:[#allocation2 + $0x2c1] sm:$0xff]
  %v1816 = vld [vmem:[#allocation2 + $0x2d1] sm:$0xff]
  %v1817 = vld [vmem:[#allocation2 + $0x2d9] sm:$0xff]
  %v1818 = vld [vmem:[#allocation2 + $0x2e9] sm:$0xff]
  %v1819 = vld [vmem:[#allocation2 + $0x2f1] sm:$0xff]
  %v1820 = vld [vmem:[#allocation2 + $0x301] sm:$0xff]
  %v1821 = vld [vmem:[#allocation2 + $0x309] sm:$0xff]
  %v1822 = vld [vmem:[#allocation2 + $0x319] sm:$0xff]
  %v1823 = vld [vmem:[#allocation2 + $0x321] sm:$0xff]
  %v1824 = vld [vmem:[#allocation2 + $0x331] sm:$0xff]
  %v1825 = vld [vmem:[#allocation2 + $0x339] sm:$0xff]
  %v1826 = vld [vmem:[#allocation2 + $0x349] sm:$0xff]
  %v1827 = vld [vmem:[#allocation2 + $0x351] sm:$0xff]
  %s1828 = scalar_lea.vmem %s1, 4
  %v1829 = vld [vmem:[%s1828] sm:$0xf]
  %v1831 = vsel %vm90, %v1756, 0
  %v1834 = vsel %vm90, %v1757, 0
  %v1837 = vsel %vm90, %v1758, 0
  %v1840 = vsel %vm90, %v1759, 0
  %v1843 = vsel %vm90, %v1760, 0
  %v1846 = vsel %vm90, %v1761, 0
  %v1849 = vsel %vm90, %v1762, 0
  %v1852 = vsel %vm90, %v1763, 0
  %v1855 = vsel %vm90, %v1764, 0
  %v1858 = vsel %vm90, %v1765, 0
  %v1861 = vsel %vm90, %v1766, 0
  %v1864 = vsel %vm90, %v1767, 0
  %v1867 = vsel %vm90, %v1768, 0
  %v1870 = vsel %vm90, %v1769, 0
  %v1873 = vsel %vm90, %v1770, 0
  %v1876 = vsel %vm90, %v1771, 0
  %v1879 = vsel %vm90, %v1772, 0
  %v1882 = vsel %vm90, %v1773, 0
  %v1885 = vsel %vm90, %v1774, 0
  %v1888 = vsel %vm90, %v1775, 0
  %v1891 = vsel %vm90, %v1776, 0
  %v1894 = vsel %vm90, %v1777, 0
  %v1897 = vsel %vm90, %v1778, 0
  %v1900 = vsel %vm90, %v1779, 0
  %v1903 = vsel %vm90, %v1780, 0
  %v1906 = vsel %vm90, %v1781, 0
  %v1909 = vsel %vm90, %v1782, 0
  %v1912 = vsel %vm90, %v1783, 0
  %v1915 = vsel %vm90, %v1784, 0
  %v1918 = vsel %vm90, %v1785, 0
  %v1921 = vsel %vm90, %v1786, 0
  %v1924 = vsel %vm90, %v1787, 0
  %v1927 = vsel %vm90, %v1792, 0
  %v1930 = vsel %vm90, %v1793, 0
  %v1933 = vsel %vm90, %v1794, 0
  %v1936 = vsel %vm90, %v1795, 0
  %v1939 = vsel %vm90, %v1796, 0
  %v1942 = vsel %vm90, %v1797, 0
  %v1945 = vsel %vm90, %v1798, 0
  %v1948 = vsel %vm90, %v1799, 0
  %v1951 = vsel %vm90, %v1800, 0
  %v1954 = vsel %vm90, %v1801, 0
  %v1957 = vsel %vm90, %v1802, 0
  %v1960 = vsel %vm90, %v1803, 0
  %v1963 = vsel %vm90, %v1804, 0
  %v1966 = vsel %vm90, %v1805, 0
  %v1969 = vsel %vm90, %v1806, 0
  %v1972 = vsel %vm90, %v1807, 0
  %v1975 = vsel %vm90, %v1808, 0
  %v1978 = vsel %vm90, %v1809, 0
  %v1981 = vsel %vm90, %v1810, 0
  %v1984 = vsel %vm90, %v1811, 0
  %v1987 = vsel %vm90, %v1812, 0
  %v1990 = vsel %vm90, %v1813, 0
  %v1993 = vsel %vm90, %v1814, 0
  %v1996 = vsel %vm90, %v1815, 0
  %v1999 = vsel %vm90, %v1816, 0
  %v2002 = vsel %vm90, %v1817, 0
  %v2005 = vsel %vm90, %v1818, 0
  %v2008 = vsel %vm90, %v1819, 0
  %v2011 = vsel %vm90, %v1820, 0
  %v2014 = vsel %vm90, %v1821, 0
  %v2017 = vsel %vm90, %v1822, 0
  %v2020 = vsel %vm90, %v1823, 0
  %v2023 = vsel %vm501, %v1829, 0
  %2025 = vmatprep.subr.mxu0 0.0
  %2026 = vmatpush1.msra.mxu0 %v2023
  %2027 = vmatprep.subr.mxu0 0.0
  %2028 = vmatpush1.msra.mxu0 0.0
  %2029 = vmatprep.subr.mxu0 0.0
  %2030 = vmatpush1.msra.mxu0 0.0
  %2031 = vmatprep.subr.mxu0 0.0
  %2032 = vmatpush1.msra.mxu0 0.0
  %2033 = vmatprep.subr.mxu0 0.0
  %2034 = vmatpush1.msra.mxu0 0.0
  %2035 = vmatprep.subr.mxu0 0.0
  %2036 = vmatpush1.msra.mxu0 0.0
  %2037 = vmatprep.subr.mxu0 0.0
  %2038 = vmatpush1.msra.mxu0 0.0
  %2039 = vmatprep.subr.mxu0 0.0
  %2040 = vmatpush1.msra.mxu0 0.0
  %2041 = vmatprep.subr.mxu0 0.0
  %2042 = vmatpush1.msra.mxu0 0.0
  %2043 = vmatprep.subr.mxu0 0.0
  %2044 = vmatpush1.msra.mxu0 0.0
  %2045 = vmatprep.subr.mxu0 0.0
  %2046 = vmatpush1.msra.mxu0 0.0
  %2047 = vmatprep.subr.mxu0 0.0
  %2048 = vmatpush1.msra.mxu0 0.0
  %2049 = vmatprep.subr.mxu0 0.0
  %2050 = vmatpush1.msra.mxu0 0.0
  %2051 = vmatprep.subr.mxu0 0.0
  %2052 = vmatpush1.msra.mxu0 0.0
  %2053 = vmatprep.subr.mxu0 0.0
  %2054 = vmatpush1.msra.mxu0 0.0
  %2055 = vmatprep.subr.mxu0 0.0
  %2056 = vmatpush1.msra.mxu0 0.0
  %2057 = vmatprep.subr.mxu0 0.0
  %2058 = vmatpush1.msra.mxu0 0.0
  %2059 = vmatprep.subr.mxu0 0.0
  %2060 = vmatpush1.msra.mxu0 0.0
  %2061 = vmatprep.subr.mxu0 0.0
  %2062 = vmatpush1.msra.mxu0 0.0
  %2063 = vmatprep.subr.mxu0 0.0
  %2064 = vmatpush1.msra.mxu0 0.0
  %2065 = vmatprep.subr.mxu0 0.0
  %2066 = vmatpush1.msra.mxu0 0.0
  %2067 = vmatprep.subr.mxu0 0.0
  %2068 = vmatpush1.msra.mxu0 0.0
  %2069 = vmatprep.subr.mxu0 0.0
  %2070 = vmatpush1.msra.mxu0 0.0
  %2071 = vmatprep.subr.mxu0 0.0
  %2072 = vmatpush1.msra.mxu0 0.0
  %2073 = vmatprep.subr.mxu0 0.0
  %2074 = vmatpush1.msra.mxu0 0.0
  %2075 = vmatprep.subr.mxu0 0.0
  %2076 = vmatpush1.msra.mxu0 0.0
  %2077 = vmatprep.subr.mxu0 0.0
  %2078 = vmatpush1.msra.mxu0 0.0
  %2079 = vmatprep.subr.mxu0 0.0
  %2080 = vmatpush1.msra.mxu0 0.0
  %2081 = vmatprep.subr.mxu0 0.0
  %2082 = vmatpush1.msra.mxu0 0.0
  %2083 = vmatprep.subr.mxu0 0.0
  %2084 = vmatpush1.msra.mxu0 0.0
  %2085 = vmatprep.subr.mxu0 0.0
  %2086 = vmatpush1.msra.mxu0 0.0
  %2087 = vmatprep.subr.mxu0 0.0
  %2088 = vmatpush1.msra.mxu0 0.0
  %2089 = vmatprep.mubr.f32.mxu0 0.0
  %2090 = vmatmul.mubr.f32.gmra.mrb[0].mxu0 %v1831
  %v2091 = vpop.f32.mrb[0].mxu0
  %v2092 = vadd.f32 0.0, %v2091
  %v2093 = vpop.f32.mrb[0].mxu0
  %2094 = vmatprep.mubr.f32.mxu0 0.0
  %2095 = vmatmul.mubr.f32.gmra.mrb[0].mxu0 %v1834
  %v2096 = vpop.f32.mrb[0].mxu0
  %v2097 = vadd.f32 0.0, %v2096
  %v2098 = vpop.f32.mrb[0].mxu0
  %2099 = vmatprep.mubr.f32.mxu0 0.0
  %2100 = vmatmul.mubr.f32.gmra.mrb[0].mxu0 %v1837
  %v2101 = vpop.f32.mrb[0].mxu0
  %v2102 = vadd.f32 0.0, %v2101
  %v2103 = vpop.f32.mrb[0].mxu0
  %2104 = vmatprep.mubr.f32.mxu0 0.0
  %2105 = vmatmul.mubr.f32.gmra.mrb[0].mxu0 %v1840
  %v2106 = vpop.f32.mrb[0].mxu0
  %v2107 = vadd.f32 0.0, %v2106
  %v2108 = vpop.f32.mrb[0].mxu0
  %2109 = vmatprep.mubr.f32.mxu0 0.0
  %2110 = vmatmul.mubr.f32.gmra.mrb[0].mxu0 %v1843
  %v2111 = vpop.f32.mrb[0].mxu0
  %v2112 = vadd.f32 0.0, %v2111
  %v2113 = vpop.f32.mrb[0].mxu0
  %2114 = vmatprep.mubr.f32.mxu0 0.0
  %2115 = vmatmul.mubr.f32.gmra.mrb[0].mxu0 %v1846
  %v2116 = vpop.f32.mrb[0].mxu0
  %v2117 = vadd.f32 0.0, %v2116
  %v2118 = vpop.f32.mrb[0].mxu0
  %2119 = vmatprep.mubr.f32.mxu0 0.0
  %2120 = vmatmul.mubr.f32.gmra.mrb[0].mxu0 %v1849
  %v2121 = vpop.f32.mrb[0].mxu0
  %v2122 = vadd.f32 0.0, %v2121
  %v2123 = vpop.f32.mrb[0].mxu0
  %2124 = vmatprep.mubr.f32.mxu0 0.0
  %2125 = vmatmul.mubr.f32.gmra.mrb[0].mxu0 %v1852
  %v2126 = vpop.f32.mrb[0].mxu0
  %v2127 = vadd.f32 0.0, %v2126
  %v2128 = vpop.f32.mrb[0].mxu0
  %2129 = vmatprep.mubr.f32.mxu0 0.0
  %2130 = vmatmul.mubr.f32.gmra.mrb[0].mxu0 %v1855
  %v2131 = vpop.f32.mrb[0].mxu0
  %v2132 = vadd.f32 0.0, %v2131
  %v2133 = vpop.f32.mrb[0].mxu0
  %2134 = vmatprep.mubr.f32.mxu0 0.0
  %2135 = vmatmul.mubr.f32.gmra.mrb[0].mxu0 %v1858
  %v2136 = vpop.f32.mrb[0].mxu0
  %v2137 = vadd.f32 0.0, %v2136
  %v2138 = vpop.f32.mrb[0].mxu0
  %2139 = vmatprep.mubr.f32.mxu0 0.0
  %2140 = vmatmul.mubr.f32.gmra.mrb[0].mxu0 %v1861
  %v2141 = vpop.f32.mrb[0].mxu0
  %v2142 = vadd.f32 0.0, %v2141
  %v2143 = vpop.f32.mrb[0].mxu0
  %2144 = vmatprep.mubr.f32.mxu0 0.0
  %2145 = vmatmul.mubr.f32.gmra.mrb[0].mxu0 %v1864
  %v2146 = vpop.f32.mrb[0].mxu0
  %v2147 = vadd.f32 0.0, %v2146
  %v2148 = vpop.f32.mrb[0].mxu0
  %2149 = vmatprep.mubr.f32.mxu0 0.0
  %2150 = vmatmul.mubr.f32.gmra.mrb[0].mxu0 %v1867
  %v2151 = vpop.f32.mrb[0].mxu0
  %v2152 = vadd.f32 0.0, %v2151
  %v2153 = vpop.f32.mrb[0].mxu0
  %2154 = vmatprep.mubr.f32.mxu0 0.0
  %2155 = vmatmul.mubr.f32.gmra.mrb[0].mxu0 %v1870
  %v2156 = vpop.f32.mrb[0].mxu0
  %v2157 = vadd.f32 0.0, %v2156
  %v2158 = vpop.f32.mrb[0].mxu0
  %2159 = vmatprep.mubr.f32.mxu0 0.0
  %2160 = vmatmul.mubr.f32.gmra.mrb[0].mxu0 %v1873
  %v2161 = vpop.f32.mrb[0].mxu0
  %v2162 = vadd.f32 0.0, %v2161
  %v2163 = vpop.f32.mrb[0].mxu0
  %2164 = vmatprep.mubr.f32.mxu0 0.0
  %2165 = vmatmul.mubr.f32.gmra.mrb[0].mxu0 %v1876
  %v2166 = vpop.f32.mrb[0].mxu0
  %v2167 = vadd.f32 0.0, %v2166
  %v2168 = vpop.f32.mrb[0].mxu0
  %2169 = vmatprep.mubr.f32.mxu0 0.0
  %2170 = vmatmul.mubr.f32.gmra.mrb[0].mxu0 %v1879
  %v2171 = vpop.f32.mrb[0].mxu0
  %v2172 = vadd.f32 0.0, %v2171
  %v2173 = vpop.f32.mrb[0].mxu0
  %2174 = vmatprep.mubr.f32.mxu0 0.0
  %2175 = vmatmul.mubr.f32.gmra.mrb[0].mxu0 %v1882
  %v2176 = vpop.f32.mrb[0].mxu0
  %v2177 = vadd.f32 0.0, %v2176
  %v2178 = vpop.f32.mrb[0].mxu0
  %2179 = vmatprep.mubr.f32.mxu0 0.0
  %2180 = vmatmul.mubr.f32.gmra.mrb[0].mxu0 %v1885
  %v2181 = vpop.f32.mrb[0].mxu0
  %v2182 = vadd.f32 0.0, %v2181
  %v2183 = vpop.f32.mrb[0].mxu0
  %2184 = vmatprep.mubr.f32.mxu0 0.0
  %2185 = vmatmul.mubr.f32.gmra.mrb[0].mxu0 %v1888
  %v2186 = vpop.f32.mrb[0].mxu0
  %v2187 = vadd.f32 0.0, %v2186
  %v2188 = vpop.f32.mrb[0].mxu0
  %2189 = vmatprep.mubr.f32.mxu0 0.0
  %2190 = vmatmul.mubr.f32.gmra.mrb[0].mxu0 %v1891
  %v2191 = vpop.f32.mrb[0].mxu0
  %v2192 = vadd.f32 0.0, %v2191
  %v2193 = vpop.f32.mrb[0].mxu0
  %2194 = vmatprep.mubr.f32.mxu0 0.0
  %2195 = vmatmul.mubr.f32.gmra.mrb[0].mxu0 %v1894
  %v2196 = vpop.f32.mrb[0].mxu0
  %v2197 = vadd.f32 0.0, %v2196
  %v2198 = vpop.f32.mrb[0].mxu0
  %2199 = vmatprep.mubr.f32.mxu0 0.0
  %2200 = vmatmul.mubr.f32.gmra.mrb[0].mxu0 %v1897
  %v2201 = vpop.f32.mrb[0].mxu0
  %v2202 = vadd.f32 0.0, %v2201
  %v2203 = vpop.f32.mrb[0].mxu0
  %2204 = vmatprep.mubr.f32.mxu0 0.0
  %2205 = vmatmul.mubr.f32.gmra.mrb[0].mxu0 %v1900
  %v2206 = vpop.f32.mrb[0].mxu0
  %v2207 = vadd.f32 0.0, %v2206
  %v2208 = vpop.f32.mrb[0].mxu0
  %2209 = vmatprep.mubr.f32.mxu0 0.0
  %2210 = vmatmul.mubr.f32.gmra.mrb[0].mxu0 %v1903
  %v2211 = vpop.f32.mrb[0].mxu0
  %v2212 = vadd.f32 0.0, %v2211
  %v2213 = vpop.f32.mrb[0].mxu0
  %2214 = vmatprep.mubr.f32.mxu0 0.0
  %2215 = vmatmul.mubr.f32.gmra.mrb[0].mxu0 %v1906
  %v2216 = vpop.f32.mrb[0].mxu0
  %v2217 = vadd.f32 0.0, %v2216
  %v2218 = vpop.f32.mrb[0].mxu0
  %2219 = vmatprep.mubr.f32.mxu0 0.0
  %2220 = vmatmul.mubr.f32.gmra.mrb[0].mxu0 %v1909
  %v2221 = vpop.f32.mrb[0].mxu0
  %v2222 = vadd.f32 0.0, %v2221
  %v2223 = vpop.f32.mrb[0].mxu0
  %2224 = vmatprep.mubr.f32.mxu0 0.0
  %2225 = vmatmul.mubr.f32.gmra.mrb[0].mxu0 %v1912
  %v2226 = vpop.f32.mrb[0].mxu0
  %v2227 = vadd.f32 0.0, %v2226
  %v2228 = vpop.f32.mrb[0].mxu0
  %2229 = vmatprep.mubr.f32.mxu0 0.0
  %2230 = vmatmul.mubr.f32.gmra.mrb[0].mxu0 %v1915
  %v2231 = vpop.f32.mrb[0].mxu0
  %v2232 = vadd.f32 0.0, %v2231
  %v2233 = vpop.f32.mrb[0].mxu0
  %2234 = vmatprep.mubr.f32.mxu0 0.0
  %2235 = vmatmul.mubr.f32.gmra.mrb[0].mxu0 %v1918
  %v2236 = vpop.f32.mrb[0].mxu0
  %v2237 = vadd.f32 0.0, %v2236
  %v2238 = vpop.f32.mrb[0].mxu0
  %2239 = vmatprep.mubr.f32.mxu0 0.0
  %2240 = vmatmul.mubr.f32.gmra.mrb[0].mxu0 %v1921
  %v2241 = vpop.f32.mrb[0].mxu0
  %v2242 = vadd.f32 0.0, %v2241
  %v2243 = vpop.f32.mrb[0].mxu0
  %2244 = vmatprep.mubr.f32.mxu0 0.0
  %2245 = vmatmul.mubr.f32.gmra.mrb[0].mxu0 %v1924
  %v2246 = vpop.f32.mrb[0].mxu0
  %v2247 = vadd.f32 0.0, %v2246
  %v2248 = vpop.f32.mrb[0].mxu0
  %2249 = vmatprep.mubr.f32.mxu0 0.0
  %2250 = vmatmul.mubr.f32.gmra.mrb[0].mxu0 %v1927
  %v2251 = vpop.f32.mrb[0].mxu0
  %v2252 = vadd.f32 0.0, %v2251
  %v2253 = vpop.f32.mrb[0].mxu0
  %2254 = vmatprep.mubr.f32.mxu0 0.0
  %2255 = vmatmul.mubr.f32.gmra.mrb[0].mxu0 %v1930
  %v2256 = vpop.f32.mrb[0].mxu0
  %v2257 = vadd.f32 0.0, %v2256
  %v2258 = vpop.f32.mrb[0].mxu0
  %2259 = vmatprep.mubr.f32.mxu0 0.0
  %2260 = vmatmul.mubr.f32.gmra.mrb[0].mxu0 %v1933
  %v2261 = vpop.f32.mrb[0].mxu0
  %v2262 = vadd.f32 0.0, %v2261
  %v2263 = vpop.f32.mrb[0].mxu0
  %2264 = vmatprep.mubr.f32.mxu0 0.0
  %2265 = vmatmul.mubr.f32.gmra.mrb[0].mxu0 %v1936
  %v2266 = vpop.f32.mrb[0].mxu0
  %v2267 = vadd.f32 0.0, %v2266
  %v2268 = vpop.f32.mrb[0].mxu0
  %2269 = vmatprep.mubr.f32.mxu0 0.0
  %2270 = vmatmul.mubr.f32.gmra.mrb[0].mxu0 %v1939
  %v2271 = vpop.f32.mrb[0].mxu0
  %v2272 = vadd.f32 0.0, %v2271
  %v2273 = vpop.f32.mrb[0].mxu0
  %2274 = vmatprep.mubr.f32.mxu0 0.0
  %2275 = vmatmul.mubr.f32.gmra.mrb[0].mxu0 %v1942
  %v2276 = vpop.f32.mrb[0].mxu0
  %v2277 = vadd.f32 0.0, %v2276
  %v2278 = vpop.f32.mrb[0].mxu0
  %2279 = vmatprep.mubr.f32.mxu0 0.0
  %2280 = vmatmul.mubr.f32.gmra.mrb[0].mxu0 %v1945
  %v2281 = vpop.f32.mrb[0].mxu0
  %v2282 = vadd.f32 0.0, %v2281
  %v2283 = vpop.f32.mrb[0].mxu0
  %2284 = vmatprep.mubr.f32.mxu0 0.0
  %2285 = vmatmul.mubr.f32.gmra.mrb[0].mxu0 %v1948
  %v2286 = vpop.f32.mrb[0].mxu0
  %v2287 = vadd.f32 0.0, %v2286
  %v2288 = vpop.f32.mrb[0].mxu0
  %2289 = vmatprep.mubr.f32.mxu0 0.0
  %2290 = vmatmul.mubr.f32.gmra.mrb[0].mxu0 %v1951
  %v2291 = vpop.f32.mrb[0].mxu0
  %v2292 = vadd.f32 0.0, %v2291
  %v2293 = vpop.f32.mrb[0].mxu0
  %2294 = vmatprep.mubr.f32.mxu0 0.0
  %2295 = vmatmul.mubr.f32.gmra.mrb[0].mxu0 %v1954
  %v2296 = vpop.f32.mrb[0].mxu0
  %v2297 = vadd.f32 0.0, %v2296
  %v2298 = vpop.f32.mrb[0].mxu0
  %2299 = vmatprep.mubr.f32.mxu0 0.0
  %2300 = vmatmul.mubr.f32.gmra.mrb[0].mxu0 %v1957
  %v2301 = vpop.f32.mrb[0].mxu0
  %v2302 = vadd.f32 0.0, %v2301
  %v2303 = vpop.f32.mrb[0].mxu0
  %2304 = vmatprep.mubr.f32.mxu0 0.0
  %2305 = vmatmul.mubr.f32.gmra.mrb[0].mxu0 %v1960
  %v2306 = vpop.f32.mrb[0].mxu0
  %v2307 = vadd.f32 0.0, %v2306
  %v2308 = vpop.f32.mrb[0].mxu0
  %2309 = vmatprep.mubr.f32.mxu0 0.0
  %2310 = vmatmul.mubr.f32.gmra.mrb[0].mxu0 %v1963
  %v2311 = vpop.f32.mrb[0].mxu0
  %v2312 = vadd.f32 0.0, %v2311
  %v2313 = vpop.f32.mrb[0].mxu0
  %2314 = vmatprep.mubr.f32.mxu0 0.0
  %2315 = vmatmul.mubr.f32.gmra.mrb[0].mxu0 %v1966
  %v2316 = vpop.f32.mrb[0].mxu0
  %v2317 = vadd.f32 0.0, %v2316
  %v2318 = vpop.f32.mrb[0].mxu0
  %2319 = vmatprep.mubr.f32.mxu0 0.0
  %2320 = vmatmul.mubr.f32.gmra.mrb[0].mxu0 %v1969
  %v2321 = vpop.f32.mrb[0].mxu0
  %v2322 = vadd.f32 0.0, %v2321
  %v2323 = vpop.f32.mrb[0].mxu0
  %2324 = vmatprep.mubr.f32.mxu0 0.0
  %2325 = vmatmul.mubr.f32.gmra.mrb[0].mxu0 %v1972
  %v2326 = vpop.f32.mrb[0].mxu0
  %v2327 = vadd.f32 0.0, %v2326
  %v2328 = vpop.f32.mrb[0].mxu0
  %2329 = vmatprep.mubr.f32.mxu0 0.0
  %2330 = vmatmul.mubr.f32.gmra.mrb[0].mxu0 %v1975
  %v2331 = vpop.f32.mrb[0].mxu0
  %v2332 = vadd.f32 0.0, %v2331
  %v2333 = vpop.f32.mrb[0].mxu0
  %2334 = vmatprep.mubr.f32.mxu0 0.0
  %2335 = vmatmul.mubr.f32.gmra.mrb[0].mxu0 %v1978
  %v2336 = vpop.f32.mrb[0].mxu0
  %v2337 = vadd.f32 0.0, %v2336
  %v2338 = vpop.f32.mrb[0].mxu0
  %2339 = vmatprep.mubr.f32.mxu0 0.0
  %2340 = vmatmul.mubr.f32.gmra.mrb[0].mxu0 %v1981
  %v2341 = vpop.f32.mrb[0].mxu0
  %v2342 = vadd.f32 0.0, %v2341
  %v2343 = vpop.f32.mrb[0].mxu0
  %2344 = vmatprep.mubr.f32.mxu0 0.0
  %2345 = vmatmul.mubr.f32.gmra.mrb[0].mxu0 %v1984
  %v2346 = vpop.f32.mrb[0].mxu0
  %v2347 = vadd.f32 0.0, %v2346
  %v2348 = vpop.f32.mrb[0].mxu0
  %2349 = vmatprep.mubr.f32.mxu0 0.0
  %2350 = vmatmul.mubr.f32.gmra.mrb[0].mxu0 %v1987
  %v2351 = vpop.f32.mrb[0].mxu0
  %v2352 = vadd.f32 0.0, %v2351
  %v2353 = vpop.f32.mrb[0].mxu0
  %2354 = vmatprep.mubr.f32.mxu0 0.0
  %2355 = vmatmul.mubr.f32.gmra.mrb[0].mxu0 %v1990
  %v2356 = vpop.f32.mrb[0].mxu0
  %v2357 = vadd.f32 0.0, %v2356
  %v2358 = vpop.f32.mrb[0].mxu0
  %2359 = vmatprep.mubr.f32.mxu0 0.0
  %2360 = vmatmul.mubr.f32.gmra.mrb[0].mxu0 %v1993
  %v2361 = vpop.f32.mrb[0].mxu0
  %v2362 = vadd.f32 0.0, %v2361
  %v2363 = vpop.f32.mrb[0].mxu0
  %2364 = vmatprep.mubr.f32.mxu0 0.0
  %2365 = vmatmul.mubr.f32.gmra.mrb[0].mxu0 %v1996
  %v2366 = vpop.f32.mrb[0].mxu0
  %v2367 = vadd.f32 0.0, %v2366
  %v2368 = vpop.f32.mrb[0].mxu0
  %2369 = vmatprep.mubr.f32.mxu0 0.0
  %2370 = vmatmul.mubr.f32.gmra.mrb[0].mxu0 %v1999
  %v2371 = vpop.f32.mrb[0].mxu0
  %v2372 = vadd.f32 0.0, %v2371
  %v2373 = vpop.f32.mrb[0].mxu0
  %2374 = vmatprep.mubr.f32.mxu0 0.0
  %2375 = vmatmul.mubr.f32.gmra.mrb[0].mxu0 %v2002
  %v2376 = vpop.f32.mrb[0].mxu0
  %v2377 = vadd.f32 0.0, %v2376
  %v2378 = vpop.f32.mrb[0].mxu0
  %2379 = vmatprep.mubr.f32.mxu0 0.0
  %2380 = vmatmul.mubr.f32.gmra.mrb[0].mxu0 %v2005
  %v2381 = vpop.f32.mrb[0].mxu0
  %v2382 = vadd.f32 0.0, %v2381
  %v2383 = vpop.f32.mrb[0].mxu0
  %2384 = vmatprep.mubr.f32.mxu0 0.0
  %2385 = vmatmul.mubr.f32.gmra.mrb[0].mxu0 %v2008
  %v2386 = vpop.f32.mrb[0].mxu0
  %v2387 = vadd.f32 0.0, %v2386
  %v2388 = vpop.f32.mrb[0].mxu0
  %2389 = vmatprep.mubr.f32.mxu0 0.0
  %2390 = vmatmul.mubr.f32.gmra.mrb[0].mxu0 %v2011
  %v2391 = vpop.f32.mrb[0].mxu0
  %v2392 = vadd.f32 0.0, %v2391
  %v2393 = vpop.f32.mrb[0].mxu0
  %2394 = vmatprep.mubr.f32.mxu0 0.0
  %2395 = vmatmul.mubr.f32.gmra.mrb[0].mxu0 %v2014
  %v2396 = vpop.f32.mrb[0].mxu0
  %v2397 = vadd.f32 0.0, %v2396
  %v2398 = vpop.f32.mrb[0].mxu0
  %2399 = vmatprep.mubr.f32.mxu0 0.0
  %2400 = vmatmul.mubr.f32.gmra.mrb[0].mxu0 %v2017
  %v2401 = vpop.f32.mrb[0].mxu0
  %v2402 = vadd.f32 0.0, %v2401
  %v2403 = vpop.f32.mrb[0].mxu0
  %2404 = vmatprep.mubr.f32.mxu0 0.0
  %2405 = vmatmul.mubr.f32.gmra.mrb[0].mxu0 %v2020
  %v2406 = vpop.f32.mrb[0].mxu0
  %v2407 = vadd.f32 0.0, %v2406
  %v2408 = vpop.f32.mrb[0].mxu0
  %2409 = vdwg.mxu0
  %v2410 = vadd.f32 %v1692, %v2092
  %v2411 = vadd.f32 %v1693, %v2097
  %v2412 = vadd.f32 %v1694, %v2102
  %v2413 = vadd.f32 %v1695, %v2107
  %v2414 = vadd.f32 %v1696, %v2112
  %v2415 = vadd.f32 %v1697, %v2117
  %v2416 = vadd.f32 %v1698, %v2122
  %v2417 = vadd.f32 %v1699, %v2127
  %v2418 = vadd.f32 %v1700, %v2132
  %v2419 = vadd.f32 %v1701, %v2137
  %v2420 = vadd.f32 %v1702, %v2142
  %v2421 = vadd.f32 %v1703, %v2147
  %v2422 = vadd.f32 %v1704, %v2152
  %v2423 = vadd.f32 %v1705, %v2157
  %v2424 = vadd.f32 %v1706, %v2162
  %v2425 = vadd.f32 %v1707, %v2167
  %v2426 = vadd.f32 %v1708, %v2172
  %v2427 = vadd.f32 %v1709, %v2177
  %v2428 = vadd.f32 %v1710, %v2182
  %v2429 = vadd.f32 %v1711, %v2187
  %v2430 = vadd.f32 %v1712, %v2192
  %v2431 = vadd.f32 %v1713, %v2197
  %v2432 = vadd.f32 %v1714, %v2202
  %v2433 = vadd.f32 %v1715, %v2207
  %v2434 = vadd.f32 %v1716, %v2212
  %v2435 = vadd.f32 %v1717, %v2217
  %v2436 = vadd.f32 %v1718, %v2222
  %v2437 = vadd.f32 %v1719, %v2227
  %v2438 = vadd.f32 %v1720, %v2232
  %v2439 = vadd.f32 %v1721, %v2237
  %v2440 = vadd.f32 %v1722, %v2242
  %v2441 = vadd.f32 %v1723, %v2247
  %v2442 = vadd.f32 %v1724, %v2252
  %v2443 = vadd.f32 %v1725, %v2257
  %v2444 = vadd.f32 %v1726, %v2262
  %v2445 = vadd.f32 %v1727, %v2267
  %v2446 = vadd.f32 %v1728, %v2272
  %v2447 = vadd.f32 %v1729, %v2277
  %v2448 = vadd.f32 %v1730, %v2282
  %v2449 = vadd.f32 %v1731, %v2287
  %v2450 = vadd.f32 %v1732, %v2292
  %v2451 = vadd.f32 %v1733, %v2297
  %v2452 = vadd.f32 %v1734, %v2302
  %v2453 = vadd.f32 %v1735, %v2307
  %v2454 = vadd.f32 %v1736, %v2312
  %v2455 = vadd.f32 %v1737, %v2317
  %v2456 = vadd.f32 %v1738, %v2322
  %v2457 = vadd.f32 %v1739, %v2327
  %v2458 = vadd.f32 %v1740, %v2332
  %v2459 = vadd.f32 %v1741, %v2337
  %v2460 = vadd.f32 %v1742, %v2342
  %v2461 = vadd.f32 %v1743, %v2347
  %v2462 = vadd.f32 %v1744, %v2352
  %v2463 = vadd.f32 %v1745, %v2357
  %v2464 = vadd.f32 %v1746, %v2362
  %v2465 = vadd.f32 %v1747, %v2367
  %v2466 = vadd.f32 %v1748, %v2372
  %v2467 = vadd.f32 %v1749, %v2377
  %v2468 = vadd.f32 %v1750, %v2382
  %v2469 = vadd.f32 %v1751, %v2387
  %v2470 = vadd.f32 %v1752, %v2392
  %v2471 = vadd.f32 %v1753, %v2397
  %v2472 = vadd.f32 %v1754, %v2402
  %v2473 = vadd.f32 %v1755, %v2407
  %s2474 = scalar_lea.vmem %s1, 16
  %v2475 = vld [vmem:[%s2474] sm:$0xf]
  %v2477 = vsel %vm90, %v1788, 0
  %v2480 = vsel %vm90, %v1789, 0
  %v2483 = vsel %vm90, %v1824, 0
  %v2486 = vsel %vm90, %v1825, 0
  %v2489 = vsel %vm501, %v2475, 0
  %2491 = vmatprep.subr.mxu0 0.0
  %2492 = vmatpush1.msra.mxu0 %v2489
  %2493 = vmatprep.subr.mxu0 0.0
  %2494 = vmatpush1.msra.mxu0 0.0
  %2495 = vmatprep.subr.mxu0 0.0
  %2496 = vmatpush1.msra.mxu0 0.0
  %2497 = vmatprep.subr.mxu0 0.0
  %2498 = vmatpush1.msra.mxu0 0.0
  %2499 = vmatprep.subr.mxu0 0.0
  %2500 = vmatpush1.msra.mxu0 0.0
  %2501 = vmatprep.subr.mxu0 0.0
  %2502 = vmatpush1.msra.mxu0 0.0
  %2503 = vmatprep.subr.mxu0 0.0
  %2504 = vmatpush1.msra.mxu0 0.0
  %2505 = vmatprep.subr.mxu0 0.0
  %2506 = vmatpush1.msra.mxu0 0.0
  %2507 = vmatprep.subr.mxu0 0.0
  %2508 = vmatpush1.msra.mxu0 0.0
  %2509 = vmatprep.subr.mxu0 0.0
  %2510 = vmatpush1.msra.mxu0 0.0
  %2511 = vmatprep.subr.mxu0 0.0
  %2512 = vmatpush1.msra.mxu0 0.0
  %2513 = vmatprep.subr.mxu0 0.0
  %2514 = vmatpush1.msra.mxu0 0.0
  %2515 = vmatprep.subr.mxu0 0.0
  %2516 = vmatpush1.msra.mxu0 0.0
  %2517 = vmatprep.subr.mxu0 0.0
  %2518 = vmatpush1.msra.mxu0 0.0
  %2519 = vmatprep.subr.mxu0 0.0
  %2520 = vmatpush1.msra.mxu0 0.0
  %2521 = vmatprep.subr.mxu0 0.0
  %2522 = vmatpush1.msra.mxu0 0.0
  %2523 = vmatprep.subr.mxu0 0.0
  %2524 = vmatpush1.msra.mxu0 0.0
  %2525 = vmatprep.subr.mxu0 0.0
  %2526 = vmatpush1.msra.mxu0 0.0
  %2527 = vmatprep.subr.mxu0 0.0
  %2528 = vmatpush1.msra.mxu0 0.0
  %2529 = vmatprep.subr.mxu0 0.0
  %2530 = vmatpush1.msra.mxu0 0.0
  %2531 = vmatprep.subr.mxu0 0.0
  %2532 = vmatpush1.msra.mxu0 0.0
  %2533 = vmatprep.subr.mxu0 0.0
  %2534 = vmatpush1.msra.mxu0 0.0
  %2535 = vmatprep.subr.mxu0 0.0
  %2536 = vmatpush1.msra.mxu0 0.0
  %2537 = vmatprep.subr.mxu0 0.0
  %2538 = vmatpush1.msra.mxu0 0.0
  %2539 = vmatprep.subr.mxu0 0.0
  %2540 = vmatpush1.msra.mxu0 0.0
  %2541 = vmatprep.subr.mxu0 0.0
  %2542 = vmatpush1.msra.mxu0 0.0
  %2543 = vmatprep.subr.mxu0 0.0
  %2544 = vmatpush1.msra.mxu0 0.0
  %2545 = vmatprep.subr.mxu0 0.0
  %2546 = vmatpush1.msra.mxu0 0.0
  %2547 = vmatprep.subr.mxu0 0.0
  %2548 = vmatpush1.msra.mxu0 0.0
  %2549 = vmatprep.subr.mxu0 0.0
  %2550 = vmatpush1.msra.mxu0 0.0
  %2551 = vmatprep.subr.mxu0 0.0
  %2552 = vmatpush1.msra.mxu0 0.0
  %2553 = vmatprep.subr.mxu0 0.0
  %2554 = vmatpush1.msra.mxu0 0.0
  %2555 = vmatprep.mubr.f32.mxu0 0.0
  %2556 = vmatmul.mubr.f32.gmra.mrb[0].mxu0 %v1837
  %v2557 = vpop.f32.mrb[0].mxu0
  %v2558 = vadd.f32 0.0, %v2557
  %v2559 = vpop.f32.mrb[0].mxu0
  %2560 = vmatprep.mubr.f32.mxu0 0.0
  %2561 = vmatmul.mubr.f32.gmra.mrb[0].mxu0 %v1840
  %v2562 = vpop.f32.mrb[0].mxu0
  %v2563 = vadd.f32 0.0, %v2562
  %v2564 = vpop.f32.mrb[0].mxu0
  %2565 = vmatprep.mubr.f32.mxu0 0.0
  %2566 = vmatmul.mubr.f32.gmra.mrb[0].mxu0 %v1843
  %v2567 = vpop.f32.mrb[0].mxu0
  %v2568 = vadd.f32 0.0, %v2567
  %v2569 = vpop.f32.mrb[0].mxu0
  %2570 = vmatprep.mubr.f32.mxu0 0.0
  %2571 = vmatmul.mubr.f32.gmra.mrb[0].mxu0 %v1846
  %v2572 = vpop.f32.mrb[0].mxu0
  %v2573 = vadd.f32 0.0, %v2572
  %v2574 = vpop.f32.mrb[0].mxu0
  %2575 = vmatprep.mubr.f32.mxu0 0.0
  %2576 = vmatmul.mubr.f32.gmra.mrb[0].mxu0 %v1849
  %v2577 = vpop.f32.mrb[0].mxu0
  %v2578 = vadd.f32 0.0, %v2577
  %v2579 = vpop.f32.mrb[0].mxu0
  %2580 = vmatprep.mubr.f32.mxu0 0.0
  %2581 = vmatmul.mubr.f32.gmra.mrb[0].mxu0 %v1852
  %v2582 = vpop.f32.mrb[0].mxu0
  %v2583 = vadd.f32 0.0, %v2582
  %v2584 = vpop.f32.mrb[0].mxu0
  %2585 = vmatprep.mubr.f32.mxu0 0.0
  %2586 = vmatmul.mubr.f32.gmra.mrb[0].mxu0 %v1855
  %v2587 = vpop.f32.mrb[0].mxu0
  %v2588 = vadd.f32 0.0, %v2587
  %v2589 = vpop.f32.mrb[0].mxu0
  %2590 = vmatprep.mubr.f32.mxu0 0.0
  %2591 = vmatmul.mubr.f32.gmra.mrb[0].mxu0 %v1858
  %v2592 = vpop.f32.mrb[0].mxu0
  %v2593 = vadd.f32 0.0, %v2592
  %v2594 = vpop.f32.mrb[0].mxu0
  %2595 = vmatprep.mubr.f32.mxu0 0.0
  %2596 = vmatmul.mubr.f32.gmra.mrb[0].mxu0 %v1861
  %v2597 = vpop.f32.mrb[0].mxu0
  %v2598 = vadd.f32 0.0, %v2597
  %v2599 = vpop.f32.mrb[0].mxu0
  %2600 = vmatprep.mubr.f32.mxu0 0.0
  %2601 = vmatmul.mubr.f32.gmra.mrb[0].mxu0 %v1864
  %v2602 = vpop.f32.mrb[0].mxu0
  %v2603 = vadd.f32 0.0, %v2602
  %v2604 = vpop.f32.mrb[0].mxu0
  %2605 = vmatprep.mubr.f32.mxu0 0.0
  %2606 = vmatmul.mubr.f32.gmra.mrb[0].mxu0 %v1867
  %v2607 = vpop.f32.mrb[0].mxu0
  %v2608 = vadd.f32 0.0, %v2607
  %v2609 = vpop.f32.mrb[0].mxu0
  %2610 = vmatprep.mubr.f32.mxu0 0.0
  %2611 = vmatmul.mubr.f32.gmra.mrb[0].mxu0 %v1870
  %v2612 = vpop.f32.mrb[0].mxu0
  %v2613 = vadd.f32 0.0, %v2612
  %v2614 = vpop.f32.mrb[0].mxu0
  %2615 = vmatprep.mubr.f32.mxu0 0.0
  %2616 = vmatmul.mubr.f32.gmra.mrb[0].mxu0 %v1873
  %v2617 = vpop.f32.mrb[0].mxu0
  %v2618 = vadd.f32 0.0, %v2617
  %v2619 = vpop.f32.mrb[0].mxu0
  %2620 = vmatprep.mubr.f32.mxu0 0.0
  %2621 = vmatmul.mubr.f32.gmra.mrb[0].mxu0 %v1876
  %v2622 = vpop.f32.mrb[0].mxu0
  %v2623 = vadd.f32 0.0, %v2622
  %v2624 = vpop.f32.mrb[0].mxu0
  %2625 = vmatprep.mubr.f32.mxu0 0.0
  %2626 = vmatmul.mubr.f32.gmra.mrb[0].mxu0 %v1879
  %v2627 = vpop.f32.mrb[0].mxu0
  %v2628 = vadd.f32 0.0, %v2627
  %v2629 = vpop.f32.mrb[0].mxu0
  %2630 = vmatprep.mubr.f32.mxu0 0.0
  %2631 = vmatmul.mubr.f32.gmra.mrb[0].mxu0 %v1882
  %v2632 = vpop.f32.mrb[0].mxu0
  %v2633 = vadd.f32 0.0, %v2632
  %v2634 = vpop.f32.mrb[0].mxu0
  %2635 = vmatprep.mubr.f32.mxu0 0.0
  %2636 = vmatmul.mubr.f32.gmra.mrb[0].mxu0 %v1885
  %v2637 = vpop.f32.mrb[0].mxu0
  %v2638 = vadd.f32 0.0, %v2637
  %v2639 = vpop.f32.mrb[0].mxu0
  %2640 = vmatprep.mubr.f32.mxu0 0.0
  %2641 = vmatmul.mubr.f32.gmra.mrb[0].mxu0 %v1888
  %v2642 = vpop.f32.mrb[0].mxu0
  %v2643 = vadd.f32 0.0, %v2642
  %v2644 = vpop.f32.mrb[0].mxu0
  %2645 = vmatprep.mubr.f32.mxu0 0.0
  %2646 = vmatmul.mubr.f32.gmra.mrb[0].mxu0 %v1891
  %v2647 = vpop.f32.mrb[0].mxu0
  %v2648 = vadd.f32 0.0, %v2647
  %v2649 = vpop.f32.mrb[0].mxu0
  %2650 = vmatprep.mubr.f32.mxu0 0.0
  %2651 = vmatmul.mubr.f32.gmra.mrb[0].mxu0 %v1894
  %v2652 = vpop.f32.mrb[0].mxu0
  %v2653 = vadd.f32 0.0, %v2652
  %v2654 = vpop.f32.mrb[0].mxu0
  %2655 = vmatprep.mubr.f32.mxu0 0.0
  %2656 = vmatmul.mubr.f32.gmra.mrb[0].mxu0 %v1897
  %v2657 = vpop.f32.mrb[0].mxu0
  %v2658 = vadd.f32 0.0, %v2657
  %v2659 = vpop.f32.mrb[0].mxu0
  %2660 = vmatprep.mubr.f32.mxu0 0.0
  %2661 = vmatmul.mubr.f32.gmra.mrb[0].mxu0 %v1900
  %v2662 = vpop.f32.mrb[0].mxu0
  %v2663 = vadd.f32 0.0, %v2662
  %v2664 = vpop.f32.mrb[0].mxu0
  %2665 = vmatprep.mubr.f32.mxu0 0.0
  %2666 = vmatmul.mubr.f32.gmra.mrb[0].mxu0 %v1903
  %v2667 = vpop.f32.mrb[0].mxu0
  %v2668 = vadd.f32 0.0, %v2667
  %v2669 = vpop.f32.mrb[0].mxu0
  %2670 = vmatprep.mubr.f32.mxu0 0.0
  %2671 = vmatmul.mubr.f32.gmra.mrb[0].mxu0 %v1906
  %v2672 = vpop.f32.mrb[0].mxu0
  %v2673 = vadd.f32 0.0, %v2672
  %v2674 = vpop.f32.mrb[0].mxu0
  %2675 = vmatprep.mubr.f32.mxu0 0.0
  %2676 = vmatmul.mubr.f32.gmra.mrb[0].mxu0 %v1909
  %v2677 = vpop.f32.mrb[0].mxu0
  %v2678 = vadd.f32 0.0, %v2677
  %v2679 = vpop.f32.mrb[0].mxu0
  %2680 = vmatprep.mubr.f32.mxu0 0.0
  %2681 = vmatmul.mubr.f32.gmra.mrb[0].mxu0 %v1912
  %v2682 = vpop.f32.mrb[0].mxu0
  %v2683 = vadd.f32 0.0, %v2682
  %v2684 = vpop.f32.mrb[0].mxu0
  %2685 = vmatprep.mubr.f32.mxu0 0.0
  %2686 = vmatmul.mubr.f32.gmra.mrb[0].mxu0 %v1915
  %v2687 = vpop.f32.mrb[0].mxu0
  %v2688 = vadd.f32 0.0, %v2687
  %v2689 = vpop.f32.mrb[0].mxu0
  %2690 = vmatprep.mubr.f32.mxu0 0.0
  %2691 = vmatmul.mubr.f32.gmra.mrb[0].mxu0 %v1918
  %v2692 = vpop.f32.mrb[0].mxu0
  %v2693 = vadd.f32 0.0, %v2692
  %v2694 = vpop.f32.mrb[0].mxu0
  %2695 = vmatprep.mubr.f32.mxu0 0.0
  %2696 = vmatmul.mubr.f32.gmra.mrb[0].mxu0 %v1921
  %v2697 = vpop.f32.mrb[0].mxu0
  %v2698 = vadd.f32 0.0, %v2697
  %v2699 = vpop.f32.mrb[0].mxu0
  %2700 = vmatprep.mubr.f32.mxu0 0.0
  %2701 = vmatmul.mubr.f32.gmra.mrb[0].mxu0 %v1924
  %v2702 = vpop.f32.mrb[0].mxu0
  %v2703 = vadd.f32 0.0, %v2702
  %v2704 = vpop.f32.mrb[0].mxu0
  %2705 = vmatprep.mubr.f32.mxu0 0.0
  %2706 = vmatmul.mubr.f32.gmra.mrb[0].mxu0 %v2477
  %v2707 = vpop.f32.mrb[0].mxu0
  %v2708 = vadd.f32 0.0, %v2707
  %v2709 = vpop.f32.mrb[0].mxu0
  %2710 = vmatprep.mubr.f32.mxu0 0.0
  %2711 = vmatmul.mubr.f32.gmra.mrb[0].mxu0 %v2480
  %v2712 = vpop.f32.mrb[0].mxu0
  %v2713 = vadd.f32 0.0, %v2712
  %v2714 = vpop.f32.mrb[0].mxu0
  %2715 = vmatprep.mubr.f32.mxu0 0.0
  %2716 = vmatmul.mubr.f32.gmra.mrb[0].mxu0 %v1933
  %v2717 = vpop.f32.mrb[0].mxu0
  %v2718 = vadd.f32 0.0, %v2717
  %v2719 = vpop.f32.mrb[0].mxu0
  %2720 = vmatprep.mubr.f32.mxu0 0.0
  %2721 = vmatmul.mubr.f32.gmra.mrb[0].mxu0 %v1936
  %v2722 = vpop.f32.mrb[0].mxu0
  %v2723 = vadd.f32 0.0, %v2722
  %v2724 = vpop.f32.mrb[0].mxu0
  %2725 = vmatprep.mubr.f32.mxu0 0.0
  %2726 = vmatmul.mubr.f32.gmra.mrb[0].mxu0 %v1939
  %v2727 = vpop.f32.mrb[0].mxu0
  %v2728 = vadd.f32 0.0, %v2727
  %v2729 = vpop.f32.mrb[0].mxu0
  %2730 = vmatprep.mubr.f32.mxu0 0.0
  %2731 = vmatmul.mubr.f32.gmra.mrb[0].mxu0 %v1942
  %v2732 = vpop.f32.mrb[0].mxu0
  %v2733 = vadd.f32 0.0, %v2732
  %v2734 = vpop.f32.mrb[0].mxu0
  %2735 = vmatprep.mubr.f32.mxu0 0.0
  %2736 = vmatmul.mubr.f32.gmra.mrb[0].mxu0 %v1945
  %v2737 = vpop.f32.mrb[0].mxu0
  %v2738 = vadd.f32 0.0, %v2737
  %v2739 = vpop.f32.mrb[0].mxu0
  %2740 = vmatprep.mubr.f32.mxu0 0.0
  %2741 = vmatmul.mubr.f32.gmra.mrb[0].mxu0 %v1948
  %v2742 = vpop.f32.mrb[0].mxu0
  %v2743 = vadd.f32 0.0, %v2742
  %v2744 = vpop.f32.mrb[0].mxu0
  %2745 = vmatprep.mubr.f32.mxu0 0.0
  %2746 = vmatmul.mubr.f32.gmra.mrb[0].mxu0 %v1951
  %v2747 = vpop.f32.mrb[0].mxu0
  %v2748 = vadd.f32 0.0, %v2747
  %v2749 = vpop.f32.mrb[0].mxu0
  %2750 = vmatprep.mubr.f32.mxu0 0.0
  %2751 = vmatmul.mubr.f32.gmra.mrb[0].mxu0 %v1954
  %v2752 = vpop.f32.mrb[0].mxu0
  %v2753 = vadd.f32 0.0, %v2752
  %v2754 = vpop.f32.mrb[0].mxu0
  %2755 = vmatprep.mubr.f32.mxu0 0.0
  %2756 = vmatmul.mubr.f32.gmra.mrb[0].mxu0 %v1957
  %v2757 = vpop.f32.mrb[0].mxu0
  %v2758 = vadd.f32 0.0, %v2757
  %v2759 = vpop.f32.mrb[0].mxu0
  %2760 = vmatprep.mubr.f32.mxu0 0.0
  %2761 = vmatmul.mubr.f32.gmra.mrb[0].mxu0 %v1960
  %v2762 = vpop.f32.mrb[0].mxu0
  %v2763 = vadd.f32 0.0, %v2762
  %v2764 = vpop.f32.mrb[0].mxu0
  %2765 = vmatprep.mubr.f32.mxu0 0.0
  %2766 = vmatmul.mubr.f32.gmra.mrb[0].mxu0 %v1963
  %v2767 = vpop.f32.mrb[0].mxu0
  %v2768 = vadd.f32 0.0, %v2767
  %v2769 = vpop.f32.mrb[0].mxu0
  %2770 = vmatprep.mubr.f32.mxu0 0.0
  %2771 = vmatmul.mubr.f32.gmra.mrb[0].mxu0 %v1966
  %v2772 = vpop.f32.mrb[0].mxu0
  %v2773 = vadd.f32 0.0, %v2772
  %v2774 = vpop.f32.mrb[0].mxu0
  %2775 = vmatprep.mubr.f32.mxu0 0.0
  %2776 = vmatmul.mubr.f32.gmra.mrb[0].mxu0 %v1969
  %v2777 = vpop.f32.mrb[0].mxu0
  %v2778 = vadd.f32 0.0, %v2777
  %v2779 = vpop.f32.mrb[0].mxu0
  %2780 = vmatprep.mubr.f32.mxu0 0.0
  %2781 = vmatmul.mubr.f32.gmra.mrb[0].mxu0 %v1972
  %v2782 = vpop.f32.mrb[0].mxu0
  %v2783 = vadd.f32 0.0, %v2782
  %v2784 = vpop.f32.mrb[0].mxu0
  %2785 = vmatprep.mubr.f32.mxu0 0.0
  %2786 = vmatmul.mubr.f32.gmra.mrb[0].mxu0 %v1975
  %v2787 = vpop.f32.mrb[0].mxu0
  %v2788 = vadd.f32 0.0, %v2787
  %v2789 = vpop.f32.mrb[0].mxu0
  %2790 = vmatprep.mubr.f32.mxu0 0.0
  %2791 = vmatmul.mubr.f32.gmra.mrb[0].mxu0 %v1978
  %v2792 = vpop.f32.mrb[0].mxu0
  %v2793 = vadd.f32 0.0, %v2792
  %v2794 = vpop.f32.mrb[0].mxu0
  %2795 = vmatprep.mubr.f32.mxu0 0.0
  %2796 = vmatmul.mubr.f32.gmra.mrb[0].mxu0 %v1981
  %v2797 = vpop.f32.mrb[0].mxu0
  %v2798 = vadd.f32 0.0, %v2797
  %v2799 = vpop.f32.mrb[0].mxu0
  %2800 = vmatprep.mubr.f32.mxu0 0.0
  %2801 = vmatmul.mubr.f32.gmra.mrb[0].mxu0 %v1984
  %v2802 = vpop.f32.mrb[0].mxu0
  %v2803 = vadd.f32 0.0, %v2802
  %v2804 = vpop.f32.mrb[0].mxu0
  %2805 = vmatprep.mubr.f32.mxu0 0.0
  %2806 = vmatmul.mubr.f32.gmra.mrb[0].mxu0 %v1987
  %v2807 = vpop.f32.mrb[0].mxu0
  %v2808 = vadd.f32 0.0, %v2807
  %v2809 = vpop.f32.mrb[0].mxu0
  %2810 = vmatprep.mubr.f32.mxu0 0.0
  %2811 = vmatmul.mubr.f32.gmra.mrb[0].mxu0 %v1990
  %v2812 = vpop.f32.mrb[0].mxu0
  %v2813 = vadd.f32 0.0, %v2812
  %v2814 = vpop.f32.mrb[0].mxu0
  %2815 = vmatprep.mubr.f32.mxu0 0.0
  %2816 = vmatmul.mubr.f32.gmra.mrb[0].mxu0 %v1993
  %v2817 = vpop.f32.mrb[0].mxu0
  %v2818 = vadd.f32 0.0, %v2817
  %v2819 = vpop.f32.mrb[0].mxu0
  %2820 = vmatprep.mubr.f32.mxu0 0.0
  %2821 = vmatmul.mubr.f32.gmra.mrb[0].mxu0 %v1996
  %v2822 = vpop.f32.mrb[0].mxu0
  %v2823 = vadd.f32 0.0, %v2822
  %v2824 = vpop.f32.mrb[0].mxu0
  %2825 = vmatprep.mubr.f32.mxu0 0.0
  %2826 = vmatmul.mubr.f32.gmra.mrb[0].mxu0 %v1999
  %v2827 = vpop.f32.mrb[0].mxu0
  %v2828 = vadd.f32 0.0, %v2827
  %v2829 = vpop.f32.mrb[0].mxu0
  %2830 = vmatprep.mubr.f32.mxu0 0.0
  %2831 = vmatmul.mubr.f32.gmra.mrb[0].mxu0 %v2002
  %v2832 = vpop.f32.mrb[0].mxu0
  %v2833 = vadd.f32 0.0, %v2832
  %v2834 = vpop.f32.mrb[0].mxu0
  %2835 = vmatprep.mubr.f32.mxu0 0.0
  %2836 = vmatmul.mubr.f32.gmra.mrb[0].mxu0 %v2005
  %v2837 = vpop.f32.mrb[0].mxu0
  %v2838 = vadd.f32 0.0, %v2837
  %v2839 = vpop.f32.mrb[0].mxu0
  %2840 = vmatprep.mubr.f32.mxu0 0.0
  %2841 = vmatmul.mubr.f32.gmra.mrb[0].mxu0 %v2008
  %v2842 = vpop.f32.mrb[0].mxu0
  %v2843 = vadd.f32 0.0, %v2842
  %v2844 = vpop.f32.mrb[0].mxu0
  %2845 = vmatprep.mubr.f32.mxu0 0.0
  %2846 = vmatmul.mubr.f32.gmra.mrb[0].mxu0 %v2011
  %v2847 = vpop.f32.mrb[0].mxu0
  %v2848 = vadd.f32 0.0, %v2847
  %v2849 = vpop.f32.mrb[0].mxu0
  %2850 = vmatprep.mubr.f32.mxu0 0.0
  %2851 = vmatmul.mubr.f32.gmra.mrb[0].mxu0 %v2014
  %v2852 = vpop.f32.mrb[0].mxu0
  %v2853 = vadd.f32 0.0, %v2852
  %v2854 = vpop.f32.mrb[0].mxu0
  %2855 = vmatprep.mubr.f32.mxu0 0.0
  %2856 = vmatmul.mubr.f32.gmra.mrb[0].mxu0 %v2017
  %v2857 = vpop.f32.mrb[0].mxu0
  %v2858 = vadd.f32 0.0, %v2857
  %v2859 = vpop.f32.mrb[0].mxu0
  %2860 = vmatprep.mubr.f32.mxu0 0.0
  %2861 = vmatmul.mubr.f32.gmra.mrb[0].mxu0 %v2020
  %v2862 = vpop.f32.mrb[0].mxu0
  %v2863 = vadd.f32 0.0, %v2862
  %v2864 = vpop.f32.mrb[0].mxu0
  %2865 = vmatprep.mubr.f32.mxu0 0.0
  %2866 = vmatmul.mubr.f32.gmra.mrb[0].mxu0 %v2483
  %v2867 = vpop.f32.mrb[0].mxu0
  %v2868 = vadd.f32 0.0, %v2867
  %v2869 = vpop.f32.mrb[0].mxu0
  %2870 = vmatprep.mubr.f32.mxu0 0.0
  %2871 = vmatmul.mubr.f32.gmra.mrb[0].mxu0 %v2486
  %v2872 = vpop.f32.mrb[0].mxu0
  %v2873 = vadd.f32 0.0, %v2872
  %v2874 = vpop.f32.mrb[0].mxu0
  %2875 = vdwg.mxu0
  %v2876 = vadd.f32 %v2410, %v2558
  %v2877 = vadd.f32 %v2411, %v2563
  %v2878 = vadd.f32 %v2412, %v2568
  %v2879 = vadd.f32 %v2413, %v2573
  %v2880 = vadd.f32 %v2414, %v2578
  %v2881 = vadd.f32 %v2415, %v2583
  %v2882 = vadd.f32 %v2416, %v2588
  %v2883 = vadd.f32 %v2417, %v2593
  %v2884 = vadd.f32 %v2418, %v2598
  %v2885 = vadd.f32 %v2419, %v2603
  %v2886 = vadd.f32 %v2420, %v2608
  %v2887 = vadd.f32 %v2421, %v2613
  %v2888 = vadd.f32 %v2422, %v2618
  %v2889 = vadd.f32 %v2423, %v2623
  %v2890 = vadd.f32 %v2424, %v2628
  %v2891 = vadd.f32 %v2425, %v2633
  %v2892 = vadd.f32 %v2426, %v2638
  %v2893 = vadd.f32 %v2427, %v2643
  %v2894 = vadd.f32 %v2428, %v2648
  %v2895 = vadd.f32 %v2429, %v2653
  %v2896 = vadd.f32 %v2430, %v2658
  %v2897 = vadd.f32 %v2431, %v2663
  %v2898 = vadd.f32 %v2432, %v2668
  %v2899 = vadd.f32 %v2433, %v2673
  %v2900 = vadd.f32 %v2434, %v2678
  %v2901 = vadd.f32 %v2435, %v2683
  %v2902 = vadd.f32 %v2436, %v2688
  %v2903 = vadd.f32 %v2437, %v2693
  %v2904 = vadd.f32 %v2438, %v2698
  %v2905 = vadd.f32 %v2439, %v2703
  %v2906 = vadd.f32 %v2440, %v2708
  %v2907 = vadd.f32 %v2441, %v2713
  %v2908 = vadd.f32 %v2442, %v2718
  %v2909 = vadd.f32 %v2443, %v2723
  %v2910 = vadd.f32 %v2444, %v2728
  %v2911 = vadd.f32 %v2445, %v2733
  %v2912 = vadd.f32 %v2446, %v2738
  %v2913 = vadd.f32 %v2447, %v2743
  %v2914 = vadd.f32 %v2448, %v2748
  %v2915 = vadd.f32 %v2449, %v2753
  %v2916 = vadd.f32 %v2450, %v2758
  %v2917 = vadd.f32 %v2451, %v2763
  %v2918 = vadd.f32 %v2452, %v2768
  %v2919 = vadd.f32 %v2453, %v2773
  %v2920 = vadd.f32 %v2454, %v2778
  %v2921 = vadd.f32 %v2455, %v2783
  %v2922 = vadd.f32 %v2456, %v2788
  %v2923 = vadd.f32 %v2457, %v2793
  %v2924 = vadd.f32 %v2458, %v2798
  %v2925 = vadd.f32 %v2459, %v2803
  %v2926 = vadd.f32 %v2460, %v2808
  %v2927 = vadd.f32 %v2461, %v2813
  %v2928 = vadd.f32 %v2462, %v2818
  %v2929 = vadd.f32 %v2463, %v2823
  %v2930 = vadd.f32 %v2464, %v2828
  %v2931 = vadd.f32 %v2465, %v2833
  %v2932 = vadd.f32 %v2466, %v2838
  %v2933 = vadd.f32 %v2467, %v2843
  %v2934 = vadd.f32 %v2468, %v2848
  %v2935 = vadd.f32 %v2469, %v2853
  %v2936 = vadd.f32 %v2470, %v2858
  %v2937 = vadd.f32 %v2471, %v2863
  %v2938 = vadd.f32 %v2472, %v2868
  %v2939 = vadd.f32 %v2473, %v2873
  %s2940 = scalar_lea.vmem %s1, 28
  %v2941 = vld [vmem:[%s2940] sm:$0xf]
  %v2943 = vsel %vm90, %v1790, 0
  %v2946 = vsel %vm90, %v1791, 0
  %v2949 = vsel %vm90, %v1826, 0
  %v2952 = vsel %vm90, %v1827, 0
  %v2955 = vsel %vm501, %v2941, 0
  %2957 = vmatprep.subr.mxu0 0.0
  %2958 = vmatpush1.msra.mxu0 %v2955
  %2959 = vmatprep.subr.mxu0 0.0
  %2960 = vmatpush1.msra.mxu0 0.0
  %2961 = vmatprep.subr.mxu0 0.0
  %2962 = vmatpush1.msra.mxu0 0.0
  %2963 = vmatprep.subr.mxu0 0.0
  %2964 = vmatpush1.msra.mxu0 0.0
  %2965 = vmatprep.subr.mxu0 0.0
  %2966 = vmatpush1.msra.mxu0 0.0
  %2967 = vmatprep.subr.mxu0 0.0
  %2968 = vmatpush1.msra.mxu0 0.0
  %2969 = vmatprep.subr.mxu0 0.0
  %2970 = vmatpush1.msra.mxu0 0.0
  %2971 = vmatprep.subr.mxu0 0.0
  %2972 = vmatpush1.msra.mxu0 0.0
  %2973 = vmatprep.subr.mxu0 0.0
  %2974 = vmatpush1.msra.mxu0 0.0
  %2975 = vmatprep.subr.mxu0 0.0
  %2976 = vmatpush1.msra.mxu0 0.0
  %2977 = vmatprep.subr.mxu0 0.0
  %2978 = vmatpush1.msra.mxu0 0.0
  %2979 = vmatprep.subr.mxu0 0.0
  %2980 = vmatpush1.msra.mxu0 0.0
  %2981 = vmatprep.subr.mxu0 0.0
  %2982 = vmatpush1.msra.mxu0 0.0
  %2983 = vmatprep.subr.mxu0 0.0
  %2984 = vmatpush1.msra.mxu0 0.0
  %2985 = vmatprep.subr.mxu0 0.0
  %2986 = vmatpush1.msra.mxu0 0.0
  %2987 = vmatprep.subr.mxu0 0.0
  %2988 = vmatpush1.msra.mxu0 0.0
  %2989 = vmatprep.subr.mxu0 0.0
  %2990 = vmatpush1.msra.mxu0 0.0
  %2991 = vmatprep.subr.mxu0 0.0
  %2992 = vmatpush1.msra.mxu0 0.0
  %2993 = vmatprep.subr.mxu0 0.0
  %2994 = vmatpush1.msra.mxu0 0.0
  %2995 = vmatprep.subr.mxu0 0.0
  %2996 = vmatpush1.msra.mxu0 0.0
  %2997 = vmatprep.subr.mxu0 0.0
  %2998 = vmatpush1.msra.mxu0 0.0
  %2999 = vmatprep.subr.mxu0 0.0
  %3000 = vmatpush1.msra.mxu0 0.0
  %3001 = vmatprep.subr.mxu0 0.0
  %3002 = vmatpush1.msra.mxu0 0.0
  %3003 = vmatprep.subr.mxu0 0.0
  %3004 = vmatpush1.msra.mxu0 0.0
  %3005 = vmatprep.subr.mxu0 0.0
  %3006 = vmatpush1.msra.mxu0 0.0
  %3007 = vmatprep.subr.mxu0 0.0
  %3008 = vmatpush1.msra.mxu0 0.0
  %3009 = vmatprep.subr.mxu0 0.0
  %3010 = vmatpush1.msra.mxu0 0.0
  %3011 = vmatprep.subr.mxu0 0.0
  %3012 = vmatpush1.msra.mxu0 0.0
  %3013 = vmatprep.subr.mxu0 0.0
  %3014 = vmatpush1.msra.mxu0 0.0
  %3015 = vmatprep.subr.mxu0 0.0
  %3016 = vmatpush1.msra.mxu0 0.0
  %3017 = vmatprep.subr.mxu0 0.0
  %3018 = vmatpush1.msra.mxu0 0.0
  %3019 = vmatprep.subr.mxu0 0.0
  %3020 = vmatpush1.msra.mxu0 0.0
  %3021 = vmatprep.mubr.f32.mxu0 0.0
  %3022 = vmatmul.mubr.f32.gmra.mrb[0].mxu0 %v1843
  %v3023 = vpop.f32.mrb[0].mxu0
  %v3024 = vadd.f32 0.0, %v3023
  %v3025 = vpop.f32.mrb[0].mxu0
  %3026 = vmatprep.mubr.f32.mxu0 0.0
  %3027 = vmatmul.mubr.f32.gmra.mrb[0].mxu0 %v1846
  %v3028 = vpop.f32.mrb[0].mxu0
  %v3029 = vadd.f32 0.0, %v3028
  %v3030 = vpop.f32.mrb[0].mxu0
  %3031 = vmatprep.mubr.f32.mxu0 0.0
  %3032 = vmatmul.mubr.f32.gmra.mrb[0].mxu0 %v1849
  %v3033 = vpop.f32.mrb[0].mxu0
  %v3034 = vadd.f32 0.0, %v3033
  %v3035 = vpop.f32.mrb[0].mxu0
  %3036 = vmatprep.mubr.f32.mxu0 0.0
  %3037 = vmatmul.mubr.f32.gmra.mrb[0].mxu0 %v1852
  %v3038 = vpop.f32.mrb[0].mxu0
  %v3039 = vadd.f32 0.0, %v3038
  %v3040 = vpop.f32.mrb[0].mxu0
  %3041 = vmatprep.mubr.f32.mxu0 0.0
  %3042 = vmatmul.mubr.f32.gmra.mrb[0].mxu0 %v1855
  %v3043 = vpop.f32.mrb[0].mxu0
  %v3044 = vadd.f32 0.0, %v3043
  %v3045 = vpop.f32.mrb[0].mxu0
  %3046 = vmatprep.mubr.f32.mxu0 0.0
  %3047 = vmatmul.mubr.f32.gmra.mrb[0].mxu0 %v1858
  %v3048 = vpop.f32.mrb[0].mxu0
  %v3049 = vadd.f32 0.0, %v3048
  %v3050 = vpop.f32.mrb[0].mxu0
  %3051 = vmatprep.mubr.f32.mxu0 0.0
  %3052 = vmatmul.mubr.f32.gmra.mrb[0].mxu0 %v1861
  %v3053 = vpop.f32.mrb[0].mxu0
  %v3054 = vadd.f32 0.0, %v3053
  %v3055 = vpop.f32.mrb[0].mxu0
  %3056 = vmatprep.mubr.f32.mxu0 0.0
  %3057 = vmatmul.mubr.f32.gmra.mrb[0].mxu0 %v1864
  %v3058 = vpop.f32.mrb[0].mxu0
  %v3059 = vadd.f32 0.0, %v3058
  %v3060 = vpop.f32.mrb[0].mxu0
  %3061 = vmatprep.mubr.f32.mxu0 0.0
  %3062 = vmatmul.mubr.f32.gmra.mrb[0].mxu0 %v1867
  %v3063 = vpop.f32.mrb[0].mxu0
  %v3064 = vadd.f32 0.0, %v3063
  %v3065 = vpop.f32.mrb[0].mxu0
  %3066 = vmatprep.mubr.f32.mxu0 0.0
  %3067 = vmatmul.mubr.f32.gmra.mrb[0].mxu0 %v1870
  %v3068 = vpop.f32.mrb[0].mxu0
  %v3069 = vadd.f32 0.0, %v3068
  %v3070 = vpop.f32.mrb[0].mxu0
  %3071 = vmatprep.mubr.f32.mxu0 0.0
  %3072 = vmatmul.mubr.f32.gmra.mrb[0].mxu0 %v1873
  %v3073 = vpop.f32.mrb[0].mxu0
  %v3074 = vadd.f32 0.0, %v3073
  %v3075 = vpop.f32.mrb[0].mxu0
  %3076 = vmatprep.mubr.f32.mxu0 0.0
  %3077 = vmatmul.mubr.f32.gmra.mrb[0].mxu0 %v1876
  %v3078 = vpop.f32.mrb[0].mxu0
  %v3079 = vadd.f32 0.0, %v3078
  %v3080 = vpop.f32.mrb[0].mxu0
  %3081 = vmatprep.mubr.f32.mxu0 0.0
  %3082 = vmatmul.mubr.f32.gmra.mrb[0].mxu0 %v1879
  %v3083 = vpop.f32.mrb[0].mxu0
  %v3084 = vadd.f32 0.0, %v3083
  %v3085 = vpop.f32.mrb[0].mxu0
  %3086 = vmatprep.mubr.f32.mxu0 0.0
  %3087 = vmatmul.mubr.f32.gmra.mrb[0].mxu0 %v1882
  %v3088 = vpop.f32.mrb[0].mxu0
  %v3089 = vadd.f32 0.0, %v3088
  %v3090 = vpop.f32.mrb[0].mxu0
  %3091 = vmatprep.mubr.f32.mxu0 0.0
  %3092 = vmatmul.mubr.f32.gmra.mrb[0].mxu0 %v1885
  %v3093 = vpop.f32.mrb[0].mxu0
  %v3094 = vadd.f32 0.0, %v3093
  %v3095 = vpop.f32.mrb[0].mxu0
  %3096 = vmatprep.mubr.f32.mxu0 0.0
  %3097 = vmatmul.mubr.f32.gmra.mrb[0].mxu0 %v1888
  %v3098 = vpop.f32.mrb[0].mxu0
  %v3099 = vadd.f32 0.0, %v3098
  %v3100 = vpop.f32.mrb[0].mxu0
  %3101 = vmatprep.mubr.f32.mxu0 0.0
  %3102 = vmatmul.mubr.f32.gmra.mrb[0].mxu0 %v1891
  %v3103 = vpop.f32.mrb[0].mxu0
  %v3104 = vadd.f32 0.0, %v3103
  %v3105 = vpop.f32.mrb[0].mxu0
  %3106 = vmatprep.mubr.f32.mxu0 0.0
  %3107 = vmatmul.mubr.f32.gmra.mrb[0].mxu0 %v1894
  %v3108 = vpop.f32.mrb[0].mxu0
  %v3109 = vadd.f32 0.0, %v3108
  %v3110 = vpop.f32.mrb[0].mxu0
  %3111 = vmatprep.mubr.f32.mxu0 0.0
  %3112 = vmatmul.mubr.f32.gmra.mrb[0].mxu0 %v1897
  %v3113 = vpop.f32.mrb[0].mxu0
  %v3114 = vadd.f32 0.0, %v3113
  %v3115 = vpop.f32.mrb[0].mxu0
  %3116 = vmatprep.mubr.f32.mxu0 0.0
  %3117 = vmatmul.mubr.f32.gmra.mrb[0].mxu0 %v1900
  %v3118 = vpop.f32.mrb[0].mxu0
  %v3119 = vadd.f32 0.0, %v3118
  %v3120 = vpop.f32.mrb[0].mxu0
  %3121 = vmatprep.mubr.f32.mxu0 0.0
  %3122 = vmatmul.mubr.f32.gmra.mrb[0].mxu0 %v1903
  %v3123 = vpop.f32.mrb[0].mxu0
  %v3124 = vadd.f32 0.0, %v3123
  %v3125 = vpop.f32.mrb[0].mxu0
  %3126 = vmatprep.mubr.f32.mxu0 0.0
  %3127 = vmatmul.mubr.f32.gmra.mrb[0].mxu0 %v1906
  %v3128 = vpop.f32.mrb[0].mxu0
  %v3129 = vadd.f32 0.0, %v3128
  %v3130 = vpop.f32.mrb[0].mxu0
  %3131 = vmatprep.mubr.f32.mxu0 0.0
  %3132 = vmatmul.mubr.f32.gmra.mrb[0].mxu0 %v1909
  %v3133 = vpop.f32.mrb[0].mxu0
  %v3134 = vadd.f32 0.0, %v3133
  %v3135 = vpop.f32.mrb[0].mxu0
  %3136 = vmatprep.mubr.f32.mxu0 0.0
  %3137 = vmatmul.mubr.f32.gmra.mrb[0].mxu0 %v1912
  %v3138 = vpop.f32.mrb[0].mxu0
  %v3139 = vadd.f32 0.0, %v3138
  %v3140 = vpop.f32.mrb[0].mxu0
  %3141 = vmatprep.mubr.f32.mxu0 0.0
  %3142 = vmatmul.mubr.f32.gmra.mrb[0].mxu0 %v1915
  %v3143 = vpop.f32.mrb[0].mxu0
  %v3144 = vadd.f32 0.0, %v3143
  %v3145 = vpop.f32.mrb[0].mxu0
  %3146 = vmatprep.mubr.f32.mxu0 0.0
  %3147 = vmatmul.mubr.f32.gmra.mrb[0].mxu0 %v1918
  %v3148 = vpop.f32.mrb[0].mxu0
  %v3149 = vadd.f32 0.0, %v3148
  %v3150 = vpop.f32.mrb[0].mxu0
  %3151 = vmatprep.mubr.f32.mxu0 0.0
  %3152 = vmatmul.mubr.f32.gmra.mrb[0].mxu0 %v1921
  %v3153 = vpop.f32.mrb[0].mxu0
  %v3154 = vadd.f32 0.0, %v3153
  %v3155 = vpop.f32.mrb[0].mxu0
  %3156 = vmatprep.mubr.f32.mxu0 0.0
  %3157 = vmatmul.mubr.f32.gmra.mrb[0].mxu0 %v1924
  %v3158 = vpop.f32.mrb[0].mxu0
  %v3159 = vadd.f32 0.0, %v3158
  %v3160 = vpop.f32.mrb[0].mxu0
  %3161 = vmatprep.mubr.f32.mxu0 0.0
  %3162 = vmatmul.mubr.f32.gmra.mrb[0].mxu0 %v2477
  %v3163 = vpop.f32.mrb[0].mxu0
  %v3164 = vadd.f32 0.0, %v3163
  %v3165 = vpop.f32.mrb[0].mxu0
  %3166 = vmatprep.mubr.f32.mxu0 0.0
  %3167 = vmatmul.mubr.f32.gmra.mrb[0].mxu0 %v2480
  %v3168 = vpop.f32.mrb[0].mxu0
  %v3169 = vadd.f32 0.0, %v3168
  %v3170 = vpop.f32.mrb[0].mxu0
  %3171 = vmatprep.mubr.f32.mxu0 0.0
  %3172 = vmatmul.mubr.f32.gmra.mrb[0].mxu0 %v2943
  %v3173 = vpop.f32.mrb[0].mxu0
  %v3174 = vadd.f32 0.0, %v3173
  %v3175 = vpop.f32.mrb[0].mxu0
  %3176 = vmatprep.mubr.f32.mxu0 0.0
  %3177 = vmatmul.mubr.f32.gmra.mrb[0].mxu0 %v2946
  %v3178 = vpop.f32.mrb[0].mxu0
  %v3179 = vadd.f32 0.0, %v3178
  %v3180 = vpop.f32.mrb[0].mxu0
  %3181 = vmatprep.mubr.f32.mxu0 0.0
  %3182 = vmatmul.mubr.f32.gmra.mrb[0].mxu0 %v1939
  %v3183 = vpop.f32.mrb[0].mxu0
  %v3184 = vadd.f32 0.0, %v3183
  %v3185 = vpop.f32.mrb[0].mxu0
  %3186 = vmatprep.mubr.f32.mxu0 0.0
  %3187 = vmatmul.mubr.f32.gmra.mrb[0].mxu0 %v1942
  %v3188 = vpop.f32.mrb[0].mxu0
  %v3189 = vadd.f32 0.0, %v3188
  %v3190 = vpop.f32.mrb[0].mxu0
  %3191 = vmatprep.mubr.f32.mxu0 0.0
  %3192 = vmatmul.mubr.f32.gmra.mrb[0].mxu0 %v1945
  %v3193 = vpop.f32.mrb[0].mxu0
  %v3194 = vadd.f32 0.0, %v3193
  %v3195 = vpop.f32.mrb[0].mxu0
  %3196 = vmatprep.mubr.f32.mxu0 0.0
  %3197 = vmatmul.mubr.f32.gmra.mrb[0].mxu0 %v1948
  %v3198 = vpop.f32.mrb[0].mxu0
  %v3199 = vadd.f32 0.0, %v3198
  %v3200 = vpop.f32.mrb[0].mxu0
  %3201 = vmatprep.mubr.f32.mxu0 0.0
  %3202 = vmatmul.mubr.f32.gmra.mrb[0].mxu0 %v1951
  %v3203 = vpop.f32.mrb[0].mxu0
  %v3204 = vadd.f32 0.0, %v3203
  %v3205 = vpop.f32.mrb[0].mxu0
  %3206 = vmatprep.mubr.f32.mxu0 0.0
  %3207 = vmatmul.mubr.f32.gmra.mrb[0].mxu0 %v1954
  %v3208 = vpop.f32.mrb[0].mxu0
  %v3209 = vadd.f32 0.0, %v3208
  %v3210 = vpop.f32.mrb[0].mxu0
  %3211 = vmatprep.mubr.f32.mxu0 0.0
  %3212 = vmatmul.mubr.f32.gmra.mrb[0].mxu0 %v1957
  %v3213 = vpop.f32.mrb[0].mxu0
  %v3214 = vadd.f32 0.0, %v3213
  %v3215 = vpop.f32.mrb[0].mxu0
  %3216 = vmatprep.mubr.f32.mxu0 0.0
  %3217 = vmatmul.mubr.f32.gmra.mrb[0].mxu0 %v1960
  %v3218 = vpop.f32.mrb[0].mxu0
  %v3219 = vadd.f32 0.0, %v3218
  %v3220 = vpop.f32.mrb[0].mxu0
  %3221 = vmatprep.mubr.f32.mxu0 0.0
  %3222 = vmatmul.mubr.f32.gmra.mrb[0].mxu0 %v1963
  %v3223 = vpop.f32.mrb[0].mxu0
  %v3224 = vadd.f32 0.0, %v3223
  %v3225 = vpop.f32.mrb[0].mxu0
  %3226 = vmatprep.mubr.f32.mxu0 0.0
  %3227 = vmatmul.mubr.f32.gmra.mrb[0].mxu0 %v1966
  %v3228 = vpop.f32.mrb[0].mxu0
  %v3229 = vadd.f32 0.0, %v3228
  %v3230 = vpop.f32.mrb[0].mxu0
  %3231 = vmatprep.mubr.f32.mxu0 0.0
  %3232 = vmatmul.mubr.f32.gmra.mrb[0].mxu0 %v1969
  %v3233 = vpop.f32.mrb[0].mxu0
  %v3234 = vadd.f32 0.0, %v3233
  %v3235 = vpop.f32.mrb[0].mxu0
  %3236 = vmatprep.mubr.f32.mxu0 0.0
  %3237 = vmatmul.mubr.f32.gmra.mrb[0].mxu0 %v1972
  %v3238 = vpop.f32.mrb[0].mxu0
  %v3239 = vadd.f32 0.0, %v3238
  %v3240 = vpop.f32.mrb[0].mxu0
  %3241 = vmatprep.mubr.f32.mxu0 0.0
  %3242 = vmatmul.mubr.f32.gmra.mrb[0].mxu0 %v1975
  %v3243 = vpop.f32.mrb[0].mxu0
  %v3244 = vadd.f32 0.0, %v3243
  %v3245 = vpop.f32.mrb[0].mxu0
  %3246 = vmatprep.mubr.f32.mxu0 0.0
  %3247 = vmatmul.mubr.f32.gmra.mrb[0].mxu0 %v1978
  %v3248 = vpop.f32.mrb[0].mxu0
  %v3249 = vadd.f32 0.0, %v3248
  %v3250 = vpop.f32.mrb[0].mxu0
  %3251 = vmatprep.mubr.f32.mxu0 0.0
  %3252 = vmatmul.mubr.f32.gmra.mrb[0].mxu0 %v1981
  %v3253 = vpop.f32.mrb[0].mxu0
  %v3254 = vadd.f32 0.0, %v3253
  %v3255 = vpop.f32.mrb[0].mxu0
  %3256 = vmatprep.mubr.f32.mxu0 0.0
  %3257 = vmatmul.mubr.f32.gmra.mrb[0].mxu0 %v1984
  %v3258 = vpop.f32.mrb[0].mxu0
  %v3259 = vadd.f32 0.0, %v3258
  %v3260 = vpop.f32.mrb[0].mxu0
  %3261 = vmatprep.mubr.f32.mxu0 0.0
  %3262 = vmatmul.mubr.f32.gmra.mrb[0].mxu0 %v1987
  %v3263 = vpop.f32.mrb[0].mxu0
  %v3264 = vadd.f32 0.0, %v3263
  %v3265 = vpop.f32.mrb[0].mxu0
  %3266 = vmatprep.mubr.f32.mxu0 0.0
  %3267 = vmatmul.mubr.f32.gmra.mrb[0].mxu0 %v1990
  %v3268 = vpop.f32.mrb[0].mxu0
  %v3269 = vadd.f32 0.0, %v3268
  %v3270 = vpop.f32.mrb[0].mxu0
  %3271 = vmatprep.mubr.f32.mxu0 0.0
  %3272 = vmatmul.mubr.f32.gmra.mrb[0].mxu0 %v1993
  %v3273 = vpop.f32.mrb[0].mxu0
  %v3274 = vadd.f32 0.0, %v3273
  %v3275 = vpop.f32.mrb[0].mxu0
  %3276 = vmatprep.mubr.f32.mxu0 0.0
  %3277 = vmatmul.mubr.f32.gmra.mrb[0].mxu0 %v1996
  %v3278 = vpop.f32.mrb[0].mxu0
  %v3279 = vadd.f32 0.0, %v3278
  %v3280 = vpop.f32.mrb[0].mxu0
  %3281 = vmatprep.mubr.f32.mxu0 0.0
  %3282 = vmatmul.mubr.f32.gmra.mrb[0].mxu0 %v1999
  %v3283 = vpop.f32.mrb[0].mxu0
  %v3284 = vadd.f32 0.0, %v3283
  %v3285 = vpop.f32.mrb[0].mxu0
  %3286 = vmatprep.mubr.f32.mxu0 0.0
  %3287 = vmatmul.mubr.f32.gmra.mrb[0].mxu0 %v2002
  %v3288 = vpop.f32.mrb[0].mxu0
  %v3289 = vadd.f32 0.0, %v3288
  %v3290 = vpop.f32.mrb[0].mxu0
  %3291 = vmatprep.mubr.f32.mxu0 0.0
  %3292 = vmatmul.mubr.f32.gmra.mrb[0].mxu0 %v2005
  %v3293 = vpop.f32.mrb[0].mxu0
  %v3294 = vadd.f32 0.0, %v3293
  %v3295 = vpop.f32.mrb[0].mxu0
  %3296 = vmatprep.mubr.f32.mxu0 0.0
  %3297 = vmatmul.mubr.f32.gmra.mrb[0].mxu0 %v2008
  %v3298 = vpop.f32.mrb[0].mxu0
  %v3299 = vadd.f32 0.0, %v3298
  %v3300 = vpop.f32.mrb[0].mxu0
  %3301 = vmatprep.mubr.f32.mxu0 0.0
  %3302 = vmatmul.mubr.f32.gmra.mrb[0].mxu0 %v2011
  %v3303 = vpop.f32.mrb[0].mxu0
  %v3304 = vadd.f32 0.0, %v3303
  %v3305 = vpop.f32.mrb[0].mxu0
  %3306 = vmatprep.mubr.f32.mxu0 0.0
  %3307 = vmatmul.mubr.f32.gmra.mrb[0].mxu0 %v2014
  %v3308 = vpop.f32.mrb[0].mxu0
  %v3309 = vadd.f32 0.0, %v3308
  %v3310 = vpop.f32.mrb[0].mxu0
  %3311 = vmatprep.mubr.f32.mxu0 0.0
  %3312 = vmatmul.mubr.f32.gmra.mrb[0].mxu0 %v2017
  %v3313 = vpop.f32.mrb[0].mxu0
  %v3314 = vadd.f32 0.0, %v3313
  %v3315 = vpop.f32.mrb[0].mxu0
  %3316 = vmatprep.mubr.f32.mxu0 0.0
  %3317 = vmatmul.mubr.f32.gmra.mrb[0].mxu0 %v2020
  %v3318 = vpop.f32.mrb[0].mxu0
  %v3319 = vadd.f32 0.0, %v3318
  %v3320 = vpop.f32.mrb[0].mxu0
  %3321 = vmatprep.mubr.f32.mxu0 0.0
  %3322 = vmatmul.mubr.f32.gmra.mrb[0].mxu0 %v2483
  %v3323 = vpop.f32.mrb[0].mxu0
  %v3324 = vadd.f32 0.0, %v3323
  %v3325 = vpop.f32.mrb[0].mxu0
  %3326 = vmatprep.mubr.f32.mxu0 0.0
  %3327 = vmatmul.mubr.f32.gmra.mrb[0].mxu0 %v2486
  %v3328 = vpop.f32.mrb[0].mxu0
  %v3329 = vadd.f32 0.0, %v3328
  %v3330 = vpop.f32.mrb[0].mxu0
  %3331 = vmatprep.mubr.f32.mxu0 0.0
  %3332 = vmatmul.mubr.f32.gmra.mrb[0].mxu0 %v2949
  %v3333 = vpop.f32.mrb[0].mxu0
  %v3334 = vadd.f32 0.0, %v3333
  %v3335 = vpop.f32.mrb[0].mxu0
  %3336 = vmatprep.mubr.f32.mxu0 0.0
  %3337 = vmatmul.mubr.f32.gmra.mrb[0].mxu0 %v2952
  %v3338 = vpop.f32.mrb[0].mxu0
  %v3339 = vadd.f32 0.0, %v3338
  %v3340 = vpop.f32.mrb[0].mxu0
  %3341 = vdwg.mxu0
  %v3342 = vadd.f32 %v2876, %v3024
  %v3343 = vadd.f32 %v2877, %v3029
  %v3344 = vadd.f32 %v2878, %v3034
  %v3345 = vadd.f32 %v2879, %v3039
  %v3346 = vadd.f32 %v2880, %v3044
  %v3347 = vadd.f32 %v2881, %v3049
  %v3348 = vadd.f32 %v2882, %v3054
  %v3349 = vadd.f32 %v2883, %v3059
  %v3350 = vadd.f32 %v2884, %v3064
  %v3351 = vadd.f32 %v2885, %v3069
  %v3352 = vadd.f32 %v2886, %v3074
  %v3353 = vadd.f32 %v2887, %v3079
  %v3354 = vadd.f32 %v2888, %v3084
  %v3355 = vadd.f32 %v2889, %v3089
  %v3356 = vadd.f32 %v2890, %v3094
  %v3357 = vadd.f32 %v2891, %v3099
  %v3358 = vadd.f32 %v2892, %v3104
  %v3359 = vadd.f32 %v2893, %v3109
  %v3360 = vadd.f32 %v2894, %v3114
  %v3361 = vadd.f32 %v2895, %v3119
  %v3362 = vadd.f32 %v2896, %v3124
  %v3363 = vadd.f32 %v2897, %v3129
  %v3364 = vadd.f32 %v2898, %v3134
  %v3365 = vadd.f32 %v2899, %v3139
  %v3366 = vadd.f32 %v2900, %v3144
  %v3367 = vadd.f32 %v2901, %v3149
  %v3368 = vadd.f32 %v2902, %v3154
  %v3369 = vadd.f32 %v2903, %v3159
  %v3370 = vadd.f32 %v2904, %v3164
  %v3371 = vadd.f32 %v2905, %v3169
  %v3372 = vadd.f32 %v2906, %v3174
  %v3373 = vadd.f32 %v2907, %v3179
  %v3374 = vadd.f32 %v2908, %v3184
  %v3375 = vadd.f32 %v2909, %v3189
  %v3376 = vadd.f32 %v2910, %v3194
  %v3377 = vadd.f32 %v2911, %v3199
  %v3378 = vadd.f32 %v2912, %v3204
  %v3379 = vadd.f32 %v2913, %v3209
  %v3380 = vadd.f32 %v2914, %v3214
  %v3381 = vadd.f32 %v2915, %v3219
  %v3382 = vadd.f32 %v2916, %v3224
  %v3383 = vadd.f32 %v2917, %v3229
  %v3384 = vadd.f32 %v2918, %v3234
  %v3385 = vadd.f32 %v2919, %v3239
  %v3386 = vadd.f32 %v2920, %v3244
  %v3387 = vadd.f32 %v2921, %v3249
  %v3388 = vadd.f32 %v2922, %v3254
  %v3389 = vadd.f32 %v2923, %v3259
  %v3390 = vadd.f32 %v2924, %v3264
  %v3391 = vadd.f32 %v2925, %v3269
  %v3392 = vadd.f32 %v2926, %v3274
  %v3393 = vadd.f32 %v2927, %v3279
  %v3394 = vadd.f32 %v2928, %v3284
  %v3395 = vadd.f32 %v2929, %v3289
  %v3396 = vadd.f32 %v2930, %v3294
  %v3397 = vadd.f32 %v2931, %v3299
  %v3398 = vadd.f32 %v2932, %v3304
  %v3399 = vadd.f32 %v2933, %v3309
  %v3400 = vadd.f32 %v2934, %v3314
  %v3401 = vadd.f32 %v2935, %v3319
  %v3402 = vadd.f32 %v2936, %v3324
  %v3403 = vadd.f32 %v2937, %v3329
  %v3404 = vadd.f32 %v2938, %v3334
  %v3405 = vadd.f32 %v2939, %v3339
  %v3406 = vld [vmem:[#allocation2 + $0x2] sm:$0xff]
  %v3407 = vld [vmem:[#allocation2 + $0xa] sm:$0xff]
  %v3408 = vld [vmem:[#allocation2 + $0x1a] sm:$0xff]
  %v3409 = vld [vmem:[#allocation2 + $0x22] sm:$0xff]
  %v3410 = vld [vmem:[#allocation2 + $0x32] sm:$0xff]
  %v3411 = vld [vmem:[#allocation2 + $0x3a] sm:$0xff]
  %v3412 = vld [vmem:[#allocation2 + $0x4a] sm:$0xff]
  %v3413 = vld [vmem:[#allocation2 + $0x52] sm:$0xff]
  %v3414 = vld [vmem:[#allocation2 + $0x62] sm:$0xff]
  %v3415 = vld [vmem:[#allocation2 + $0x6a] sm:$0xff]
  %v3416 = vld [vmem:[#allocation2 + $0x7a] sm:$0xff]
  %v3417 = vld [vmem:[#allocation2 + $0x82] sm:$0xff]
  %v3418 = vld [vmem:[#allocation2 + $0x92] sm:$0xff]
  %v3419 = vld [vmem:[#allocation2 + $0x9a] sm:$0xff]
  %v3420 = vld [vmem:[#allocation2 + $0xaa] sm:$0xff]
  %v3421 = vld [vmem:[#allocation2 + $0xb2] sm:$0xff]
  %v3422 = vld [vmem:[#allocation2 + $0xc2] sm:$0xff]
  %v3423 = vld [vmem:[#allocation2 + $0xca] sm:$0xff]
  %v3424 = vld [vmem:[#allocation2 + $0xda] sm:$0xff]
  %v3425 = vld [vmem:[#allocation2 + $0xe2] sm:$0xff]
  %v3426 = vld [vmem:[#allocation2 + $0xf2] sm:$0xff]
  %v3427 = vld [vmem:[#allocation2 + $0xfa] sm:$0xff]
  %v3428 = vld [vmem:[#allocation2 + $0x10a] sm:$0xff]
  %v3429 = vld [vmem:[#allocation2 + $0x112] sm:$0xff]
  %v3430 = vld [vmem:[#allocation2 + $0x122] sm:$0xff]
  %v3431 = vld [vmem:[#allocation2 + $0x12a] sm:$0xff]
  %v3432 = vld [vmem:[#allocation2 + $0x13a] sm:$0xff]
  %v3433 = vld [vmem:[#allocation2 + $0x142] sm:$0xff]
  %v3434 = vld [vmem:[#allocation2 + $0x152] sm:$0xff]
  %v3435 = vld [vmem:[#allocation2 + $0x15a] sm:$0xff]
  %v3436 = vld [vmem:[#allocation2 + $0x16a] sm:$0xff]
  %v3437 = vld [vmem:[#allocation2 + $0x172] sm:$0xff]
  %v3438 = vld [vmem:[#allocation2 + $0x182] sm:$0xff]
  %v3439 = vld [vmem:[#allocation2 + $0x18a] sm:$0xff]
  %v3440 = vld [vmem:[#allocation2 + $0x19a] sm:$0xff]
  %v3441 = vld [vmem:[#allocation2 + $0x1a2] sm:$0xff]
  %v3442 = vld [vmem:[#allocation2 + $0x1b2] sm:$0xff]
  %v3443 = vld [vmem:[#allocation2 + $0x1ba] sm:$0xff]
  %v3444 = vld [vmem:[#allocation2 + $0x1ca] sm:$0xff]
  %v3445 = vld [vmem:[#allocation2 + $0x1d2] sm:$0xff]
  %v3446 = vld [vmem:[#allocation2 + $0x1e2] sm:$0xff]
  %v3447 = vld [vmem:[#allocation2 + $0x1ea] sm:$0xff]
  %v3448 = vld [vmem:[#allocation2 + $0x1fa] sm:$0xff]
  %v3449 = vld [vmem:[#allocation2 + $0x202] sm:$0xff]
  %v3450 = vld [vmem:[#allocation2 + $0x212] sm:$0xff]
  %v3451 = vld [vmem:[#allocation2 + $0x21a] sm:$0xff]
  %v3452 = vld [vmem:[#allocation2 + $0x22a] sm:$0xff]
  %v3453 = vld [vmem:[#allocation2 + $0x232] sm:$0xff]
  %v3454 = vld [vmem:[#allocation2 + $0x242] sm:$0xff]
  %v3455 = vld [vmem:[#allocation2 + $0x24a] sm:$0xff]
  %v3456 = vld [vmem:[#allocation2 + $0x25a] sm:$0xff]
  %v3457 = vld [vmem:[#allocation2 + $0x262] sm:$0xff]
  %v3458 = vld [vmem:[#allocation2 + $0x272] sm:$0xff]
  %v3459 = vld [vmem:[#allocation2 + $0x27a] sm:$0xff]
  %v3460 = vld [vmem:[#allocation2 + $0x28a] sm:$0xff]
  %v3461 = vld [vmem:[#allocation2 + $0x292] sm:$0xff]
  %v3462 = vld [vmem:[#allocation2 + $0x2a2] sm:$0xff]
  %v3463 = vld [vmem:[#allocation2 + $0x2aa] sm:$0xff]
  %v3464 = vld [vmem:[#allocation2 + $0x2ba] sm:$0xff]
  %v3465 = vld [vmem:[#allocation2 + $0x2c2] sm:$0xff]
  %v3466 = vld [vmem:[#allocation2 + $0x2d2] sm:$0xff]
  %v3467 = vld [vmem:[#allocation2 + $0x2da] sm:$0xff]
  %v3468 = vld [vmem:[#allocation2 + $0x2ea] sm:$0xff]
  %v3469 = vld [vmem:[#allocation2 + $0x2f2] sm:$0xff]
  %v3470 = vld [vmem:[#allocation2 + $0x302] sm:$0xff]
  %v3471 = vld [vmem:[#allocation2 + $0x30a] sm:$0xff]
  %v3472 = vld [vmem:[#allocation2 + $0x31a] sm:$0xff]
  %v3473 = vld [vmem:[#allocation2 + $0x322] sm:$0xff]
  %v3474 = vld [vmem:[#allocation2 + $0x332] sm:$0xff]
  %v3475 = vld [vmem:[#allocation2 + $0x33a] sm:$0xff]
  %v3476 = vld [vmem:[#allocation2 + $0x34a] sm:$0xff]
  %v3477 = vld [vmem:[#allocation2 + $0x352] sm:$0xff]
  %s3478 = scalar_lea.vmem %s1, 8
  %v3479 = vld [vmem:[%s3478] sm:$0xf]
  %v3481 = vsel %vm90, %v3406, 0
  %v3484 = vsel %vm90, %v3407, 0
  %v3487 = vsel %vm90, %v3408, 0
  %v3490 = vsel %vm90, %v3409, 0
  %v3493 = vsel %vm90, %v3410, 0
  %v3496 = vsel %vm90, %v3411, 0
  %v3499 = vsel %vm90, %v3412, 0
  %v3502 = vsel %vm90, %v3413, 0
  %v3505 = vsel %vm90, %v3414, 0
  %v3508 = vsel %vm90, %v3415, 0
  %v3511 = vsel %vm90, %v3416, 0
  %v3514 = vsel %vm90, %v3417, 0
  %v3517 = vsel %vm90, %v3418, 0
  %v3520 = vsel %vm90, %v3419, 0
  %v3523 = vsel %vm90, %v3420, 0
  %v3526 = vsel %vm90, %v3421, 0
  %v3529 = vsel %vm90, %v3422, 0
  %v3532 = vsel %vm90, %v3423, 0
  %v3535 = vsel %vm90, %v3424, 0
  %v3538 = vsel %vm90, %v3425, 0
  %v3541 = vsel %vm90, %v3426, 0
  %v3544 = vsel %vm90, %v3427, 0
  %v3547 = vsel %vm90, %v3428, 0
  %v3550 = vsel %vm90, %v3429, 0
  %v3553 = vsel %vm90, %v3430, 0
  %v3556 = vsel %vm90, %v3431, 0
  %v3559 = vsel %vm90, %v3432, 0
  %v3562 = vsel %vm90, %v3433, 0
  %v3565 = vsel %vm90, %v3434, 0
  %v3568 = vsel %vm90, %v3435, 0
  %v3571 = vsel %vm90, %v3436, 0
  %v3574 = vsel %vm90, %v3437, 0
  %v3577 = vsel %vm90, %v3442, 0
  %v3580 = vsel %vm90, %v3443, 0
  %v3583 = vsel %vm90, %v3444, 0
  %v3586 = vsel %vm90, %v3445, 0
  %v3589 = vsel %vm90, %v3446, 0
  %v3592 = vsel %vm90, %v3447, 0
  %v3595 = vsel %vm90, %v3448, 0
  %v3598 = vsel %vm90, %v3449, 0
  %v3601 = vsel %vm90, %v3450, 0
  %v3604 = vsel %vm90, %v3451, 0
  %v3607 = vsel %vm90, %v3452, 0
  %v3610 = vsel %vm90, %v3453, 0
  %v3613 = vsel %vm90, %v3454, 0
  %v3616 = vsel %vm90, %v3455, 0
  %v3619 = vsel %vm90, %v3456, 0
  %v3622 = vsel %vm90, %v3457, 0
  %v3625 = vsel %vm90, %v3458, 0
  %v3628 = vsel %vm90, %v3459, 0
  %v3631 = vsel %vm90, %v3460, 0
  %v3634 = vsel %vm90, %v3461, 0
  %v3637 = vsel %vm90, %v3462, 0
  %v3640 = vsel %vm90, %v3463, 0
  %v3643 = vsel %vm90, %v3464, 0
  %v3646 = vsel %vm90, %v3465, 0
  %v3649 = vsel %vm90, %v3466, 0
  %v3652 = vsel %vm90, %v3467, 0
  %v3655 = vsel %vm90, %v3468, 0
  %v3658 = vsel %vm90, %v3469, 0
  %v3661 = vsel %vm90, %v3470, 0
  %v3664 = vsel %vm90, %v3471, 0
  %v3667 = vsel %vm90, %v3472, 0
  %v3670 = vsel %vm90, %v3473, 0
  %v3673 = vsel %vm501, %v3479, 0
  %3675 = vmatprep.subr.mxu0 0.0
  %3676 = vmatpush1.msra.mxu0 %v3673
  %3677 = vmatprep.subr.mxu0 0.0
  %3678 = vmatpush1.msra.mxu0 0.0
  %3679 = vmatprep.subr.mxu0 0.0
  %3680 = vmatpush1.msra.mxu0 0.0
  %3681 = vmatprep.subr.mxu0 0.0
  %3682 = vmatpush1.msra.mxu0 0.0
  %3683 = vmatprep.subr.mxu0 0.0
  %3684 = vmatpush1.msra.mxu0 0.0
  %3685 = vmatprep.subr.mxu0 0.0
  %3686 = vmatpush1.msra.mxu0 0.0
  %3687 = vmatprep.subr.mxu0 0.0
  %3688 = vmatpush1.msra.mxu0 0.0
  %3689 = vmatprep.subr.mxu0 0.0
  %3690 = vmatpush1.msra.mxu0 0.0
  %3691 = vmatprep.subr.mxu0 0.0
  %3692 = vmatpush1.msra.mxu0 0.0
  %3693 = vmatprep.subr.mxu0 0.0
  %3694 = vmatpush1.msra.mxu0 0.0
  %3695 = vmatprep.subr.mxu0 0.0
  %3696 = vmatpush1.msra.mxu0 0.0
  %3697 = vmatprep.subr.mxu0 0.0
  %3698 = vmatpush1.msra.mxu0 0.0
  %3699 = vmatprep.subr.mxu0 0.0
  %3700 = vmatpush1.msra.mxu0 0.0
  %3701 = vmatprep.subr.mxu0 0.0
  %3702 = vmatpush1.msra.mxu0 0.0
  %3703 = vmatprep.subr.mxu0 0.0
  %3704 = vmatpush1.msra.mxu0 0.0
  %3705 = vmatprep.subr.mxu0 0.0
  %3706 = vmatpush1.msra.mxu0 0.0
  %3707 = vmatprep.subr.mxu0 0.0
  %3708 = vmatpush1.msra.mxu0 0.0
  %3709 = vmatprep.subr.mxu0 0.0
  %3710 = vmatpush1.msra.mxu0 0.0
  %3711 = vmatprep.subr.mxu0 0.0
  %3712 = vmatpush1.msra.mxu0 0.0
  %3713 = vmatprep.subr.mxu0 0.0
  %3714 = vmatpush1.msra.mxu0 0.0
  %3715 = vmatprep.subr.mxu0 0.0
  %3716 = vmatpush1.msra.mxu0 0.0
  %3717 = vmatprep.subr.mxu0 0.0
  %3718 = vmatpush1.msra.mxu0 0.0
  %3719 = vmatprep.subr.mxu0 0.0
  %3720 = vmatpush1.msra.mxu0 0.0
  %3721 = vmatprep.subr.mxu0 0.0
  %3722 = vmatpush1.msra.mxu0 0.0
  %3723 = vmatprep.subr.mxu0 0.0
  %3724 = vmatpush1.msra.mxu0 0.0
  %3725 = vmatprep.subr.mxu0 0.0
  %3726 = vmatpush1.msra.mxu0 0.0
  %3727 = vmatprep.subr.mxu0 0.0
  %3728 = vmatpush1.msra.mxu0 0.0
  %3729 = vmatprep.subr.mxu0 0.0
  %3730 = vmatpush1.msra.mxu0 0.0
  %3731 = vmatprep.subr.mxu0 0.0
  %3732 = vmatpush1.msra.mxu0 0.0
  %3733 = vmatprep.subr.mxu0 0.0
  %3734 = vmatpush1.msra.mxu0 0.0
  %3735 = vmatprep.subr.mxu0 0.0
  %3736 = vmatpush1.msra.mxu0 0.0
  %3737 = vmatprep.subr.mxu0 0.0
  %3738 = vmatpush1.msra.mxu0 0.0
  %3739 = vmatprep.mubr.f32.mxu0 0.0
  %3740 = vmatmul.mubr.f32.gmra.mrb[0].mxu0 %v3481
  %v3741 = vpop.f32.mrb[0].mxu0
  %v3742 = vadd.f32 0.0, %v3741
  %v3743 = vpop.f32.mrb[0].mxu0
  %3744 = vmatprep.mubr.f32.mxu0 0.0
  %3745 = vmatmul.mubr.f32.gmra.mrb[0].mxu0 %v3484
  %v3746 = vpop.f32.mrb[0].mxu0
  %v3747 = vadd.f32 0.0, %v3746
  %v3748 = vpop.f32.mrb[0].mxu0
  %3749 = vmatprep.mubr.f32.mxu0 0.0
  %3750 = vmatmul.mubr.f32.gmra.mrb[0].mxu0 %v3487
  %v3751 = vpop.f32.mrb[0].mxu0
  %v3752 = vadd.f32 0.0, %v3751
  %v3753 = vpop.f32.mrb[0].mxu0
  %3754 = vmatprep.mubr.f32.mxu0 0.0
  %3755 = vmatmul.mubr.f32.gmra.mrb[0].mxu0 %v3490
  %v3756 = vpop.f32.mrb[0].mxu0
  %v3757 = vadd.f32 0.0, %v3756
  %v3758 = vpop.f32.mrb[0].mxu0
  %3759 = vmatprep.mubr.f32.mxu0 0.0
  %3760 = vmatmul.mubr.f32.gmra.mrb[0].mxu0 %v3493
  %v3761 = vpop.f32.mrb[0].mxu0
  %v3762 = vadd.f32 0.0, %v3761
  %v3763 = vpop.f32.mrb[0].mxu0
  %3764 = vmatprep.mubr.f32.mxu0 0.0
  %3765 = vmatmul.mubr.f32.gmra.mrb[0].mxu0 %v3496
  %v3766 = vpop.f32.mrb[0].mxu0
  %v3767 = vadd.f32 0.0, %v3766
  %v3768 = vpop.f32.mrb[0].mxu0
  %3769 = vmatprep.mubr.f32.mxu0 0.0
  %3770 = vmatmul.mubr.f32.gmra.mrb[0].mxu0 %v3499
  %v3771 = vpop.f32.mrb[0].mxu0
  %v3772 = vadd.f32 0.0, %v3771
  %v3773 = vpop.f32.mrb[0].mxu0
  %3774 = vmatprep.mubr.f32.mxu0 0.0
  %3775 = vmatmul.mubr.f32.gmra.mrb[0].mxu0 %v3502
  %v3776 = vpop.f32.mrb[0].mxu0
  %v3777 = vadd.f32 0.0, %v3776
  %v3778 = vpop.f32.mrb[0].mxu0
  %3779 = vmatprep.mubr.f32.mxu0 0.0
  %3780 = vmatmul.mubr.f32.gmra.mrb[0].mxu0 %v3505
  %v3781 = vpop.f32.mrb[0].mxu0
  %v3782 = vadd.f32 0.0, %v3781
  %v3783 = vpop.f32.mrb[0].mxu0
  %3784 = vmatprep.mubr.f32.mxu0 0.0
  %3785 = vmatmul.mubr.f32.gmra.mrb[0].mxu0 %v3508
  %v3786 = vpop.f32.mrb[0].mxu0
  %v3787 = vadd.f32 0.0, %v3786
  %v3788 = vpop.f32.mrb[0].mxu0
  %3789 = vmatprep.mubr.f32.mxu0 0.0
  %3790 = vmatmul.mubr.f32.gmra.mrb[0].mxu0 %v3511
  %v3791 = vpop.f32.mrb[0].mxu0
  %v3792 = vadd.f32 0.0, %v3791
  %v3793 = vpop.f32.mrb[0].mxu0
  %3794 = vmatprep.mubr.f32.mxu0 0.0
  %3795 = vmatmul.mubr.f32.gmra.mrb[0].mxu0 %v3514
  %v3796 = vpop.f32.mrb[0].mxu0
  %v3797 = vadd.f32 0.0, %v3796
  %v3798 = vpop.f32.mrb[0].mxu0
  %3799 = vmatprep.mubr.f32.mxu0 0.0
  %3800 = vmatmul.mubr.f32.gmra.mrb[0].mxu0 %v3517
  %v3801 = vpop.f32.mrb[0].mxu0
  %v3802 = vadd.f32 0.0, %v3801
  %v3803 = vpop.f32.mrb[0].mxu0
  %3804 = vmatprep.mubr.f32.mxu0 0.0
  %3805 = vmatmul.mubr.f32.gmra.mrb[0].mxu0 %v3520
  %v3806 = vpop.f32.mrb[0].mxu0
  %v3807 = vadd.f32 0.0, %v3806
  %v3808 = vpop.f32.mrb[0].mxu0
  %3809 = vmatprep.mubr.f32.mxu0 0.0
  %3810 = vmatmul.mubr.f32.gmra.mrb[0].mxu0 %v3523
  %v3811 = vpop.f32.mrb[0].mxu0
  %v3812 = vadd.f32 0.0, %v3811
  %v3813 = vpop.f32.mrb[0].mxu0
  %3814 = vmatprep.mubr.f32.mxu0 0.0
  %3815 = vmatmul.mubr.f32.gmra.mrb[0].mxu0 %v3526
  %v3816 = vpop.f32.mrb[0].mxu0
  %v3817 = vadd.f32 0.0, %v3816
  %v3818 = vpop.f32.mrb[0].mxu0
  %3819 = vmatprep.mubr.f32.mxu0 0.0
  %3820 = vmatmul.mubr.f32.gmra.mrb[0].mxu0 %v3529
  %v3821 = vpop.f32.mrb[0].mxu0
  %v3822 = vadd.f32 0.0, %v3821
  %v3823 = vpop.f32.mrb[0].mxu0
  %3824 = vmatprep.mubr.f32.mxu0 0.0
  %3825 = vmatmul.mubr.f32.gmra.mrb[0].mxu0 %v3532
  %v3826 = vpop.f32.mrb[0].mxu0
  %v3827 = vadd.f32 0.0, %v3826
  %v3828 = vpop.f32.mrb[0].mxu0
  %3829 = vmatprep.mubr.f32.mxu0 0.0
  %3830 = vmatmul.mubr.f32.gmra.mrb[0].mxu0 %v3535
  %v3831 = vpop.f32.mrb[0].mxu0
  %v3832 = vadd.f32 0.0, %v3831
  %v3833 = vpop.f32.mrb[0].mxu0
  %3834 = vmatprep.mubr.f32.mxu0 0.0
  %3835 = vmatmul.mubr.f32.gmra.mrb[0].mxu0 %v3538
  %v3836 = vpop.f32.mrb[0].mxu0
  %v3837 = vadd.f32 0.0, %v3836
  %v3838 = vpop.f32.mrb[0].mxu0
  %3839 = vmatprep.mubr.f32.mxu0 0.0
  %3840 = vmatmul.mubr.f32.gmra.mrb[0].mxu0 %v3541
  %v3841 = vpop.f32.mrb[0].mxu0
  %v3842 = vadd.f32 0.0, %v3841
  %v3843 = vpop.f32.mrb[0].mxu0
  %3844 = vmatprep.mubr.f32.mxu0 0.0
  %3845 = vmatmul.mubr.f32.gmra.mrb[0].mxu0 %v3544
  %v3846 = vpop.f32.mrb[0].mxu0
  %v3847 = vadd.f32 0.0, %v3846
  %v3848 = vpop.f32.mrb[0].mxu0
  %3849 = vmatprep.mubr.f32.mxu0 0.0
  %3850 = vmatmul.mubr.f32.gmra.mrb[0].mxu0 %v3547
  %v3851 = vpop.f32.mrb[0].mxu0
  %v3852 = vadd.f32 0.0, %v3851
  %v3853 = vpop.f32.mrb[0].mxu0
  %3854 = vmatprep.mubr.f32.mxu0 0.0
  %3855 = vmatmul.mubr.f32.gmra.mrb[0].mxu0 %v3550
  %v3856 = vpop.f32.mrb[0].mxu0
  %v3857 = vadd.f32 0.0, %v3856
  %v3858 = vpop.f32.mrb[0].mxu0
  %3859 = vmatprep.mubr.f32.mxu0 0.0
  %3860 = vmatmul.mubr.f32.gmra.mrb[0].mxu0 %v3553
  %v3861 = vpop.f32.mrb[0].mxu0
  %v3862 = vadd.f32 0.0, %v3861
  %v3863 = vpop.f32.mrb[0].mxu0
  %3864 = vmatprep.mubr.f32.mxu0 0.0
  %3865 = vmatmul.mubr.f32.gmra.mrb[0].mxu0 %v3556
  %v3866 = vpop.f32.mrb[0].mxu0
  %v3867 = vadd.f32 0.0, %v3866
  %v3868 = vpop.f32.mrb[0].mxu0
  %3869 = vmatprep.mubr.f32.mxu0 0.0
  %3870 = vmatmul.mubr.f32.gmra.mrb[0].mxu0 %v3559
  %v3871 = vpop.f32.mrb[0].mxu0
  %v3872 = vadd.f32 0.0, %v3871
  %v3873 = vpop.f32.mrb[0].mxu0
  %3874 = vmatprep.mubr.f32.mxu0 0.0
  %3875 = vmatmul.mubr.f32.gmra.mrb[0].mxu0 %v3562
  %v3876 = vpop.f32.mrb[0].mxu0
  %v3877 = vadd.f32 0.0, %v3876
  %v3878 = vpop.f32.mrb[0].mxu0
  %3879 = vmatprep.mubr.f32.mxu0 0.0
  %3880 = vmatmul.mubr.f32.gmra.mrb[0].mxu0 %v3565
  %v3881 = vpop.f32.mrb[0].mxu0
  %v3882 = vadd.f32 0.0, %v3881
  %v3883 = vpop.f32.mrb[0].mxu0
  %3884 = vmatprep.mubr.f32.mxu0 0.0
  %3885 = vmatmul.mubr.f32.gmra.mrb[0].mxu0 %v3568
  %v3886 = vpop.f32.mrb[0].mxu0
  %v3887 = vadd.f32 0.0, %v3886
  %v3888 = vpop.f32.mrb[0].mxu0
  %3889 = vmatprep.mubr.f32.mxu0 0.0
  %3890 = vmatmul.mubr.f32.gmra.mrb[0].mxu0 %v3571
  %v3891 = vpop.f32.mrb[0].mxu0
  %v3892 = vadd.f32 0.0, %v3891
  %v3893 = vpop.f32.mrb[0].mxu0
  %3894 = vmatprep.mubr.f32.mxu0 0.0
  %3895 = vmatmul.mubr.f32.gmra.mrb[0].mxu0 %v3574
  %v3896 = vpop.f32.mrb[0].mxu0
  %v3897 = vadd.f32 0.0, %v3896
  %v3898 = vpop.f32.mrb[0].mxu0
  %3899 = vmatprep.mubr.f32.mxu0 0.0
  %3900 = vmatmul.mubr.f32.gmra.mrb[0].mxu0 %v3577
  %v3901 = vpop.f32.mrb[0].mxu0
  %v3902 = vadd.f32 0.0, %v3901
  %v3903 = vpop.f32.mrb[0].mxu0
  %3904 = vmatprep.mubr.f32.mxu0 0.0
  %3905 = vmatmul.mubr.f32.gmra.mrb[0].mxu0 %v3580
  %v3906 = vpop.f32.mrb[0].mxu0
  %v3907 = vadd.f32 0.0, %v3906
  %v3908 = vpop.f32.mrb[0].mxu0
  %3909 = vmatprep.mubr.f32.mxu0 0.0
  %3910 = vmatmul.mubr.f32.gmra.mrb[0].mxu0 %v3583
  %v3911 = vpop.f32.mrb[0].mxu0
  %v3912 = vadd.f32 0.0, %v3911
  %v3913 = vpop.f32.mrb[0].mxu0
  %3914 = vmatprep.mubr.f32.mxu0 0.0
  %3915 = vmatmul.mubr.f32.gmra.mrb[0].mxu0 %v3586
  %v3916 = vpop.f32.mrb[0].mxu0
  %v3917 = vadd.f32 0.0, %v3916
  %v3918 = vpop.f32.mrb[0].mxu0
  %3919 = vmatprep.mubr.f32.mxu0 0.0
  %3920 = vmatmul.mubr.f32.gmra.mrb[0].mxu0 %v3589
  %v3921 = vpop.f32.mrb[0].mxu0
  %v3922 = vadd.f32 0.0, %v3921
  %v3923 = vpop.f32.mrb[0].mxu0
  %3924 = vmatprep.mubr.f32.mxu0 0.0
  %3925 = vmatmul.mubr.f32.gmra.mrb[0].mxu0 %v3592
  %v3926 = vpop.f32.mrb[0].mxu0
  %v3927 = vadd.f32 0.0, %v3926
  %v3928 = vpop.f32.mrb[0].mxu0
  %3929 = vmatprep.mubr.f32.mxu0 0.0
  %3930 = vmatmul.mubr.f32.gmra.mrb[0].mxu0 %v3595
  %v3931 = vpop.f32.mrb[0].mxu0
  %v3932 = vadd.f32 0.0, %v3931
  %v3933 = vpop.f32.mrb[0].mxu0
  %3934 = vmatprep.mubr.f32.mxu0 0.0
  %3935 = vmatmul.mubr.f32.gmra.mrb[0].mxu0 %v3598
  %v3936 = vpop.f32.mrb[0].mxu0
  %v3937 = vadd.f32 0.0, %v3936
  %v3938 = vpop.f32.mrb[0].mxu0
  %3939 = vmatprep.mubr.f32.mxu0 0.0
  %3940 = vmatmul.mubr.f32.gmra.mrb[0].mxu0 %v3601
  %v3941 = vpop.f32.mrb[0].mxu0
  %v3942 = vadd.f32 0.0, %v3941
  %v3943 = vpop.f32.mrb[0].mxu0
  %3944 = vmatprep.mubr.f32.mxu0 0.0
  %3945 = vmatmul.mubr.f32.gmra.mrb[0].mxu0 %v3604
  %v3946 = vpop.f32.mrb[0].mxu0
  %v3947 = vadd.f32 0.0, %v3946
  %v3948 = vpop.f32.mrb[0].mxu0
  %3949 = vmatprep.mubr.f32.mxu0 0.0
  %3950 = vmatmul.mubr.f32.gmra.mrb[0].mxu0 %v3607
  %v3951 = vpop.f32.mrb[0].mxu0
  %v3952 = vadd.f32 0.0, %v3951
  %v3953 = vpop.f32.mrb[0].mxu0
  %3954 = vmatprep.mubr.f32.mxu0 0.0
  %3955 = vmatmul.mubr.f32.gmra.mrb[0].mxu0 %v3610
  %v3956 = vpop.f32.mrb[0].mxu0
  %v3957 = vadd.f32 0.0, %v3956
  %v3958 = vpop.f32.mrb[0].mxu0
  %3959 = vmatprep.mubr.f32.mxu0 0.0
  %3960 = vmatmul.mubr.f32.gmra.mrb[0].mxu0 %v3613
  %v3961 = vpop.f32.mrb[0].mxu0
  %v3962 = vadd.f32 0.0, %v3961
  %v3963 = vpop.f32.mrb[0].mxu0
  %3964 = vmatprep.mubr.f32.mxu0 0.0
  %3965 = vmatmul.mubr.f32.gmra.mrb[0].mxu0 %v3616
  %v3966 = vpop.f32.mrb[0].mxu0
  %v3967 = vadd.f32 0.0, %v3966
  %v3968 = vpop.f32.mrb[0].mxu0
  %3969 = vmatprep.mubr.f32.mxu0 0.0
  %3970 = vmatmul.mubr.f32.gmra.mrb[0].mxu0 %v3619
  %v3971 = vpop.f32.mrb[0].mxu0
  %v3972 = vadd.f32 0.0, %v3971
  %v3973 = vpop.f32.mrb[0].mxu0
  %3974 = vmatprep.mubr.f32.mxu0 0.0
  %3975 = vmatmul.mubr.f32.gmra.mrb[0].mxu0 %v3622
  %v3976 = vpop.f32.mrb[0].mxu0
  %v3977 = vadd.f32 0.0, %v3976
  %v3978 = vpop.f32.mrb[0].mxu0
  %3979 = vmatprep.mubr.f32.mxu0 0.0
  %3980 = vmatmul.mubr.f32.gmra.mrb[0].mxu0 %v3625
  %v3981 = vpop.f32.mrb[0].mxu0
  %v3982 = vadd.f32 0.0, %v3981
  %v3983 = vpop.f32.mrb[0].mxu0
  %3984 = vmatprep.mubr.f32.mxu0 0.0
  %3985 = vmatmul.mubr.f32.gmra.mrb[0].mxu0 %v3628
  %v3986 = vpop.f32.mrb[0].mxu0
  %v3987 = vadd.f32 0.0, %v3986
  %v3988 = vpop.f32.mrb[0].mxu0
  %3989 = vmatprep.mubr.f32.mxu0 0.0
  %3990 = vmatmul.mubr.f32.gmra.mrb[0].mxu0 %v3631
  %v3991 = vpop.f32.mrb[0].mxu0
  %v3992 = vadd.f32 0.0, %v3991
  %v3993 = vpop.f32.mrb[0].mxu0
  %3994 = vmatprep.mubr.f32.mxu0 0.0
  %3995 = vmatmul.mubr.f32.gmra.mrb[0].mxu0 %v3634
  %v3996 = vpop.f32.mrb[0].mxu0
  %v3997 = vadd.f32 0.0, %v3996
  %v3998 = vpop.f32.mrb[0].mxu0
  %3999 = vmatprep.mubr.f32.mxu0 0.0
  %4000 = vmatmul.mubr.f32.gmra.mrb[0].mxu0 %v3637
  %v4001 = vpop.f32.mrb[0].mxu0
  %v4002 = vadd.f32 0.0, %v4001
  %v4003 = vpop.f32.mrb[0].mxu0
  %4004 = vmatprep.mubr.f32.mxu0 0.0
  %4005 = vmatmul.mubr.f32.gmra.mrb[0].mxu0 %v3640
  %v4006 = vpop.f32.mrb[0].mxu0
  %v4007 = vadd.f32 0.0, %v4006
  %v4008 = vpop.f32.mrb[0].mxu0
  %4009 = vmatprep.mubr.f32.mxu0 0.0
  %4010 = vmatmul.mubr.f32.gmra.mrb[0].mxu0 %v3643
  %v4011 = vpop.f32.mrb[0].mxu0
  %v4012 = vadd.f32 0.0, %v4011
  %v4013 = vpop.f32.mrb[0].mxu0
  %4014 = vmatprep.mubr.f32.mxu0 0.0
  %4015 = vmatmul.mubr.f32.gmra.mrb[0].mxu0 %v3646
  %v4016 = vpop.f32.mrb[0].mxu0
  %v4017 = vadd.f32 0.0, %v4016
  %v4018 = vpop.f32.mrb[0].mxu0
  %4019 = vmatprep.mubr.f32.mxu0 0.0
  %4020 = vmatmul.mubr.f32.gmra.mrb[0].mxu0 %v3649
  %v4021 = vpop.f32.mrb[0].mxu0
  %v4022 = vadd.f32 0.0, %v4021
  %v4023 = vpop.f32.mrb[0].mxu0
  %4024 = vmatprep.mubr.f32.mxu0 0.0
  %4025 = vmatmul.mubr.f32.gmra.mrb[0].mxu0 %v3652
  %v4026 = vpop.f32.mrb[0].mxu0
  %v4027 = vadd.f32 0.0, %v4026
  %v4028 = vpop.f32.mrb[0].mxu0
  %4029 = vmatprep.mubr.f32.mxu0 0.0
  %4030 = vmatmul.mubr.f32.gmra.mrb[0].mxu0 %v3655
  %v4031 = vpop.f32.mrb[0].mxu0
  %v4032 = vadd.f32 0.0, %v4031
  %v4033 = vpop.f32.mrb[0].mxu0
  %4034 = vmatprep.mubr.f32.mxu0 0.0
  %4035 = vmatmul.mubr.f32.gmra.mrb[0].mxu0 %v3658
  %v4036 = vpop.f32.mrb[0].mxu0
  %v4037 = vadd.f32 0.0, %v4036
  %v4038 = vpop.f32.mrb[0].mxu0
  %4039 = vmatprep.mubr.f32.mxu0 0.0
  %4040 = vmatmul.mubr.f32.gmra.mrb[0].mxu0 %v3661
  %v4041 = vpop.f32.mrb[0].mxu0
  %v4042 = vadd.f32 0.0, %v4041
  %v4043 = vpop.f32.mrb[0].mxu0
  %4044 = vmatprep.mubr.f32.mxu0 0.0
  %4045 = vmatmul.mubr.f32.gmra.mrb[0].mxu0 %v3664
  %v4046 = vpop.f32.mrb[0].mxu0
  %v4047 = vadd.f32 0.0, %v4046
  %v4048 = vpop.f32.mrb[0].mxu0
  %4049 = vmatprep.mubr.f32.mxu0 0.0
  %4050 = vmatmul.mubr.f32.gmra.mrb[0].mxu0 %v3667
  %v4051 = vpop.f32.mrb[0].mxu0
  %v4052 = vadd.f32 0.0, %v4051
  %v4053 = vpop.f32.mrb[0].mxu0
  %4054 = vmatprep.mubr.f32.mxu0 0.0
  %4055 = vmatmul.mubr.f32.gmra.mrb[0].mxu0 %v3670
  %v4056 = vpop.f32.mrb[0].mxu0
  %v4057 = vadd.f32 0.0, %v4056
  %v4058 = vpop.f32.mrb[0].mxu0
  %4059 = vdwg.mxu0
  %v4060 = vadd.f32 %v3342, %v3742
  %v4061 = vadd.f32 %v3343, %v3747
  %v4062 = vadd.f32 %v3344, %v3752
  %v4063 = vadd.f32 %v3345, %v3757
  %v4064 = vadd.f32 %v3346, %v3762
  %v4065 = vadd.f32 %v3347, %v3767
  %v4066 = vadd.f32 %v3348, %v3772
  %v4067 = vadd.f32 %v3349, %v3777
  %v4068 = vadd.f32 %v3350, %v3782
  %v4069 = vadd.f32 %v3351, %v3787
  %v4070 = vadd.f32 %v3352, %v3792
  %v4071 = vadd.f32 %v3353, %v3797
  %v4072 = vadd.f32 %v3354, %v3802
  %v4073 = vadd.f32 %v3355, %v3807
  %v4074 = vadd.f32 %v3356, %v3812
  %v4075 = vadd.f32 %v3357, %v3817
  %v4076 = vadd.f32 %v3358, %v3822
  %v4077 = vadd.f32 %v3359, %v3827
  %v4078 = vadd.f32 %v3360, %v3832
  %v4079 = vadd.f32 %v3361, %v3837
  %v4080 = vadd.f32 %v3362, %v3842
  %v4081 = vadd.f32 %v3363, %v3847
  %v4082 = vadd.f32 %v3364, %v3852
  %v4083 = vadd.f32 %v3365, %v3857
  %v4084 = vadd.f32 %v3366, %v3862
  %v4085 = vadd.f32 %v3367, %v3867
  %v4086 = vadd.f32 %v3368, %v3872
  %v4087 = vadd.f32 %v3369, %v3877
  %v4088 = vadd.f32 %v3370, %v3882
  %v4089 = vadd.f32 %v3371, %v3887
  %v4090 = vadd.f32 %v3372, %v3892
  %v4091 = vadd.f32 %v3373, %v3897
  %v4092 = vadd.f32 %v3374, %v3902
  %v4093 = vadd.f32 %v3375, %v3907
  %v4094 = vadd.f32 %v3376, %v3912
  %v4095 = vadd.f32 %v3377, %v3917
  %v4096 = vadd.f32 %v3378, %v3922
  %v4097 = vadd.f32 %v3379, %v3927
  %v4098 = vadd.f32 %v3380, %v3932
  %v4099 = vadd.f32 %v3381, %v3937
  %v4100 = vadd.f32 %v3382, %v3942
  %v4101 = vadd.f32 %v3383, %v3947
  %v4102 = vadd.f32 %v3384, %v3952
  %v4103 = vadd.f32 %v3385, %v3957
  %v4104 = vadd.f32 %v3386, %v3962
  %v4105 = vadd.f32 %v3387, %v3967
  %v4106 = vadd.f32 %v3388, %v3972
  %v4107 = vadd.f32 %v3389, %v3977
  %v4108 = vadd.f32 %v3390, %v3982
  %v4109 = vadd.f32 %v3391, %v3987
  %v4110 = vadd.f32 %v3392, %v3992
  %v4111 = vadd.f32 %v3393, %v3997
  %v4112 = vadd.f32 %v3394, %v4002
  %v4113 = vadd.f32 %v3395, %v4007
  %v4114 = vadd.f32 %v3396, %v4012
  %v4115 = vadd.f32 %v3397, %v4017
  %v4116 = vadd.f32 %v3398, %v4022
  %v4117 = vadd.f32 %v3399, %v4027
  %v4118 = vadd.f32 %v3400, %v4032
  %v4119 = vadd.f32 %v3401, %v4037
  %v4120 = vadd.f32 %v3402, %v4042
  %v4121 = vadd.f32 %v3403, %v4047
  %v4122 = vadd.f32 %v3404, %v4052
  %v4123 = vadd.f32 %v3405, %v4057
  %s4124 = scalar_lea.vmem %s1, 20
  %v4125 = vld [vmem:[%s4124] sm:$0xf]
  %v4127 = vsel %vm90, %v3438, 0
  %v4130 = vsel %vm90, %v3439, 0
  %v4133 = vsel %vm90, %v3474, 0
  %v4136 = vsel %vm90, %v3475, 0
  %v4139 = vsel %vm501, %v4125, 0
  %4141 = vmatprep.subr.mxu0 0.0
  %4142 = vmatpush1.msra.mxu0 %v4139
  %4143 = vmatprep.subr.mxu0 0.0
  %4144 = vmatpush1.msra.mxu0 0.0
  %4145 = vmatprep.subr.mxu0 0.0
  %4146 = vmatpush1.msra.mxu0 0.0
  %4147 = vmatprep.subr.mxu0 0.0
  %4148 = vmatpush1.msra.mxu0 0.0
  %4149 = vmatprep.subr.mxu0 0.0
  %4150 = vmatpush1.msra.mxu0 0.0
  %4151 = vmatprep.subr.mxu0 0.0
  %4152 = vmatpush1.msra.mxu0 0.0
  %4153 = vmatprep.subr.mxu0 0.0
  %4154 = vmatpush1.msra.mxu0 0.0
  %4155 = vmatprep.subr.mxu0 0.0
  %4156 = vmatpush1.msra.mxu0 0.0
  %4157 = vmatprep.subr.mxu0 0.0
  %4158 = vmatpush1.msra.mxu0 0.0
  %4159 = vmatprep.subr.mxu0 0.0
  %4160 = vmatpush1.msra.mxu0 0.0
  %4161 = vmatprep.subr.mxu0 0.0
  %4162 = vmatpush1.msra.mxu0 0.0
  %4163 = vmatprep.subr.mxu0 0.0
  %4164 = vmatpush1.msra.mxu0 0.0
  %4165 = vmatprep.subr.mxu0 0.0
  %4166 = vmatpush1.msra.mxu0 0.0
  %4167 = vmatprep.subr.mxu0 0.0
  %4168 = vmatpush1.msra.mxu0 0.0
  %4169 = vmatprep.subr.mxu0 0.0
  %4170 = vmatpush1.msra.mxu0 0.0
  %4171 = vmatprep.subr.mxu0 0.0
  %4172 = vmatpush1.msra.mxu0 0.0
  %4173 = vmatprep.subr.mxu0 0.0
  %4174 = vmatpush1.msra.mxu0 0.0
  %4175 = vmatprep.subr.mxu0 0.0
  %4176 = vmatpush1.msra.mxu0 0.0
  %4177 = vmatprep.subr.mxu0 0.0
  %4178 = vmatpush1.msra.mxu0 0.0
  %4179 = vmatprep.subr.mxu0 0.0
  %4180 = vmatpush1.msra.mxu0 0.0
  %4181 = vmatprep.subr.mxu0 0.0
  %4182 = vmatpush1.msra.mxu0 0.0
  %4183 = vmatprep.subr.mxu0 0.0
  %4184 = vmatpush1.msra.mxu0 0.0
  %4185 = vmatprep.subr.mxu0 0.0
  %4186 = vmatpush1.msra.mxu0 0.0
  %4187 = vmatprep.subr.mxu0 0.0
  %4188 = vmatpush1.msra.mxu0 0.0
  %4189 = vmatprep.subr.mxu0 0.0
  %4190 = vmatpush1.msra.mxu0 0.0
  %4191 = vmatprep.subr.mxu0 0.0
  %4192 = vmatpush1.msra.mxu0 0.0
  %4193 = vmatprep.subr.mxu0 0.0
  %4194 = vmatpush1.msra.mxu0 0.0
  %4195 = vmatprep.subr.mxu0 0.0
  %4196 = vmatpush1.msra.mxu0 0.0
  %4197 = vmatprep.subr.mxu0 0.0
  %4198 = vmatpush1.msra.mxu0 0.0
  %4199 = vmatprep.subr.mxu0 0.0
  %4200 = vmatpush1.msra.mxu0 0.0
  %4201 = vmatprep.subr.mxu0 0.0
  %4202 = vmatpush1.msra.mxu0 0.0
  %4203 = vmatprep.subr.mxu0 0.0
  %4204 = vmatpush1.msra.mxu0 0.0
  %4205 = vmatprep.mubr.f32.mxu0 0.0
  %4206 = vmatmul.mubr.f32.gmra.mrb[0].mxu0 %v3487
  %v4207 = vpop.f32.mrb[0].mxu0
  %v4208 = vadd.f32 0.0, %v4207
  %v4209 = vpop.f32.mrb[0].mxu0
  %4210 = vmatprep.mubr.f32.mxu0 0.0
  %4211 = vmatmul.mubr.f32.gmra.mrb[0].mxu0 %v3490
  %v4212 = vpop.f32.mrb[0].mxu0
  %v4213 = vadd.f32 0.0, %v4212
  %v4214 = vpop.f32.mrb[0].mxu0
  %4215 = vmatprep.mubr.f32.mxu0 0.0
  %4216 = vmatmul.mubr.f32.gmra.mrb[0].mxu0 %v3493
  %v4217 = vpop.f32.mrb[0].mxu0
  %v4218 = vadd.f32 0.0, %v4217
  %v4219 = vpop.f32.mrb[0].mxu0
  %4220 = vmatprep.mubr.f32.mxu0 0.0
  %4221 = vmatmul.mubr.f32.gmra.mrb[0].mxu0 %v3496
  %v4222 = vpop.f32.mrb[0].mxu0
  %v4223 = vadd.f32 0.0, %v4222
  %v4224 = vpop.f32.mrb[0].mxu0
  %4225 = vmatprep.mubr.f32.mxu0 0.0
  %4226 = vmatmul.mubr.f32.gmra.mrb[0].mxu0 %v3499
  %v4227 = vpop.f32.mrb[0].mxu0
  %v4228 = vadd.f32 0.0, %v4227
  %v4229 = vpop.f32.mrb[0].mxu0
  %4230 = vmatprep.mubr.f32.mxu0 0.0
  %4231 = vmatmul.mubr.f32.gmra.mrb[0].mxu0 %v3502
  %v4232 = vpop.f32.mrb[0].mxu0
  %v4233 = vadd.f32 0.0, %v4232
  %v4234 = vpop.f32.mrb[0].mxu0
  %4235 = vmatprep.mubr.f32.mxu0 0.0
  %4236 = vmatmul.mubr.f32.gmra.mrb[0].mxu0 %v3505
  %v4237 = vpop.f32.mrb[0].mxu0
  %v4238 = vadd.f32 0.0, %v4237
  %v4239 = vpop.f32.mrb[0].mxu0
  %4240 = vmatprep.mubr.f32.mxu0 0.0
  %4241 = vmatmul.mubr.f32.gmra.mrb[0].mxu0 %v3508
  %v4242 = vpop.f32.mrb[0].mxu0
  %v4243 = vadd.f32 0.0, %v4242
  %v4244 = vpop.f32.mrb[0].mxu0
  %4245 = vmatprep.mubr.f32.mxu0 0.0
  %4246 = vmatmul.mubr.f32.gmra.mrb[0].mxu0 %v3511
  %v4247 = vpop.f32.mrb[0].mxu0
  %v4248 = vadd.f32 0.0, %v4247
  %v4249 = vpop.f32.mrb[0].mxu0
  %4250 = vmatprep.mubr.f32.mxu0 0.0
  %4251 = vmatmul.mubr.f32.gmra.mrb[0].mxu0 %v3514
  %v4252 = vpop.f32.mrb[0].mxu0
  %v4253 = vadd.f32 0.0, %v4252
  %v4254 = vpop.f32.mrb[0].mxu0
  %4255 = vmatprep.mubr.f32.mxu0 0.0
  %4256 = vmatmul.mubr.f32.gmra.mrb[0].mxu0 %v3517
  %v4257 = vpop.f32.mrb[0].mxu0
  %v4258 = vadd.f32 0.0, %v4257
  %v4259 = vpop.f32.mrb[0].mxu0
  %4260 = vmatprep.mubr.f32.mxu0 0.0
  %4261 = vmatmul.mubr.f32.gmra.mrb[0].mxu0 %v3520
  %v4262 = vpop.f32.mrb[0].mxu0
  %v4263 = vadd.f32 0.0, %v4262
  %v4264 = vpop.f32.mrb[0].mxu0
  %4265 = vmatprep.mubr.f32.mxu0 0.0
  %4266 = vmatmul.mubr.f32.gmra.mrb[0].mxu0 %v3523
  %v4267 = vpop.f32.mrb[0].mxu0
  %v4268 = vadd.f32 0.0, %v4267
  %v4269 = vpop.f32.mrb[0].mxu0
  %4270 = vmatprep.mubr.f32.mxu0 0.0
  %4271 = vmatmul.mubr.f32.gmra.mrb[0].mxu0 %v3526
  %v4272 = vpop.f32.mrb[0].mxu0
  %v4273 = vadd.f32 0.0, %v4272
  %v4274 = vpop.f32.mrb[0].mxu0
  %4275 = vmatprep.mubr.f32.mxu0 0.0
  %4276 = vmatmul.mubr.f32.gmra.mrb[0].mxu0 %v3529
  %v4277 = vpop.f32.mrb[0].mxu0
  %v4278 = vadd.f32 0.0, %v4277
  %v4279 = vpop.f32.mrb[0].mxu0
  %4280 = vmatprep.mubr.f32.mxu0 0.0
  %4281 = vmatmul.mubr.f32.gmra.mrb[0].mxu0 %v3532
  %v4282 = vpop.f32.mrb[0].mxu0
  %v4283 = vadd.f32 0.0, %v4282
  %v4284 = vpop.f32.mrb[0].mxu0
  %4285 = vmatprep.mubr.f32.mxu0 0.0
  %4286 = vmatmul.mubr.f32.gmra.mrb[0].mxu0 %v3535
  %v4287 = vpop.f32.mrb[0].mxu0
  %v4288 = vadd.f32 0.0, %v4287
  %v4289 = vpop.f32.mrb[0].mxu0
  %4290 = vmatprep.mubr.f32.mxu0 0.0
  %4291 = vmatmul.mubr.f32.gmra.mrb[0].mxu0 %v3538
  %v4292 = vpop.f32.mrb[0].mxu0
  %v4293 = vadd.f32 0.0, %v4292
  %v4294 = vpop.f32.mrb[0].mxu0
  %4295 = vmatprep.mubr.f32.mxu0 0.0
  %4296 = vmatmul.mubr.f32.gmra.mrb[0].mxu0 %v3541
  %v4297 = vpop.f32.mrb[0].mxu0
  %v4298 = vadd.f32 0.0, %v4297
  %v4299 = vpop.f32.mrb[0].mxu0
  %4300 = vmatprep.mubr.f32.mxu0 0.0
  %4301 = vmatmul.mubr.f32.gmra.mrb[0].mxu0 %v3544
  %v4302 = vpop.f32.mrb[0].mxu0
  %v4303 = vadd.f32 0.0, %v4302
  %v4304 = vpop.f32.mrb[0].mxu0
  %4305 = vmatprep.mubr.f32.mxu0 0.0
  %4306 = vmatmul.mubr.f32.gmra.mrb[0].mxu0 %v3547
  %v4307 = vpop.f32.mrb[0].mxu0
  %v4308 = vadd.f32 0.0, %v4307
  %v4309 = vpop.f32.mrb[0].mxu0
  %4310 = vmatprep.mubr.f32.mxu0 0.0
  %4311 = vmatmul.mubr.f32.gmra.mrb[0].mxu0 %v3550
  %v4312 = vpop.f32.mrb[0].mxu0
  %v4313 = vadd.f32 0.0, %v4312
  %v4314 = vpop.f32.mrb[0].mxu0
  %4315 = vmatprep.mubr.f32.mxu0 0.0
  %4316 = vmatmul.mubr.f32.gmra.mrb[0].mxu0 %v3553
  %v4317 = vpop.f32.mrb[0].mxu0
  %v4318 = vadd.f32 0.0, %v4317
  %v4319 = vpop.f32.mrb[0].mxu0
  %4320 = vmatprep.mubr.f32.mxu0 0.0
  %4321 = vmatmul.mubr.f32.gmra.mrb[0].mxu0 %v3556
  %v4322 = vpop.f32.mrb[0].mxu0
  %v4323 = vadd.f32 0.0, %v4322
  %v4324 = vpop.f32.mrb[0].mxu0
  %4325 = vmatprep.mubr.f32.mxu0 0.0
  %4326 = vmatmul.mubr.f32.gmra.mrb[0].mxu0 %v3559
  %v4327 = vpop.f32.mrb[0].mxu0
  %v4328 = vadd.f32 0.0, %v4327
  %v4329 = vpop.f32.mrb[0].mxu0
  %4330 = vmatprep.mubr.f32.mxu0 0.0
  %4331 = vmatmul.mubr.f32.gmra.mrb[0].mxu0 %v3562
  %v4332 = vpop.f32.mrb[0].mxu0
  %v4333 = vadd.f32 0.0, %v4332
  %v4334 = vpop.f32.mrb[0].mxu0
  %4335 = vmatprep.mubr.f32.mxu0 0.0
  %4336 = vmatmul.mubr.f32.gmra.mrb[0].mxu0 %v3565
  %v4337 = vpop.f32.mrb[0].mxu0
  %v4338 = vadd.f32 0.0, %v4337
  %v4339 = vpop.f32.mrb[0].mxu0
  %4340 = vmatprep.mubr.f32.mxu0 0.0
  %4341 = vmatmul.mubr.f32.gmra.mrb[0].mxu0 %v3568
  %v4342 = vpop.f32.mrb[0].mxu0
  %v4343 = vadd.f32 0.0, %v4342
  %v4344 = vpop.f32.mrb[0].mxu0
  %4345 = vmatprep.mubr.f32.mxu0 0.0
  %4346 = vmatmul.mubr.f32.gmra.mrb[0].mxu0 %v3571
  %v4347 = vpop.f32.mrb[0].mxu0
  %v4348 = vadd.f32 0.0, %v4347
  %v4349 = vpop.f32.mrb[0].mxu0
  %4350 = vmatprep.mubr.f32.mxu0 0.0
  %4351 = vmatmul.mubr.f32.gmra.mrb[0].mxu0 %v3574
  %v4352 = vpop.f32.mrb[0].mxu0
  %v4353 = vadd.f32 0.0, %v4352
  %v4354 = vpop.f32.mrb[0].mxu0
  %4355 = vmatprep.mubr.f32.mxu0 0.0
  %4356 = vmatmul.mubr.f32.gmra.mrb[0].mxu0 %v4127
  %v4357 = vpop.f32.mrb[0].mxu0
  %v4358 = vadd.f32 0.0, %v4357
  %v4359 = vpop.f32.mrb[0].mxu0
  %4360 = vmatprep.mubr.f32.mxu0 0.0
  %4361 = vmatmul.mubr.f32.gmra.mrb[0].mxu0 %v4130
  %v4362 = vpop.f32.mrb[0].mxu0
  %v4363 = vadd.f32 0.0, %v4362
  %v4364 = vpop.f32.mrb[0].mxu0
  %4365 = vmatprep.mubr.f32.mxu0 0.0
  %4366 = vmatmul.mubr.f32.gmra.mrb[0].mxu0 %v3583
  %v4367 = vpop.f32.mrb[0].mxu0
  %v4368 = vadd.f32 0.0, %v4367
  %v4369 = vpop.f32.mrb[0].mxu0
  %4370 = vmatprep.mubr.f32.mxu0 0.0
  %4371 = vmatmul.mubr.f32.gmra.mrb[0].mxu0 %v3586
  %v4372 = vpop.f32.mrb[0].mxu0
  %v4373 = vadd.f32 0.0, %v4372
  %v4374 = vpop.f32.mrb[0].mxu0
  %4375 = vmatprep.mubr.f32.mxu0 0.0
  %4376 = vmatmul.mubr.f32.gmra.mrb[0].mxu0 %v3589
  %v4377 = vpop.f32.mrb[0].mxu0
  %v4378 = vadd.f32 0.0, %v4377
  %v4379 = vpop.f32.mrb[0].mxu0
  %4380 = vmatprep.mubr.f32.mxu0 0.0
  %4381 = vmatmul.mubr.f32.gmra.mrb[0].mxu0 %v3592
  %v4382 = vpop.f32.mrb[0].mxu0
  %v4383 = vadd.f32 0.0, %v4382
  %v4384 = vpop.f32.mrb[0].mxu0
  %4385 = vmatprep.mubr.f32.mxu0 0.0
  %4386 = vmatmul.mubr.f32.gmra.mrb[0].mxu0 %v3595
  %v4387 = vpop.f32.mrb[0].mxu0
  %v4388 = vadd.f32 0.0, %v4387
  %v4389 = vpop.f32.mrb[0].mxu0
  %4390 = vmatprep.mubr.f32.mxu0 0.0
  %4391 = vmatmul.mubr.f32.gmra.mrb[0].mxu0 %v3598
  %v4392 = vpop.f32.mrb[0].mxu0
  %v4393 = vadd.f32 0.0, %v4392
  %v4394 = vpop.f32.mrb[0].mxu0
  %4395 = vmatprep.mubr.f32.mxu0 0.0
  %4396 = vmatmul.mubr.f32.gmra.mrb[0].mxu0 %v3601
  %v4397 = vpop.f32.mrb[0].mxu0
  %v4398 = vadd.f32 0.0, %v4397
  %v4399 = vpop.f32.mrb[0].mxu0
  %4400 = vmatprep.mubr.f32.mxu0 0.0
  %4401 = vmatmul.mubr.f32.gmra.mrb[0].mxu0 %v3604
  %v4402 = vpop.f32.mrb[0].mxu0
  %v4403 = vadd.f32 0.0, %v4402
  %v4404 = vpop.f32.mrb[0].mxu0
  %4405 = vmatprep.mubr.f32.mxu0 0.0
  %4406 = vmatmul.mubr.f32.gmra.mrb[0].mxu0 %v3607
  %v4407 = vpop.f32.mrb[0].mxu0
  %v4408 = vadd.f32 0.0, %v4407
  %v4409 = vpop.f32.mrb[0].mxu0
  %4410 = vmatprep.mubr.f32.mxu0 0.0
  %4411 = vmatmul.mubr.f32.gmra.mrb[0].mxu0 %v3610
  %v4412 = vpop.f32.mrb[0].mxu0
  %v4413 = vadd.f32 0.0, %v4412
  %v4414 = vpop.f32.mrb[0].mxu0
  %4415 = vmatprep.mubr.f32.mxu0 0.0
  %4416 = vmatmul.mubr.f32.gmra.mrb[0].mxu0 %v3613
  %v4417 = vpop.f32.mrb[0].mxu0
  %v4418 = vadd.f32 0.0, %v4417
  %v4419 = vpop.f32.mrb[0].mxu0
  %4420 = vmatprep.mubr.f32.mxu0 0.0
  %4421 = vmatmul.mubr.f32.gmra.mrb[0].mxu0 %v3616
  %v4422 = vpop.f32.mrb[0].mxu0
  %v4423 = vadd.f32 0.0, %v4422
  %v4424 = vpop.f32.mrb[0].mxu0
  %4425 = vmatprep.mubr.f32.mxu0 0.0
  %4426 = vmatmul.mubr.f32.gmra.mrb[0].mxu0 %v3619
  %v4427 = vpop.f32.mrb[0].mxu0
  %v4428 = vadd.f32 0.0, %v4427
  %v4429 = vpop.f32.mrb[0].mxu0
  %4430 = vmatprep.mubr.f32.mxu0 0.0
  %4431 = vmatmul.mubr.f32.gmra.mrb[0].mxu0 %v3622
  %v4432 = vpop.f32.mrb[0].mxu0
  %v4433 = vadd.f32 0.0, %v4432
  %v4434 = vpop.f32.mrb[0].mxu0
  %4435 = vmatprep.mubr.f32.mxu0 0.0
  %4436 = vmatmul.mubr.f32.gmra.mrb[0].mxu0 %v3625
  %v4437 = vpop.f32.mrb[0].mxu0
  %v4438 = vadd.f32 0.0, %v4437
  %v4439 = vpop.f32.mrb[0].mxu0
  %4440 = vmatprep.mubr.f32.mxu0 0.0
  %4441 = vmatmul.mubr.f32.gmra.mrb[0].mxu0 %v3628
  %v4442 = vpop.f32.mrb[0].mxu0
  %v4443 = vadd.f32 0.0, %v4442
  %v4444 = vpop.f32.mrb[0].mxu0
  %4445 = vmatprep.mubr.f32.mxu0 0.0
  %4446 = vmatmul.mubr.f32.gmra.mrb[0].mxu0 %v3631
  %v4447 = vpop.f32.mrb[0].mxu0
  %v4448 = vadd.f32 0.0, %v4447
  %v4449 = vpop.f32.mrb[0].mxu0
  %4450 = vmatprep.mubr.f32.mxu0 0.0
  %4451 = vmatmul.mubr.f32.gmra.mrb[0].mxu0 %v3634
  %v4452 = vpop.f32.mrb[0].mxu0
  %v4453 = vadd.f32 0.0, %v4452
  %v4454 = vpop.f32.mrb[0].mxu0
  %4455 = vmatprep.mubr.f32.mxu0 0.0
  %4456 = vmatmul.mubr.f32.gmra.mrb[0].mxu0 %v3637
  %v4457 = vpop.f32.mrb[0].mxu0
  %v4458 = vadd.f32 0.0, %v4457
  %v4459 = vpop.f32.mrb[0].mxu0
  %4460 = vmatprep.mubr.f32.mxu0 0.0
  %4461 = vmatmul.mubr.f32.gmra.mrb[0].mxu0 %v3640
  %v4462 = vpop.f32.mrb[0].mxu0
  %v4463 = vadd.f32 0.0, %v4462
  %v4464 = vpop.f32.mrb[0].mxu0
  %4465 = vmatprep.mubr.f32.mxu0 0.0
  %4466 = vmatmul.mubr.f32.gmra.mrb[0].mxu0 %v3643
  %v4467 = vpop.f32.mrb[0].mxu0
  %v4468 = vadd.f32 0.0, %v4467
  %v4469 = vpop.f32.mrb[0].mxu0
  %4470 = vmatprep.mubr.f32.mxu0 0.0
  %4471 = vmatmul.mubr.f32.gmra.mrb[0].mxu0 %v3646
  %v4472 = vpop.f32.mrb[0].mxu0
  %v4473 = vadd.f32 0.0, %v4472
  %v4474 = vpop.f32.mrb[0].mxu0
  %4475 = vmatprep.mubr.f32.mxu0 0.0
  %4476 = vmatmul.mubr.f32.gmra.mrb[0].mxu0 %v3649
  %v4477 = vpop.f32.mrb[0].mxu0
  %v4478 = vadd.f32 0.0, %v4477
  %v4479 = vpop.f32.mrb[0].mxu0
  %4480 = vmatprep.mubr.f32.mxu0 0.0
  %4481 = vmatmul.mubr.f32.gmra.mrb[0].mxu0 %v3652
  %v4482 = vpop.f32.mrb[0].mxu0
  %v4483 = vadd.f32 0.0, %v4482
  %v4484 = vpop.f32.mrb[0].mxu0
  %4485 = vmatprep.mubr.f32.mxu0 0.0
  %4486 = vmatmul.mubr.f32.gmra.mrb[0].mxu0 %v3655
  %v4487 = vpop.f32.mrb[0].mxu0
  %v4488 = vadd.f32 0.0, %v4487
  %v4489 = vpop.f32.mrb[0].mxu0
  %4490 = vmatprep.mubr.f32.mxu0 0.0
  %4491 = vmatmul.mubr.f32.gmra.mrb[0].mxu0 %v3658
  %v4492 = vpop.f32.mrb[0].mxu0
  %v4493 = vadd.f32 0.0, %v4492
  %v4494 = vpop.f32.mrb[0].mxu0
  %4495 = vmatprep.mubr.f32.mxu0 0.0
  %4496 = vmatmul.mubr.f32.gmra.mrb[0].mxu0 %v3661
  %v4497 = vpop.f32.mrb[0].mxu0
  %v4498 = vadd.f32 0.0, %v4497
  %v4499 = vpop.f32.mrb[0].mxu0
  %4500 = vmatprep.mubr.f32.mxu0 0.0
  %4501 = vmatmul.mubr.f32.gmra.mrb[0].mxu0 %v3664
  %v4502 = vpop.f32.mrb[0].mxu0
  %v4503 = vadd.f32 0.0, %v4502
  %v4504 = vpop.f32.mrb[0].mxu0
  %4505 = vmatprep.mubr.f32.mxu0 0.0
  %4506 = vmatmul.mubr.f32.gmra.mrb[0].mxu0 %v3667
  %v4507 = vpop.f32.mrb[0].mxu0
  %v4508 = vadd.f32 0.0, %v4507
  %v4509 = vpop.f32.mrb[0].mxu0
  %4510 = vmatprep.mubr.f32.mxu0 0.0
  %4511 = vmatmul.mubr.f32.gmra.mrb[0].mxu0 %v3670
  %v4512 = vpop.f32.mrb[0].mxu0
  %v4513 = vadd.f32 0.0, %v4512
  %v4514 = vpop.f32.mrb[0].mxu0
  %4515 = vmatprep.mubr.f32.mxu0 0.0
  %4516 = vmatmul.mubr.f32.gmra.mrb[0].mxu0 %v4133
  %v4517 = vpop.f32.mrb[0].mxu0
  %v4518 = vadd.f32 0.0, %v4517
  %v4519 = vpop.f32.mrb[0].mxu0
  %4520 = vmatprep.mubr.f32.mxu0 0.0
  %4521 = vmatmul.mubr.f32.gmra.mrb[0].mxu0 %v4136
  %v4522 = vpop.f32.mrb[0].mxu0
  %v4523 = vadd.f32 0.0, %v4522
  %v4524 = vpop.f32.mrb[0].mxu0
  %4525 = vdwg.mxu0
  %v4526 = vadd.f32 %v4060, %v4208
  %v4527 = vadd.f32 %v4061, %v4213
  %v4528 = vadd.f32 %v4062, %v4218
  %v4529 = vadd.f32 %v4063, %v4223
  %v4530 = vadd.f32 %v4064, %v4228
  %v4531 = vadd.f32 %v4065, %v4233
  %v4532 = vadd.f32 %v4066, %v4238
  %v4533 = vadd.f32 %v4067, %v4243
  %v4534 = vadd.f32 %v4068, %v4248
  %v4535 = vadd.f32 %v4069, %v4253
  %v4536 = vadd.f32 %v4070, %v4258
  %v4537 = vadd.f32 %v4071, %v4263
  %v4538 = vadd.f32 %v4072, %v4268
  %v4539 = vadd.f32 %v4073, %v4273
  %v4540 = vadd.f32 %v4074, %v4278
  %v4541 = vadd.f32 %v4075, %v4283
  %v4542 = vadd.f32 %v4076, %v4288
  %v4543 = vadd.f32 %v4077, %v4293
  %v4544 = vadd.f32 %v4078, %v4298
  %v4545 = vadd.f32 %v4079, %v4303
  %v4546 = vadd.f32 %v4080, %v4308
  %v4547 = vadd.f32 %v4081, %v4313
  %v4548 = vadd.f32 %v4082, %v4318
  %v4549 = vadd.f32 %v4083, %v4323
  %v4550 = vadd.f32 %v4084, %v4328
  %v4551 = vadd.f32 %v4085, %v4333
  %v4552 = vadd.f32 %v4086, %v4338
  %v4553 = vadd.f32 %v4087, %v4343
  %v4554 = vadd.f32 %v4088, %v4348
  %v4555 = vadd.f32 %v4089, %v4353
  %v4556 = vadd.f32 %v4090, %v4358
  %v4557 = vadd.f32 %v4091, %v4363
  %v4558 = vadd.f32 %v4092, %v4368
  %v4559 = vadd.f32 %v4093, %v4373
  %v4560 = vadd.f32 %v4094, %v4378
  %v4561 = vadd.f32 %v4095, %v4383
  %v4562 = vadd.f32 %v4096, %v4388
  %v4563 = vadd.f32 %v4097, %v4393
  %v4564 = vadd.f32 %v4098, %v4398
  %v4565 = vadd.f32 %v4099, %v4403
  %v4566 = vadd.f32 %v4100, %v4408
  %v4567 = vadd.f32 %v4101, %v4413
  %v4568 = vadd.f32 %v4102, %v4418
  %v4569 = vadd.f32 %v4103, %v4423
  %v4570 = vadd.f32 %v4104, %v4428
  %v4571 = vadd.f32 %v4105, %v4433
  %v4572 = vadd.f32 %v4106, %v4438
  %v4573 = vadd.f32 %v4107, %v4443
  %v4574 = vadd.f32 %v4108, %v4448
  %v4575 = vadd.f32 %v4109, %v4453
  %v4576 = vadd.f32 %v4110, %v4458
  %v4577 = vadd.f32 %v4111, %v4463
  %v4578 = vadd.f32 %v4112, %v4468
  %v4579 = vadd.f32 %v4113, %v4473
  %v4580 = vadd.f32 %v4114, %v4478
  %v4581 = vadd.f32 %v4115, %v4483
  %v4582 = vadd.f32 %v4116, %v4488
  %v4583 = vadd.f32 %v4117, %v4493
  %v4584 = vadd.f32 %v4118, %v4498
  %v4585 = vadd.f32 %v4119, %v4503
  %v4586 = vadd.f32 %v4120, %v4508
  %v4587 = vadd.f32 %v4121, %v4513
  %v4588 = vadd.f32 %v4122, %v4518
  %v4589 = vadd.f32 %v4123, %v4523
  %s4590 = scalar_lea.vmem %s1, 32
  %v4591 = vld [vmem:[%s4590] sm:$0xf]
  %v4593 = vsel %vm90, %v3440, 0
  %v4596 = vsel %vm90, %v3441, 0
  %v4599 = vsel %vm90, %v3476, 0
  %v4602 = vsel %vm90, %v3477, 0
  %v4605 = vsel %vm501, %v4591, 0
  %4607 = vmatprep.subr.mxu0 0.0
  %4608 = vmatpush1.msra.mxu0 %v4605
  %4609 = vmatprep.subr.mxu0 0.0
  %4610 = vmatpush1.msra.mxu0 0.0
  %4611 = vmatprep.subr.mxu0 0.0
  %4612 = vmatpush1.msra.mxu0 0.0
  %4613 = vmatprep.subr.mxu0 0.0
  %4614 = vmatpush1.msra.mxu0 0.0
  %4615 = vmatprep.subr.mxu0 0.0
  %4616 = vmatpush1.msra.mxu0 0.0
  %4617 = vmatprep.subr.mxu0 0.0
  %4618 = vmatpush1.msra.mxu0 0.0
  %4619 = vmatprep.subr.mxu0 0.0
  %4620 = vmatpush1.msra.mxu0 0.0
  %4621 = vmatprep.subr.mxu0 0.0
  %4622 = vmatpush1.msra.mxu0 0.0
  %4623 = vmatprep.subr.mxu0 0.0
  %4624 = vmatpush1.msra.mxu0 0.0
  %4625 = vmatprep.subr.mxu0 0.0
  %4626 = vmatpush1.msra.mxu0 0.0
  %4627 = vmatprep.subr.mxu0 0.0
  %4628 = vmatpush1.msra.mxu0 0.0
  %4629 = vmatprep.subr.mxu0 0.0
  %4630 = vmatpush1.msra.mxu0 0.0
  %4631 = vmatprep.subr.mxu0 0.0
  %4632 = vmatpush1.msra.mxu0 0.0
  %4633 = vmatprep.subr.mxu0 0.0
  %4634 = vmatpush1.msra.mxu0 0.0
  %4635 = vmatprep.subr.mxu0 0.0
  %4636 = vmatpush1.msra.mxu0 0.0
  %4637 = vmatprep.subr.mxu0 0.0
  %4638 = vmatpush1.msra.mxu0 0.0
  %4639 = vmatprep.subr.mxu0 0.0
  %4640 = vmatpush1.msra.mxu0 0.0
  %4641 = vmatprep.subr.mxu0 0.0
  %4642 = vmatpush1.msra.mxu0 0.0
  %4643 = vmatprep.subr.mxu0 0.0
  %4644 = vmatpush1.msra.mxu0 0.0
  %4645 = vmatprep.subr.mxu0 0.0
  %4646 = vmatpush1.msra.mxu0 0.0
  %4647 = vmatprep.subr.mxu0 0.0
  %4648 = vmatpush1.msra.mxu0 0.0
  %4649 = vmatprep.subr.mxu0 0.0
  %4650 = vmatpush1.msra.mxu0 0.0
  %4651 = vmatprep.subr.mxu0 0.0
  %4652 = vmatpush1.msra.mxu0 0.0
  %4653 = vmatprep.subr.mxu0 0.0
  %4654 = vmatpush1.msra.mxu0 0.0
  %4655 = vmatprep.subr.mxu0 0.0
  %4656 = vmatpush1.msra.mxu0 0.0
  %4657 = vmatprep.subr.mxu0 0.0
  %4658 = vmatpush1.msra.mxu0 0.0
  %4659 = vmatprep.subr.mxu0 0.0
  %4660 = vmatpush1.msra.mxu0 0.0
  %4661 = vmatprep.subr.mxu0 0.0
  %4662 = vmatpush1.msra.mxu0 0.0
  %4663 = vmatprep.subr.mxu0 0.0
  %4664 = vmatpush1.msra.mxu0 0.0
  %4665 = vmatprep.subr.mxu0 0.0
  %4666 = vmatpush1.msra.mxu0 0.0
  %4667 = vmatprep.subr.mxu0 0.0
  %4668 = vmatpush1.msra.mxu0 0.0
  %4669 = vmatprep.subr.mxu0 0.0
  %4670 = vmatpush1.msra.mxu0 0.0
  %4671 = vmatprep.mubr.f32.mxu0 0.0
  %4672 = vmatmul.mubr.f32.gmra.mrb[0].mxu0 %v3493
  %v4673 = vpop.f32.mrb[0].mxu0
  %v4674 = vadd.f32 0.0, %v4673
  %v4675 = vpop.f32.mrb[0].mxu0
  %4676 = vmatprep.mubr.f32.mxu0 0.0
  %4677 = vmatmul.mubr.f32.gmra.mrb[0].mxu0 %v3496
  %v4678 = vpop.f32.mrb[0].mxu0
  %v4679 = vadd.f32 0.0, %v4678
  %v4680 = vpop.f32.mrb[0].mxu0
  %4681 = vmatprep.mubr.f32.mxu0 0.0
  %4682 = vmatmul.mubr.f32.gmra.mrb[0].mxu0 %v3499
  %v4683 = vpop.f32.mrb[0].mxu0
  %v4684 = vadd.f32 0.0, %v4683
  %v4685 = vpop.f32.mrb[0].mxu0
  %4686 = vmatprep.mubr.f32.mxu0 0.0
  %4687 = vmatmul.mubr.f32.gmra.mrb[0].mxu0 %v3502
  %v4688 = vpop.f32.mrb[0].mxu0
  %v4689 = vadd.f32 0.0, %v4688
  %v4690 = vpop.f32.mrb[0].mxu0
  %4691 = vmatprep.mubr.f32.mxu0 0.0
  %4692 = vmatmul.mubr.f32.gmra.mrb[0].mxu0 %v3505
  %v4693 = vpop.f32.mrb[0].mxu0
  %v4694 = vadd.f32 0.0, %v4693
  %v4695 = vpop.f32.mrb[0].mxu0
  %4696 = vmatprep.mubr.f32.mxu0 0.0
  %4697 = vmatmul.mubr.f32.gmra.mrb[0].mxu0 %v3508
  %v4698 = vpop.f32.mrb[0].mxu0
  %v4699 = vadd.f32 0.0, %v4698
  %v4700 = vpop.f32.mrb[0].mxu0
  %4701 = vmatprep.mubr.f32.mxu0 0.0
  %4702 = vmatmul.mubr.f32.gmra.mrb[0].mxu0 %v3511
  %v4703 = vpop.f32.mrb[0].mxu0
  %v4704 = vadd.f32 0.0, %v4703
  %v4705 = vpop.f32.mrb[0].mxu0
  %4706 = vmatprep.mubr.f32.mxu0 0.0
  %4707 = vmatmul.mubr.f32.gmra.mrb[0].mxu0 %v3514
  %v4708 = vpop.f32.mrb[0].mxu0
  %v4709 = vadd.f32 0.0, %v4708
  %v4710 = vpop.f32.mrb[0].mxu0
  %4711 = vmatprep.mubr.f32.mxu0 0.0
  %4712 = vmatmul.mubr.f32.gmra.mrb[0].mxu0 %v3517
  %v4713 = vpop.f32.mrb[0].mxu0
  %v4714 = vadd.f32 0.0, %v4713
  %v4715 = vpop.f32.mrb[0].mxu0
  %4716 = vmatprep.mubr.f32.mxu0 0.0
  %4717 = vmatmul.mubr.f32.gmra.mrb[0].mxu0 %v3520
  %v4718 = vpop.f32.mrb[0].mxu0
  %v4719 = vadd.f32 0.0, %v4718
  %v4720 = vpop.f32.mrb[0].mxu0
  %4721 = vmatprep.mubr.f32.mxu0 0.0
  %4722 = vmatmul.mubr.f32.gmra.mrb[0].mxu0 %v3523
  %v4723 = vpop.f32.mrb[0].mxu0
  %v4724 = vadd.f32 0.0, %v4723
  %v4725 = vpop.f32.mrb[0].mxu0
  %4726 = vmatprep.mubr.f32.mxu0 0.0
  %4727 = vmatmul.mubr.f32.gmra.mrb[0].mxu0 %v3526
  %v4728 = vpop.f32.mrb[0].mxu0
  %v4729 = vadd.f32 0.0, %v4728
  %v4730 = vpop.f32.mrb[0].mxu0
  %4731 = vmatprep.mubr.f32.mxu0 0.0
  %4732 = vmatmul.mubr.f32.gmra.mrb[0].mxu0 %v3529
  %v4733 = vpop.f32.mrb[0].mxu0
  %v4734 = vadd.f32 0.0, %v4733
  %v4735 = vpop.f32.mrb[0].mxu0
  %4736 = vmatprep.mubr.f32.mxu0 0.0
  %4737 = vmatmul.mubr.f32.gmra.mrb[0].mxu0 %v3532
  %v4738 = vpop.f32.mrb[0].mxu0
  %v4739 = vadd.f32 0.0, %v4738
  %v4740 = vpop.f32.mrb[0].mxu0
  %4741 = vmatprep.mubr.f32.mxu0 0.0
  %4742 = vmatmul.mubr.f32.gmra.mrb[0].mxu0 %v3535
  %v4743 = vpop.f32.mrb[0].mxu0
  %v4744 = vadd.f32 0.0, %v4743
  %v4745 = vpop.f32.mrb[0].mxu0
  %4746 = vmatprep.mubr.f32.mxu0 0.0
  %4747 = vmatmul.mubr.f32.gmra.mrb[0].mxu0 %v3538
  %v4748 = vpop.f32.mrb[0].mxu0
  %v4749 = vadd.f32 0.0, %v4748
  %v4750 = vpop.f32.mrb[0].mxu0
  %4751 = vmatprep.mubr.f32.mxu0 0.0
  %4752 = vmatmul.mubr.f32.gmra.mrb[0].mxu0 %v3541
  %v4753 = vpop.f32.mrb[0].mxu0
  %v4754 = vadd.f32 0.0, %v4753
  %v4755 = vpop.f32.mrb[0].mxu0
  %4756 = vmatprep.mubr.f32.mxu0 0.0
  %4757 = vmatmul.mubr.f32.gmra.mrb[0].mxu0 %v3544
  %v4758 = vpop.f32.mrb[0].mxu0
  %v4759 = vadd.f32 0.0, %v4758
  %v4760 = vpop.f32.mrb[0].mxu0
  %4761 = vmatprep.mubr.f32.mxu0 0.0
  %4762 = vmatmul.mubr.f32.gmra.mrb[0].mxu0 %v3547
  %v4763 = vpop.f32.mrb[0].mxu0
  %v4764 = vadd.f32 0.0, %v4763
  %v4765 = vpop.f32.mrb[0].mxu0
  %4766 = vmatprep.mubr.f32.mxu0 0.0
  %4767 = vmatmul.mubr.f32.gmra.mrb[0].mxu0 %v3550
  %v4768 = vpop.f32.mrb[0].mxu0
  %v4769 = vadd.f32 0.0, %v4768
  %v4770 = vpop.f32.mrb[0].mxu0
  %4771 = vmatprep.mubr.f32.mxu0 0.0
  %4772 = vmatmul.mubr.f32.gmra.mrb[0].mxu0 %v3553
  %v4773 = vpop.f32.mrb[0].mxu0
  %v4774 = vadd.f32 0.0, %v4773
  %v4775 = vpop.f32.mrb[0].mxu0
  %4776 = vmatprep.mubr.f32.mxu0 0.0
  %4777 = vmatmul.mubr.f32.gmra.mrb[0].mxu0 %v3556
  %v4778 = vpop.f32.mrb[0].mxu0
  %v4779 = vadd.f32 0.0, %v4778
  %v4780 = vpop.f32.mrb[0].mxu0
  %4781 = vmatprep.mubr.f32.mxu0 0.0
  %4782 = vmatmul.mubr.f32.gmra.mrb[0].mxu0 %v3559
  %v4783 = vpop.f32.mrb[0].mxu0
  %v4784 = vadd.f32 0.0, %v4783
  %v4785 = vpop.f32.mrb[0].mxu0
  %4786 = vmatprep.mubr.f32.mxu0 0.0
  %4787 = vmatmul.mubr.f32.gmra.mrb[0].mxu0 %v3562
  %v4788 = vpop.f32.mrb[0].mxu0
  %v4789 = vadd.f32 0.0, %v4788
  %v4790 = vpop.f32.mrb[0].mxu0
  %4791 = vmatprep.mubr.f32.mxu0 0.0
  %4792 = vmatmul.mubr.f32.gmra.mrb[0].mxu0 %v3565
  %v4793 = vpop.f32.mrb[0].mxu0
  %v4794 = vadd.f32 0.0, %v4793
  %v4795 = vpop.f32.mrb[0].mxu0
  %4796 = vmatprep.mubr.f32.mxu0 0.0
  %4797 = vmatmul.mubr.f32.gmra.mrb[0].mxu0 %v3568
  %v4798 = vpop.f32.mrb[0].mxu0
  %v4799 = vadd.f32 0.0, %v4798
  %v4800 = vpop.f32.mrb[0].mxu0
  %4801 = vmatprep.mubr.f32.mxu0 0.0
  %4802 = vmatmul.mubr.f32.gmra.mrb[0].mxu0 %v3571
  %v4803 = vpop.f32.mrb[0].mxu0
  %v4804 = vadd.f32 0.0, %v4803
  %v4805 = vpop.f32.mrb[0].mxu0
  %4806 = vmatprep.mubr.f32.mxu0 0.0
  %4807 = vmatmul.mubr.f32.gmra.mrb[0].mxu0 %v3574
  %v4808 = vpop.f32.mrb[0].mxu0
  %v4809 = vadd.f32 0.0, %v4808
  %v4810 = vpop.f32.mrb[0].mxu0
  %4811 = vmatprep.mubr.f32.mxu0 0.0
  %4812 = vmatmul.mubr.f32.gmra.mrb[0].mxu0 %v4127
  %v4813 = vpop.f32.mrb[0].mxu0
  %v4814 = vadd.f32 0.0, %v4813
  %v4815 = vpop.f32.mrb[0].mxu0
  %4816 = vmatprep.mubr.f32.mxu0 0.0
  %4817 = vmatmul.mubr.f32.gmra.mrb[0].mxu0 %v4130
  %v4818 = vpop.f32.mrb[0].mxu0
  %v4819 = vadd.f32 0.0, %v4818
  %v4820 = vpop.f32.mrb[0].mxu0
  %4821 = vmatprep.mubr.f32.mxu0 0.0
  %4822 = vmatmul.mubr.f32.gmra.mrb[0].mxu0 %v4593
  %v4823 = vpop.f32.mrb[0].mxu0
  %v4824 = vadd.f32 0.0, %v4823
  %v4825 = vpop.f32.mrb[0].mxu0
  %4826 = vmatprep.mubr.f32.mxu0 0.0
  %4827 = vmatmul.mubr.f32.gmra.mrb[0].mxu0 %v4596
  %v4828 = vpop.f32.mrb[0].mxu0
  %v4829 = vadd.f32 0.0, %v4828
  %v4830 = vpop.f32.mrb[0].mxu0
  %4831 = vmatprep.mubr.f32.mxu0 0.0
  %4832 = vmatmul.mubr.f32.gmra.mrb[0].mxu0 %v3589
  %v4833 = vpop.f32.mrb[0].mxu0
  %v4834 = vadd.f32 0.0, %v4833
  %v4835 = vpop.f32.mrb[0].mxu0
  %4836 = vmatprep.mubr.f32.mxu0 0.0
  %4837 = vmatmul.mubr.f32.gmra.mrb[0].mxu0 %v3592
  %v4838 = vpop.f32.mrb[0].mxu0
  %v4839 = vadd.f32 0.0, %v4838
  %v4840 = vpop.f32.mrb[0].mxu0
  %4841 = vmatprep.mubr.f32.mxu0 0.0
  %4842 = vmatmul.mubr.f32.gmra.mrb[0].mxu0 %v3595
  %v4843 = vpop.f32.mrb[0].mxu0
  %v4844 = vadd.f32 0.0, %v4843
  %v4845 = vpop.f32.mrb[0].mxu0
  %4846 = vmatprep.mubr.f32.mxu0 0.0
  %4847 = vmatmul.mubr.f32.gmra.mrb[0].mxu0 %v3598
  %v4848 = vpop.f32.mrb[0].mxu0
  %v4849 = vadd.f32 0.0, %v4848
  %v4850 = vpop.f32.mrb[0].mxu0
  %4851 = vmatprep.mubr.f32.mxu0 0.0
  %4852 = vmatmul.mubr.f32.gmra.mrb[0].mxu0 %v3601
  %v4853 = vpop.f32.mrb[0].mxu0
  %v4854 = vadd.f32 0.0, %v4853
  %v4855 = vpop.f32.mrb[0].mxu0
  %4856 = vmatprep.mubr.f32.mxu0 0.0
  %4857 = vmatmul.mubr.f32.gmra.mrb[0].mxu0 %v3604
  %v4858 = vpop.f32.mrb[0].mxu0
  %v4859 = vadd.f32 0.0, %v4858
  %v4860 = vpop.f32.mrb[0].mxu0
  %4861 = vmatprep.mubr.f32.mxu0 0.0
  %4862 = vmatmul.mubr.f32.gmra.mrb[0].mxu0 %v3607
  %v4863 = vpop.f32.mrb[0].mxu0
  %v4864 = vadd.f32 0.0, %v4863
  %v4865 = vpop.f32.mrb[0].mxu0
  %4866 = vmatprep.mubr.f32.mxu0 0.0
  %4867 = vmatmul.mubr.f32.gmra.mrb[0].mxu0 %v3610
  %v4868 = vpop.f32.mrb[0].mxu0
  %v4869 = vadd.f32 0.0, %v4868
  %v4870 = vpop.f32.mrb[0].mxu0
  %4871 = vmatprep.mubr.f32.mxu0 0.0
  %4872 = vmatmul.mubr.f32.gmra.mrb[0].mxu0 %v3613
  %v4873 = vpop.f32.mrb[0].mxu0
  %v4874 = vadd.f32 0.0, %v4873
  %v4875 = vpop.f32.mrb[0].mxu0
  %4876 = vmatprep.mubr.f32.mxu0 0.0
  %4877 = vmatmul.mubr.f32.gmra.mrb[0].mxu0 %v3616
  %v4878 = vpop.f32.mrb[0].mxu0
  %v4879 = vadd.f32 0.0, %v4878
  %v4880 = vpop.f32.mrb[0].mxu0
  %4881 = vmatprep.mubr.f32.mxu0 0.0
  %4882 = vmatmul.mubr.f32.gmra.mrb[0].mxu0 %v3619
  %v4883 = vpop.f32.mrb[0].mxu0
  %v4884 = vadd.f32 0.0, %v4883
  %v4885 = vpop.f32.mrb[0].mxu0
  %4886 = vmatprep.mubr.f32.mxu0 0.0
  %4887 = vmatmul.mubr.f32.gmra.mrb[0].mxu0 %v3622
  %v4888 = vpop.f32.mrb[0].mxu0
  %v4889 = vadd.f32 0.0, %v4888
  %v4890 = vpop.f32.mrb[0].mxu0
  %4891 = vmatprep.mubr.f32.mxu0 0.0
  %4892 = vmatmul.mubr.f32.gmra.mrb[0].mxu0 %v3625
  %v4893 = vpop.f32.mrb[0].mxu0
  %v4894 = vadd.f32 0.0, %v4893
  %v4895 = vpop.f32.mrb[0].mxu0
  %4896 = vmatprep.mubr.f32.mxu0 0.0
  %4897 = vmatmul.mubr.f32.gmra.mrb[0].mxu0 %v3628
  %v4898 = vpop.f32.mrb[0].mxu0
  %v4899 = vadd.f32 0.0, %v4898
  %v4900 = vpop.f32.mrb[0].mxu0
  %4901 = vmatprep.mubr.f32.mxu0 0.0
  %4902 = vmatmul.mubr.f32.gmra.mrb[0].mxu0 %v3631
  %v4903 = vpop.f32.mrb[0].mxu0
  %v4904 = vadd.f32 0.0, %v4903
  %v4905 = vpop.f32.mrb[0].mxu0
  %4906 = vmatprep.mubr.f32.mxu0 0.0
  %4907 = vmatmul.mubr.f32.gmra.mrb[0].mxu0 %v3634
  %v4908 = vpop.f32.mrb[0].mxu0
  %v4909 = vadd.f32 0.0, %v4908
  %v4910 = vpop.f32.mrb[0].mxu0
  %4911 = vmatprep.mubr.f32.mxu0 0.0
  %4912 = vmatmul.mubr.f32.gmra.mrb[0].mxu0 %v3637
  %v4913 = vpop.f32.mrb[0].mxu0
  %v4914 = vadd.f32 0.0, %v4913
  %v4915 = vpop.f32.mrb[0].mxu0
  %4916 = vmatprep.mubr.f32.mxu0 0.0
  %4917 = vmatmul.mubr.f32.gmra.mrb[0].mxu0 %v3640
  %v4918 = vpop.f32.mrb[0].mxu0
  %v4919 = vadd.f32 0.0, %v4918
  %v4920 = vpop.f32.mrb[0].mxu0
  %4921 = vmatprep.mubr.f32.mxu0 0.0
  %4922 = vmatmul.mubr.f32.gmra.mrb[0].mxu0 %v3643
  %v4923 = vpop.f32.mrb[0].mxu0
  %v4924 = vadd.f32 0.0, %v4923
  %v4925 = vpop.f32.mrb[0].mxu0
  %4926 = vmatprep.mubr.f32.mxu0 0.0
  %4927 = vmatmul.mubr.f32.gmra.mrb[0].mxu0 %v3646
  %v4928 = vpop.f32.mrb[0].mxu0
  %v4929 = vadd.f32 0.0, %v4928
  %v4930 = vpop.f32.mrb[0].mxu0
  %4931 = vmatprep.mubr.f32.mxu0 0.0
  %4932 = vmatmul.mubr.f32.gmra.mrb[0].mxu0 %v3649
  %v4933 = vpop.f32.mrb[0].mxu0
  %v4934 = vadd.f32 0.0, %v4933
  %v4935 = vpop.f32.mrb[0].mxu0
  %4936 = vmatprep.mubr.f32.mxu0 0.0
  %4937 = vmatmul.mubr.f32.gmra.mrb[0].mxu0 %v3652
  %v4938 = vpop.f32.mrb[0].mxu0
  %v4939 = vadd.f32 0.0, %v4938
  %v4940 = vpop.f32.mrb[0].mxu0
  %4941 = vmatprep.mubr.f32.mxu0 0.0
  %4942 = vmatmul.mubr.f32.gmra.mrb[0].mxu0 %v3655
  %v4943 = vpop.f32.mrb[0].mxu0
  %v4944 = vadd.f32 0.0, %v4943
  %v4945 = vpop.f32.mrb[0].mxu0
  %4946 = vmatprep.mubr.f32.mxu0 0.0
  %4947 = vmatmul.mubr.f32.gmra.mrb[0].mxu0 %v3658
  %v4948 = vpop.f32.mrb[0].mxu0
  %v4949 = vadd.f32 0.0, %v4948
  %v4950 = vpop.f32.mrb[0].mxu0
  %4951 = vmatprep.mubr.f32.mxu0 0.0
  %4952 = vmatmul.mubr.f32.gmra.mrb[0].mxu0 %v3661
  %v4953 = vpop.f32.mrb[0].mxu0
  %v4954 = vadd.f32 0.0, %v4953
  %v4955 = vpop.f32.mrb[0].mxu0
  %4956 = vmatprep.mubr.f32.mxu0 0.0
  %4957 = vmatmul.mubr.f32.gmra.mrb[0].mxu0 %v3664
  %v4958 = vpop.f32.mrb[0].mxu0
  %v4959 = vadd.f32 0.0, %v4958
  %v4960 = vpop.f32.mrb[0].mxu0
  %4961 = vmatprep.mubr.f32.mxu0 0.0
  %4962 = vmatmul.mubr.f32.gmra.mrb[0].mxu0 %v3667
  %v4963 = vpop.f32.mrb[0].mxu0
  %v4964 = vadd.f32 0.0, %v4963
  %v4965 = vpop.f32.mrb[0].mxu0
  %4966 = vmatprep.mubr.f32.mxu0 0.0
  %4967 = vmatmul.mubr.f32.gmra.mrb[0].mxu0 %v3670
  %v4968 = vpop.f32.mrb[0].mxu0
  %v4969 = vadd.f32 0.0, %v4968
  %v4970 = vpop.f32.mrb[0].mxu0
  %4971 = vmatprep.mubr.f32.mxu0 0.0
  %4972 = vmatmul.mubr.f32.gmra.mrb[0].mxu0 %v4133
  %v4973 = vpop.f32.mrb[0].mxu0
  %v4974 = vadd.f32 0.0, %v4973
  %v4975 = vpop.f32.mrb[0].mxu0
  %4976 = vmatprep.mubr.f32.mxu0 0.0
  %4977 = vmatmul.mubr.f32.gmra.mrb[0].mxu0 %v4136
  %v4978 = vpop.f32.mrb[0].mxu0
  %v4979 = vadd.f32 0.0, %v4978
  %v4980 = vpop.f32.mrb[0].mxu0
  %4981 = vmatprep.mubr.f32.mxu0 0.0
  %4982 = vmatmul.mubr.f32.gmra.mrb[0].mxu0 %v4599
  %v4983 = vpop.f32.mrb[0].mxu0
  %v4984 = vadd.f32 0.0, %v4983
  %v4985 = vpop.f32.mrb[0].mxu0
  %4986 = vmatprep.mubr.f32.mxu0 0.0
  %4987 = vmatmul.mubr.f32.gmra.mrb[0].mxu0 %v4602
  %v4988 = vpop.f32.mrb[0].mxu0
  %v4989 = vadd.f32 0.0, %v4988
  %v4990 = vpop.f32.mrb[0].mxu0
  %4991 = vdwg.mxu0
  %v4992 = vadd.f32 %v4526, %v4674
  %v4993 = vadd.f32 %v4527, %v4679
  %v4994 = vadd.f32 %v4528, %v4684
  %v4995 = vadd.f32 %v4529, %v4689
  %v4996 = vadd.f32 %v4530, %v4694
  %v4997 = vadd.f32 %v4531, %v4699
  %v4998 = vadd.f32 %v4532, %v4704
  %v4999 = vadd.f32 %v4533, %v4709
  %v5000 = vadd.f32 %v4534, %v4714
  %v5001 = vadd.f32 %v4535, %v4719
  %v5002 = vadd.f32 %v4536, %v4724
  %v5003 = vadd.f32 %v4537, %v4729
  %v5004 = vadd.f32 %v4538, %v4734
  %v5005 = vadd.f32 %v4539, %v4739
  %v5006 = vadd.f32 %v4540, %v4744
  %v5007 = vadd.f32 %v4541, %v4749
  %v5008 = vadd.f32 %v4542, %v4754
  %v5009 = vadd.f32 %v4543, %v4759
  %v5010 = vadd.f32 %v4544, %v4764
  %v5011 = vadd.f32 %v4545, %v4769
  %v5012 = vadd.f32 %v4546, %v4774
  %v5013 = vadd.f32 %v4547, %v4779
  %v5014 = vadd.f32 %v4548, %v4784
  %v5015 = vadd.f32 %v4549, %v4789
  %v5016 = vadd.f32 %v4550, %v4794
  %v5017 = vadd.f32 %v4551, %v4799
  %v5018 = vadd.f32 %v4552, %v4804
  %v5019 = vadd.f32 %v4553, %v4809
  %v5020 = vadd.f32 %v4554, %v4814
  %v5021 = vadd.f32 %v4555, %v4819
  %v5022 = vadd.f32 %v4556, %v4824
  %v5023 = vadd.f32 %v4557, %v4829
  %v5024 = vadd.f32 %v4558, %v4834
  %v5025 = vadd.f32 %v4559, %v4839
  %v5026 = vadd.f32 %v4560, %v4844
  %v5027 = vadd.f32 %v4561, %v4849
  %v5028 = vadd.f32 %v4562, %v4854
  %v5029 = vadd.f32 %v4563, %v4859
  %v5030 = vadd.f32 %v4564, %v4864
  %v5031 = vadd.f32 %v4565, %v4869
  %v5032 = vadd.f32 %v4566, %v4874
  %v5033 = vadd.f32 %v4567, %v4879
  %v5034 = vadd.f32 %v4568, %v4884
  %v5035 = vadd.f32 %v4569, %v4889
  %v5036 = vadd.f32 %v4570, %v4894
  %v5037 = vadd.f32 %v4571, %v4899
  %v5038 = vadd.f32 %v4572, %v4904
  %v5039 = vadd.f32 %v4573, %v4909
  %v5040 = vadd.f32 %v4574, %v4914
  %v5041 = vadd.f32 %v4575, %v4919
  %v5042 = vadd.f32 %v4576, %v4924
  %v5043 = vadd.f32 %v4577, %v4929
  %v5044 = vadd.f32 %v4578, %v4934
  %v5045 = vadd.f32 %v4579, %v4939
  %v5046 = vadd.f32 %v4580, %v4944
  %v5047 = vadd.f32 %v4581, %v4949
  %v5048 = vadd.f32 %v4582, %v4954
  %v5049 = vadd.f32 %v4583, %v4959
  %v5050 = vadd.f32 %v4584, %v4964
  %v5051 = vadd.f32 %v4585, %v4969
  %v5052 = vadd.f32 %v4586, %v4974
  %v5053 = vadd.f32 %v4587, %v4979
  %v5054 = vadd.f32 %v4588, %v4984
  %v5055 = vadd.f32 %v4589, %v4989
  %v5056 = vld [vmem:[%s3] sm:$0x1]
  %s5057 = scalar_lea.vmem %s3, 1
  %v5058 = vld [vmem:[%s5057] sm:$0x1]
  %v5059 = vsel %vm90, %v4992, 0.0
  %v5060 = vsel %vm90, %v4993, 0.0
  %v5061 = vadd.f32 %v5059, %v5060
  %v5062 = vsel %vm90, %v4994, 0.0
  %v5063 = vadd.f32 %v5061, %v5062
  %v5064 = vsel %vm90, %v4995, 0.0
  %v5065 = vadd.f32 %v5063, %v5064
  %v5066 = vsel %vm90, %v4996, 0.0
  %v5067 = vadd.f32 %v5065, %v5066
  %v5068 = vsel %vm90, %v4997, 0.0
  %v5069 = vadd.f32 %v5067, %v5068
  %v5070 = vsel %vm90, %v4998, 0.0
  %v5071 = vadd.f32 %v5069, %v5070
  %v5072 = vsel %vm90, %v4999, 0.0
  %v5073 = vadd.f32 %v5071, %v5072
  %v5074 = vsel %vm90, %v5000, 0.0
  %v5075 = vadd.f32 %v5073, %v5074
  %v5076 = vsel %vm90, %v5001, 0.0
  %v5077 = vadd.f32 %v5075, %v5076
  %v5078 = vsel %vm90, %v5002, 0.0
  %v5079 = vadd.f32 %v5077, %v5078
  %v5080 = vsel %vm90, %v5003, 0.0
  %v5081 = vadd.f32 %v5079, %v5080
  %v5082 = vsel %vm90, %v5004, 0.0
  %v5083 = vadd.f32 %v5081, %v5082
  %v5084 = vsel %vm90, %v5005, 0.0
  %v5085 = vadd.f32 %v5083, %v5084
  %v5086 = vsel %vm90, %v5006, 0.0
  %v5087 = vadd.f32 %v5085, %v5086
  %v5088 = vsel %vm90, %v5007, 0.0
  %v5089 = vadd.f32 %v5087, %v5088
  %v5090 = vsel %vm90, %v5008, 0.0
  %v5091 = vadd.f32 %v5089, %v5090
  %v5092 = vsel %vm90, %v5009, 0.0
  %v5093 = vadd.f32 %v5091, %v5092
  %v5094 = vsel %vm90, %v5010, 0.0
  %v5095 = vadd.f32 %v5093, %v5094
  %v5096 = vsel %vm90, %v5011, 0.0
  %v5097 = vadd.f32 %v5095, %v5096
  %v5098 = vsel %vm90, %v5012, 0.0
  %v5099 = vadd.f32 %v5097, %v5098
  %v5100 = vsel %vm90, %v5013, 0.0
  %v5101 = vadd.f32 %v5099, %v5100
  %v5102 = vsel %vm90, %v5014, 0.0
  %v5103 = vadd.f32 %v5101, %v5102
  %v5104 = vsel %vm90, %v5015, 0.0
  %v5105 = vadd.f32 %v5103, %v5104
  %v5106 = vsel %vm90, %v5016, 0.0
  %v5107 = vadd.f32 %v5105, %v5106
  %v5108 = vsel %vm90, %v5017, 0.0
  %v5109 = vadd.f32 %v5107, %v5108
  %v5110 = vsel %vm90, %v5018, 0.0
  %v5111 = vadd.f32 %v5109, %v5110
  %v5112 = vsel %vm90, %v5019, 0.0
  %v5113 = vadd.f32 %v5111, %v5112
  %v5114 = vsel %vm90, %v5020, 0.0
  %v5115 = vadd.f32 %v5113, %v5114
  %v5116 = vsel %vm90, %v5021, 0.0
  %v5117 = vadd.f32 %v5115, %v5116
  %v5118 = vsel %vm90, %v5022, 0.0
  %v5119 = vadd.f32 %v5117, %v5118
  %v5120 = vsel %vm90, %v5023, 0.0
  %v5121 = vadd.f32 %v5119, %v5120
  %v5122 = vsel %vm90, %v5024, 0.0
  %v5123 = vadd.f32 %v5121, %v5122
  %v5124 = vsel %vm90, %v5025, 0.0
  %v5125 = vadd.f32 %v5123, %v5124
  %v5126 = vsel %vm90, %v5026, 0.0
  %v5127 = vadd.f32 %v5125, %v5126
  %v5128 = vsel %vm90, %v5027, 0.0
  %v5129 = vadd.f32 %v5127, %v5128
  %v5130 = vsel %vm90, %v5028, 0.0
  %v5131 = vadd.f32 %v5129, %v5130
  %v5132 = vsel %vm90, %v5029, 0.0
  %v5133 = vadd.f32 %v5131, %v5132
  %v5134 = vsel %vm90, %v5030, 0.0
  %v5135 = vadd.f32 %v5133, %v5134
  %v5136 = vsel %vm90, %v5031, 0.0
  %v5137 = vadd.f32 %v5135, %v5136
  %v5138 = vsel %vm90, %v5032, 0.0
  %v5139 = vadd.f32 %v5137, %v5138
  %v5140 = vsel %vm90, %v5033, 0.0
  %v5141 = vadd.f32 %v5139, %v5140
  %v5142 = vsel %vm90, %v5034, 0.0
  %v5143 = vadd.f32 %v5141, %v5142
  %v5144 = vsel %vm90, %v5035, 0.0
  %v5145 = vadd.f32 %v5143, %v5144
  %v5146 = vsel %vm90, %v5036, 0.0
  %v5147 = vadd.f32 %v5145, %v5146
  %v5148 = vsel %vm90, %v5037, 0.0
  %v5149 = vadd.f32 %v5147, %v5148
  %v5150 = vsel %vm90, %v5038, 0.0
  %v5151 = vadd.f32 %v5149, %v5150
  %v5152 = vsel %vm90, %v5039, 0.0
  %v5153 = vadd.f32 %v5151, %v5152
  %v5154 = vsel %vm90, %v5040, 0.0
  %v5155 = vadd.f32 %v5153, %v5154
  %v5156 = vsel %vm90, %v5041, 0.0
  %v5157 = vadd.f32 %v5155, %v5156
  %v5158 = vsel %vm90, %v5042, 0.0
  %v5159 = vadd.f32 %v5157, %v5158
  %v5160 = vsel %vm90, %v5043, 0.0
  %v5161 = vadd.f32 %v5159, %v5160
  %v5162 = vsel %vm90, %v5044, 0.0
  %v5163 = vadd.f32 %v5161, %v5162
  %v5164 = vsel %vm90, %v5045, 0.0
  %v5165 = vadd.f32 %v5163, %v5164
  %v5166 = vsel %vm90, %v5046, 0.0
  %v5167 = vadd.f32 %v5165, %v5166
  %v5168 = vsel %vm90, %v5047, 0.0
  %v5169 = vadd.f32 %v5167, %v5168
  %v5170 = vsel %vm90, %v5048, 0.0
  %v5171 = vadd.f32 %v5169, %v5170
  %v5172 = vsel %vm90, %v5049, 0.0
  %v5173 = vadd.f32 %v5171, %v5172
  %v5174 = vsel %vm90, %v5050, 0.0
  %v5175 = vadd.f32 %v5173, %v5174
  %v5176 = vsel %vm90, %v5051, 0.0
  %v5177 = vadd.f32 %v5175, %v5176
  %v5178 = vsel %vm90, %v5052, 0.0
  %v5179 = vadd.f32 %v5177, %v5178
  %v5180 = vsel %vm90, %v5053, 0.0
  %v5181 = vadd.f32 %v5179, %v5180
  %v5182 = vsel %vm90, %v5054, 0.0
  %v5183 = vadd.f32 %v5181, %v5182
  %v5184 = vsel %vm90, %v5055, 0.0
  %v5185 = vadd.f32 %v5183, %v5184
  %v5186 = vrot.slane %v5185, 4
  %v5187 = vadd.f32 %v5185, %v5186
  %v5188 = vrot.slane %v5187, 2
  %v5189 = vadd.f32 %v5187, %v5188
  %v5190 = vrot.slane %v5189, 1
  %v5191 = vadd.f32 %v5189, %v5190
  %v5192 = vmul.f32 %v4992, %v4992
  %v5193 = vmul.f32 %v4993, %v4993
  %v5194 = vmul.f32 %v4994, %v4994
  %v5195 = vmul.f32 %v4995, %v4995
  %v5196 = vmul.f32 %v4996, %v4996
  %v5197 = vmul.f32 %v4997, %v4997
  %v5198 = vmul.f32 %v4998, %v4998
  %v5199 = vmul.f32 %v4999, %v4999
  %v5200 = vmul.f32 %v5000, %v5000
  %v5201 = vmul.f32 %v5001, %v5001
  %v5202 = vmul.f32 %v5002, %v5002
  %v5203 = vmul.f32 %v5003, %v5003
  %v5204 = vmul.f32 %v5004, %v5004
  %v5205 = vmul.f32 %v5005, %v5005
  %v5206 = vmul.f32 %v5006, %v5006
  %v5207 = vmul.f32 %v5007, %v5007
  %v5208 = vmul.f32 %v5008, %v5008
  %v5209 = vmul.f32 %v5009, %v5009
  %v5210 = vmul.f32 %v5010, %v5010
  %v5211 = vmul.f32 %v5011, %v5011
  %v5212 = vmul.f32 %v5012, %v5012
  %v5213 = vmul.f32 %v5013, %v5013
  %v5214 = vmul.f32 %v5014, %v5014
  %v5215 = vmul.f32 %v5015, %v5015
  %v5216 = vmul.f32 %v5016, %v5016
  %v5217 = vmul.f32 %v5017, %v5017
  %v5218 = vmul.f32 %v5018, %v5018
  %v5219 = vmul.f32 %v5019, %v5019
  %v5220 = vmul.f32 %v5020, %v5020
  %v5221 = vmul.f32 %v5021, %v5021
  %v5222 = vmul.f32 %v5022, %v5022
  %v5223 = vmul.f32 %v5023, %v5023
  %v5224 = vmul.f32 %v5024, %v5024
  %v5225 = vmul.f32 %v5025, %v5025
  %v5226 = vmul.f32 %v5026, %v5026
  %v5227 = vmul.f32 %v5027, %v5027
  %v5228 = vmul.f32 %v5028, %v5028
  %v5229 = vmul.f32 %v5029, %v5029
  %v5230 = vmul.f32 %v5030, %v5030
  %v5231 = vmul.f32 %v5031, %v5031
  %v5232 = vmul.f32 %v5032, %v5032
  %v5233 = vmul.f32 %v5033, %v5033
  %v5234 = vmul.f32 %v5034, %v5034
  %v5235 = vmul.f32 %v5035, %v5035
  %v5236 = vmul.f32 %v5036, %v5036
  %v5237 = vmul.f32 %v5037, %v5037
  %v5238 = vmul.f32 %v5038, %v5038
  %v5239 = vmul.f32 %v5039, %v5039
  %v5240 = vmul.f32 %v5040, %v5040
  %v5241 = vmul.f32 %v5041, %v5041
  %v5242 = vmul.f32 %v5042, %v5042
  %v5243 = vmul.f32 %v5043, %v5043
  %v5244 = vmul.f32 %v5044, %v5044
  %v5245 = vmul.f32 %v5045, %v5045
  %v5246 = vmul.f32 %v5046, %v5046
  %v5247 = vmul.f32 %v5047, %v5047
  %v5248 = vmul.f32 %v5048, %v5048
  %v5249 = vmul.f32 %v5049, %v5049
  %v5250 = vmul.f32 %v5050, %v5050
  %v5251 = vmul.f32 %v5051, %v5051
  %v5252 = vmul.f32 %v5052, %v5052
  %v5253 = vmul.f32 %v5053, %v5053
  %v5254 = vmul.f32 %v5054, %v5054
  %v5255 = vmul.f32 %v5055, %v5055
  %v5256 = vsel %vm90, %v5192, 0.0
  %v5257 = vsel %vm90, %v5193, 0.0
  %v5258 = vadd.f32 %v5256, %v5257
  %v5259 = vsel %vm90, %v5194, 0.0
  %v5260 = vadd.f32 %v5258, %v5259
  %v5261 = vsel %vm90, %v5195, 0.0
  %v5262 = vadd.f32 %v5260, %v5261
  %v5263 = vsel %vm90, %v5196, 0.0
  %v5264 = vadd.f32 %v5262, %v5263
  %v5265 = vsel %vm90, %v5197, 0.0
  %v5266 = vadd.f32 %v5264, %v5265
  %v5267 = vsel %vm90, %v5198, 0.0
  %v5268 = vadd.f32 %v5266, %v5267
  %v5269 = vsel %vm90, %v5199, 0.0
  %v5270 = vadd.f32 %v5268, %v5269
  %v5271 = vsel %vm90, %v5200, 0.0
  %v5272 = vadd.f32 %v5270, %v5271
  %v5273 = vsel %vm90, %v5201, 0.0
  %v5274 = vadd.f32 %v5272, %v5273
  %v5275 = vsel %vm90, %v5202, 0.0
  %v5276 = vadd.f32 %v5274, %v5275
  %v5277 = vsel %vm90, %v5203, 0.0
  %v5278 = vadd.f32 %v5276, %v5277
  %v5279 = vsel %vm90, %v5204, 0.0
  %v5280 = vadd.f32 %v5278, %v5279
  %v5281 = vsel %vm90, %v5205, 0.0
  %v5282 = vadd.f32 %v5280, %v5281
  %v5283 = vsel %vm90, %v5206, 0.0
  %v5284 = vadd.f32 %v5282, %v5283
  %v5285 = vsel %vm90, %v5207, 0.0
  %v5286 = vadd.f32 %v5284, %v5285
  %v5287 = vsel %vm90, %v5208, 0.0
  %v5288 = vadd.f32 %v5286, %v5287
  %v5289 = vsel %vm90, %v5209, 0.0
  %v5290 = vadd.f32 %v5288, %v5289
  %v5291 = vsel %vm90, %v5210, 0.0
  %v5292 = vadd.f32 %v5290, %v5291
  %v5293 = vsel %vm90, %v5211, 0.0
  %v5294 = vadd.f32 %v5292, %v5293
  %v5295 = vsel %vm90, %v5212, 0.0
  %v5296 = vadd.f32 %v5294, %v5295
  %v5297 = vsel %vm90, %v5213, 0.0
  %v5298 = vadd.f32 %v5296, %v5297
  %v5299 = vsel %vm90, %v5214, 0.0
  %v5300 = vadd.f32 %v5298, %v5299
  %v5301 = vsel %vm90, %v5215, 0.0
  %v5302 = vadd.f32 %v5300, %v5301
  %v5303 = vsel %vm90, %v5216, 0.0
  %v5304 = vadd.f32 %v5302, %v5303
  %v5305 = vsel %vm90, %v5217, 0.0
  %v5306 = vadd.f32 %v5304, %v5305
  %v5307 = vsel %vm90, %v5218, 0.0
  %v5308 = vadd.f32 %v5306, %v5307
  %v5309 = vsel %vm90, %v5219, 0.0
  %v5310 = vadd.f32 %v5308, %v5309
  %v5311 = vsel %vm90, %v5220, 0.0
  %v5312 = vadd.f32 %v5310, %v5311
  %v5313 = vsel %vm90, %v5221, 0.0
  %v5314 = vadd.f32 %v5312, %v5313
  %v5315 = vsel %vm90, %v5222, 0.0
  %v5316 = vadd.f32 %v5314, %v5315
  %v5317 = vsel %vm90, %v5223, 0.0
  %v5318 = vadd.f32 %v5316, %v5317
  %v5319 = vsel %vm90, %v5224, 0.0
  %v5320 = vadd.f32 %v5318, %v5319
  %v5321 = vsel %vm90, %v5225, 0.0
  %v5322 = vadd.f32 %v5320, %v5321
  %v5323 = vsel %vm90, %v5226, 0.0
  %v5324 = vadd.f32 %v5322, %v5323
  %v5325 = vsel %vm90, %v5227, 0.0
  %v5326 = vadd.f32 %v5324, %v5325
  %v5327 = vsel %vm90, %v5228, 0.0
  %v5328 = vadd.f32 %v5326, %v5327
  %v5329 = vsel %vm90, %v5229, 0.0
  %v5330 = vadd.f32 %v5328, %v5329
  %v5331 = vsel %vm90, %v5230, 0.0
  %v5332 = vadd.f32 %v5330, %v5331
  %v5333 = vsel %vm90, %v5231, 0.0
  %v5334 = vadd.f32 %v5332, %v5333
  %v5335 = vsel %vm90, %v5232, 0.0
  %v5336 = vadd.f32 %v5334, %v5335
  %v5337 = vsel %vm90, %v5233, 0.0
  %v5338 = vadd.f32 %v5336, %v5337
  %v5339 = vsel %vm90, %v5234, 0.0
  %v5340 = vadd.f32 %v5338, %v5339
  %v5341 = vsel %vm90, %v5235, 0.0
  %v5342 = vadd.f32 %v5340, %v5341
  %v5343 = vsel %vm90, %v5236, 0.0
  %v5344 = vadd.f32 %v5342, %v5343
  %v5345 = vsel %vm90, %v5237, 0.0
  %v5346 = vadd.f32 %v5344, %v5345
  %v5347 = vsel %vm90, %v5238, 0.0
  %v5348 = vadd.f32 %v5346, %v5347
  %v5349 = vsel %vm90, %v5239, 0.0
  %v5350 = vadd.f32 %v5348, %v5349
  %v5351 = vsel %vm90, %v5240, 0.0
  %v5352 = vadd.f32 %v5350, %v5351
  %v5353 = vsel %vm90, %v5241, 0.0
  %v5354 = vadd.f32 %v5352, %v5353
  %v5355 = vsel %vm90, %v5242, 0.0
  %v5356 = vadd.f32 %v5354, %v5355
  %v5357 = vsel %vm90, %v5243, 0.0
  %v5358 = vadd.f32 %v5356, %v5357
  %v5359 = vsel %vm90, %v5244, 0.0
  %v5360 = vadd.f32 %v5358, %v5359
  %v5361 = vsel %vm90, %v5245, 0.0
  %v5362 = vadd.f32 %v5360, %v5361
  %v5363 = vsel %vm90, %v5246, 0.0
  %v5364 = vadd.f32 %v5362, %v5363
  %v5365 = vsel %vm90, %v5247, 0.0
  %v5366 = vadd.f32 %v5364, %v5365
  %v5367 = vsel %vm90, %v5248, 0.0
  %v5368 = vadd.f32 %v5366, %v5367
  %v5369 = vsel %vm90, %v5249, 0.0
  %v5370 = vadd.f32 %v5368, %v5369
  %v5371 = vsel %vm90, %v5250, 0.0
  %v5372 = vadd.f32 %v5370, %v5371
  %v5373 = vsel %vm90, %v5251, 0.0
  %v5374 = vadd.f32 %v5372, %v5373
  %v5375 = vsel %vm90, %v5252, 0.0
  %v5376 = vadd.f32 %v5374, %v5375
  %v5377 = vsel %vm90, %v5253, 0.0
  %v5378 = vadd.f32 %v5376, %v5377
  %v5379 = vsel %vm90, %v5254, 0.0
  %v5380 = vadd.f32 %v5378, %v5379
  %v5381 = vsel %vm90, %v5255, 0.0
  %v5382 = vadd.f32 %v5380, %v5381
  %v5383 = vrot.slane %v5382, 4
  %v5384 = vadd.f32 %v5382, %v5383
  %v5385 = vrot.slane %v5384, 2
  %v5386 = vadd.f32 %v5384, %v5385
  %v5387 = vrot.slane %v5386, 1
  %v5388 = vadd.f32 %v5386, %v5387
  %v5389 = vmul.f32 %v5191, 0.001953125
  %v5390 = vmul.f32 %v5388, 0.001953125
  %v5391 = vmul.f32 %v5389, %v5389
  %v5392 = vsub.f32 %v5390, %v5391
  %v5393 = vadd.f32 %v5392, 1e-05
  %v5394 = vrsqrt.pop %v5393
  %v5395 = vmul.f32 %v5056, %v5394
  %v5396 = vmul.f32 %v5389, %v5395
  %v5397 = vsub.f32 %v5058, %v5396
  %v5399 = vlaneseq
  %v5400 = vshrl.u32 %v5399, 7
  %v5401 = vsub.s32 0, %v5400
  %v5402 = vrot.slane %v5395, %v5401
  %v5404 = vmul.f32 %v4992, %v5402
  %v5405 = vmul.f32 %v4993, %v5402
  %v5406 = vmul.f32 %v4994, %v5402
  %v5407 = vmul.f32 %v4995, %v5402
  %v5408 = vmul.f32 %v4996, %v5402
  %v5409 = vmul.f32 %v4997, %v5402
  %v5410 = vmul.f32 %v4998, %v5402
  %v5411 = vmul.f32 %v4999, %v5402
  %v5412 = vmul.f32 %v5000, %v5402
  %v5413 = vmul.f32 %v5001, %v5402
  %v5414 = vmul.f32 %v5002, %v5402
  %v5415 = vmul.f32 %v5003, %v5402
  %v5416 = vmul.f32 %v5004, %v5402
  %v5417 = vmul.f32 %v5005, %v5402
  %v5418 = vmul.f32 %v5006, %v5402
  %v5419 = vmul.f32 %v5007, %v5402
  %v5420 = vmul.f32 %v5008, %v5402
  %v5421 = vmul.f32 %v5009, %v5402
  %v5422 = vmul.f32 %v5010, %v5402
  %v5423 = vmul.f32 %v5011, %v5402
  %v5424 = vmul.f32 %v5012, %v5402
  %v5425 = vmul.f32 %v5013, %v5402
  %v5426 = vmul.f32 %v5014, %v5402
  %v5427 = vmul.f32 %v5015, %v5402
  %v5428 = vmul.f32 %v5016, %v5402
  %v5429 = vmul.f32 %v5017, %v5402
  %v5430 = vmul.f32 %v5018, %v5402
  %v5431 = vmul.f32 %v5019, %v5402
  %v5432 = vmul.f32 %v5020, %v5402
  %v5433 = vmul.f32 %v5021, %v5402
  %v5434 = vmul.f32 %v5022, %v5402
  %v5435 = vmul.f32 %v5023, %v5402
  %v5436 = vmul.f32 %v5024, %v5402
  %v5437 = vmul.f32 %v5025, %v5402
  %v5438 = vmul.f32 %v5026, %v5402
  %v5439 = vmul.f32 %v5027, %v5402
  %v5440 = vmul.f32 %v5028, %v5402
  %v5441 = vmul.f32 %v5029, %v5402
  %v5442 = vmul.f32 %v5030, %v5402
  %v5443 = vmul.f32 %v5031, %v5402
  %v5444 = vmul.f32 %v5032, %v5402
  %v5445 = vmul.f32 %v5033, %v5402
  %v5446 = vmul.f32 %v5034, %v5402
  %v5447 = vmul.f32 %v5035, %v5402
  %v5448 = vmul.f32 %v5036, %v5402
  %v5449 = vmul.f32 %v5037, %v5402
  %v5450 = vmul.f32 %v5038, %v5402
  %v5451 = vmul.f32 %v5039, %v5402
  %v5452 = vmul.f32 %v5040, %v5402
  %v5453 = vmul.f32 %v5041, %v5402
  %v5454 = vmul.f32 %v5042, %v5402
  %v5455 = vmul.f32 %v5043, %v5402
  %v5456 = vmul.f32 %v5044, %v5402
  %v5457 = vmul.f32 %v5045, %v5402
  %v5458 = vmul.f32 %v5046, %v5402
  %v5459 = vmul.f32 %v5047, %v5402
  %v5460 = vmul.f32 %v5048, %v5402
  %v5461 = vmul.f32 %v5049, %v5402
  %v5462 = vmul.f32 %v5050, %v5402
  %v5463 = vmul.f32 %v5051, %v5402
  %v5464 = vmul.f32 %v5052, %v5402
  %v5465 = vmul.f32 %v5053, %v5402
  %v5466 = vmul.f32 %v5054, %v5402
  %v5467 = vmul.f32 %v5055, %v5402
  %v5469 = vlaneseq
  %v5470 = vshrl.u32 %v5469, 7
  %v5471 = vsub.s32 0, %v5470
  %v5472 = vrot.slane %v5397, %v5471
  %v5474 = vadd.f32 %v5404, %v5472
  %v5475 = vadd.f32 %v5405, %v5472
  %v5476 = vadd.f32 %v5406, %v5472
  %v5477 = vadd.f32 %v5407, %v5472
  %v5478 = vadd.f32 %v5408, %v5472
  %v5479 = vadd.f32 %v5409, %v5472
  %v5480 = vadd.f32 %v5410, %v5472
  %v5481 = vadd.f32 %v5411, %v5472
  %v5482 = vadd.f32 %v5412, %v5472
  %v5483 = vadd.f32 %v5413, %v5472
  %v5484 = vadd.f32 %v5414, %v5472
  %v5485 = vadd.f32 %v5415, %v5472
  %v5486 = vadd.f32 %v5416, %v5472
  %v5487 = vadd.f32 %v5417, %v5472
  %v5488 = vadd.f32 %v5418, %v5472
  %v5489 = vadd.f32 %v5419, %v5472
  %v5490 = vadd.f32 %v5420, %v5472
  %v5491 = vadd.f32 %v5421, %v5472
  %v5492 = vadd.f32 %v5422, %v5472
  %v5493 = vadd.f32 %v5423, %v5472
  %v5494 = vadd.f32 %v5424, %v5472
  %v5495 = vadd.f32 %v5425, %v5472
  %v5496 = vadd.f32 %v5426, %v5472
  %v5497 = vadd.f32 %v5427, %v5472
  %v5498 = vadd.f32 %v5428, %v5472
  %v5499 = vadd.f32 %v5429, %v5472
  %v5500 = vadd.f32 %v5430, %v5472
  %v5501 = vadd.f32 %v5431, %v5472
  %v5502 = vadd.f32 %v5432, %v5472
  %v5503 = vadd.f32 %v5433, %v5472
  %v5504 = vadd.f32 %v5434, %v5472
  %v5505 = vadd.f32 %v5435, %v5472
  %v5506 = vadd.f32 %v5436, %v5472
  %v5507 = vadd.f32 %v5437, %v5472
  %v5508 = vadd.f32 %v5438, %v5472
  %v5509 = vadd.f32 %v5439, %v5472
  %v5510 = vadd.f32 %v5440, %v5472
  %v5511 = vadd.f32 %v5441, %v5472
  %v5512 = vadd.f32 %v5442, %v5472
  %v5513 = vadd.f32 %v5443, %v5472
  %v5514 = vadd.f32 %v5444, %v5472
  %v5515 = vadd.f32 %v5445, %v5472
  %v5516 = vadd.f32 %v5446, %v5472
  %v5517 = vadd.f32 %v5447, %v5472
  %v5518 = vadd.f32 %v5448, %v5472
  %v5519 = vadd.f32 %v5449, %v5472
  %v5520 = vadd.f32 %v5450, %v5472
  %v5521 = vadd.f32 %v5451, %v5472
  %v5522 = vadd.f32 %v5452, %v5472
  %v5523 = vadd.f32 %v5453, %v5472
  %v5524 = vadd.f32 %v5454, %v5472
  %v5525 = vadd.f32 %v5455, %v5472
  %v5526 = vadd.f32 %v5456, %v5472
  %v5527 = vadd.f32 %v5457, %v5472
  %v5528 = vadd.f32 %v5458, %v5472
  %v5529 = vadd.f32 %v5459, %v5472
  %v5530 = vadd.f32 %v5460, %v5472
  %v5531 = vadd.f32 %v5461, %v5472
  %v5532 = vadd.f32 %v5462, %v5472
  %v5533 = vadd.f32 %v5463, %v5472
  %v5534 = vadd.f32 %v5464, %v5472
  %v5535 = vadd.f32 %v5465, %v5472
  %v5536 = vadd.f32 %v5466, %v5472
  %v5537 = vadd.f32 %v5467, %v5472
  %v5538 = vmax.f32 %v5474, 0.0
  %v5539 = vmax.f32 %v5475, 0.0
  %v5540 = vmax.f32 %v5476, 0.0
  %v5541 = vmax.f32 %v5477, 0.0
  %v5542 = vmax.f32 %v5478, 0.0
  %v5543 = vmax.f32 %v5479, 0.0
  %v5544 = vmax.f32 %v5480, 0.0
  %v5545 = vmax.f32 %v5481, 0.0
  %v5546 = vmax.f32 %v5482, 0.0
  %v5547 = vmax.f32 %v5483, 0.0
  %v5548 = vmax.f32 %v5484, 0.0
  %v5549 = vmax.f32 %v5485, 0.0
  %v5550 = vmax.f32 %v5486, 0.0
  %v5551 = vmax.f32 %v5487, 0.0
  %v5552 = vmax.f32 %v5488, 0.0
  %v5553 = vmax.f32 %v5489, 0.0
  %v5554 = vmax.f32 %v5490, 0.0
  %v5555 = vmax.f32 %v5491, 0.0
  %v5556 = vmax.f32 %v5492, 0.0
  %v5557 = vmax.f32 %v5493, 0.0
  %v5558 = vmax.f32 %v5494, 0.0
  %v5559 = vmax.f32 %v5495, 0.0
  %v5560 = vmax.f32 %v5496, 0.0
  %v5561 = vmax.f32 %v5497, 0.0
  %v5562 = vmax.f32 %v5498, 0.0
  %v5563 = vmax.f32 %v5499, 0.0
  %v5564 = vmax.f32 %v5500, 0.0
  %v5565 = vmax.f32 %v5501, 0.0
  %v5566 = vmax.f32 %v5502, 0.0
  %v5567 = vmax.f32 %v5503, 0.0
  %v5568 = vmax.f32 %v5504, 0.0
  %v5569 = vmax.f32 %v5505, 0.0
  %v5570 = vmax.f32 %v5506, 0.0
  %v5571 = vmax.f32 %v5507, 0.0
  %v5572 = vmax.f32 %v5508, 0.0
  %v5573 = vmax.f32 %v5509, 0.0
  %v5574 = vmax.f32 %v5510, 0.0
  %v5575 = vmax.f32 %v5511, 0.0
  %v5576 = vmax.f32 %v5512, 0.0
  %v5577 = vmax.f32 %v5513, 0.0
  %v5578 = vmax.f32 %v5514, 0.0
  %v5579 = vmax.f32 %v5515, 0.0
  %v5580 = vmax.f32 %v5516, 0.0
  %v5581 = vmax.f32 %v5517, 0.0
  %v5582 = vmax.f32 %v5518, 0.0
  %v5583 = vmax.f32 %v5519, 0.0
  %v5584 = vmax.f32 %v5520, 0.0
  %v5585 = vmax.f32 %v5521, 0.0
  %v5586 = vmax.f32 %v5522, 0.0
  %v5587 = vmax.f32 %v5523, 0.0
  %v5588 = vmax.f32 %v5524, 0.0
  %v5589 = vmax.f32 %v5525, 0.0
  %v5590 = vmax.f32 %v5526, 0.0
  %v5591 = vmax.f32 %v5527, 0.0
  %v5592 = vmax.f32 %v5528, 0.0
  %v5593 = vmax.f32 %v5529, 0.0
  %v5594 = vmax.f32 %v5530, 0.0
  %v5595 = vmax.f32 %v5531, 0.0
  %v5596 = vmax.f32 %v5532, 0.0
  %v5597 = vmax.f32 %v5533, 0.0
  %v5598 = vmax.f32 %v5534, 0.0
  %v5599 = vmax.f32 %v5535, 0.0
  %v5600 = vmax.f32 %v5536, 0.0
  %v5601 = vmax.f32 %v5537, 0.0
  %5602 = vst.msk [vmem:[%s169 + $0x1] sm:$0xff] %vm90, %v5538
  %5603 = vst.msk [vmem:[%s169 + $0x9] sm:$0xff] %vm90, %v5539
  %5604 = vst.msk [vmem:[%s169 + $0x19] sm:$0xff] %vm90, %v5540
  %5605 = vst.msk [vmem:[%s169 + $0x21] sm:$0xff] %vm90, %v5541
  %5606 = vst.msk [vmem:[%s169 + $0x31] sm:$0xff] %vm90, %v5542
  %5607 = vst.msk [vmem:[%s169 + $0x39] sm:$0xff] %vm90, %v5543
  %5608 = vst.msk [vmem:[%s169 + $0x49] sm:$0xff] %vm90, %v5544
  %5609 = vst.msk [vmem:[%s169 + $0x51] sm:$0xff] %vm90, %v5545
  %5610 = vst.msk [vmem:[%s169 + $0x61] sm:$0xff] %vm90, %v5546
  %5611 = vst.msk [vmem:[%s169 + $0x69] sm:$0xff] %vm90, %v5547
  %5612 = vst.msk [vmem:[%s169 + $0x79] sm:$0xff] %vm90, %v5548
  %5613 = vst.msk [vmem:[%s169 + $0x81] sm:$0xff] %vm90, %v5549
  %5614 = vst.msk [vmem:[%s169 + $0x91] sm:$0xff] %vm90, %v5550
  %5615 = vst.msk [vmem:[%s169 + $0x99] sm:$0xff] %vm90, %v5551
  %5616 = vst.msk [vmem:[%s169 + $0xa9] sm:$0xff] %vm90, %v5552
  %5617 = vst.msk [vmem:[%s169 + $0xb1] sm:$0xff] %vm90, %v5553
  %5618 = vst.msk [vmem:[%s169 + $0xc1] sm:$0xff] %vm90, %v5554
  %5619 = vst.msk [vmem:[%s169 + $0xc9] sm:$0xff] %vm90, %v5555
  %5620 = vst.msk [vmem:[%s169 + $0xd9] sm:$0xff] %vm90, %v5556
  %5621 = vst.msk [vmem:[%s169 + $0xe1] sm:$0xff] %vm90, %v5557
  %5622 = vst.msk [vmem:[%s169 + $0xf1] sm:$0xff] %vm90, %v5558
  %5623 = vst.msk [vmem:[%s169 + $0xf9] sm:$0xff] %vm90, %v5559
  %5624 = vst.msk [vmem:[%s169 + $0x109] sm:$0xff] %vm90, %v5560
  %5625 = vst.msk [vmem:[%s169 + $0x111] sm:$0xff] %vm90, %v5561
  %5626 = vst.msk [vmem:[%s169 + $0x121] sm:$0xff] %vm90, %v5562
  %5627 = vst.msk [vmem:[%s169 + $0x129] sm:$0xff] %vm90, %v5563
  %5628 = vst.msk [vmem:[%s169 + $0x139] sm:$0xff] %vm90, %v5564
  %5629 = vst.msk [vmem:[%s169 + $0x141] sm:$0xff] %vm90, %v5565
  %5630 = vst.msk [vmem:[%s169 + $0x151] sm:$0xff] %vm90, %v5566
  %5631 = vst.msk [vmem:[%s169 + $0x159] sm:$0xff] %vm90, %v5567
  %5632 = vst.msk [vmem:[%s169 + $0x169] sm:$0xff] %vm90, %v5568
  %5633 = vst.msk [vmem:[%s169 + $0x171] sm:$0xff] %vm90, %v5569
  %5634 = vst.msk [vmem:[%s169 + $0x1b1] sm:$0xff] %vm90, %v5570
  %5635 = vst.msk [vmem:[%s169 + $0x1b9] sm:$0xff] %vm90, %v5571
  %5636 = vst.msk [vmem:[%s169 + $0x1c9] sm:$0xff] %vm90, %v5572
  %5637 = vst.msk [vmem:[%s169 + $0x1d1] sm:$0xff] %vm90, %v5573
  %5638 = vst.msk [vmem:[%s169 + $0x1e1] sm:$0xff] %vm90, %v5574
  %5639 = vst.msk [vmem:[%s169 + $0x1e9] sm:$0xff] %vm90, %v5575
  %5640 = vst.msk [vmem:[%s169 + $0x1f9] sm:$0xff] %vm90, %v5576
  %5641 = vst.msk [vmem:[%s169 + $0x201] sm:$0xff] %vm90, %v5577
  %5642 = vst.msk [vmem:[%s169 + $0x211] sm:$0xff] %vm90, %v5578
  %5643 = vst.msk [vmem:[%s169 + $0x219] sm:$0xff] %vm90, %v5579
  %5644 = vst.msk [vmem:[%s169 + $0x229] sm:$0xff] %vm90, %v5580
  %5645 = vst.msk [vmem:[%s169 + $0x231] sm:$0xff] %vm90, %v5581
  %5646 = vst.msk [vmem:[%s169 + $0x241] sm:$0xff] %vm90, %v5582
  %5647 = vst.msk [vmem:[%s169 + $0x249] sm:$0xff] %vm90, %v5583
  %5648 = vst.msk [vmem:[%s169 + $0x259] sm:$0xff] %vm90, %v5584
  %5649 = vst.msk [vmem:[%s169 + $0x261] sm:$0xff] %vm90, %v5585
  %5650 = vst.msk [vmem:[%s169 + $0x271] sm:$0xff] %vm90, %v5586
  %5651 = vst.msk [vmem:[%s169 + $0x279] sm:$0xff] %vm90, %v5587
  %5652 = vst.msk [vmem:[%s169 + $0x289] sm:$0xff] %vm90, %v5588
  %5653 = vst.msk [vmem:[%s169 + $0x291] sm:$0xff] %vm90, %v5589
  %5654 = vst.msk [vmem:[%s169 + $0x2a1] sm:$0xff] %vm90, %v5590
  %5655 = vst.msk [vmem:[%s169 + $0x2a9] sm:$0xff] %vm90, %v5591
  %5656 = vst.msk [vmem:[%s169 + $0x2b9] sm:$0xff] %vm90, %v5592
  %5657 = vst.msk [vmem:[%s169 + $0x2c1] sm:$0xff] %vm90, %v5593
  %5658 = vst.msk [vmem:[%s169 + $0x2d1] sm:$0xff] %vm90, %v5594
  %5659 = vst.msk [vmem:[%s169 + $0x2d9] sm:$0xff] %vm90, %v5595
  %5660 = vst.msk [vmem:[%s169 + $0x2e9] sm:$0xff] %vm90, %v5596
  %5661 = vst.msk [vmem:[%s169 + $0x2f1] sm:$0xff] %vm90, %v5597
  %5662 = vst.msk [vmem:[%s169 + $0x301] sm:$0xff] %vm90, %v5598
  %5663 = vst.msk [vmem:[%s169 + $0x309] sm:$0xff] %vm90, %v5599
  %5664 = vst.msk [vmem:[%s169 + $0x319] sm:$0xff] %vm90, %v5600
  %5665 = vst.msk [vmem:[%s169 + $0x321] sm:$0xff] %vm90, %v5601
  %v5666 = vld [vmem:[#allocation2] sm:$0xff]
  %v5667 = vld [vmem:[#allocation2 + $0x8] sm:$0xff]
  %v5668 = vld [vmem:[#allocation2 + $0x18] sm:$0xff]
  %v5669 = vld [vmem:[#allocation2 + $0x20] sm:$0xff]
  %v5670 = vld [vmem:[#allocation2 + $0x30] sm:$0xff]
  %v5671 = vld [vmem:[#allocation2 + $0x38] sm:$0xff]
  %v5672 = vld [vmem:[#allocation2 + $0x48] sm:$0xff]
  %v5673 = vld [vmem:[#allocation2 + $0x50] sm:$0xff]
  %v5674 = vld [vmem:[#allocation2 + $0x60] sm:$0xff]
  %v5675 = vld [vmem:[#allocation2 + $0x68] sm:$0xff]
  %v5676 = vld [vmem:[#allocation2 + $0x78] sm:$0xff]
  %v5677 = vld [vmem:[#allocation2 + $0x80] sm:$0xff]
  %v5678 = vld [vmem:[#allocation2 + $0x90] sm:$0xff]
  %v5679 = vld [vmem:[#allocation2 + $0x98] sm:$0xff]
  %v5680 = vld [vmem:[#allocation2 + $0xa8] sm:$0xff]
  %v5681 = vld [vmem:[#allocation2 + $0xb0] sm:$0xff]
  %v5682 = vld [vmem:[#allocation2 + $0xc0] sm:$0xff]
  %v5683 = vld [vmem:[#allocation2 + $0xc8] sm:$0xff]
  %v5684 = vld [vmem:[#allocation2 + $0xd8] sm:$0xff]
  %v5685 = vld [vmem:[#allocation2 + $0xe0] sm:$0xff]
  %v5686 = vld [vmem:[#allocation2 + $0xf0] sm:$0xff]
  %v5687 = vld [vmem:[#allocation2 + $0xf8] sm:$0xff]
  %v5688 = vld [vmem:[#allocation2 + $0x108] sm:$0xff]
  %v5689 = vld [vmem:[#allocation2 + $0x110] sm:$0xff]
  %v5690 = vld [vmem:[#allocation2 + $0x120] sm:$0xff]
  %v5691 = vld [vmem:[#allocation2 + $0x128] sm:$0xff]
  %v5692 = vld [vmem:[#allocation2 + $0x138] sm:$0xff]
  %v5693 = vld [vmem:[#allocation2 + $0x140] sm:$0xff]
  %v5694 = vld [vmem:[#allocation2 + $0x150] sm:$0xff]
  %v5695 = vld [vmem:[#allocation2 + $0x158] sm:$0xff]
  %v5696 = vld [vmem:[#allocation2 + $0x168] sm:$0xff]
  %v5697 = vld [vmem:[#allocation2 + $0x170] sm:$0xff]
  %v5698 = vld [vmem:[#allocation2 + $0x180] sm:$0xff]
  %v5699 = vld [vmem:[#allocation2 + $0x188] sm:$0xff]
  %v5700 = vld [vmem:[#allocation2 + $0x198] sm:$0xff]
  %v5701 = vld [vmem:[#allocation2 + $0x1a0] sm:$0xff]
  %v5702 = vld [vmem:[#allocation2 + $0x1b0] sm:$0xff]
  %v5703 = vld [vmem:[#allocation2 + $0x1b8] sm:$0xff]
  %v5704 = vld [vmem:[#allocation2 + $0x1c8] sm:$0xff]
  %v5705 = vld [vmem:[#allocation2 + $0x1d0] sm:$0xff]
  %v5706 = vld [vmem:[#allocation2 + $0x1e0] sm:$0xff]
  %v5707 = vld [vmem:[#allocation2 + $0x1e8] sm:$0xff]
  %v5708 = vld [vmem:[#allocation2 + $0x1f8] sm:$0xff]
  %v5709 = vld [vmem:[#allocation2 + $0x200] sm:$0xff]
  %v5710 = vld [vmem:[#allocation2 + $0x210] sm:$0xff]
  %v5711 = vld [vmem:[#allocation2 + $0x218] sm:$0xff]
  %v5712 = vld [vmem:[#allocation2 + $0x228] sm:$0xff]
  %v5713 = vld [vmem:[#allocation2 + $0x230] sm:$0xff]
  %v5714 = vld [vmem:[#allocation2 + $0x240] sm:$0xff]
  %v5715 = vld [vmem:[#allocation2 + $0x248] sm:$0xff]
  %v5716 = vld [vmem:[#allocation2 + $0x258] sm:$0xff]
  %v5717 = vld [vmem:[#allocation2 + $0x260] sm:$0xff]
  %v5718 = vld [vmem:[#allocation2 + $0x270] sm:$0xff]
  %v5719 = vld [vmem:[#allocation2 + $0x278] sm:$0xff]
  %v5720 = vld [vmem:[#allocation2 + $0x288] sm:$0xff]
  %v5721 = vld [vmem:[#allocation2 + $0x290] sm:$0xff]
  %v5722 = vld [vmem:[#allocation2 + $0x2a0] sm:$0xff]
  %v5723 = vld [vmem:[#allocation2 + $0x2a8] sm:$0xff]
  %v5724 = vld [vmem:[#allocation2 + $0x2b8] sm:$0xff]
  %v5725 = vld [vmem:[#allocation2 + $0x2c0] sm:$0xff]
  %v5726 = vld [vmem:[#allocation2 + $0x2d0] sm:$0xff]
  %v5727 = vld [vmem:[#allocation2 + $0x2d8] sm:$0xff]
  %v5728 = vld [vmem:[#allocation2 + $0x2e8] sm:$0xff]
  %v5729 = vld [vmem:[#allocation2 + $0x2f0] sm:$0xff]
  %v5730 = vld [vmem:[#allocation2 + $0x300] sm:$0xff]
  %v5731 = vld [vmem:[#allocation2 + $0x308] sm:$0xff]
  %v5732 = vld [vmem:[#allocation2 + $0x318] sm:$0xff]
  %v5733 = vld [vmem:[#allocation2 + $0x320] sm:$0xff]
  %v5734 = vld [vmem:[#allocation2 + $0x330] sm:$0xff]
  %v5735 = vld [vmem:[#allocation2 + $0x338] sm:$0xff]
  %v5736 = vld [vmem:[#allocation2 + $0x348] sm:$0xff]
  %v5737 = vld [vmem:[#allocation2 + $0x350] sm:$0xff]
  %v5738 = vld [vmem:[%s2] sm:$0xf]
  %s5739 = scalar_lea.vmem %s2, 12
  %v5740 = vld [vmem:[%s5739] sm:$0xf]
  %v5742 = vsel %vm90, %v5668, 0
  %v5745 = vsel %vm90, %v5669, 0
  %v5748 = vsel %vm90, %v5670, 0
  %v5751 = vsel %vm90, %v5671, 0
  %v5754 = vsel %vm90, %v5672, 0
  %v5757 = vsel %vm90, %v5673, 0
  %v5760 = vsel %vm90, %v5674, 0
  %v5763 = vsel %vm90, %v5675, 0
  %v5766 = vsel %vm90, %v5676, 0
  %v5769 = vsel %vm90, %v5677, 0
  %v5772 = vsel %vm90, %v5678, 0
  %v5775 = vsel %vm90, %v5679, 0
  %v5778 = vsel %vm90, %v5680, 0
  %v5781 = vsel %vm90, %v5681, 0
  %v5784 = vsel %vm90, %v5682, 0
  %v5787 = vsel %vm90, %v5683, 0
  %v5790 = vsel %vm90, %v5684, 0
  %v5793 = vsel %vm90, %v5685, 0
  %v5796 = vsel %vm90, %v5686, 0
  %v5799 = vsel %vm90, %v5687, 0
  %v5802 = vsel %vm90, %v5688, 0
  %v5805 = vsel %vm90, %v5689, 0
  %v5808 = vsel %vm90, %v5690, 0
  %v5811 = vsel %vm90, %v5691, 0
  %v5814 = vsel %vm90, %v5692, 0
  %v5817 = vsel %vm90, %v5693, 0
  %v5820 = vsel %vm90, %v5694, 0
  %v5823 = vsel %vm90, %v5695, 0
  %v5826 = vsel %vm90, %v5696, 0
  %v5829 = vsel %vm90, %v5697, 0
  %v5832 = vsel %vm90, %v5698, 0
  %v5835 = vsel %vm90, %v5699, 0
  %v5838 = vsel %vm90, %v5704, 0
  %v5841 = vsel %vm90, %v5705, 0
  %v5844 = vsel %vm90, %v5706, 0
  %v5847 = vsel %vm90, %v5707, 0
  %v5850 = vsel %vm90, %v5708, 0
  %v5853 = vsel %vm90, %v5709, 0
  %v5856 = vsel %vm90, %v5710, 0
  %v5859 = vsel %vm90, %v5711, 0
  %v5862 = vsel %vm90, %v5712, 0
  %v5865 = vsel %vm90, %v5713, 0
  %v5868 = vsel %vm90, %v5714, 0
  %v5871 = vsel %vm90, %v5715, 0
  %v5874 = vsel %vm90, %v5716, 0
  %v5877 = vsel %vm90, %v5717, 0
  %v5880 = vsel %vm90, %v5718, 0
  %v5883 = vsel %vm90, %v5719, 0
  %v5886 = vsel %vm90, %v5720, 0
  %v5889 = vsel %vm90, %v5721, 0
  %v5892 = vsel %vm90, %v5722, 0
  %v5895 = vsel %vm90, %v5723, 0
  %v5898 = vsel %vm90, %v5724, 0
  %v5901 = vsel %vm90, %v5725, 0
  %v5904 = vsel %vm90, %v5726, 0
  %v5907 = vsel %vm90, %v5727, 0
  %v5910 = vsel %vm90, %v5728, 0
  %v5913 = vsel %vm90, %v5729, 0
  %v5916 = vsel %vm90, %v5730, 0
  %v5919 = vsel %vm90, %v5731, 0
  %v5922 = vsel %vm90, %v5732, 0
  %v5925 = vsel %vm90, %v5733, 0
  %v5928 = vsel %vm90, %v5734, 0
  %v5931 = vsel %vm90, %v5735, 0
  %v5934 = vsel %vm501, %v5740, 0
  %5936 = vmatprep.subr.mxu0 0.0
  %5937 = vmatpush1.msra.mxu0 %v5934
  %5938 = vmatprep.subr.mxu0 0.0
  %5939 = vmatpush1.msra.mxu0 0.0
  %5940 = vmatprep.subr.mxu0 0.0
  %5941 = vmatpush1.msra.mxu0 0.0
  %5942 = vmatprep.subr.mxu0 0.0
  %5943 = vmatpush1.msra.mxu0 0.0
  %5944 = vmatprep.subr.mxu0 0.0
  %5945 = vmatpush1.msra.mxu0 0.0
  %5946 = vmatprep.subr.mxu0 0.0
  %5947 = vmatpush1.msra.mxu0 0.0
  %5948 = vmatprep.subr.mxu0 0.0
  %5949 = vmatpush1.msra.mxu0 0.0
  %5950 = vmatprep.subr.mxu0 0.0
  %5951 = vmatpush1.msra.mxu0 0.0
  %5952 = vmatprep.subr.mxu0 0.0
  %5953 = vmatpush1.msra.mxu0 0.0
  %5954 = vmatprep.subr.mxu0 0.0
  %5955 = vmatpush1.msra.mxu0 0.0
  %5956 = vmatprep.subr.mxu0 0.0
  %5957 = vmatpush1.msra.mxu0 0.0
  %5958 = vmatprep.subr.mxu0 0.0
  %5959 = vmatpush1.msra.mxu0 0.0
  %5960 = vmatprep.subr.mxu0 0.0
  %5961 = vmatpush1.msra.mxu0 0.0
  %5962 = vmatprep.subr.mxu0 0.0
  %5963 = vmatpush1.msra.mxu0 0.0
  %5964 = vmatprep.subr.mxu0 0.0
  %5965 = vmatpush1.msra.mxu0 0.0
  %5966 = vmatprep.subr.mxu0 0.0
  %5967 = vmatpush1.msra.mxu0 0.0
  %5968 = vmatprep.subr.mxu0 0.0
  %5969 = vmatpush1.msra.mxu0 0.0
  %5970 = vmatprep.subr.mxu0 0.0
  %5971 = vmatpush1.msra.mxu0 0.0
  %5972 = vmatprep.subr.mxu0 0.0
  %5973 = vmatpush1.msra.mxu0 0.0
  %5974 = vmatprep.subr.mxu0 0.0
  %5975 = vmatpush1.msra.mxu0 0.0
  %5976 = vmatprep.subr.mxu0 0.0
  %5977 = vmatpush1.msra.mxu0 0.0
  %5978 = vmatprep.subr.mxu0 0.0
  %5979 = vmatpush1.msra.mxu0 0.0
  %5980 = vmatprep.subr.mxu0 0.0
  %5981 = vmatpush1.msra.mxu0 0.0
  %5982 = vmatprep.subr.mxu0 0.0
  %5983 = vmatpush1.msra.mxu0 0.0
  %5984 = vmatprep.subr.mxu0 0.0
  %5985 = vmatpush1.msra.mxu0 0.0
  %5986 = vmatprep.subr.mxu0 0.0
  %5987 = vmatpush1.msra.mxu0 0.0
  %5988 = vmatprep.subr.mxu0 0.0
  %5989 = vmatpush1.msra.mxu0 0.0
  %5990 = vmatprep.subr.mxu0 0.0
  %5991 = vmatpush1.msra.mxu0 0.0
  %5992 = vmatprep.subr.mxu0 0.0
  %5993 = vmatpush1.msra.mxu0 0.0
  %5994 = vmatprep.subr.mxu0 0.0
  %5995 = vmatpush1.msra.mxu0 0.0
  %5996 = vmatprep.subr.mxu0 0.0
  %5997 = vmatpush1.msra.mxu0 0.0
  %5998 = vmatprep.subr.mxu0 0.0
  %5999 = vmatpush1.msra.mxu0 0.0
  %6000 = vmatprep.mubr.f32.mxu0 0.0
  %6001 = vmatmul.mubr.f32.gmra.mrb[0].mxu0 %v5742
  %v6002 = vpop.f32.mrb[0].mxu0
  %v6003 = vadd.f32 0.0, %v6002
  %v6004 = vpop.f32.mrb[0].mxu0
  %6005 = vmatprep.mubr.f32.mxu0 0.0
  %6006 = vmatmul.mubr.f32.gmra.mrb[0].mxu0 %v5745
  %v6007 = vpop.f32.mrb[0].mxu0
  %v6008 = vadd.f32 0.0, %v6007
  %v6009 = vpop.f32.mrb[0].mxu0
  %6010 = vmatprep.mubr.f32.mxu0 0.0
  %6011 = vmatmul.mubr.f32.gmra.mrb[0].mxu0 %v5748
  %v6012 = vpop.f32.mrb[0].mxu0
  %v6013 = vadd.f32 0.0, %v6012
  %v6014 = vpop.f32.mrb[0].mxu0
  %6015 = vmatprep.mubr.f32.mxu0 0.0
  %6016 = vmatmul.mubr.f32.gmra.mrb[0].mxu0 %v5751
  %v6017 = vpop.f32.mrb[0].mxu0
  %v6018 = vadd.f32 0.0, %v6017
  %v6019 = vpop.f32.mrb[0].mxu0
  %6020 = vmatprep.mubr.f32.mxu0 0.0
  %6021 = vmatmul.mubr.f32.gmra.mrb[0].mxu0 %v5754
  %v6022 = vpop.f32.mrb[0].mxu0
  %v6023 = vadd.f32 0.0, %v6022
  %v6024 = vpop.f32.mrb[0].mxu0
  %6025 = vmatprep.mubr.f32.mxu0 0.0
  %6026 = vmatmul.mubr.f32.gmra.mrb[0].mxu0 %v5757
  %v6027 = vpop.f32.mrb[0].mxu0
  %v6028 = vadd.f32 0.0, %v6027
  %v6029 = vpop.f32.mrb[0].mxu0
  %6030 = vmatprep.mubr.f32.mxu0 0.0
  %6031 = vmatmul.mubr.f32.gmra.mrb[0].mxu0 %v5760
  %v6032 = vpop.f32.mrb[0].mxu0
  %v6033 = vadd.f32 0.0, %v6032
  %v6034 = vpop.f32.mrb[0].mxu0
  %6035 = vmatprep.mubr.f32.mxu0 0.0
  %6036 = vmatmul.mubr.f32.gmra.mrb[0].mxu0 %v5763
  %v6037 = vpop.f32.mrb[0].mxu0
  %v6038 = vadd.f32 0.0, %v6037
  %v6039 = vpop.f32.mrb[0].mxu0
  %6040 = vmatprep.mubr.f32.mxu0 0.0
  %6041 = vmatmul.mubr.f32.gmra.mrb[0].mxu0 %v5766
  %v6042 = vpop.f32.mrb[0].mxu0
  %v6043 = vadd.f32 0.0, %v6042
  %v6044 = vpop.f32.mrb[0].mxu0
  %6045 = vmatprep.mubr.f32.mxu0 0.0
  %6046 = vmatmul.mubr.f32.gmra.mrb[0].mxu0 %v5769
  %v6047 = vpop.f32.mrb[0].mxu0
  %v6048 = vadd.f32 0.0, %v6047
  %v6049 = vpop.f32.mrb[0].mxu0
  %6050 = vmatprep.mubr.f32.mxu0 0.0
  %6051 = vmatmul.mubr.f32.gmra.mrb[0].mxu0 %v5772
  %v6052 = vpop.f32.mrb[0].mxu0
  %v6053 = vadd.f32 0.0, %v6052
  %v6054 = vpop.f32.mrb[0].mxu0
  %6055 = vmatprep.mubr.f32.mxu0 0.0
  %6056 = vmatmul.mubr.f32.gmra.mrb[0].mxu0 %v5775
  %v6057 = vpop.f32.mrb[0].mxu0
  %v6058 = vadd.f32 0.0, %v6057
  %v6059 = vpop.f32.mrb[0].mxu0
  %6060 = vmatprep.mubr.f32.mxu0 0.0
  %6061 = vmatmul.mubr.f32.gmra.mrb[0].mxu0 %v5778
  %v6062 = vpop.f32.mrb[0].mxu0
  %v6063 = vadd.f32 0.0, %v6062
  %v6064 = vpop.f32.mrb[0].mxu0
  %6065 = vmatprep.mubr.f32.mxu0 0.0
  %6066 = vmatmul.mubr.f32.gmra.mrb[0].mxu0 %v5781
  %v6067 = vpop.f32.mrb[0].mxu0
  %v6068 = vadd.f32 0.0, %v6067
  %v6069 = vpop.f32.mrb[0].mxu0
  %6070 = vmatprep.mubr.f32.mxu0 0.0
  %6071 = vmatmul.mubr.f32.gmra.mrb[0].mxu0 %v5784
  %v6072 = vpop.f32.mrb[0].mxu0
  %v6073 = vadd.f32 0.0, %v6072
  %v6074 = vpop.f32.mrb[0].mxu0
  %6075 = vmatprep.mubr.f32.mxu0 0.0
  %6076 = vmatmul.mubr.f32.gmra.mrb[0].mxu0 %v5787
  %v6077 = vpop.f32.mrb[0].mxu0
  %v6078 = vadd.f32 0.0, %v6077
  %v6079 = vpop.f32.mrb[0].mxu0
  %6080 = vmatprep.mubr.f32.mxu0 0.0
  %6081 = vmatmul.mubr.f32.gmra.mrb[0].mxu0 %v5790
  %v6082 = vpop.f32.mrb[0].mxu0
  %v6083 = vadd.f32 0.0, %v6082
  %v6084 = vpop.f32.mrb[0].mxu0
  %6085 = vmatprep.mubr.f32.mxu0 0.0
  %6086 = vmatmul.mubr.f32.gmra.mrb[0].mxu0 %v5793
  %v6087 = vpop.f32.mrb[0].mxu0
  %v6088 = vadd.f32 0.0, %v6087
  %v6089 = vpop.f32.mrb[0].mxu0
  %6090 = vmatprep.mubr.f32.mxu0 0.0
  %6091 = vmatmul.mubr.f32.gmra.mrb[0].mxu0 %v5796
  %v6092 = vpop.f32.mrb[0].mxu0
  %v6093 = vadd.f32 0.0, %v6092
  %v6094 = vpop.f32.mrb[0].mxu0
  %6095 = vmatprep.mubr.f32.mxu0 0.0
  %6096 = vmatmul.mubr.f32.gmra.mrb[0].mxu0 %v5799
  %v6097 = vpop.f32.mrb[0].mxu0
  %v6098 = vadd.f32 0.0, %v6097
  %v6099 = vpop.f32.mrb[0].mxu0
  %6100 = vmatprep.mubr.f32.mxu0 0.0
  %6101 = vmatmul.mubr.f32.gmra.mrb[0].mxu0 %v5802
  %v6102 = vpop.f32.mrb[0].mxu0
  %v6103 = vadd.f32 0.0, %v6102
  %v6104 = vpop.f32.mrb[0].mxu0
  %6105 = vmatprep.mubr.f32.mxu0 0.0
  %6106 = vmatmul.mubr.f32.gmra.mrb[0].mxu0 %v5805
  %v6107 = vpop.f32.mrb[0].mxu0
  %v6108 = vadd.f32 0.0, %v6107
  %v6109 = vpop.f32.mrb[0].mxu0
  %6110 = vmatprep.mubr.f32.mxu0 0.0
  %6111 = vmatmul.mubr.f32.gmra.mrb[0].mxu0 %v5808
  %v6112 = vpop.f32.mrb[0].mxu0
  %v6113 = vadd.f32 0.0, %v6112
  %v6114 = vpop.f32.mrb[0].mxu0
  %6115 = vmatprep.mubr.f32.mxu0 0.0
  %6116 = vmatmul.mubr.f32.gmra.mrb[0].mxu0 %v5811
  %v6117 = vpop.f32.mrb[0].mxu0
  %v6118 = vadd.f32 0.0, %v6117
  %v6119 = vpop.f32.mrb[0].mxu0
  %6120 = vmatprep.mubr.f32.mxu0 0.0
  %6121 = vmatmul.mubr.f32.gmra.mrb[0].mxu0 %v5814
  %v6122 = vpop.f32.mrb[0].mxu0
  %v6123 = vadd.f32 0.0, %v6122
  %v6124 = vpop.f32.mrb[0].mxu0
  %6125 = vmatprep.mubr.f32.mxu0 0.0
  %6126 = vmatmul.mubr.f32.gmra.mrb[0].mxu0 %v5817
  %v6127 = vpop.f32.mrb[0].mxu0
  %v6128 = vadd.f32 0.0, %v6127
  %v6129 = vpop.f32.mrb[0].mxu0
  %6130 = vmatprep.mubr.f32.mxu0 0.0
  %6131 = vmatmul.mubr.f32.gmra.mrb[0].mxu0 %v5820
  %v6132 = vpop.f32.mrb[0].mxu0
  %v6133 = vadd.f32 0.0, %v6132
  %v6134 = vpop.f32.mrb[0].mxu0
  %6135 = vmatprep.mubr.f32.mxu0 0.0
  %6136 = vmatmul.mubr.f32.gmra.mrb[0].mxu0 %v5823
  %v6137 = vpop.f32.mrb[0].mxu0
  %v6138 = vadd.f32 0.0, %v6137
  %v6139 = vpop.f32.mrb[0].mxu0
  %6140 = vmatprep.mubr.f32.mxu0 0.0
  %6141 = vmatmul.mubr.f32.gmra.mrb[0].mxu0 %v5826
  %v6142 = vpop.f32.mrb[0].mxu0
  %v6143 = vadd.f32 0.0, %v6142
  %v6144 = vpop.f32.mrb[0].mxu0
  %6145 = vmatprep.mubr.f32.mxu0 0.0
  %6146 = vmatmul.mubr.f32.gmra.mrb[0].mxu0 %v5829
  %v6147 = vpop.f32.mrb[0].mxu0
  %v6148 = vadd.f32 0.0, %v6147
  %v6149 = vpop.f32.mrb[0].mxu0
  %6150 = vmatprep.mubr.f32.mxu0 0.0
  %6151 = vmatmul.mubr.f32.gmra.mrb[0].mxu0 %v5832
  %v6152 = vpop.f32.mrb[0].mxu0
  %v6153 = vadd.f32 0.0, %v6152
  %v6154 = vpop.f32.mrb[0].mxu0
  %6155 = vmatprep.mubr.f32.mxu0 0.0
  %6156 = vmatmul.mubr.f32.gmra.mrb[0].mxu0 %v5835
  %v6157 = vpop.f32.mrb[0].mxu0
  %v6158 = vadd.f32 0.0, %v6157
  %v6159 = vpop.f32.mrb[0].mxu0
  %6160 = vmatprep.mubr.f32.mxu0 0.0
  %6161 = vmatmul.mubr.f32.gmra.mrb[0].mxu0 %v5838
  %v6162 = vpop.f32.mrb[0].mxu0
  %v6163 = vadd.f32 0.0, %v6162
  %v6164 = vpop.f32.mrb[0].mxu0
  %6165 = vmatprep.mubr.f32.mxu0 0.0
  %6166 = vmatmul.mubr.f32.gmra.mrb[0].mxu0 %v5841
  %v6167 = vpop.f32.mrb[0].mxu0
  %v6168 = vadd.f32 0.0, %v6167
  %v6169 = vpop.f32.mrb[0].mxu0
  %6170 = vmatprep.mubr.f32.mxu0 0.0
  %6171 = vmatmul.mubr.f32.gmra.mrb[0].mxu0 %v5844
  %v6172 = vpop.f32.mrb[0].mxu0
  %v6173 = vadd.f32 0.0, %v6172
  %v6174 = vpop.f32.mrb[0].mxu0
  %6175 = vmatprep.mubr.f32.mxu0 0.0
  %6176 = vmatmul.mubr.f32.gmra.mrb[0].mxu0 %v5847
  %v6177 = vpop.f32.mrb[0].mxu0
  %v6178 = vadd.f32 0.0, %v6177
  %v6179 = vpop.f32.mrb[0].mxu0
  %6180 = vmatprep.mubr.f32.mxu0 0.0
  %6181 = vmatmul.mubr.f32.gmra.mrb[0].mxu0 %v5850
  %v6182 = vpop.f32.mrb[0].mxu0
  %v6183 = vadd.f32 0.0, %v6182
  %v6184 = vpop.f32.mrb[0].mxu0
  %6185 = vmatprep.mubr.f32.mxu0 0.0
  %6186 = vmatmul.mubr.f32.gmra.mrb[0].mxu0 %v5853
  %v6187 = vpop.f32.mrb[0].mxu0
  %v6188 = vadd.f32 0.0, %v6187
  %v6189 = vpop.f32.mrb[0].mxu0
  %6190 = vmatprep.mubr.f32.mxu0 0.0
  %6191 = vmatmul.mubr.f32.gmra.mrb[0].mxu0 %v5856
  %v6192 = vpop.f32.mrb[0].mxu0
  %v6193 = vadd.f32 0.0, %v6192
  %v6194 = vpop.f32.mrb[0].mxu0
  %6195 = vmatprep.mubr.f32.mxu0 0.0
  %6196 = vmatmul.mubr.f32.gmra.mrb[0].mxu0 %v5859
  %v6197 = vpop.f32.mrb[0].mxu0
  %v6198 = vadd.f32 0.0, %v6197
  %v6199 = vpop.f32.mrb[0].mxu0
  %6200 = vmatprep.mubr.f32.mxu0 0.0
  %6201 = vmatmul.mubr.f32.gmra.mrb[0].mxu0 %v5862
  %v6202 = vpop.f32.mrb[0].mxu0
  %v6203 = vadd.f32 0.0, %v6202
  %v6204 = vpop.f32.mrb[0].mxu0
  %6205 = vmatprep.mubr.f32.mxu0 0.0
  %6206 = vmatmul.mubr.f32.gmra.mrb[0].mxu0 %v5865
  %v6207 = vpop.f32.mrb[0].mxu0
  %v6208 = vadd.f32 0.0, %v6207
  %v6209 = vpop.f32.mrb[0].mxu0
  %6210 = vmatprep.mubr.f32.mxu0 0.0
  %6211 = vmatmul.mubr.f32.gmra.mrb[0].mxu0 %v5868
  %v6212 = vpop.f32.mrb[0].mxu0
  %v6213 = vadd.f32 0.0, %v6212
  %v6214 = vpop.f32.mrb[0].mxu0
  %6215 = vmatprep.mubr.f32.mxu0 0.0
  %6216 = vmatmul.mubr.f32.gmra.mrb[0].mxu0 %v5871
  %v6217 = vpop.f32.mrb[0].mxu0
  %v6218 = vadd.f32 0.0, %v6217
  %v6219 = vpop.f32.mrb[0].mxu0
  %6220 = vmatprep.mubr.f32.mxu0 0.0
  %6221 = vmatmul.mubr.f32.gmra.mrb[0].mxu0 %v5874
  %v6222 = vpop.f32.mrb[0].mxu0
  %v6223 = vadd.f32 0.0, %v6222
  %v6224 = vpop.f32.mrb[0].mxu0
  %6225 = vmatprep.mubr.f32.mxu0 0.0
  %6226 = vmatmul.mubr.f32.gmra.mrb[0].mxu0 %v5877
  %v6227 = vpop.f32.mrb[0].mxu0
  %v6228 = vadd.f32 0.0, %v6227
  %v6229 = vpop.f32.mrb[0].mxu0
  %6230 = vmatprep.mubr.f32.mxu0 0.0
  %6231 = vmatmul.mubr.f32.gmra.mrb[0].mxu0 %v5880
  %v6232 = vpop.f32.mrb[0].mxu0
  %v6233 = vadd.f32 0.0, %v6232
  %v6234 = vpop.f32.mrb[0].mxu0
  %6235 = vmatprep.mubr.f32.mxu0 0.0
  %6236 = vmatmul.mubr.f32.gmra.mrb[0].mxu0 %v5883
  %v6237 = vpop.f32.mrb[0].mxu0
  %v6238 = vadd.f32 0.0, %v6237
  %v6239 = vpop.f32.mrb[0].mxu0
  %6240 = vmatprep.mubr.f32.mxu0 0.0
  %6241 = vmatmul.mubr.f32.gmra.mrb[0].mxu0 %v5886
  %v6242 = vpop.f32.mrb[0].mxu0
  %v6243 = vadd.f32 0.0, %v6242
  %v6244 = vpop.f32.mrb[0].mxu0
  %6245 = vmatprep.mubr.f32.mxu0 0.0
  %6246 = vmatmul.mubr.f32.gmra.mrb[0].mxu0 %v5889
  %v6247 = vpop.f32.mrb[0].mxu0
  %v6248 = vadd.f32 0.0, %v6247
  %v6249 = vpop.f32.mrb[0].mxu0
  %6250 = vmatprep.mubr.f32.mxu0 0.0
  %6251 = vmatmul.mubr.f32.gmra.mrb[0].mxu0 %v5892
  %v6252 = vpop.f32.mrb[0].mxu0
  %v6253 = vadd.f32 0.0, %v6252
  %v6254 = vpop.f32.mrb[0].mxu0
  %6255 = vmatprep.mubr.f32.mxu0 0.0
  %6256 = vmatmul.mubr.f32.gmra.mrb[0].mxu0 %v5895
  %v6257 = vpop.f32.mrb[0].mxu0
  %v6258 = vadd.f32 0.0, %v6257
  %v6259 = vpop.f32.mrb[0].mxu0
  %6260 = vmatprep.mubr.f32.mxu0 0.0
  %6261 = vmatmul.mubr.f32.gmra.mrb[0].mxu0 %v5898
  %v6262 = vpop.f32.mrb[0].mxu0
  %v6263 = vadd.f32 0.0, %v6262
  %v6264 = vpop.f32.mrb[0].mxu0
  %6265 = vmatprep.mubr.f32.mxu0 0.0
  %6266 = vmatmul.mubr.f32.gmra.mrb[0].mxu0 %v5901
  %v6267 = vpop.f32.mrb[0].mxu0
  %v6268 = vadd.f32 0.0, %v6267
  %v6269 = vpop.f32.mrb[0].mxu0
  %6270 = vmatprep.mubr.f32.mxu0 0.0
  %6271 = vmatmul.mubr.f32.gmra.mrb[0].mxu0 %v5904
  %v6272 = vpop.f32.mrb[0].mxu0
  %v6273 = vadd.f32 0.0, %v6272
  %v6274 = vpop.f32.mrb[0].mxu0
  %6275 = vmatprep.mubr.f32.mxu0 0.0
  %6276 = vmatmul.mubr.f32.gmra.mrb[0].mxu0 %v5907
  %v6277 = vpop.f32.mrb[0].mxu0
  %v6278 = vadd.f32 0.0, %v6277
  %v6279 = vpop.f32.mrb[0].mxu0
  %6280 = vmatprep.mubr.f32.mxu0 0.0
  %6281 = vmatmul.mubr.f32.gmra.mrb[0].mxu0 %v5910
  %v6282 = vpop.f32.mrb[0].mxu0
  %v6283 = vadd.f32 0.0, %v6282
  %v6284 = vpop.f32.mrb[0].mxu0
  %6285 = vmatprep.mubr.f32.mxu0 0.0
  %6286 = vmatmul.mubr.f32.gmra.mrb[0].mxu0 %v5913
  %v6287 = vpop.f32.mrb[0].mxu0
  %v6288 = vadd.f32 0.0, %v6287
  %v6289 = vpop.f32.mrb[0].mxu0
  %6290 = vmatprep.mubr.f32.mxu0 0.0
  %6291 = vmatmul.mubr.f32.gmra.mrb[0].mxu0 %v5916
  %v6292 = vpop.f32.mrb[0].mxu0
  %v6293 = vadd.f32 0.0, %v6292
  %v6294 = vpop.f32.mrb[0].mxu0
  %6295 = vmatprep.mubr.f32.mxu0 0.0
  %6296 = vmatmul.mubr.f32.gmra.mrb[0].mxu0 %v5919
  %v6297 = vpop.f32.mrb[0].mxu0
  %v6298 = vadd.f32 0.0, %v6297
  %v6299 = vpop.f32.mrb[0].mxu0
  %6300 = vmatprep.mubr.f32.mxu0 0.0
  %6301 = vmatmul.mubr.f32.gmra.mrb[0].mxu0 %v5922
  %v6302 = vpop.f32.mrb[0].mxu0
  %v6303 = vadd.f32 0.0, %v6302
  %v6304 = vpop.f32.mrb[0].mxu0
  %6305 = vmatprep.mubr.f32.mxu0 0.0
  %6306 = vmatmul.mubr.f32.gmra.mrb[0].mxu0 %v5925
  %v6307 = vpop.f32.mrb[0].mxu0
  %v6308 = vadd.f32 0.0, %v6307
  %v6309 = vpop.f32.mrb[0].mxu0
  %6310 = vmatprep.mubr.f32.mxu0 0.0
  %6311 = vmatmul.mubr.f32.gmra.mrb[0].mxu0 %v5928
  %v6312 = vpop.f32.mrb[0].mxu0
  %v6313 = vadd.f32 0.0, %v6312
  %v6314 = vpop.f32.mrb[0].mxu0
  %6315 = vmatprep.mubr.f32.mxu0 0.0
  %6316 = vmatmul.mubr.f32.gmra.mrb[0].mxu0 %v5931
  %v6317 = vpop.f32.mrb[0].mxu0
  %v6318 = vadd.f32 0.0, %v6317
  %v6319 = vpop.f32.mrb[0].mxu0
  %6320 = vdwg.mxu0
  %v6322 = vsel %vm90, %v5666, 0
  %v6325 = vsel %vm90, %v5667, 0
  %v6328 = vsel %vm90, %v5702, 0
  %v6331 = vsel %vm90, %v5703, 0
  %v6334 = vsel %vm501, %v5738, 0
  %6336 = vmatprep.subr.mxu0 0.0
  %6337 = vmatpush1.msra.mxu0 %v6334
  %6338 = vmatprep.subr.mxu0 0.0
  %6339 = vmatpush1.msra.mxu0 0.0
  %6340 = vmatprep.subr.mxu0 0.0
  %6341 = vmatpush1.msra.mxu0 0.0
  %6342 = vmatprep.subr.mxu0 0.0
  %6343 = vmatpush1.msra.mxu0 0.0
  %6344 = vmatprep.subr.mxu0 0.0
  %6345 = vmatpush1.msra.mxu0 0.0
  %6346 = vmatprep.subr.mxu0 0.0
  %6347 = vmatpush1.msra.mxu0 0.0
  %6348 = vmatprep.subr.mxu0 0.0
  %6349 = vmatpush1.msra.mxu0 0.0
  %6350 = vmatprep.subr.mxu0 0.0
  %6351 = vmatpush1.msra.mxu0 0.0
  %6352 = vmatprep.subr.mxu0 0.0
  %6353 = vmatpush1.msra.mxu0 0.0
  %6354 = vmatprep.subr.mxu0 0.0
  %6355 = vmatpush1.msra.mxu0 0.0
  %6356 = vmatprep.subr.mxu0 0.0
  %6357 = vmatpush1.msra.mxu0 0.0
  %6358 = vmatprep.subr.mxu0 0.0
  %6359 = vmatpush1.msra.mxu0 0.0
  %6360 = vmatprep.subr.mxu0 0.0
  %6361 = vmatpush1.msra.mxu0 0.0
  %6362 = vmatprep.subr.mxu0 0.0
  %6363 = vmatpush1.msra.mxu0 0.0
  %6364 = vmatprep.subr.mxu0 0.0
  %6365 = vmatpush1.msra.mxu0 0.0
  %6366 = vmatprep.subr.mxu0 0.0
  %6367 = vmatpush1.msra.mxu0 0.0
  %6368 = vmatprep.subr.mxu0 0.0
  %6369 = vmatpush1.msra.mxu0 0.0
  %6370 = vmatprep.subr.mxu0 0.0
  %6371 = vmatpush1.msra.mxu0 0.0
  %6372 = vmatprep.subr.mxu0 0.0
  %6373 = vmatpush1.msra.mxu0 0.0
  %6374 = vmatprep.subr.mxu0 0.0
  %6375 = vmatpush1.msra.mxu0 0.0
  %6376 = vmatprep.subr.mxu0 0.0
  %6377 = vmatpush1.msra.mxu0 0.0
  %6378 = vmatprep.subr.mxu0 0.0
  %6379 = vmatpush1.msra.mxu0 0.0
  %6380 = vmatprep.subr.mxu0 0.0
  %6381 = vmatpush1.msra.mxu0 0.0
  %6382 = vmatprep.subr.mxu0 0.0
  %6383 = vmatpush1.msra.mxu0 0.0
  %6384 = vmatprep.subr.mxu0 0.0
  %6385 = vmatpush1.msra.mxu0 0.0
  %6386 = vmatprep.subr.mxu0 0.0
  %6387 = vmatpush1.msra.mxu0 0.0
  %6388 = vmatprep.subr.mxu0 0.0
  %6389 = vmatpush1.msra.mxu0 0.0
  %6390 = vmatprep.subr.mxu0 0.0
  %6391 = vmatpush1.msra.mxu0 0.0
  %6392 = vmatprep.subr.mxu0 0.0
  %6393 = vmatpush1.msra.mxu0 0.0
  %6394 = vmatprep.subr.mxu0 0.0
  %6395 = vmatpush1.msra.mxu0 0.0
  %6396 = vmatprep.subr.mxu0 0.0
  %6397 = vmatpush1.msra.mxu0 0.0
  %6398 = vmatprep.subr.mxu0 0.0
  %6399 = vmatpush1.msra.mxu0 0.0
  %6400 = vmatprep.mubr.f32.mxu0 0.0
  %6401 = vmatmul.mubr.f32.gmra.mrb[0].mxu0 %v6322
  %v6402 = vpop.f32.mrb[0].mxu0
  %v6403 = vadd.f32 %v6003, %v6402
  %v6404 = vpop.f32.mrb[0].mxu0
  %6405 = vmatprep.mubr.f32.mxu0 0.0
  %6406 = vmatmul.mubr.f32.gmra.mrb[0].mxu0 %v6325
  %v6407 = vpop.f32.mrb[0].mxu0
  %v6408 = vadd.f32 %v6008, %v6407
  %v6409 = vpop.f32.mrb[0].mxu0
  %6410 = vmatprep.mubr.f32.mxu0 0.0
  %6411 = vmatmul.mubr.f32.gmra.mrb[0].mxu0 %v5742
  %v6412 = vpop.f32.mrb[0].mxu0
  %v6413 = vadd.f32 %v6013, %v6412
  %v6414 = vpop.f32.mrb[0].mxu0
  %6415 = vmatprep.mubr.f32.mxu0 0.0
  %6416 = vmatmul.mubr.f32.gmra.mrb[0].mxu0 %v5745
  %v6417 = vpop.f32.mrb[0].mxu0
  %v6418 = vadd.f32 %v6018, %v6417
  %v6419 = vpop.f32.mrb[0].mxu0
  %6420 = vmatprep.mubr.f32.mxu0 0.0
  %6421 = vmatmul.mubr.f32.gmra.mrb[0].mxu0 %v5748
  %v6422 = vpop.f32.mrb[0].mxu0
  %v6423 = vadd.f32 %v6023, %v6422
  %v6424 = vpop.f32.mrb[0].mxu0
  %6425 = vmatprep.mubr.f32.mxu0 0.0
  %6426 = vmatmul.mubr.f32.gmra.mrb[0].mxu0 %v5751
  %v6427 = vpop.f32.mrb[0].mxu0
  %v6428 = vadd.f32 %v6028, %v6427
  %v6429 = vpop.f32.mrb[0].mxu0
  %6430 = vmatprep.mubr.f32.mxu0 0.0
  %6431 = vmatmul.mubr.f32.gmra.mrb[0].mxu0 %v5754
  %v6432 = vpop.f32.mrb[0].mxu0
  %v6433 = vadd.f32 %v6033, %v6432
  %v6434 = vpop.f32.mrb[0].mxu0
  %6435 = vmatprep.mubr.f32.mxu0 0.0
  %6436 = vmatmul.mubr.f32.gmra.mrb[0].mxu0 %v5757
  %v6437 = vpop.f32.mrb[0].mxu0
  %v6438 = vadd.f32 %v6038, %v6437
  %v6439 = vpop.f32.mrb[0].mxu0
  %6440 = vmatprep.mubr.f32.mxu0 0.0
  %6441 = vmatmul.mubr.f32.gmra.mrb[0].mxu0 %v5760
  %v6442 = vpop.f32.mrb[0].mxu0
  %v6443 = vadd.f32 %v6043, %v6442
  %v6444 = vpop.f32.mrb[0].mxu0
  %6445 = vmatprep.mubr.f32.mxu0 0.0
  %6446 = vmatmul.mubr.f32.gmra.mrb[0].mxu0 %v5763
  %v6447 = vpop.f32.mrb[0].mxu0
  %v6448 = vadd.f32 %v6048, %v6447
  %v6449 = vpop.f32.mrb[0].mxu0
  %6450 = vmatprep.mubr.f32.mxu0 0.0
  %6451 = vmatmul.mubr.f32.gmra.mrb[0].mxu0 %v5766
  %v6452 = vpop.f32.mrb[0].mxu0
  %v6453 = vadd.f32 %v6053, %v6452
  %v6454 = vpop.f32.mrb[0].mxu0
  %6455 = vmatprep.mubr.f32.mxu0 0.0
  %6456 = vmatmul.mubr.f32.gmra.mrb[0].mxu0 %v5769
  %v6457 = vpop.f32.mrb[0].mxu0
  %v6458 = vadd.f32 %v6058, %v6457
  %v6459 = vpop.f32.mrb[0].mxu0
  %6460 = vmatprep.mubr.f32.mxu0 0.0
  %6461 = vmatmul.mubr.f32.gmra.mrb[0].mxu0 %v5772
  %v6462 = vpop.f32.mrb[0].mxu0
  %v6463 = vadd.f32 %v6063, %v6462
  %v6464 = vpop.f32.mrb[0].mxu0
  %6465 = vmatprep.mubr.f32.mxu0 0.0
  %6466 = vmatmul.mubr.f32.gmra.mrb[0].mxu0 %v5775
  %v6467 = vpop.f32.mrb[0].mxu0
  %v6468 = vadd.f32 %v6068, %v6467
  %v6469 = vpop.f32.mrb[0].mxu0
  %6470 = vmatprep.mubr.f32.mxu0 0.0
  %6471 = vmatmul.mubr.f32.gmra.mrb[0].mxu0 %v5778
  %v6472 = vpop.f32.mrb[0].mxu0
  %v6473 = vadd.f32 %v6073, %v6472
  %v6474 = vpop.f32.mrb[0].mxu0
  %6475 = vmatprep.mubr.f32.mxu0 0.0
  %6476 = vmatmul.mubr.f32.gmra.mrb[0].mxu0 %v5781
  %v6477 = vpop.f32.mrb[0].mxu0
  %v6478 = vadd.f32 %v6078, %v6477
  %v6479 = vpop.f32.mrb[0].mxu0
  %6480 = vmatprep.mubr.f32.mxu0 0.0
  %6481 = vmatmul.mubr.f32.gmra.mrb[0].mxu0 %v5784
  %v6482 = vpop.f32.mrb[0].mxu0
  %v6483 = vadd.f32 %v6083, %v6482
  %v6484 = vpop.f32.mrb[0].mxu0
  %6485 = vmatprep.mubr.f32.mxu0 0.0
  %6486 = vmatmul.mubr.f32.gmra.mrb[0].mxu0 %v5787
  %v6487 = vpop.f32.mrb[0].mxu0
  %v6488 = vadd.f32 %v6088, %v6487
  %v6489 = vpop.f32.mrb[0].mxu0
  %6490 = vmatprep.mubr.f32.mxu0 0.0
  %6491 = vmatmul.mubr.f32.gmra.mrb[0].mxu0 %v5790
  %v6492 = vpop.f32.mrb[0].mxu0
  %v6493 = vadd.f32 %v6093, %v6492
  %v6494 = vpop.f32.mrb[0].mxu0
  %6495 = vmatprep.mubr.f32.mxu0 0.0
  %6496 = vmatmul.mubr.f32.gmra.mrb[0].mxu0 %v5793
  %v6497 = vpop.f32.mrb[0].mxu0
  %v6498 = vadd.f32 %v6098, %v6497
  %v6499 = vpop.f32.mrb[0].mxu0
  %6500 = vmatprep.mubr.f32.mxu0 0.0
  %6501 = vmatmul.mubr.f32.gmra.mrb[0].mxu0 %v5796
  %v6502 = vpop.f32.mrb[0].mxu0
  %v6503 = vadd.f32 %v6103, %v6502
  %v6504 = vpop.f32.mrb[0].mxu0
  %6505 = vmatprep.mubr.f32.mxu0 0.0
  %6506 = vmatmul.mubr.f32.gmra.mrb[0].mxu0 %v5799
  %v6507 = vpop.f32.mrb[0].mxu0
  %v6508 = vadd.f32 %v6108, %v6507
  %v6509 = vpop.f32.mrb[0].mxu0
  %6510 = vmatprep.mubr.f32.mxu0 0.0
  %6511 = vmatmul.mubr.f32.gmra.mrb[0].mxu0 %v5802
  %v6512 = vpop.f32.mrb[0].mxu0
  %v6513 = vadd.f32 %v6113, %v6512
  %v6514 = vpop.f32.mrb[0].mxu0
  %6515 = vmatprep.mubr.f32.mxu0 0.0
  %6516 = vmatmul.mubr.f32.gmra.mrb[0].mxu0 %v5805
  %v6517 = vpop.f32.mrb[0].mxu0
  %v6518 = vadd.f32 %v6118, %v6517
  %v6519 = vpop.f32.mrb[0].mxu0
  %6520 = vmatprep.mubr.f32.mxu0 0.0
  %6521 = vmatmul.mubr.f32.gmra.mrb[0].mxu0 %v5808
  %v6522 = vpop.f32.mrb[0].mxu0
  %v6523 = vadd.f32 %v6123, %v6522
  %v6524 = vpop.f32.mrb[0].mxu0
  %6525 = vmatprep.mubr.f32.mxu0 0.0
  %6526 = vmatmul.mubr.f32.gmra.mrb[0].mxu0 %v5811
  %v6527 = vpop.f32.mrb[0].mxu0
  %v6528 = vadd.f32 %v6128, %v6527
  %v6529 = vpop.f32.mrb[0].mxu0
  %6530 = vmatprep.mubr.f32.mxu0 0.0
  %6531 = vmatmul.mubr.f32.gmra.mrb[0].mxu0 %v5814
  %v6532 = vpop.f32.mrb[0].mxu0
  %v6533 = vadd.f32 %v6133, %v6532
  %v6534 = vpop.f32.mrb[0].mxu0
  %6535 = vmatprep.mubr.f32.mxu0 0.0
  %6536 = vmatmul.mubr.f32.gmra.mrb[0].mxu0 %v5817
  %v6537 = vpop.f32.mrb[0].mxu0
  %v6538 = vadd.f32 %v6138, %v6537
  %v6539 = vpop.f32.mrb[0].mxu0
  %6540 = vmatprep.mubr.f32.mxu0 0.0
  %6541 = vmatmul.mubr.f32.gmra.mrb[0].mxu0 %v5820
  %v6542 = vpop.f32.mrb[0].mxu0
  %v6543 = vadd.f32 %v6143, %v6542
  %v6544 = vpop.f32.mrb[0].mxu0
  %6545 = vmatprep.mubr.f32.mxu0 0.0
  %6546 = vmatmul.mubr.f32.gmra.mrb[0].mxu0 %v5823
  %v6547 = vpop.f32.mrb[0].mxu0
  %v6548 = vadd.f32 %v6148, %v6547
  %v6549 = vpop.f32.mrb[0].mxu0
  %6550 = vmatprep.mubr.f32.mxu0 0.0
  %6551 = vmatmul.mubr.f32.gmra.mrb[0].mxu0 %v5826
  %v6552 = vpop.f32.mrb[0].mxu0
  %v6553 = vadd.f32 %v6153, %v6552
  %v6554 = vpop.f32.mrb[0].mxu0
  %6555 = vmatprep.mubr.f32.mxu0 0.0
  %6556 = vmatmul.mubr.f32.gmra.mrb[0].mxu0 %v5829
  %v6557 = vpop.f32.mrb[0].mxu0
  %v6558 = vadd.f32 %v6158, %v6557
  %v6559 = vpop.f32.mrb[0].mxu0
  %6560 = vmatprep.mubr.f32.mxu0 0.0
  %6561 = vmatmul.mubr.f32.gmra.mrb[0].mxu0 %v6328
  %v6562 = vpop.f32.mrb[0].mxu0
  %v6563 = vadd.f32 %v6163, %v6562
  %v6564 = vpop.f32.mrb[0].mxu0
  %6565 = vmatprep.mubr.f32.mxu0 0.0
  %6566 = vmatmul.mubr.f32.gmra.mrb[0].mxu0 %v6331
  %v6567 = vpop.f32.mrb[0].mxu0
  %v6568 = vadd.f32 %v6168, %v6567
  %v6569 = vpop.f32.mrb[0].mxu0
  %6570 = vmatprep.mubr.f32.mxu0 0.0
  %6571 = vmatmul.mubr.f32.gmra.mrb[0].mxu0 %v5838
  %v6572 = vpop.f32.mrb[0].mxu0
  %v6573 = vadd.f32 %v6173, %v6572
  %v6574 = vpop.f32.mrb[0].mxu0
  %6575 = vmatprep.mubr.f32.mxu0 0.0
  %6576 = vmatmul.mubr.f32.gmra.mrb[0].mxu0 %v5841
  %v6577 = vpop.f32.mrb[0].mxu0
  %v6578 = vadd.f32 %v6178, %v6577
  %v6579 = vpop.f32.mrb[0].mxu0
  %6580 = vmatprep.mubr.f32.mxu0 0.0
  %6581 = vmatmul.mubr.f32.gmra.mrb[0].mxu0 %v5844
  %v6582 = vpop.f32.mrb[0].mxu0
  %v6583 = vadd.f32 %v6183, %v6582
  %v6584 = vpop.f32.mrb[0].mxu0
  %6585 = vmatprep.mubr.f32.mxu0 0.0
  %6586 = vmatmul.mubr.f32.gmra.mrb[0].mxu0 %v5847
  %v6587 = vpop.f32.mrb[0].mxu0
  %v6588 = vadd.f32 %v6188, %v6587
  %v6589 = vpop.f32.mrb[0].mxu0
  %6590 = vmatprep.mubr.f32.mxu0 0.0
  %6591 = vmatmul.mubr.f32.gmra.mrb[0].mxu0 %v5850
  %v6592 = vpop.f32.mrb[0].mxu0
  %v6593 = vadd.f32 %v6193, %v6592
  %v6594 = vpop.f32.mrb[0].mxu0
  %6595 = vmatprep.mubr.f32.mxu0 0.0
  %6596 = vmatmul.mubr.f32.gmra.mrb[0].mxu0 %v5853
  %v6597 = vpop.f32.mrb[0].mxu0
  %v6598 = vadd.f32 %v6198, %v6597
  %v6599 = vpop.f32.mrb[0].mxu0
  %6600 = vmatprep.mubr.f32.mxu0 0.0
  %6601 = vmatmul.mubr.f32.gmra.mrb[0].mxu0 %v5856
  %v6602 = vpop.f32.mrb[0].mxu0
  %v6603 = vadd.f32 %v6203, %v6602
  %v6604 = vpop.f32.mrb[0].mxu0
  %6605 = vmatprep.mubr.f32.mxu0 0.0
  %6606 = vmatmul.mubr.f32.gmra.mrb[0].mxu0 %v5859
  %v6607 = vpop.f32.mrb[0].mxu0
  %v6608 = vadd.f32 %v6208, %v6607
  %v6609 = vpop.f32.mrb[0].mxu0
  %6610 = vmatprep.mubr.f32.mxu0 0.0
  %6611 = vmatmul.mubr.f32.gmra.mrb[0].mxu0 %v5862
  %v6612 = vpop.f32.mrb[0].mxu0
  %v6613 = vadd.f32 %v6213, %v6612
  %v6614 = vpop.f32.mrb[0].mxu0
  %6615 = vmatprep.mubr.f32.mxu0 0.0
  %6616 = vmatmul.mubr.f32.gmra.mrb[0].mxu0 %v5865
  %v6617 = vpop.f32.mrb[0].mxu0
  %v6618 = vadd.f32 %v6218, %v6617
  %v6619 = vpop.f32.mrb[0].mxu0
  %6620 = vmatprep.mubr.f32.mxu0 0.0
  %6621 = vmatmul.mubr.f32.gmra.mrb[0].mxu0 %v5868
  %v6622 = vpop.f32.mrb[0].mxu0
  %v6623 = vadd.f32 %v6223, %v6622
  %v6624 = vpop.f32.mrb[0].mxu0
  %6625 = vmatprep.mubr.f32.mxu0 0.0
  %6626 = vmatmul.mubr.f32.gmra.mrb[0].mxu0 %v5871
  %v6627 = vpop.f32.mrb[0].mxu0
  %v6628 = vadd.f32 %v6228, %v6627
  %v6629 = vpop.f32.mrb[0].mxu0
  %6630 = vmatprep.mubr.f32.mxu0 0.0
  %6631 = vmatmul.mubr.f32.gmra.mrb[0].mxu0 %v5874
  %v6632 = vpop.f32.mrb[0].mxu0
  %v6633 = vadd.f32 %v6233, %v6632
  %v6634 = vpop.f32.mrb[0].mxu0
  %6635 = vmatprep.mubr.f32.mxu0 0.0
  %6636 = vmatmul.mubr.f32.gmra.mrb[0].mxu0 %v5877
  %v6637 = vpop.f32.mrb[0].mxu0
  %v6638 = vadd.f32 %v6238, %v6637
  %v6639 = vpop.f32.mrb[0].mxu0
  %6640 = vmatprep.mubr.f32.mxu0 0.0
  %6641 = vmatmul.mubr.f32.gmra.mrb[0].mxu0 %v5880
  %v6642 = vpop.f32.mrb[0].mxu0
  %v6643 = vadd.f32 %v6243, %v6642
  %v6644 = vpop.f32.mrb[0].mxu0
  %6645 = vmatprep.mubr.f32.mxu0 0.0
  %6646 = vmatmul.mubr.f32.gmra.mrb[0].mxu0 %v5883
  %v6647 = vpop.f32.mrb[0].mxu0
  %v6648 = vadd.f32 %v6248, %v6647
  %v6649 = vpop.f32.mrb[0].mxu0
  %6650 = vmatprep.mubr.f32.mxu0 0.0
  %6651 = vmatmul.mubr.f32.gmra.mrb[0].mxu0 %v5886
  %v6652 = vpop.f32.mrb[0].mxu0
  %v6653 = vadd.f32 %v6253, %v6652
  %v6654 = vpop.f32.mrb[0].mxu0
  %6655 = vmatprep.mubr.f32.mxu0 0.0
  %6656 = vmatmul.mubr.f32.gmra.mrb[0].mxu0 %v5889
  %v6657 = vpop.f32.mrb[0].mxu0
  %v6658 = vadd.f32 %v6258, %v6657
  %v6659 = vpop.f32.mrb[0].mxu0
  %6660 = vmatprep.mubr.f32.mxu0 0.0
  %6661 = vmatmul.mubr.f32.gmra.mrb[0].mxu0 %v5892
  %v6662 = vpop.f32.mrb[0].mxu0
  %v6663 = vadd.f32 %v6263, %v6662
  %v6664 = vpop.f32.mrb[0].mxu0
  %6665 = vmatprep.mubr.f32.mxu0 0.0
  %6666 = vmatmul.mubr.f32.gmra.mrb[0].mxu0 %v5895
  %v6667 = vpop.f32.mrb[0].mxu0
  %v6668 = vadd.f32 %v6268, %v6667
  %v6669 = vpop.f32.mrb[0].mxu0
  %6670 = vmatprep.mubr.f32.mxu0 0.0
  %6671 = vmatmul.mubr.f32.gmra.mrb[0].mxu0 %v5898
  %v6672 = vpop.f32.mrb[0].mxu0
  %v6673 = vadd.f32 %v6273, %v6672
  %v6674 = vpop.f32.mrb[0].mxu0
  %6675 = vmatprep.mubr.f32.mxu0 0.0
  %6676 = vmatmul.mubr.f32.gmra.mrb[0].mxu0 %v5901
  %v6677 = vpop.f32.mrb[0].mxu0
  %v6678 = vadd.f32 %v6278, %v6677
  %v6679 = vpop.f32.mrb[0].mxu0
  %6680 = vmatprep.mubr.f32.mxu0 0.0
  %6681 = vmatmul.mubr.f32.gmra.mrb[0].mxu0 %v5904
  %v6682 = vpop.f32.mrb[0].mxu0
  %v6683 = vadd.f32 %v6283, %v6682
  %v6684 = vpop.f32.mrb[0].mxu0
  %6685 = vmatprep.mubr.f32.mxu0 0.0
  %6686 = vmatmul.mubr.f32.gmra.mrb[0].mxu0 %v5907
  %v6687 = vpop.f32.mrb[0].mxu0
  %v6688 = vadd.f32 %v6288, %v6687
  %v6689 = vpop.f32.mrb[0].mxu0
  %6690 = vmatprep.mubr.f32.mxu0 0.0
  %6691 = vmatmul.mubr.f32.gmra.mrb[0].mxu0 %v5910
  %v6692 = vpop.f32.mrb[0].mxu0
  %v6693 = vadd.f32 %v6293, %v6692
  %v6694 = vpop.f32.mrb[0].mxu0
  %6695 = vmatprep.mubr.f32.mxu0 0.0
  %6696 = vmatmul.mubr.f32.gmra.mrb[0].mxu0 %v5913
  %v6697 = vpop.f32.mrb[0].mxu0
  %v6698 = vadd.f32 %v6298, %v6697
  %v6699 = vpop.f32.mrb[0].mxu0
  %6700 = vmatprep.mubr.f32.mxu0 0.0
  %6701 = vmatmul.mubr.f32.gmra.mrb[0].mxu0 %v5916
  %v6702 = vpop.f32.mrb[0].mxu0
  %v6703 = vadd.f32 %v6303, %v6702
  %v6704 = vpop.f32.mrb[0].mxu0
  %6705 = vmatprep.mubr.f32.mxu0 0.0
  %6706 = vmatmul.mubr.f32.gmra.mrb[0].mxu0 %v5919
  %v6707 = vpop.f32.mrb[0].mxu0
  %v6708 = vadd.f32 %v6308, %v6707
  %v6709 = vpop.f32.mrb[0].mxu0
  %6710 = vmatprep.mubr.f32.mxu0 0.0
  %6711 = vmatmul.mubr.f32.gmra.mrb[0].mxu0 %v5922
  %v6712 = vpop.f32.mrb[0].mxu0
  %v6713 = vadd.f32 %v6313, %v6712
  %v6714 = vpop.f32.mrb[0].mxu0
  %6715 = vmatprep.mubr.f32.mxu0 0.0
  %6716 = vmatmul.mubr.f32.gmra.mrb[0].mxu0 %v5925
  %v6717 = vpop.f32.mrb[0].mxu0
  %v6718 = vadd.f32 %v6318, %v6717
  %v6719 = vpop.f32.mrb[0].mxu0
  %6720 = vdwg.mxu0
  %s6721 = scalar_lea.vmem %s2, 24
  %v6722 = vld [vmem:[%s6721] sm:$0xf]
  %v6724 = vsel %vm90, %v5700, 0
  %v6727 = vsel %vm90, %v5701, 0
  %v6730 = vsel %vm90, %v5736, 0
  %v6733 = vsel %vm90, %v5737, 0
  %v6736 = vsel %vm501, %v6722, 0
  %6738 = vmatprep.subr.mxu0 0.0
  %6739 = vmatpush1.msra.mxu0 %v6736
  %6740 = vmatprep.subr.mxu0 0.0
  %6741 = vmatpush1.msra.mxu0 0.0
  %6742 = vmatprep.subr.mxu0 0.0
  %6743 = vmatpush1.msra.mxu0 0.0
  %6744 = vmatprep.subr.mxu0 0.0
  %6745 = vmatpush1.msra.mxu0 0.0
  %6746 = vmatprep.subr.mxu0 0.0
  %6747 = vmatpush1.msra.mxu0 0.0
  %6748 = vmatprep.subr.mxu0 0.0
  %6749 = vmatpush1.msra.mxu0 0.0
  %6750 = vmatprep.subr.mxu0 0.0
  %6751 = vmatpush1.msra.mxu0 0.0
  %6752 = vmatprep.subr.mxu0 0.0
  %6753 = vmatpush1.msra.mxu0 0.0
  %6754 = vmatprep.subr.mxu0 0.0
  %6755 = vmatpush1.msra.mxu0 0.0
  %6756 = vmatprep.subr.mxu0 0.0
  %6757 = vmatpush1.msra.mxu0 0.0
  %6758 = vmatprep.subr.mxu0 0.0
  %6759 = vmatpush1.msra.mxu0 0.0
  %6760 = vmatprep.subr.mxu0 0.0
  %6761 = vmatpush1.msra.mxu0 0.0
  %6762 = vmatprep.subr.mxu0 0.0
  %6763 = vmatpush1.msra.mxu0 0.0
  %6764 = vmatprep.subr.mxu0 0.0
  %6765 = vmatpush1.msra.mxu0 0.0
  %6766 = vmatprep.subr.mxu0 0.0
  %6767 = vmatpush1.msra.mxu0 0.0
  %6768 = vmatprep.subr.mxu0 0.0
  %6769 = vmatpush1.msra.mxu0 0.0
  %6770 = vmatprep.subr.mxu0 0.0
  %6771 = vmatpush1.msra.mxu0 0.0
  %6772 = vmatprep.subr.mxu0 0.0
  %6773 = vmatpush1.msra.mxu0 0.0
  %6774 = vmatprep.subr.mxu0 0.0
  %6775 = vmatpush1.msra.mxu0 0.0
  %6776 = vmatprep.subr.mxu0 0.0
  %6777 = vmatpush1.msra.mxu0 0.0
  %6778 = vmatprep.subr.mxu0 0.0
  %6779 = vmatpush1.msra.mxu0 0.0
  %6780 = vmatprep.subr.mxu0 0.0
  %6781 = vmatpush1.msra.mxu0 0.0
  %6782 = vmatprep.subr.mxu0 0.0
  %6783 = vmatpush1.msra.mxu0 0.0
  %6784 = vmatprep.subr.mxu0 0.0
  %6785 = vmatpush1.msra.mxu0 0.0
  %6786 = vmatprep.subr.mxu0 0.0
  %6787 = vmatpush1.msra.mxu0 0.0
  %6788 = vmatprep.subr.mxu0 0.0
  %6789 = vmatpush1.msra.mxu0 0.0
  %6790 = vmatprep.subr.mxu0 0.0
  %6791 = vmatpush1.msra.mxu0 0.0
  %6792 = vmatprep.subr.mxu0 0.0
  %6793 = vmatpush1.msra.mxu0 0.0
  %6794 = vmatprep.subr.mxu0 0.0
  %6795 = vmatpush1.msra.mxu0 0.0
  %6796 = vmatprep.subr.mxu0 0.0
  %6797 = vmatpush1.msra.mxu0 0.0
  %6798 = vmatprep.subr.mxu0 0.0
  %6799 = vmatpush1.msra.mxu0 0.0
  %6800 = vmatprep.subr.mxu0 0.0
  %6801 = vmatpush1.msra.mxu0 0.0
  %6802 = vmatprep.mubr.f32.mxu0 0.0
  %6803 = vmatmul.mubr.f32.gmra.mrb[0].mxu0 %v5748
  %v6804 = vpop.f32.mrb[0].mxu0
  %v6805 = vadd.f32 0.0, %v6804
  %v6806 = vpop.f32.mrb[0].mxu0
  %6807 = vmatprep.mubr.f32.mxu0 0.0
  %6808 = vmatmul.mubr.f32.gmra.mrb[0].mxu0 %v5751
  %v6809 = vpop.f32.mrb[0].mxu0
  %v6810 = vadd.f32 0.0, %v6809
  %v6811 = vpop.f32.mrb[0].mxu0
  %6812 = vmatprep.mubr.f32.mxu0 0.0
  %6813 = vmatmul.mubr.f32.gmra.mrb[0].mxu0 %v5754
  %v6814 = vpop.f32.mrb[0].mxu0
  %v6815 = vadd.f32 0.0, %v6814
  %v6816 = vpop.f32.mrb[0].mxu0
  %6817 = vmatprep.mubr.f32.mxu0 0.0
  %6818 = vmatmul.mubr.f32.gmra.mrb[0].mxu0 %v5757
  %v6819 = vpop.f32.mrb[0].mxu0
  %v6820 = vadd.f32 0.0, %v6819
  %v6821 = vpop.f32.mrb[0].mxu0
  %6822 = vmatprep.mubr.f32.mxu0 0.0
  %6823 = vmatmul.mubr.f32.gmra.mrb[0].mxu0 %v5760
  %v6824 = vpop.f32.mrb[0].mxu0
  %v6825 = vadd.f32 0.0, %v6824
  %v6826 = vpop.f32.mrb[0].mxu0
  %6827 = vmatprep.mubr.f32.mxu0 0.0
  %6828 = vmatmul.mubr.f32.gmra.mrb[0].mxu0 %v5763
  %v6829 = vpop.f32.mrb[0].mxu0
  %v6830 = vadd.f32 0.0, %v6829
  %v6831 = vpop.f32.mrb[0].mxu0
  %6832 = vmatprep.mubr.f32.mxu0 0.0
  %6833 = vmatmul.mubr.f32.gmra.mrb[0].mxu0 %v5766
  %v6834 = vpop.f32.mrb[0].mxu0
  %v6835 = vadd.f32 0.0, %v6834
  %v6836 = vpop.f32.mrb[0].mxu0
  %6837 = vmatprep.mubr.f32.mxu0 0.0
  %6838 = vmatmul.mubr.f32.gmra.mrb[0].mxu0 %v5769
  %v6839 = vpop.f32.mrb[0].mxu0
  %v6840 = vadd.f32 0.0, %v6839
  %v6841 = vpop.f32.mrb[0].mxu0
  %6842 = vmatprep.mubr.f32.mxu0 0.0
  %6843 = vmatmul.mubr.f32.gmra.mrb[0].mxu0 %v5772
  %v6844 = vpop.f32.mrb[0].mxu0
  %v6845 = vadd.f32 0.0, %v6844
  %v6846 = vpop.f32.mrb[0].mxu0
  %6847 = vmatprep.mubr.f32.mxu0 0.0
  %6848 = vmatmul.mubr.f32.gmra.mrb[0].mxu0 %v5775
  %v6849 = vpop.f32.mrb[0].mxu0
  %v6850 = vadd.f32 0.0, %v6849
  %v6851 = vpop.f32.mrb[0].mxu0
  %6852 = vmatprep.mubr.f32.mxu0 0.0
  %6853 = vmatmul.mubr.f32.gmra.mrb[0].mxu0 %v5778
  %v6854 = vpop.f32.mrb[0].mxu0
  %v6855 = vadd.f32 0.0, %v6854
  %v6856 = vpop.f32.mrb[0].mxu0
  %6857 = vmatprep.mubr.f32.mxu0 0.0
  %6858 = vmatmul.mubr.f32.gmra.mrb[0].mxu0 %v5781
  %v6859 = vpop.f32.mrb[0].mxu0
  %v6860 = vadd.f32 0.0, %v6859
  %v6861 = vpop.f32.mrb[0].mxu0
  %6862 = vmatprep.mubr.f32.mxu0 0.0
  %6863 = vmatmul.mubr.f32.gmra.mrb[0].mxu0 %v5784
  %v6864 = vpop.f32.mrb[0].mxu0
  %v6865 = vadd.f32 0.0, %v6864
  %v6866 = vpop.f32.mrb[0].mxu0
  %6867 = vmatprep.mubr.f32.mxu0 0.0
  %6868 = vmatmul.mubr.f32.gmra.mrb[0].mxu0 %v5787
  %v6869 = vpop.f32.mrb[0].mxu0
  %v6870 = vadd.f32 0.0, %v6869
  %v6871 = vpop.f32.mrb[0].mxu0
  %6872 = vmatprep.mubr.f32.mxu0 0.0
  %6873 = vmatmul.mubr.f32.gmra.mrb[0].mxu0 %v5790
  %v6874 = vpop.f32.mrb[0].mxu0
  %v6875 = vadd.f32 0.0, %v6874
  %v6876 = vpop.f32.mrb[0].mxu0
  %6877 = vmatprep.mubr.f32.mxu0 0.0
  %6878 = vmatmul.mubr.f32.gmra.mrb[0].mxu0 %v5793
  %v6879 = vpop.f32.mrb[0].mxu0
  %v6880 = vadd.f32 0.0, %v6879
  %v6881 = vpop.f32.mrb[0].mxu0
  %6882 = vmatprep.mubr.f32.mxu0 0.0
  %6883 = vmatmul.mubr.f32.gmra.mrb[0].mxu0 %v5796
  %v6884 = vpop.f32.mrb[0].mxu0
  %v6885 = vadd.f32 0.0, %v6884
  %v6886 = vpop.f32.mrb[0].mxu0
  %6887 = vmatprep.mubr.f32.mxu0 0.0
  %6888 = vmatmul.mubr.f32.gmra.mrb[0].mxu0 %v5799
  %v6889 = vpop.f32.mrb[0].mxu0
  %v6890 = vadd.f32 0.0, %v6889
  %v6891 = vpop.f32.mrb[0].mxu0
  %6892 = vmatprep.mubr.f32.mxu0 0.0
  %6893 = vmatmul.mubr.f32.gmra.mrb[0].mxu0 %v5802
  %v6894 = vpop.f32.mrb[0].mxu0
  %v6895 = vadd.f32 0.0, %v6894
  %v6896 = vpop.f32.mrb[0].mxu0
  %6897 = vmatprep.mubr.f32.mxu0 0.0
  %6898 = vmatmul.mubr.f32.gmra.mrb[0].mxu0 %v5805
  %v6899 = vpop.f32.mrb[0].mxu0
  %v6900 = vadd.f32 0.0, %v6899
  %v6901 = vpop.f32.mrb[0].mxu0
  %6902 = vmatprep.mubr.f32.mxu0 0.0
  %6903 = vmatmul.mubr.f32.gmra.mrb[0].mxu0 %v5808
  %v6904 = vpop.f32.mrb[0].mxu0
  %v6905 = vadd.f32 0.0, %v6904
  %v6906 = vpop.f32.mrb[0].mxu0
  %6907 = vmatprep.mubr.f32.mxu0 0.0
  %6908 = vmatmul.mubr.f32.gmra.mrb[0].mxu0 %v5811
  %v6909 = vpop.f32.mrb[0].mxu0
  %v6910 = vadd.f32 0.0, %v6909
  %v6911 = vpop.f32.mrb[0].mxu0
  %6912 = vmatprep.mubr.f32.mxu0 0.0
  %6913 = vmatmul.mubr.f32.gmra.mrb[0].mxu0 %v5814
  %v6914 = vpop.f32.mrb[0].mxu0
  %v6915 = vadd.f32 0.0, %v6914
  %v6916 = vpop.f32.mrb[0].mxu0
  %6917 = vmatprep.mubr.f32.mxu0 0.0
  %6918 = vmatmul.mubr.f32.gmra.mrb[0].mxu0 %v5817
  %v6919 = vpop.f32.mrb[0].mxu0
  %v6920 = vadd.f32 0.0, %v6919
  %v6921 = vpop.f32.mrb[0].mxu0
  %6922 = vmatprep.mubr.f32.mxu0 0.0
  %6923 = vmatmul.mubr.f32.gmra.mrb[0].mxu0 %v5820
  %v6924 = vpop.f32.mrb[0].mxu0
  %v6925 = vadd.f32 0.0, %v6924
  %v6926 = vpop.f32.mrb[0].mxu0
  %6927 = vmatprep.mubr.f32.mxu0 0.0
  %6928 = vmatmul.mubr.f32.gmra.mrb[0].mxu0 %v5823
  %v6929 = vpop.f32.mrb[0].mxu0
  %v6930 = vadd.f32 0.0, %v6929
  %v6931 = vpop.f32.mrb[0].mxu0
  %6932 = vmatprep.mubr.f32.mxu0 0.0
  %6933 = vmatmul.mubr.f32.gmra.mrb[0].mxu0 %v5826
  %v6934 = vpop.f32.mrb[0].mxu0
  %v6935 = vadd.f32 0.0, %v6934
  %v6936 = vpop.f32.mrb[0].mxu0
  %6937 = vmatprep.mubr.f32.mxu0 0.0
  %6938 = vmatmul.mubr.f32.gmra.mrb[0].mxu0 %v5829
  %v6939 = vpop.f32.mrb[0].mxu0
  %v6940 = vadd.f32 0.0, %v6939
  %v6941 = vpop.f32.mrb[0].mxu0
  %6942 = vmatprep.mubr.f32.mxu0 0.0
  %6943 = vmatmul.mubr.f32.gmra.mrb[0].mxu0 %v5832
  %v6944 = vpop.f32.mrb[0].mxu0
  %v6945 = vadd.f32 0.0, %v6944
  %v6946 = vpop.f32.mrb[0].mxu0
  %6947 = vmatprep.mubr.f32.mxu0 0.0
  %6948 = vmatmul.mubr.f32.gmra.mrb[0].mxu0 %v5835
  %v6949 = vpop.f32.mrb[0].mxu0
  %v6950 = vadd.f32 0.0, %v6949
  %v6951 = vpop.f32.mrb[0].mxu0
  %6952 = vmatprep.mubr.f32.mxu0 0.0
  %6953 = vmatmul.mubr.f32.gmra.mrb[0].mxu0 %v6724
  %v6954 = vpop.f32.mrb[0].mxu0
  %v6955 = vadd.f32 0.0, %v6954
  %v6956 = vpop.f32.mrb[0].mxu0
  %6957 = vmatprep.mubr.f32.mxu0 0.0
  %6958 = vmatmul.mubr.f32.gmra.mrb[0].mxu0 %v6727
  %v6959 = vpop.f32.mrb[0].mxu0
  %v6960 = vadd.f32 0.0, %v6959
  %v6961 = vpop.f32.mrb[0].mxu0
  %6962 = vmatprep.mubr.f32.mxu0 0.0
  %6963 = vmatmul.mubr.f32.gmra.mrb[0].mxu0 %v5844
  %v6964 = vpop.f32.mrb[0].mxu0
  %v6965 = vadd.f32 0.0, %v6964
  %v6966 = vpop.f32.mrb[0].mxu0
  %6967 = vmatprep.mubr.f32.mxu0 0.0
  %6968 = vmatmul.mubr.f32.gmra.mrb[0].mxu0 %v5847
  %v6969 = vpop.f32.mrb[0].mxu0
  %v6970 = vadd.f32 0.0, %v6969
  %v6971 = vpop.f32.mrb[0].mxu0
  %6972 = vmatprep.mubr.f32.mxu0 0.0
  %6973 = vmatmul.mubr.f32.gmra.mrb[0].mxu0 %v5850
  %v6974 = vpop.f32.mrb[0].mxu0
  %v6975 = vadd.f32 0.0, %v6974
  %v6976 = vpop.f32.mrb[0].mxu0
  %6977 = vmatprep.mubr.f32.mxu0 0.0
  %6978 = vmatmul.mubr.f32.gmra.mrb[0].mxu0 %v5853
  %v6979 = vpop.f32.mrb[0].mxu0
  %v6980 = vadd.f32 0.0, %v6979
  %v6981 = vpop.f32.mrb[0].mxu0
  %6982 = vmatprep.mubr.f32.mxu0 0.0
  %6983 = vmatmul.mubr.f32.gmra.mrb[0].mxu0 %v5856
  %v6984 = vpop.f32.mrb[0].mxu0
  %v6985 = vadd.f32 0.0, %v6984
  %v6986 = vpop.f32.mrb[0].mxu0
  %6987 = vmatprep.mubr.f32.mxu0 0.0
  %6988 = vmatmul.mubr.f32.gmra.mrb[0].mxu0 %v5859
  %v6989 = vpop.f32.mrb[0].mxu0
  %v6990 = vadd.f32 0.0, %v6989
  %v6991 = vpop.f32.mrb[0].mxu0
  %6992 = vmatprep.mubr.f32.mxu0 0.0
  %6993 = vmatmul.mubr.f32.gmra.mrb[0].mxu0 %v5862
  %v6994 = vpop.f32.mrb[0].mxu0
  %v6995 = vadd.f32 0.0, %v6994
  %v6996 = vpop.f32.mrb[0].mxu0
  %6997 = vmatprep.mubr.f32.mxu0 0.0
  %6998 = vmatmul.mubr.f32.gmra.mrb[0].mxu0 %v5865
  %v6999 = vpop.f32.mrb[0].mxu0
  %v7000 = vadd.f32 0.0, %v6999
  %v7001 = vpop.f32.mrb[0].mxu0
  %7002 = vmatprep.mubr.f32.mxu0 0.0
  %7003 = vmatmul.mubr.f32.gmra.mrb[0].mxu0 %v5868
  %v7004 = vpop.f32.mrb[0].mxu0
  %v7005 = vadd.f32 0.0, %v7004
  %v7006 = vpop.f32.mrb[0].mxu0
  %7007 = vmatprep.mubr.f32.mxu0 0.0
  %7008 = vmatmul.mubr.f32.gmra.mrb[0].mxu0 %v5871
  %v7009 = vpop.f32.mrb[0].mxu0
  %v7010 = vadd.f32 0.0, %v7009
  %v7011 = vpop.f32.mrb[0].mxu0
  %7012 = vmatprep.mubr.f32.mxu0 0.0
  %7013 = vmatmul.mubr.f32.gmra.mrb[0].mxu0 %v5874
  %v7014 = vpop.f32.mrb[0].mxu0
  %v7015 = vadd.f32 0.0, %v7014
  %v7016 = vpop.f32.mrb[0].mxu0
  %7017 = vmatprep.mubr.f32.mxu0 0.0
  %7018 = vmatmul.mubr.f32.gmra.mrb[0].mxu0 %v5877
  %v7019 = vpop.f32.mrb[0].mxu0
  %v7020 = vadd.f32 0.0, %v7019
  %v7021 = vpop.f32.mrb[0].mxu0
  %7022 = vmatprep.mubr.f32.mxu0 0.0
  %7023 = vmatmul.mubr.f32.gmra.mrb[0].mxu0 %v5880
  %v7024 = vpop.f32.mrb[0].mxu0
  %v7025 = vadd.f32 0.0, %v7024
  %v7026 = vpop.f32.mrb[0].mxu0
  %7027 = vmatprep.mubr.f32.mxu0 0.0
  %7028 = vmatmul.mubr.f32.gmra.mrb[0].mxu0 %v5883
  %v7029 = vpop.f32.mrb[0].mxu0
  %v7030 = vadd.f32 0.0, %v7029
  %v7031 = vpop.f32.mrb[0].mxu0
  %7032 = vmatprep.mubr.f32.mxu0 0.0
  %7033 = vmatmul.mubr.f32.gmra.mrb[0].mxu0 %v5886
  %v7034 = vpop.f32.mrb[0].mxu0
  %v7035 = vadd.f32 0.0, %v7034
  %v7036 = vpop.f32.mrb[0].mxu0
  %7037 = vmatprep.mubr.f32.mxu0 0.0
  %7038 = vmatmul.mubr.f32.gmra.mrb[0].mxu0 %v5889
  %v7039 = vpop.f32.mrb[0].mxu0
  %v7040 = vadd.f32 0.0, %v7039
  %v7041 = vpop.f32.mrb[0].mxu0
  %7042 = vmatprep.mubr.f32.mxu0 0.0
  %7043 = vmatmul.mubr.f32.gmra.mrb[0].mxu0 %v5892
  %v7044 = vpop.f32.mrb[0].mxu0
  %v7045 = vadd.f32 0.0, %v7044
  %v7046 = vpop.f32.mrb[0].mxu0
  %7047 = vmatprep.mubr.f32.mxu0 0.0
  %7048 = vmatmul.mubr.f32.gmra.mrb[0].mxu0 %v5895
  %v7049 = vpop.f32.mrb[0].mxu0
  %v7050 = vadd.f32 0.0, %v7049
  %v7051 = vpop.f32.mrb[0].mxu0
  %7052 = vmatprep.mubr.f32.mxu0 0.0
  %7053 = vmatmul.mubr.f32.gmra.mrb[0].mxu0 %v5898
  %v7054 = vpop.f32.mrb[0].mxu0
  %v7055 = vadd.f32 0.0, %v7054
  %v7056 = vpop.f32.mrb[0].mxu0
  %7057 = vmatprep.mubr.f32.mxu0 0.0
  %7058 = vmatmul.mubr.f32.gmra.mrb[0].mxu0 %v5901
  %v7059 = vpop.f32.mrb[0].mxu0
  %v7060 = vadd.f32 0.0, %v7059
  %v7061 = vpop.f32.mrb[0].mxu0
  %7062 = vmatprep.mubr.f32.mxu0 0.0
  %7063 = vmatmul.mubr.f32.gmra.mrb[0].mxu0 %v5904
  %v7064 = vpop.f32.mrb[0].mxu0
  %v7065 = vadd.f32 0.0, %v7064
  %v7066 = vpop.f32.mrb[0].mxu0
  %7067 = vmatprep.mubr.f32.mxu0 0.0
  %7068 = vmatmul.mubr.f32.gmra.mrb[0].mxu0 %v5907
  %v7069 = vpop.f32.mrb[0].mxu0
  %v7070 = vadd.f32 0.0, %v7069
  %v7071 = vpop.f32.mrb[0].mxu0
  %7072 = vmatprep.mubr.f32.mxu0 0.0
  %7073 = vmatmul.mubr.f32.gmra.mrb[0].mxu0 %v5910
  %v7074 = vpop.f32.mrb[0].mxu0
  %v7075 = vadd.f32 0.0, %v7074
  %v7076 = vpop.f32.mrb[0].mxu0
  %7077 = vmatprep.mubr.f32.mxu0 0.0
  %7078 = vmatmul.mubr.f32.gmra.mrb[0].mxu0 %v5913
  %v7079 = vpop.f32.mrb[0].mxu0
  %v7080 = vadd.f32 0.0, %v7079
  %v7081 = vpop.f32.mrb[0].mxu0
  %7082 = vmatprep.mubr.f32.mxu0 0.0
  %7083 = vmatmul.mubr.f32.gmra.mrb[0].mxu0 %v5916
  %v7084 = vpop.f32.mrb[0].mxu0
  %v7085 = vadd.f32 0.0, %v7084
  %v7086 = vpop.f32.mrb[0].mxu0
  %7087 = vmatprep.mubr.f32.mxu0 0.0
  %7088 = vmatmul.mubr.f32.gmra.mrb[0].mxu0 %v5919
  %v7089 = vpop.f32.mrb[0].mxu0
  %v7090 = vadd.f32 0.0, %v7089
  %v7091 = vpop.f32.mrb[0].mxu0
  %7092 = vmatprep.mubr.f32.mxu0 0.0
  %7093 = vmatmul.mubr.f32.gmra.mrb[0].mxu0 %v5922
  %v7094 = vpop.f32.mrb[0].mxu0
  %v7095 = vadd.f32 0.0, %v7094
  %v7096 = vpop.f32.mrb[0].mxu0
  %7097 = vmatprep.mubr.f32.mxu0 0.0
  %7098 = vmatmul.mubr.f32.gmra.mrb[0].mxu0 %v5925
  %v7099 = vpop.f32.mrb[0].mxu0
  %v7100 = vadd.f32 0.0, %v7099
  %v7101 = vpop.f32.mrb[0].mxu0
  %7102 = vmatprep.mubr.f32.mxu0 0.0
  %7103 = vmatmul.mubr.f32.gmra.mrb[0].mxu0 %v5928
  %v7104 = vpop.f32.mrb[0].mxu0
  %v7105 = vadd.f32 0.0, %v7104
  %v7106 = vpop.f32.mrb[0].mxu0
  %7107 = vmatprep.mubr.f32.mxu0 0.0
  %7108 = vmatmul.mubr.f32.gmra.mrb[0].mxu0 %v5931
  %v7109 = vpop.f32.mrb[0].mxu0
  %v7110 = vadd.f32 0.0, %v7109
  %v7111 = vpop.f32.mrb[0].mxu0
  %7112 = vmatprep.mubr.f32.mxu0 0.0
  %7113 = vmatmul.mubr.f32.gmra.mrb[0].mxu0 %v6730
  %v7114 = vpop.f32.mrb[0].mxu0
  %v7115 = vadd.f32 0.0, %v7114
  %v7116 = vpop.f32.mrb[0].mxu0
  %7117 = vmatprep.mubr.f32.mxu0 0.0
  %7118 = vmatmul.mubr.f32.gmra.mrb[0].mxu0 %v6733
  %v7119 = vpop.f32.mrb[0].mxu0
  %v7120 = vadd.f32 0.0, %v7119
  %v7121 = vpop.f32.mrb[0].mxu0
  %7122 = vdwg.mxu0
  %v7123 = vadd.f32 %v6403, %v6805
  %v7124 = vadd.f32 %v6408, %v6810
  %v7125 = vadd.f32 %v6413, %v6815
  %v7126 = vadd.f32 %v6418, %v6820
  %v7127 = vadd.f32 %v6423, %v6825
  %v7128 = vadd.f32 %v6428, %v6830
  %v7129 = vadd.f32 %v6433, %v6835
  %v7130 = vadd.f32 %v6438, %v6840
  %v7131 = vadd.f32 %v6443, %v6845
  %v7132 = vadd.f32 %v6448, %v6850
  %v7133 = vadd.f32 %v6453, %v6855
  %v7134 = vadd.f32 %v6458, %v6860
  %v7135 = vadd.f32 %v6463, %v6865
  %v7136 = vadd.f32 %v6468, %v6870
  %v7137 = vadd.f32 %v6473, %v6875
  %v7138 = vadd.f32 %v6478, %v6880
  %v7139 = vadd.f32 %v6483, %v6885
  %v7140 = vadd.f32 %v6488, %v6890
  %v7141 = vadd.f32 %v6493, %v6895
  %v7142 = vadd.f32 %v6498, %v6900
  %v7143 = vadd.f32 %v6503, %v6905
  %v7144 = vadd.f32 %v6508, %v6910
  %v7145 = vadd.f32 %v6513, %v6915
  %v7146 = vadd.f32 %v6518, %v6920
  %v7147 = vadd.f32 %v6523, %v6925
  %v7148 = vadd.f32 %v6528, %v6930
  %v7149 = vadd.f32 %v6533, %v6935
  %v7150 = vadd.f32 %v6538, %v6940
  %v7151 = vadd.f32 %v6543, %v6945
  %v7152 = vadd.f32 %v6548, %v6950
  %v7153 = vadd.f32 %v6553, %v6955
  %v7154 = vadd.f32 %v6558, %v6960
  %v7155 = vadd.f32 %v6563, %v6965
  %v7156 = vadd.f32 %v6568, %v6970
  %v7157 = vadd.f32 %v6573, %v6975
  %v7158 = vadd.f32 %v6578, %v6980
  %v7159 = vadd.f32 %v6583, %v6985
  %v7160 = vadd.f32 %v6588, %v6990
  %v7161 = vadd.f32 %v6593, %v6995
  %v7162 = vadd.f32 %v6598, %v7000
  %v7163 = vadd.f32 %v6603, %v7005
  %v7164 = vadd.f32 %v6608, %v7010
  %v7165 = vadd.f32 %v6613, %v7015
  %v7166 = vadd.f32 %v6618, %v7020
  %v7167 = vadd.f32 %v6623, %v7025
  %v7168 = vadd.f32 %v6628, %v7030
  %v7169 = vadd.f32 %v6633, %v7035
  %v7170 = vadd.f32 %v6638, %v7040
  %v7171 = vadd.f32 %v6643, %v7045
  %v7172 = vadd.f32 %v6648, %v7050
  %v7173 = vadd.f32 %v6653, %v7055
  %v7174 = vadd.f32 %v6658, %v7060
  %v7175 = vadd.f32 %v6663, %v7065
  %v7176 = vadd.f32 %v6668, %v7070
  %v7177 = vadd.f32 %v6673, %v7075
  %v7178 = vadd.f32 %v6678, %v7080
  %v7179 = vadd.f32 %v6683, %v7085
  %v7180 = vadd.f32 %v6688, %v7090
  %v7181 = vadd.f32 %v6693, %v7095
  %v7182 = vadd.f32 %v6698, %v7100
  %v7183 = vadd.f32 %v6703, %v7105
  %v7184 = vadd.f32 %v6708, %v7110
  %v7185 = vadd.f32 %v6713, %v7115
  %v7186 = vadd.f32 %v6718, %v7120
  %v7187 = vld [vmem:[#allocation2 + $0x1] sm:$0xff]
  %v7188 = vld [vmem:[#allocation2 + $0x9] sm:$0xff]
  %v7189 = vld [vmem:[#allocation2 + $0x19] sm:$0xff]
  %v7190 = vld [vmem:[#allocation2 + $0x21] sm:$0xff]
  %v7191 = vld [vmem:[#allocation2 + $0x31] sm:$0xff]
  %v7192 = vld [vmem:[#allocation2 + $0x39] sm:$0xff]
  %v7193 = vld [vmem:[#allocation2 + $0x49] sm:$0xff]
  %v7194 = vld [vmem:[#allocation2 + $0x51] sm:$0xff]
  %v7195 = vld [vmem:[#allocation2 + $0x61] sm:$0xff]
  %v7196 = vld [vmem:[#allocation2 + $0x69] sm:$0xff]
  %v7197 = vld [vmem:[#allocation2 + $0x79] sm:$0xff]
  %v7198 = vld [vmem:[#allocation2 + $0x81] sm:$0xff]
  %v7199 = vld [vmem:[#allocation2 + $0x91] sm:$0xff]
  %v7200 = vld [vmem:[#allocation2 + $0x99] sm:$0xff]
  %v7201 = vld [vmem:[#allocation2 + $0xa9] sm:$0xff]
  %v7202 = vld [vmem:[#allocation2 + $0xb1] sm:$0xff]
  %v7203 = vld [vmem:[#allocation2 + $0xc1] sm:$0xff]
  %v7204 = vld [vmem:[#allocation2 + $0xc9] sm:$0xff]
  %v7205 = vld [vmem:[#allocation2 + $0xd9] sm:$0xff]
  %v7206 = vld [vmem:[#allocation2 + $0xe1] sm:$0xff]
  %v7207 = vld [vmem:[#allocation2 + $0xf1] sm:$0xff]
  %v7208 = vld [vmem:[#allocation2 + $0xf9] sm:$0xff]
  %v7209 = vld [vmem:[#allocation2 + $0x109] sm:$0xff]
  %v7210 = vld [vmem:[#allocation2 + $0x111] sm:$0xff]
  %v7211 = vld [vmem:[#allocation2 + $0x121] sm:$0xff]
  %v7212 = vld [vmem:[#allocation2 + $0x129] sm:$0xff]
  %v7213 = vld [vmem:[#allocation2 + $0x139] sm:$0xff]
  %v7214 = vld [vmem:[#allocation2 + $0x141] sm:$0xff]
  %v7215 = vld [vmem:[#allocation2 + $0x151] sm:$0xff]
  %v7216 = vld [vmem:[#allocation2 + $0x159] sm:$0xff]
  %v7217 = vld [vmem:[#allocation2 + $0x169] sm:$0xff]
  %v7218 = vld [vmem:[#allocation2 + $0x171] sm:$0xff]
  %v7219 = vld [vmem:[#allocation2 + $0x181] sm:$0xff]
  %v7220 = vld [vmem:[#allocation2 + $0x189] sm:$0xff]
  %v7221 = vld [vmem:[#allocation2 + $0x199] sm:$0xff]
  %v7222 = vld [vmem:[#allocation2 + $0x1a1] sm:$0xff]
  %v7223 = vld [vmem:[#allocation2 + $0x1b1] sm:$0xff]
  %v7224 = vld [vmem:[#allocation2 + $0x1b9] sm:$0xff]
  %v7225 = vld [vmem:[#allocation2 + $0x1c9] sm:$0xff]
  %v7226 = vld [vmem:[#allocation2 + $0x1d1] sm:$0xff]
  %v7227 = vld [vmem:[#allocation2 + $0x1e1] sm:$0xff]
  %v7228 = vld [vmem:[#allocation2 + $0x1e9] sm:$0xff]
  %v7229 = vld [vmem:[#allocation2 + $0x1f9] sm:$0xff]
  %v7230 = vld [vmem:[#allocation2 + $0x201] sm:$0xff]
  %v7231 = vld [vmem:[#allocation2 + $0x211] sm:$0xff]
  %v7232 = vld [vmem:[#allocation2 + $0x219] sm:$0xff]
  %v7233 = vld [vmem:[#allocation2 + $0x229] sm:$0xff]
  %v7234 = vld [vmem:[#allocation2 + $0x231] sm:$0xff]
  %v7235 = vld [vmem:[#allocation2 + $0x241] sm:$0xff]
  %v7236 = vld [vmem:[#allocation2 + $0x249] sm:$0xff]
  %v7237 = vld [vmem:[#allocation2 + $0x259] sm:$0xff]
  %v7238 = vld [vmem:[#allocation2 + $0x261] sm:$0xff]
  %v7239 = vld [vmem:[#allocation2 + $0x271] sm:$0xff]
  %v7240 = vld [vmem:[#allocation2 + $0x279] sm:$0xff]
  %v7241 = vld [vmem:[#allocation2 + $0x289] sm:$0xff]
  %v7242 = vld [vmem:[#allocation2 + $0x291] sm:$0xff]
  %v7243 = vld [vmem:[#allocation2 + $0x2a1] sm:$0xff]
  %v7244 = vld [vmem:[#allocation2 + $0x2a9] sm:$0xff]
  %v7245 = vld [vmem:[#allocation2 + $0x2b9] sm:$0xff]
  %v7246 = vld [vmem:[#allocation2 + $0x2c1] sm:$0xff]
  %v7247 = vld [vmem:[#allocation2 + $0x2d1] sm:$0xff]
  %v7248 = vld [vmem:[#allocation2 + $0x2d9] sm:$0xff]
  %v7249 = vld [vmem:[#allocation2 + $0x2e9] sm:$0xff]
  %v7250 = vld [vmem:[#allocation2 + $0x2f1] sm:$0xff]
  %v7251 = vld [vmem:[#allocation2 + $0x301] sm:$0xff]
  %v7252 = vld [vmem:[#allocation2 + $0x309] sm:$0xff]
  %v7253 = vld [vmem:[#allocation2 + $0x319] sm:$0xff]
  %v7254 = vld [vmem:[#allocation2 + $0x321] sm:$0xff]
  %v7255 = vld [vmem:[#allocation2 + $0x331] sm:$0xff]
  %v7256 = vld [vmem:[#allocation2 + $0x339] sm:$0xff]
  %v7257 = vld [vmem:[#allocation2 + $0x349] sm:$0xff]
  %v7258 = vld [vmem:[#allocation2 + $0x351] sm:$0xff]
  %s7259 = scalar_lea.vmem %s2, 4
  %v7260 = vld [vmem:[%s7259] sm:$0xf]
  %v7262 = vsel %vm90, %v7187, 0
  %v7265 = vsel %vm90, %v7188, 0
  %v7268 = vsel %vm90, %v7189, 0
  %v7271 = vsel %vm90, %v7190, 0
  %v7274 = vsel %vm90, %v7191, 0
  %v7277 = vsel %vm90, %v7192, 0
  %v7280 = vsel %vm90, %v7193, 0
  %v7283 = vsel %vm90, %v7194, 0
  %v7286 = vsel %vm90, %v7195, 0
  %v7289 = vsel %vm90, %v7196, 0
  %v7292 = vsel %vm90, %v7197, 0
  %v7295 = vsel %vm90, %v7198, 0
  %v7298 = vsel %vm90, %v7199, 0
  %v7301 = vsel %vm90, %v7200, 0
  %v7304 = vsel %vm90, %v7201, 0
  %v7307 = vsel %vm90, %v7202, 0
  %v7310 = vsel %vm90, %v7203, 0
  %v7313 = vsel %vm90, %v7204, 0
  %v7316 = vsel %vm90, %v7205, 0
  %v7319 = vsel %vm90, %v7206, 0
  %v7322 = vsel %vm90, %v7207, 0
  %v7325 = vsel %vm90, %v7208, 0
  %v7328 = vsel %vm90, %v7209, 0
  %v7331 = vsel %vm90, %v7210, 0
  %v7334 = vsel %vm90, %v7211, 0
  %v7337 = vsel %vm90, %v7212, 0
  %v7340 = vsel %vm90, %v7213, 0
  %v7343 = vsel %vm90, %v7214, 0
  %v7346 = vsel %vm90, %v7215, 0
  %v7349 = vsel %vm90, %v7216, 0
  %v7352 = vsel %vm90, %v7217, 0
  %v7355 = vsel %vm90, %v7218, 0
  %v7358 = vsel %vm90, %v7223, 0
  %v7361 = vsel %vm90, %v7224, 0
  %v7364 = vsel %vm90, %v7225, 0
  %v7367 = vsel %vm90, %v7226, 0
  %v7370 = vsel %vm90, %v7227, 0
  %v7373 = vsel %vm90, %v7228, 0
  %v7376 = vsel %vm90, %v7229, 0
  %v7379 = vsel %vm90, %v7230, 0
  %v7382 = vsel %vm90, %v7231, 0
  %v7385 = vsel %vm90, %v7232, 0
  %v7388 = vsel %vm90, %v7233, 0
  %v7391 = vsel %vm90, %v7234, 0
  %v7394 = vsel %vm90, %v7235, 0
  %v7397 = vsel %vm90, %v7236, 0
  %v7400 = vsel %vm90, %v7237, 0
  %v7403 = vsel %vm90, %v7238, 0
  %v7406 = vsel %vm90, %v7239, 0
  %v7409 = vsel %vm90, %v7240, 0
  %v7412 = vsel %vm90, %v7241, 0
  %v7415 = vsel %vm90, %v7242, 0
  %v7418 = vsel %vm90, %v7243, 0
  %v7421 = vsel %vm90, %v7244, 0
  %v7424 = vsel %vm90, %v7245, 0
  %v7427 = vsel %vm90, %v7246, 0
  %v7430 = vsel %vm90, %v7247, 0
  %v7433 = vsel %vm90, %v7248, 0
  %v7436 = vsel %vm90, %v7249, 0
  %v7439 = vsel %vm90, %v7250, 0
  %v7442 = vsel %vm90, %v7251, 0
  %v7445 = vsel %vm90, %v7252, 0
  %v7448 = vsel %vm90, %v7253, 0
  %v7451 = vsel %vm90, %v7254, 0
  %v7454 = vsel %vm501, %v7260, 0
  %7456 = vmatprep.subr.mxu0 0.0
  %7457 = vmatpush1.msra.mxu0 %v7454
  %7458 = vmatprep.subr.mxu0 0.0
  %7459 = vmatpush1.msra.mxu0 0.0
  %7460 = vmatprep.subr.mxu0 0.0
  %7461 = vmatpush1.msra.mxu0 0.0
  %7462 = vmatprep.subr.mxu0 0.0
  %7463 = vmatpush1.msra.mxu0 0.0
  %7464 = vmatprep.subr.mxu0 0.0
  %7465 = vmatpush1.msra.mxu0 0.0
  %7466 = vmatprep.subr.mxu0 0.0
  %7467 = vmatpush1.msra.mxu0 0.0
  %7468 = vmatprep.subr.mxu0 0.0
  %7469 = vmatpush1.msra.mxu0 0.0
  %7470 = vmatprep.subr.mxu0 0.0
  %7471 = vmatpush1.msra.mxu0 0.0
  %7472 = vmatprep.subr.mxu0 0.0
  %7473 = vmatpush1.msra.mxu0 0.0
  %7474 = vmatprep.subr.mxu0 0.0
  %7475 = vmatpush1.msra.mxu0 0.0
  %7476 = vmatprep.subr.mxu0 0.0
  %7477 = vmatpush1.msra.mxu0 0.0
  %7478 = vmatprep.subr.mxu0 0.0
  %7479 = vmatpush1.msra.mxu0 0.0
  %7480 = vmatprep.subr.mxu0 0.0
  %7481 = vmatpush1.msra.mxu0 0.0
  %7482 = vmatprep.subr.mxu0 0.0
  %7483 = vmatpush1.msra.mxu0 0.0
  %7484 = vmatprep.subr.mxu0 0.0
  %7485 = vmatpush1.msra.mxu0 0.0
  %7486 = vmatprep.subr.mxu0 0.0
  %7487 = vmatpush1.msra.mxu0 0.0
  %7488 = vmatprep.subr.mxu0 0.0
  %7489 = vmatpush1.msra.mxu0 0.0
  %7490 = vmatprep.subr.mxu0 0.0
  %7491 = vmatpush1.msra.mxu0 0.0
  %7492 = vmatprep.subr.mxu0 0.0
  %7493 = vmatpush1.msra.mxu0 0.0
  %7494 = vmatprep.subr.mxu0 0.0
  %7495 = vmatpush1.msra.mxu0 0.0
  %7496 = vmatprep.subr.mxu0 0.0
  %7497 = vmatpush1.msra.mxu0 0.0
  %7498 = vmatprep.subr.mxu0 0.0
  %7499 = vmatpush1.msra.mxu0 0.0
  %7500 = vmatprep.subr.mxu0 0.0
  %7501 = vmatpush1.msra.mxu0 0.0
  %7502 = vmatprep.subr.mxu0 0.0
  %7503 = vmatpush1.msra.mxu0 0.0
  %7504 = vmatprep.subr.mxu0 0.0
  %7505 = vmatpush1.msra.mxu0 0.0
  %7506 = vmatprep.subr.mxu0 0.0
  %7507 = vmatpush1.msra.mxu0 0.0
  %7508 = vmatprep.subr.mxu0 0.0
  %7509 = vmatpush1.msra.mxu0 0.0
  %7510 = vmatprep.subr.mxu0 0.0
  %7511 = vmatpush1.msra.mxu0 0.0
  %7512 = vmatprep.subr.mxu0 0.0
  %7513 = vmatpush1.msra.mxu0 0.0
  %7514 = vmatprep.subr.mxu0 0.0
  %7515 = vmatpush1.msra.mxu0 0.0
  %7516 = vmatprep.subr.mxu0 0.0
  %7517 = vmatpush1.msra.mxu0 0.0
  %7518 = vmatprep.subr.mxu0 0.0
  %7519 = vmatpush1.msra.mxu0 0.0
  %7520 = vmatprep.mubr.f32.mxu0 0.0
  %7521 = vmatmul.mubr.f32.gmra.mrb[0].mxu0 %v7262
  %v7522 = vpop.f32.mrb[0].mxu0
  %v7523 = vadd.f32 0.0, %v7522
  %v7524 = vpop.f32.mrb[0].mxu0
  %7525 = vmatprep.mubr.f32.mxu0 0.0
  %7526 = vmatmul.mubr.f32.gmra.mrb[0].mxu0 %v7265
  %v7527 = vpop.f32.mrb[0].mxu0
  %v7528 = vadd.f32 0.0, %v7527
  %v7529 = vpop.f32.mrb[0].mxu0
  %7530 = vmatprep.mubr.f32.mxu0 0.0
  %7531 = vmatmul.mubr.f32.gmra.mrb[0].mxu0 %v7268
  %v7532 = vpop.f32.mrb[0].mxu0
  %v7533 = vadd.f32 0.0, %v7532
  %v7534 = vpop.f32.mrb[0].mxu0
  %7535 = vmatprep.mubr.f32.mxu0 0.0
  %7536 = vmatmul.mubr.f32.gmra.mrb[0].mxu0 %v7271
  %v7537 = vpop.f32.mrb[0].mxu0
  %v7538 = vadd.f32 0.0, %v7537
  %v7539 = vpop.f32.mrb[0].mxu0
  %7540 = vmatprep.mubr.f32.mxu0 0.0
  %7541 = vmatmul.mubr.f32.gmra.mrb[0].mxu0 %v7274
  %v7542 = vpop.f32.mrb[0].mxu0
  %v7543 = vadd.f32 0.0, %v7542
  %v7544 = vpop.f32.mrb[0].mxu0
  %7545 = vmatprep.mubr.f32.mxu0 0.0
  %7546 = vmatmul.mubr.f32.gmra.mrb[0].mxu0 %v7277
  %v7547 = vpop.f32.mrb[0].mxu0
  %v7548 = vadd.f32 0.0, %v7547
  %v7549 = vpop.f32.mrb[0].mxu0
  %7550 = vmatprep.mubr.f32.mxu0 0.0
  %7551 = vmatmul.mubr.f32.gmra.mrb[0].mxu0 %v7280
  %v7552 = vpop.f32.mrb[0].mxu0
  %v7553 = vadd.f32 0.0, %v7552
  %v7554 = vpop.f32.mrb[0].mxu0
  %7555 = vmatprep.mubr.f32.mxu0 0.0
  %7556 = vmatmul.mubr.f32.gmra.mrb[0].mxu0 %v7283
  %v7557 = vpop.f32.mrb[0].mxu0
  %v7558 = vadd.f32 0.0, %v7557
  %v7559 = vpop.f32.mrb[0].mxu0
  %7560 = vmatprep.mubr.f32.mxu0 0.0
  %7561 = vmatmul.mubr.f32.gmra.mrb[0].mxu0 %v7286
  %v7562 = vpop.f32.mrb[0].mxu0
  %v7563 = vadd.f32 0.0, %v7562
  %v7564 = vpop.f32.mrb[0].mxu0
  %7565 = vmatprep.mubr.f32.mxu0 0.0
  %7566 = vmatmul.mubr.f32.gmra.mrb[0].mxu0 %v7289
  %v7567 = vpop.f32.mrb[0].mxu0
  %v7568 = vadd.f32 0.0, %v7567
  %v7569 = vpop.f32.mrb[0].mxu0
  %7570 = vmatprep.mubr.f32.mxu0 0.0
  %7571 = vmatmul.mubr.f32.gmra.mrb[0].mxu0 %v7292
  %v7572 = vpop.f32.mrb[0].mxu0
  %v7573 = vadd.f32 0.0, %v7572
  %v7574 = vpop.f32.mrb[0].mxu0
  %7575 = vmatprep.mubr.f32.mxu0 0.0
  %7576 = vmatmul.mubr.f32.gmra.mrb[0].mxu0 %v7295
  %v7577 = vpop.f32.mrb[0].mxu0
  %v7578 = vadd.f32 0.0, %v7577
  %v7579 = vpop.f32.mrb[0].mxu0
  %7580 = vmatprep.mubr.f32.mxu0 0.0
  %7581 = vmatmul.mubr.f32.gmra.mrb[0].mxu0 %v7298
  %v7582 = vpop.f32.mrb[0].mxu0
  %v7583 = vadd.f32 0.0, %v7582
  %v7584 = vpop.f32.mrb[0].mxu0
  %7585 = vmatprep.mubr.f32.mxu0 0.0
  %7586 = vmatmul.mubr.f32.gmra.mrb[0].mxu0 %v7301
  %v7587 = vpop.f32.mrb[0].mxu0
  %v7588 = vadd.f32 0.0, %v7587
  %v7589 = vpop.f32.mrb[0].mxu0
  %7590 = vmatprep.mubr.f32.mxu0 0.0
  %7591 = vmatmul.mubr.f32.gmra.mrb[0].mxu0 %v7304
  %v7592 = vpop.f32.mrb[0].mxu0
  %v7593 = vadd.f32 0.0, %v7592
  %v7594 = vpop.f32.mrb[0].mxu0
  %7595 = vmatprep.mubr.f32.mxu0 0.0
  %7596 = vmatmul.mubr.f32.gmra.mrb[0].mxu0 %v7307
  %v7597 = vpop.f32.mrb[0].mxu0
  %v7598 = vadd.f32 0.0, %v7597
  %v7599 = vpop.f32.mrb[0].mxu0
  %7600 = vmatprep.mubr.f32.mxu0 0.0
  %7601 = vmatmul.mubr.f32.gmra.mrb[0].mxu0 %v7310
  %v7602 = vpop.f32.mrb[0].mxu0
  %v7603 = vadd.f32 0.0, %v7602
  %v7604 = vpop.f32.mrb[0].mxu0
  %7605 = vmatprep.mubr.f32.mxu0 0.0
  %7606 = vmatmul.mubr.f32.gmra.mrb[0].mxu0 %v7313
  %v7607 = vpop.f32.mrb[0].mxu0
  %v7608 = vadd.f32 0.0, %v7607
  %v7609 = vpop.f32.mrb[0].mxu0
  %7610 = vmatprep.mubr.f32.mxu0 0.0
  %7611 = vmatmul.mubr.f32.gmra.mrb[0].mxu0 %v7316
  %v7612 = vpop.f32.mrb[0].mxu0
  %v7613 = vadd.f32 0.0, %v7612
  %v7614 = vpop.f32.mrb[0].mxu0
  %7615 = vmatprep.mubr.f32.mxu0 0.0
  %7616 = vmatmul.mubr.f32.gmra.mrb[0].mxu0 %v7319
  %v7617 = vpop.f32.mrb[0].mxu0
  %v7618 = vadd.f32 0.0, %v7617
  %v7619 = vpop.f32.mrb[0].mxu0
  %7620 = vmatprep.mubr.f32.mxu0 0.0
  %7621 = vmatmul.mubr.f32.gmra.mrb[0].mxu0 %v7322
  %v7622 = vpop.f32.mrb[0].mxu0
  %v7623 = vadd.f32 0.0, %v7622
  %v7624 = vpop.f32.mrb[0].mxu0
  %7625 = vmatprep.mubr.f32.mxu0 0.0
  %7626 = vmatmul.mubr.f32.gmra.mrb[0].mxu0 %v7325
  %v7627 = vpop.f32.mrb[0].mxu0
  %v7628 = vadd.f32 0.0, %v7627
  %v7629 = vpop.f32.mrb[0].mxu0
  %7630 = vmatprep.mubr.f32.mxu0 0.0
  %7631 = vmatmul.mubr.f32.gmra.mrb[0].mxu0 %v7328
  %v7632 = vpop.f32.mrb[0].mxu0
  %v7633 = vadd.f32 0.0, %v7632
  %v7634 = vpop.f32.mrb[0].mxu0
  %7635 = vmatprep.mubr.f32.mxu0 0.0
  %7636 = vmatmul.mubr.f32.gmra.mrb[0].mxu0 %v7331
  %v7637 = vpop.f32.mrb[0].mxu0
  %v7638 = vadd.f32 0.0, %v7637
  %v7639 = vpop.f32.mrb[0].mxu0
  %7640 = vmatprep.mubr.f32.mxu0 0.0
  %7641 = vmatmul.mubr.f32.gmra.mrb[0].mxu0 %v7334
  %v7642 = vpop.f32.mrb[0].mxu0
  %v7643 = vadd.f32 0.0, %v7642
  %v7644 = vpop.f32.mrb[0].mxu0
  %7645 = vmatprep.mubr.f32.mxu0 0.0
  %7646 = vmatmul.mubr.f32.gmra.mrb[0].mxu0 %v7337
  %v7647 = vpop.f32.mrb[0].mxu0
  %v7648 = vadd.f32 0.0, %v7647
  %v7649 = vpop.f32.mrb[0].mxu0
  %7650 = vmatprep.mubr.f32.mxu0 0.0
  %7651 = vmatmul.mubr.f32.gmra.mrb[0].mxu0 %v7340
  %v7652 = vpop.f32.mrb[0].mxu0
  %v7653 = vadd.f32 0.0, %v7652
  %v7654 = vpop.f32.mrb[0].mxu0
  %7655 = vmatprep.mubr.f32.mxu0 0.0
  %7656 = vmatmul.mubr.f32.gmra.mrb[0].mxu0 %v7343
  %v7657 = vpop.f32.mrb[0].mxu0
  %v7658 = vadd.f32 0.0, %v7657
  %v7659 = vpop.f32.mrb[0].mxu0
  %7660 = vmatprep.mubr.f32.mxu0 0.0
  %7661 = vmatmul.mubr.f32.gmra.mrb[0].mxu0 %v7346
  %v7662 = vpop.f32.mrb[0].mxu0
  %v7663 = vadd.f32 0.0, %v7662
  %v7664 = vpop.f32.mrb[0].mxu0
  %7665 = vmatprep.mubr.f32.mxu0 0.0
  %7666 = vmatmul.mubr.f32.gmra.mrb[0].mxu0 %v7349
  %v7667 = vpop.f32.mrb[0].mxu0
  %v7668 = vadd.f32 0.0, %v7667
  %v7669 = vpop.f32.mrb[0].mxu0
  %7670 = vmatprep.mubr.f32.mxu0 0.0
  %7671 = vmatmul.mubr.f32.gmra.mrb[0].mxu0 %v7352
  %v7672 = vpop.f32.mrb[0].mxu0
  %v7673 = vadd.f32 0.0, %v7672
  %v7674 = vpop.f32.mrb[0].mxu0
  %7675 = vmatprep.mubr.f32.mxu0 0.0
  %7676 = vmatmul.mubr.f32.gmra.mrb[0].mxu0 %v7355
  %v7677 = vpop.f32.mrb[0].mxu0
  %v7678 = vadd.f32 0.0, %v7677
  %v7679 = vpop.f32.mrb[0].mxu0
  %7680 = vmatprep.mubr.f32.mxu0 0.0
  %7681 = vmatmul.mubr.f32.gmra.mrb[0].mxu0 %v7358
  %v7682 = vpop.f32.mrb[0].mxu0
  %v7683 = vadd.f32 0.0, %v7682
  %v7684 = vpop.f32.mrb[0].mxu0
  %7685 = vmatprep.mubr.f32.mxu0 0.0
  %7686 = vmatmul.mubr.f32.gmra.mrb[0].mxu0 %v7361
  %v7687 = vpop.f32.mrb[0].mxu0
  %v7688 = vadd.f32 0.0, %v7687
  %v7689 = vpop.f32.mrb[0].mxu0
  %7690 = vmatprep.mubr.f32.mxu0 0.0
  %7691 = vmatmul.mubr.f32.gmra.mrb[0].mxu0 %v7364
  %v7692 = vpop.f32.mrb[0].mxu0
  %v7693 = vadd.f32 0.0, %v7692
  %v7694 = vpop.f32.mrb[0].mxu0
  %7695 = vmatprep.mubr.f32.mxu0 0.0
  %7696 = vmatmul.mubr.f32.gmra.mrb[0].mxu0 %v7367
  %v7697 = vpop.f32.mrb[0].mxu0
  %v7698 = vadd.f32 0.0, %v7697
  %v7699 = vpop.f32.mrb[0].mxu0
  %7700 = vmatprep.mubr.f32.mxu0 0.0
  %7701 = vmatmul.mubr.f32.gmra.mrb[0].mxu0 %v7370
  %v7702 = vpop.f32.mrb[0].mxu0
  %v7703 = vadd.f32 0.0, %v7702
  %v7704 = vpop.f32.mrb[0].mxu0
  %7705 = vmatprep.mubr.f32.mxu0 0.0
  %7706 = vmatmul.mubr.f32.gmra.mrb[0].mxu0 %v7373
  %v7707 = vpop.f32.mrb[0].mxu0
  %v7708 = vadd.f32 0.0, %v7707
  %v7709 = vpop.f32.mrb[0].mxu0
  %7710 = vmatprep.mubr.f32.mxu0 0.0
  %7711 = vmatmul.mubr.f32.gmra.mrb[0].mxu0 %v7376
  %v7712 = vpop.f32.mrb[0].mxu0
  %v7713 = vadd.f32 0.0, %v7712
  %v7714 = vpop.f32.mrb[0].mxu0
  %7715 = vmatprep.mubr.f32.mxu0 0.0
  %7716 = vmatmul.mubr.f32.gmra.mrb[0].mxu0 %v7379
  %v7717 = vpop.f32.mrb[0].mxu0
  %v7718 = vadd.f32 0.0, %v7717
  %v7719 = vpop.f32.mrb[0].mxu0
  %7720 = vmatprep.mubr.f32.mxu0 0.0
  %7721 = vmatmul.mubr.f32.gmra.mrb[0].mxu0 %v7382
  %v7722 = vpop.f32.mrb[0].mxu0
  %v7723 = vadd.f32 0.0, %v7722
  %v7724 = vpop.f32.mrb[0].mxu0
  %7725 = vmatprep.mubr.f32.mxu0 0.0
  %7726 = vmatmul.mubr.f32.gmra.mrb[0].mxu0 %v7385
  %v7727 = vpop.f32.mrb[0].mxu0
  %v7728 = vadd.f32 0.0, %v7727
  %v7729 = vpop.f32.mrb[0].mxu0
  %7730 = vmatprep.mubr.f32.mxu0 0.0
  %7731 = vmatmul.mubr.f32.gmra.mrb[0].mxu0 %v7388
  %v7732 = vpop.f32.mrb[0].mxu0
  %v7733 = vadd.f32 0.0, %v7732
  %v7734 = vpop.f32.mrb[0].mxu0
  %7735 = vmatprep.mubr.f32.mxu0 0.0
  %7736 = vmatmul.mubr.f32.gmra.mrb[0].mxu0 %v7391
  %v7737 = vpop.f32.mrb[0].mxu0
  %v7738 = vadd.f32 0.0, %v7737
  %v7739 = vpop.f32.mrb[0].mxu0
  %7740 = vmatprep.mubr.f32.mxu0 0.0
  %7741 = vmatmul.mubr.f32.gmra.mrb[0].mxu0 %v7394
  %v7742 = vpop.f32.mrb[0].mxu0
  %v7743 = vadd.f32 0.0, %v7742
  %v7744 = vpop.f32.mrb[0].mxu0
  %7745 = vmatprep.mubr.f32.mxu0 0.0
  %7746 = vmatmul.mubr.f32.gmra.mrb[0].mxu0 %v7397
  %v7747 = vpop.f32.mrb[0].mxu0
  %v7748 = vadd.f32 0.0, %v7747
  %v7749 = vpop.f32.mrb[0].mxu0
  %7750 = vmatprep.mubr.f32.mxu0 0.0
  %7751 = vmatmul.mubr.f32.gmra.mrb[0].mxu0 %v7400
  %v7752 = vpop.f32.mrb[0].mxu0
  %v7753 = vadd.f32 0.0, %v7752
  %v7754 = vpop.f32.mrb[0].mxu0
  %7755 = vmatprep.mubr.f32.mxu0 0.0
  %7756 = vmatmul.mubr.f32.gmra.mrb[0].mxu0 %v7403
  %v7757 = vpop.f32.mrb[0].mxu0
  %v7758 = vadd.f32 0.0, %v7757
  %v7759 = vpop.f32.mrb[0].mxu0
  %7760 = vmatprep.mubr.f32.mxu0 0.0
  %7761 = vmatmul.mubr.f32.gmra.mrb[0].mxu0 %v7406
  %v7762 = vpop.f32.mrb[0].mxu0
  %v7763 = vadd.f32 0.0, %v7762
  %v7764 = vpop.f32.mrb[0].mxu0
  %7765 = vmatprep.mubr.f32.mxu0 0.0
  %7766 = vmatmul.mubr.f32.gmra.mrb[0].mxu0 %v7409
  %v7767 = vpop.f32.mrb[0].mxu0
  %v7768 = vadd.f32 0.0, %v7767
  %v7769 = vpop.f32.mrb[0].mxu0
  %7770 = vmatprep.mubr.f32.mxu0 0.0
  %7771 = vmatmul.mubr.f32.gmra.mrb[0].mxu0 %v7412
  %v7772 = vpop.f32.mrb[0].mxu0
  %v7773 = vadd.f32 0.0, %v7772
  %v7774 = vpop.f32.mrb[0].mxu0
  %7775 = vmatprep.mubr.f32.mxu0 0.0
  %7776 = vmatmul.mubr.f32.gmra.mrb[0].mxu0 %v7415
  %v7777 = vpop.f32.mrb[0].mxu0
  %v7778 = vadd.f32 0.0, %v7777
  %v7779 = vpop.f32.mrb[0].mxu0
  %7780 = vmatprep.mubr.f32.mxu0 0.0
  %7781 = vmatmul.mubr.f32.gmra.mrb[0].mxu0 %v7418
  %v7782 = vpop.f32.mrb[0].mxu0
  %v7783 = vadd.f32 0.0, %v7782
  %v7784 = vpop.f32.mrb[0].mxu0
  %7785 = vmatprep.mubr.f32.mxu0 0.0
  %7786 = vmatmul.mubr.f32.gmra.mrb[0].mxu0 %v7421
  %v7787 = vpop.f32.mrb[0].mxu0
  %v7788 = vadd.f32 0.0, %v7787
  %v7789 = vpop.f32.mrb[0].mxu0
  %7790 = vmatprep.mubr.f32.mxu0 0.0
  %7791 = vmatmul.mubr.f32.gmra.mrb[0].mxu0 %v7424
  %v7792 = vpop.f32.mrb[0].mxu0
  %v7793 = vadd.f32 0.0, %v7792
  %v7794 = vpop.f32.mrb[0].mxu0
  %7795 = vmatprep.mubr.f32.mxu0 0.0
  %7796 = vmatmul.mubr.f32.gmra.mrb[0].mxu0 %v7427
  %v7797 = vpop.f32.mrb[0].mxu0
  %v7798 = vadd.f32 0.0, %v7797
  %v7799 = vpop.f32.mrb[0].mxu0
  %7800 = vmatprep.mubr.f32.mxu0 0.0
  %7801 = vmatmul.mubr.f32.gmra.mrb[0].mxu0 %v7430
  %v7802 = vpop.f32.mrb[0].mxu0
  %v7803 = vadd.f32 0.0, %v7802
  %v7804 = vpop.f32.mrb[0].mxu0
  %7805 = vmatprep.mubr.f32.mxu0 0.0
  %7806 = vmatmul.mubr.f32.gmra.mrb[0].mxu0 %v7433
  %v7807 = vpop.f32.mrb[0].mxu0
  %v7808 = vadd.f32 0.0, %v7807
  %v7809 = vpop.f32.mrb[0].mxu0
  %7810 = vmatprep.mubr.f32.mxu0 0.0
  %7811 = vmatmul.mubr.f32.gmra.mrb[0].mxu0 %v7436
  %v7812 = vpop.f32.mrb[0].mxu0
  %v7813 = vadd.f32 0.0, %v7812
  %v7814 = vpop.f32.mrb[0].mxu0
  %7815 = vmatprep.mubr.f32.mxu0 0.0
  %7816 = vmatmul.mubr.f32.gmra.mrb[0].mxu0 %v7439
  %v7817 = vpop.f32.mrb[0].mxu0
  %v7818 = vadd.f32 0.0, %v7817
  %v7819 = vpop.f32.mrb[0].mxu0
  %7820 = vmatprep.mubr.f32.mxu0 0.0
  %7821 = vmatmul.mubr.f32.gmra.mrb[0].mxu0 %v7442
  %v7822 = vpop.f32.mrb[0].mxu0
  %v7823 = vadd.f32 0.0, %v7822
  %v7824 = vpop.f32.mrb[0].mxu0
  %7825 = vmatprep.mubr.f32.mxu0 0.0
  %7826 = vmatmul.mubr.f32.gmra.mrb[0].mxu0 %v7445
  %v7827 = vpop.f32.mrb[0].mxu0
  %v7828 = vadd.f32 0.0, %v7827
  %v7829 = vpop.f32.mrb[0].mxu0
  %7830 = vmatprep.mubr.f32.mxu0 0.0
  %7831 = vmatmul.mubr.f32.gmra.mrb[0].mxu0 %v7448
  %v7832 = vpop.f32.mrb[0].mxu0
  %v7833 = vadd.f32 0.0, %v7832
  %v7834 = vpop.f32.mrb[0].mxu0
  %7835 = vmatprep.mubr.f32.mxu0 0.0
  %7836 = vmatmul.mubr.f32.gmra.mrb[0].mxu0 %v7451
  %v7837 = vpop.f32.mrb[0].mxu0
  %v7838 = vadd.f32 0.0, %v7837
  %v7839 = vpop.f32.mrb[0].mxu0
  %7840 = vdwg.mxu0
  %v7841 = vadd.f32 %v7123, %v7523
  %v7842 = vadd.f32 %v7124, %v7528
  %v7843 = vadd.f32 %v7125, %v7533
  %v7844 = vadd.f32 %v7126, %v7538
  %v7845 = vadd.f32 %v7127, %v7543
  %v7846 = vadd.f32 %v7128, %v7548
  %v7847 = vadd.f32 %v7129, %v7553
  %v7848 = vadd.f32 %v7130, %v7558
  %v7849 = vadd.f32 %v7131, %v7563
  %v7850 = vadd.f32 %v7132, %v7568
  %v7851 = vadd.f32 %v7133, %v7573
  %v7852 = vadd.f32 %v7134, %v7578
  %v7853 = vadd.f32 %v7135, %v7583
  %v7854 = vadd.f32 %v7136, %v7588
  %v7855 = vadd.f32 %v7137, %v7593
  %v7856 = vadd.f32 %v7138, %v7598
  %v7857 = vadd.f32 %v7139, %v7603
  %v7858 = vadd.f32 %v7140, %v7608
  %v7859 = vadd.f32 %v7141, %v7613
  %v7860 = vadd.f32 %v7142, %v7618
  %v7861 = vadd.f32 %v7143, %v7623
  %v7862 = vadd.f32 %v7144, %v7628
  %v7863 = vadd.f32 %v7145, %v7633
  %v7864 = vadd.f32 %v7146, %v7638
  %v7865 = vadd.f32 %v7147, %v7643
  %v7866 = vadd.f32 %v7148, %v7648
  %v7867 = vadd.f32 %v7149, %v7653
  %v7868 = vadd.f32 %v7150, %v7658
  %v7869 = vadd.f32 %v7151, %v7663
  %v7870 = vadd.f32 %v7152, %v7668
  %v7871 = vadd.f32 %v7153, %v7673
  %v7872 = vadd.f32 %v7154, %v7678
  %v7873 = vadd.f32 %v7155, %v7683
  %v7874 = vadd.f32 %v7156, %v7688
  %v7875 = vadd.f32 %v7157, %v7693
  %v7876 = vadd.f32 %v7158, %v7698
  %v7877 = vadd.f32 %v7159, %v7703
  %v7878 = vadd.f32 %v7160, %v7708
  %v7879 = vadd.f32 %v7161, %v7713
  %v7880 = vadd.f32 %v7162, %v7718
  %v7881 = vadd.f32 %v7163, %v7723
  %v7882 = vadd.f32 %v7164, %v7728
  %v7883 = vadd.f32 %v7165, %v7733
  %v7884 = vadd.f32 %v7166, %v7738
  %v7885 = vadd.f32 %v7167, %v7743
  %v7886 = vadd.f32 %v7168, %v7748
  %v7887 = vadd.f32 %v7169, %v7753
  %v7888 = vadd.f32 %v7170, %v7758
  %v7889 = vadd.f32 %v7171, %v7763
  %v7890 = vadd.f32 %v7172, %v7768
  %v7891 = vadd.f32 %v7173, %v7773
  %v7892 = vadd.f32 %v7174, %v7778
  %v7893 = vadd.f32 %v7175, %v7783
  %v7894 = vadd.f32 %v7176, %v7788
  %v7895 = vadd.f32 %v7177, %v7793
  %v7896 = vadd.f32 %v7178, %v7798
  %v7897 = vadd.f32 %v7179, %v7803
  %v7898 = vadd.f32 %v7180, %v7808
  %v7899 = vadd.f32 %v7181, %v7813
  %v7900 = vadd.f32 %v7182, %v7818
  %v7901 = vadd.f32 %v7183, %v7823
  %v7902 = vadd.f32 %v7184, %v7828
  %v7903 = vadd.f32 %v7185, %v7833
  %v7904 = vadd.f32 %v7186, %v7838
  %s7905 = scalar_lea.vmem %s2, 16
  %v7906 = vld [vmem:[%s7905] sm:$0xf]
  %v7908 = vsel %vm90, %v7219, 0
  %v7911 = vsel %vm90, %v7220, 0
  %v7914 = vsel %vm90, %v7255, 0
  %v7917 = vsel %vm90, %v7256, 0
  %v7920 = vsel %vm501, %v7906, 0
  %7922 = vmatprep.subr.mxu0 0.0
  %7923 = vmatpush1.msra.mxu0 %v7920
  %7924 = vmatprep.subr.mxu0 0.0
  %7925 = vmatpush1.msra.mxu0 0.0
  %7926 = vmatprep.subr.mxu0 0.0
  %7927 = vmatpush1.msra.mxu0 0.0
  %7928 = vmatprep.subr.mxu0 0.0
  %7929 = vmatpush1.msra.mxu0 0.0
  %7930 = vmatprep.subr.mxu0 0.0
  %7931 = vmatpush1.msra.mxu0 0.0
  %7932 = vmatprep.subr.mxu0 0.0
  %7933 = vmatpush1.msra.mxu0 0.0
  %7934 = vmatprep.subr.mxu0 0.0
  %7935 = vmatpush1.msra.mxu0 0.0
  %7936 = vmatprep.subr.mxu0 0.0
  %7937 = vmatpush1.msra.mxu0 0.0
  %7938 = vmatprep.subr.mxu0 0.0
  %7939 = vmatpush1.msra.mxu0 0.0
  %7940 = vmatprep.subr.mxu0 0.0
  %7941 = vmatpush1.msra.mxu0 0.0
  %7942 = vmatprep.subr.mxu0 0.0
  %7943 = vmatpush1.msra.mxu0 0.0
  %7944 = vmatprep.subr.mxu0 0.0
  %7945 = vmatpush1.msra.mxu0 0.0
  %7946 = vmatprep.subr.mxu0 0.0
  %7947 = vmatpush1.msra.mxu0 0.0
  %7948 = vmatprep.subr.mxu0 0.0
  %7949 = vmatpush1.msra.mxu0 0.0
  %7950 = vmatprep.subr.mxu0 0.0
  %7951 = vmatpush1.msra.mxu0 0.0
  %7952 = vmatprep.subr.mxu0 0.0
  %7953 = vmatpush1.msra.mxu0 0.0
  %7954 = vmatprep.subr.mxu0 0.0
  %7955 = vmatpush1.msra.mxu0 0.0
  %7956 = vmatprep.subr.mxu0 0.0
  %7957 = vmatpush1.msra.mxu0 0.0
  %7958 = vmatprep.subr.mxu0 0.0
  %7959 = vmatpush1.msra.mxu0 0.0
  %7960 = vmatprep.subr.mxu0 0.0
  %7961 = vmatpush1.msra.mxu0 0.0
  %7962 = vmatprep.subr.mxu0 0.0
  %7963 = vmatpush1.msra.mxu0 0.0
  %7964 = vmatprep.subr.mxu0 0.0
  %7965 = vmatpush1.msra.mxu0 0.0
  %7966 = vmatprep.subr.mxu0 0.0
  %7967 = vmatpush1.msra.mxu0 0.0
  %7968 = vmatprep.subr.mxu0 0.0
  %7969 = vmatpush1.msra.mxu0 0.0
  %7970 = vmatprep.subr.mxu0 0.0
  %7971 = vmatpush1.msra.mxu0 0.0
  %7972 = vmatprep.subr.mxu0 0.0
  %7973 = vmatpush1.msra.mxu0 0.0
  %7974 = vmatprep.subr.mxu0 0.0
  %7975 = vmatpush1.msra.mxu0 0.0
  %7976 = vmatprep.subr.mxu0 0.0
  %7977 = vmatpush1.msra.mxu0 0.0
  %7978 = vmatprep.subr.mxu0 0.0
  %7979 = vmatpush1.msra.mxu0 0.0
  %7980 = vmatprep.subr.mxu0 0.0
  %7981 = vmatpush1.msra.mxu0 0.0
  %7982 = vmatprep.subr.mxu0 0.0
  %7983 = vmatpush1.msra.mxu0 0.0
  %7984 = vmatprep.subr.mxu0 0.0
  %7985 = vmatpush1.msra.mxu0 0.0
  %7986 = vmatprep.mubr.f32.mxu0 0.0
  %7987 = vmatmul.mubr.f32.gmra.mrb[0].mxu0 %v7268
  %v7988 = vpop.f32.mrb[0].mxu0
  %v7989 = vadd.f32 0.0, %v7988
  %v7990 = vpop.f32.mrb[0].mxu0
  %7991 = vmatprep.mubr.f32.mxu0 0.0
  %7992 = vmatmul.mubr.f32.gmra.mrb[0].mxu0 %v7271
  %v7993 = vpop.f32.mrb[0].mxu0
  %v7994 = vadd.f32 0.0, %v7993
  %v7995 = vpop.f32.mrb[0].mxu0
  %7996 = vmatprep.mubr.f32.mxu0 0.0
  %7997 = vmatmul.mubr.f32.gmra.mrb[0].mxu0 %v7274
  %v7998 = vpop.f32.mrb[0].mxu0
  %v7999 = vadd.f32 0.0, %v7998
  %v8000 = vpop.f32.mrb[0].mxu0
  %8001 = vmatprep.mubr.f32.mxu0 0.0
  %8002 = vmatmul.mubr.f32.gmra.mrb[0].mxu0 %v7277
  %v8003 = vpop.f32.mrb[0].mxu0
  %v8004 = vadd.f32 0.0, %v8003
  %v8005 = vpop.f32.mrb[0].mxu0
  %8006 = vmatprep.mubr.f32.mxu0 0.0
  %8007 = vmatmul.mubr.f32.gmra.mrb[0].mxu0 %v7280
  %v8008 = vpop.f32.mrb[0].mxu0
  %v8009 = vadd.f32 0.0, %v8008
  %v8010 = vpop.f32.mrb[0].mxu0
  %8011 = vmatprep.mubr.f32.mxu0 0.0
  %8012 = vmatmul.mubr.f32.gmra.mrb[0].mxu0 %v7283
  %v8013 = vpop.f32.mrb[0].mxu0
  %v8014 = vadd.f32 0.0, %v8013
  %v8015 = vpop.f32.mrb[0].mxu0
  %8016 = vmatprep.mubr.f32.mxu0 0.0
  %8017 = vmatmul.mubr.f32.gmra.mrb[0].mxu0 %v7286
  %v8018 = vpop.f32.mrb[0].mxu0
  %v8019 = vadd.f32 0.0, %v8018
  %v8020 = vpop.f32.mrb[0].mxu0
  %8021 = vmatprep.mubr.f32.mxu0 0.0
  %8022 = vmatmul.mubr.f32.gmra.mrb[0].mxu0 %v7289
  %v8023 = vpop.f32.mrb[0].mxu0
  %v8024 = vadd.f32 0.0, %v8023
  %v8025 = vpop.f32.mrb[0].mxu0
  %8026 = vmatprep.mubr.f32.mxu0 0.0
  %8027 = vmatmul.mubr.f32.gmra.mrb[0].mxu0 %v7292
  %v8028 = vpop.f32.mrb[0].mxu0
  %v8029 = vadd.f32 0.0, %v8028
  %v8030 = vpop.f32.mrb[0].mxu0
  %8031 = vmatprep.mubr.f32.mxu0 0.0
  %8032 = vmatmul.mubr.f32.gmra.mrb[0].mxu0 %v7295
  %v8033 = vpop.f32.mrb[0].mxu0
  %v8034 = vadd.f32 0.0, %v8033
  %v8035 = vpop.f32.mrb[0].mxu0
  %8036 = vmatprep.mubr.f32.mxu0 0.0
  %8037 = vmatmul.mubr.f32.gmra.mrb[0].mxu0 %v7298
  %v8038 = vpop.f32.mrb[0].mxu0
  %v8039 = vadd.f32 0.0, %v8038
  %v8040 = vpop.f32.mrb[0].mxu0
  %8041 = vmatprep.mubr.f32.mxu0 0.0
  %8042 = vmatmul.mubr.f32.gmra.mrb[0].mxu0 %v7301
  %v8043 = vpop.f32.mrb[0].mxu0
  %v8044 = vadd.f32 0.0, %v8043
  %v8045 = vpop.f32.mrb[0].mxu0
  %8046 = vmatprep.mubr.f32.mxu0 0.0
  %8047 = vmatmul.mubr.f32.gmra.mrb[0].mxu0 %v7304
  %v8048 = vpop.f32.mrb[0].mxu0
  %v8049 = vadd.f32 0.0, %v8048
  %v8050 = vpop.f32.mrb[0].mxu0
  %8051 = vmatprep.mubr.f32.mxu0 0.0
  %8052 = vmatmul.mubr.f32.gmra.mrb[0].mxu0 %v7307
  %v8053 = vpop.f32.mrb[0].mxu0
  %v8054 = vadd.f32 0.0, %v8053
  %v8055 = vpop.f32.mrb[0].mxu0
  %8056 = vmatprep.mubr.f32.mxu0 0.0
  %8057 = vmatmul.mubr.f32.gmra.mrb[0].mxu0 %v7310
  %v8058 = vpop.f32.mrb[0].mxu0
  %v8059 = vadd.f32 0.0, %v8058
  %v8060 = vpop.f32.mrb[0].mxu0
  %8061 = vmatprep.mubr.f32.mxu0 0.0
  %8062 = vmatmul.mubr.f32.gmra.mrb[0].mxu0 %v7313
  %v8063 = vpop.f32.mrb[0].mxu0
  %v8064 = vadd.f32 0.0, %v8063
  %v8065 = vpop.f32.mrb[0].mxu0
  %8066 = vmatprep.mubr.f32.mxu0 0.0
  %8067 = vmatmul.mubr.f32.gmra.mrb[0].mxu0 %v7316
  %v8068 = vpop.f32.mrb[0].mxu0
  %v8069 = vadd.f32 0.0, %v8068
  %v8070 = vpop.f32.mrb[0].mxu0
  %8071 = vmatprep.mubr.f32.mxu0 0.0
  %8072 = vmatmul.mubr.f32.gmra.mrb[0].mxu0 %v7319
  %v8073 = vpop.f32.mrb[0].mxu0
  %v8074 = vadd.f32 0.0, %v8073
  %v8075 = vpop.f32.mrb[0].mxu0
  %8076 = vmatprep.mubr.f32.mxu0 0.0
  %8077 = vmatmul.mubr.f32.gmra.mrb[0].mxu0 %v7322
  %v8078 = vpop.f32.mrb[0].mxu0
  %v8079 = vadd.f32 0.0, %v8078
  %v8080 = vpop.f32.mrb[0].mxu0
  %8081 = vmatprep.mubr.f32.mxu0 0.0
  %8082 = vmatmul.mubr.f32.gmra.mrb[0].mxu0 %v7325
  %v8083 = vpop.f32.mrb[0].mxu0
  %v8084 = vadd.f32 0.0, %v8083
  %v8085 = vpop.f32.mrb[0].mxu0
  %8086 = vmatprep.mubr.f32.mxu0 0.0
  %8087 = vmatmul.mubr.f32.gmra.mrb[0].mxu0 %v7328
  %v8088 = vpop.f32.mrb[0].mxu0
  %v8089 = vadd.f32 0.0, %v8088
  %v8090 = vpop.f32.mrb[0].mxu0
  %8091 = vmatprep.mubr.f32.mxu0 0.0
  %8092 = vmatmul.mubr.f32.gmra.mrb[0].mxu0 %v7331
  %v8093 = vpop.f32.mrb[0].mxu0
  %v8094 = vadd.f32 0.0, %v8093
  %v8095 = vpop.f32.mrb[0].mxu0
  %8096 = vmatprep.mubr.f32.mxu0 0.0
  %8097 = vmatmul.mubr.f32.gmra.mrb[0].mxu0 %v7334
  %v8098 = vpop.f32.mrb[0].mxu0
  %v8099 = vadd.f32 0.0, %v8098
  %v8100 = vpop.f32.mrb[0].mxu0
  %8101 = vmatprep.mubr.f32.mxu0 0.0
  %8102 = vmatmul.mubr.f32.gmra.mrb[0].mxu0 %v7337
  %v8103 = vpop.f32.mrb[0].mxu0
  %v8104 = vadd.f32 0.0, %v8103
  %v8105 = vpop.f32.mrb[0].mxu0
  %8106 = vmatprep.mubr.f32.mxu0 0.0
  %8107 = vmatmul.mubr.f32.gmra.mrb[0].mxu0 %v7340
  %v8108 = vpop.f32.mrb[0].mxu0
  %v8109 = vadd.f32 0.0, %v8108
  %v8110 = vpop.f32.mrb[0].mxu0
  %8111 = vmatprep.mubr.f32.mxu0 0.0
  %8112 = vmatmul.mubr.f32.gmra.mrb[0].mxu0 %v7343
  %v8113 = vpop.f32.mrb[0].mxu0
  %v8114 = vadd.f32 0.0, %v8113
  %v8115 = vpop.f32.mrb[0].mxu0
  %8116 = vmatprep.mubr.f32.mxu0 0.0
  %8117 = vmatmul.mubr.f32.gmra.mrb[0].mxu0 %v7346
  %v8118 = vpop.f32.mrb[0].mxu0
  %v8119 = vadd.f32 0.0, %v8118
  %v8120 = vpop.f32.mrb[0].mxu0
  %8121 = vmatprep.mubr.f32.mxu0 0.0
  %8122 = vmatmul.mubr.f32.gmra.mrb[0].mxu0 %v7349
  %v8123 = vpop.f32.mrb[0].mxu0
  %v8124 = vadd.f32 0.0, %v8123
  %v8125 = vpop.f32.mrb[0].mxu0
  %8126 = vmatprep.mubr.f32.mxu0 0.0
  %8127 = vmatmul.mubr.f32.gmra.mrb[0].mxu0 %v7352
  %v8128 = vpop.f32.mrb[0].mxu0
  %v8129 = vadd.f32 0.0, %v8128
  %v8130 = vpop.f32.mrb[0].mxu0
  %8131 = vmatprep.mubr.f32.mxu0 0.0
  %8132 = vmatmul.mubr.f32.gmra.mrb[0].mxu0 %v7355
  %v8133 = vpop.f32.mrb[0].mxu0
  %v8134 = vadd.f32 0.0, %v8133
  %v8135 = vpop.f32.mrb[0].mxu0
  %8136 = vmatprep.mubr.f32.mxu0 0.0
  %8137 = vmatmul.mubr.f32.gmra.mrb[0].mxu0 %v7908
  %v8138 = vpop.f32.mrb[0].mxu0
  %v8139 = vadd.f32 0.0, %v8138
  %v8140 = vpop.f32.mrb[0].mxu0
  %8141 = vmatprep.mubr.f32.mxu0 0.0
  %8142 = vmatmul.mubr.f32.gmra.mrb[0].mxu0 %v7911
  %v8143 = vpop.f32.mrb[0].mxu0
  %v8144 = vadd.f32 0.0, %v8143
  %v8145 = vpop.f32.mrb[0].mxu0
  %8146 = vmatprep.mubr.f32.mxu0 0.0
  %8147 = vmatmul.mubr.f32.gmra.mrb[0].mxu0 %v7364
  %v8148 = vpop.f32.mrb[0].mxu0
  %v8149 = vadd.f32 0.0, %v8148
  %v8150 = vpop.f32.mrb[0].mxu0
  %8151 = vmatprep.mubr.f32.mxu0 0.0
  %8152 = vmatmul.mubr.f32.gmra.mrb[0].mxu0 %v7367
  %v8153 = vpop.f32.mrb[0].mxu0
  %v8154 = vadd.f32 0.0, %v8153
  %v8155 = vpop.f32.mrb[0].mxu0
  %8156 = vmatprep.mubr.f32.mxu0 0.0
  %8157 = vmatmul.mubr.f32.gmra.mrb[0].mxu0 %v7370
  %v8158 = vpop.f32.mrb[0].mxu0
  %v8159 = vadd.f32 0.0, %v8158
  %v8160 = vpop.f32.mrb[0].mxu0
  %8161 = vmatprep.mubr.f32.mxu0 0.0
  %8162 = vmatmul.mubr.f32.gmra.mrb[0].mxu0 %v7373
  %v8163 = vpop.f32.mrb[0].mxu0
  %v8164 = vadd.f32 0.0, %v8163
  %v8165 = vpop.f32.mrb[0].mxu0
  %8166 = vmatprep.mubr.f32.mxu0 0.0
  %8167 = vmatmul.mubr.f32.gmra.mrb[0].mxu0 %v7376
  %v8168 = vpop.f32.mrb[0].mxu0
  %v8169 = vadd.f32 0.0, %v8168
  %v8170 = vpop.f32.mrb[0].mxu0
  %8171 = vmatprep.mubr.f32.mxu0 0.0
  %8172 = vmatmul.mubr.f32.gmra.mrb[0].mxu0 %v7379
  %v8173 = vpop.f32.mrb[0].mxu0
  %v8174 = vadd.f32 0.0, %v8173
  %v8175 = vpop.f32.mrb[0].mxu0
  %8176 = vmatprep.mubr.f32.mxu0 0.0
  %8177 = vmatmul.mubr.f32.gmra.mrb[0].mxu0 %v7382
  %v8178 = vpop.f32.mrb[0].mxu0
  %v8179 = vadd.f32 0.0, %v8178
  %v8180 = vpop.f32.mrb[0].mxu0
  %8181 = vmatprep.mubr.f32.mxu0 0.0
  %8182 = vmatmul.mubr.f32.gmra.mrb[0].mxu0 %v7385
  %v8183 = vpop.f32.mrb[0].mxu0
  %v8184 = vadd.f32 0.0, %v8183
  %v8185 = vpop.f32.mrb[0].mxu0
  %8186 = vmatprep.mubr.f32.mxu0 0.0
  %8187 = vmatmul.mubr.f32.gmra.mrb[0].mxu0 %v7388
  %v8188 = vpop.f32.mrb[0].mxu0
  %v8189 = vadd.f32 0.0, %v8188
  %v8190 = vpop.f32.mrb[0].mxu0
  %8191 = vmatprep.mubr.f32.mxu0 0.0
  %8192 = vmatmul.mubr.f32.gmra.mrb[0].mxu0 %v7391
  %v8193 = vpop.f32.mrb[0].mxu0
  %v8194 = vadd.f32 0.0, %v8193
  %v8195 = vpop.f32.mrb[0].mxu0
  %8196 = vmatprep.mubr.f32.mxu0 0.0
  %8197 = vmatmul.mubr.f32.gmra.mrb[0].mxu0 %v7394
  %v8198 = vpop.f32.mrb[0].mxu0
  %v8199 = vadd.f32 0.0, %v8198
  %v8200 = vpop.f32.mrb[0].mxu0
  %8201 = vmatprep.mubr.f32.mxu0 0.0
  %8202 = vmatmul.mubr.f32.gmra.mrb[0].mxu0 %v7397
  %v8203 = vpop.f32.mrb[0].mxu0
  %v8204 = vadd.f32 0.0, %v8203
  %v8205 = vpop.f32.mrb[0].mxu0
  %8206 = vmatprep.mubr.f32.mxu0 0.0
  %8207 = vmatmul.mubr.f32.gmra.mrb[0].mxu0 %v7400
  %v8208 = vpop.f32.mrb[0].mxu0
  %v8209 = vadd.f32 0.0, %v8208
  %v8210 = vpop.f32.mrb[0].mxu0
  %8211 = vmatprep.mubr.f32.mxu0 0.0
  %8212 = vmatmul.mubr.f32.gmra.mrb[0].mxu0 %v7403
  %v8213 = vpop.f32.mrb[0].mxu0
  %v8214 = vadd.f32 0.0, %v8213
  %v8215 = vpop.f32.mrb[0].mxu0
  %8216 = vmatprep.mubr.f32.mxu0 0.0
  %8217 = vmatmul.mubr.f32.gmra.mrb[0].mxu0 %v7406
  %v8218 = vpop.f32.mrb[0].mxu0
  %v8219 = vadd.f32 0.0, %v8218
  %v8220 = vpop.f32.mrb[0].mxu0
  %8221 = vmatprep.mubr.f32.mxu0 0.0
  %8222 = vmatmul.mubr.f32.gmra.mrb[0].mxu0 %v7409
  %v8223 = vpop.f32.mrb[0].mxu0
  %v8224 = vadd.f32 0.0, %v8223
  %v8225 = vpop.f32.mrb[0].mxu0
  %8226 = vmatprep.mubr.f32.mxu0 0.0
  %8227 = vmatmul.mubr.f32.gmra.mrb[0].mxu0 %v7412
  %v8228 = vpop.f32.mrb[0].mxu0
  %v8229 = vadd.f32 0.0, %v8228
  %v8230 = vpop.f32.mrb[0].mxu0
  %8231 = vmatprep.mubr.f32.mxu0 0.0
  %8232 = vmatmul.mubr.f32.gmra.mrb[0].mxu0 %v7415
  %v8233 = vpop.f32.mrb[0].mxu0
  %v8234 = vadd.f32 0.0, %v8233
  %v8235 = vpop.f32.mrb[0].mxu0
  %8236 = vmatprep.mubr.f32.mxu0 0.0
  %8237 = vmatmul.mubr.f32.gmra.mrb[0].mxu0 %v7418
  %v8238 = vpop.f32.mrb[0].mxu0
  %v8239 = vadd.f32 0.0, %v8238
  %v8240 = vpop.f32.mrb[0].mxu0
  %8241 = vmatprep.mubr.f32.mxu0 0.0
  %8242 = vmatmul.mubr.f32.gmra.mrb[0].mxu0 %v7421
  %v8243 = vpop.f32.mrb[0].mxu0
  %v8244 = vadd.f32 0.0, %v8243
  %v8245 = vpop.f32.mrb[0].mxu0
  %8246 = vmatprep.mubr.f32.mxu0 0.0
  %8247 = vmatmul.mubr.f32.gmra.mrb[0].mxu0 %v7424
  %v8248 = vpop.f32.mrb[0].mxu0
  %v8249 = vadd.f32 0.0, %v8248
  %v8250 = vpop.f32.mrb[0].mxu0
  %8251 = vmatprep.mubr.f32.mxu0 0.0
  %8252 = vmatmul.mubr.f32.gmra.mrb[0].mxu0 %v7427
  %v8253 = vpop.f32.mrb[0].mxu0
  %v8254 = vadd.f32 0.0, %v8253
  %v8255 = vpop.f32.mrb[0].mxu0
  %8256 = vmatprep.mubr.f32.mxu0 0.0
  %8257 = vmatmul.mubr.f32.gmra.mrb[0].mxu0 %v7430
  %v8258 = vpop.f32.mrb[0].mxu0
  %v8259 = vadd.f32 0.0, %v8258
  %v8260 = vpop.f32.mrb[0].mxu0
  %8261 = vmatprep.mubr.f32.mxu0 0.0
  %8262 = vmatmul.mubr.f32.gmra.mrb[0].mxu0 %v7433
  %v8263 = vpop.f32.mrb[0].mxu0
  %v8264 = vadd.f32 0.0, %v8263
  %v8265 = vpop.f32.mrb[0].mxu0
  %8266 = vmatprep.mubr.f32.mxu0 0.0
  %8267 = vmatmul.mubr.f32.gmra.mrb[0].mxu0 %v7436
  %v8268 = vpop.f32.mrb[0].mxu0
  %v8269 = vadd.f32 0.0, %v8268
  %v8270 = vpop.f32.mrb[0].mxu0
  %8271 = vmatprep.mubr.f32.mxu0 0.0
  %8272 = vmatmul.mubr.f32.gmra.mrb[0].mxu0 %v7439
  %v8273 = vpop.f32.mrb[0].mxu0
  %v8274 = vadd.f32 0.0, %v8273
  %v8275 = vpop.f32.mrb[0].mxu0
  %8276 = vmatprep.mubr.f32.mxu0 0.0
  %8277 = vmatmul.mubr.f32.gmra.mrb[0].mxu0 %v7442
  %v8278 = vpop.f32.mrb[0].mxu0
  %v8279 = vadd.f32 0.0, %v8278
  %v8280 = vpop.f32.mrb[0].mxu0
  %8281 = vmatprep.mubr.f32.mxu0 0.0
  %8282 = vmatmul.mubr.f32.gmra.mrb[0].mxu0 %v7445
  %v8283 = vpop.f32.mrb[0].mxu0
  %v8284 = vadd.f32 0.0, %v8283
  %v8285 = vpop.f32.mrb[0].mxu0
  %8286 = vmatprep.mubr.f32.mxu0 0.0
  %8287 = vmatmul.mubr.f32.gmra.mrb[0].mxu0 %v7448
  %v8288 = vpop.f32.mrb[0].mxu0
  %v8289 = vadd.f32 0.0, %v8288
  %v8290 = vpop.f32.mrb[0].mxu0
  %8291 = vmatprep.mubr.f32.mxu0 0.0
  %8292 = vmatmul.mubr.f32.gmra.mrb[0].mxu0 %v7451
  %v8293 = vpop.f32.mrb[0].mxu0
  %v8294 = vadd.f32 0.0, %v8293
  %v8295 = vpop.f32.mrb[0].mxu0
  %8296 = vmatprep.mubr.f32.mxu0 0.0
  %8297 = vmatmul.mubr.f32.gmra.mrb[0].mxu0 %v7914
  %v8298 = vpop.f32.mrb[0].mxu0
  %v8299 = vadd.f32 0.0, %v8298
  %v8300 = vpop.f32.mrb[0].mxu0
  %8301 = vmatprep.mubr.f32.mxu0 0.0
  %8302 = vmatmul.mubr.f32.gmra.mrb[0].mxu0 %v7917
  %v8303 = vpop.f32.mrb[0].mxu0
  %v8304 = vadd.f32 0.0, %v8303
  %v8305 = vpop.f32.mrb[0].mxu0
  %8306 = vdwg.mxu0
  %v8307 = vadd.f32 %v7841, %v7989
  %v8308 = vadd.f32 %v7842, %v7994
  %v8309 = vadd.f32 %v7843, %v7999
  %v8310 = vadd.f32 %v7844, %v8004
  %v8311 = vadd.f32 %v7845, %v8009
  %v8312 = vadd.f32 %v7846, %v8014
  %v8313 = vadd.f32 %v7847, %v8019
  %v8314 = vadd.f32 %v7848, %v8024
  %v8315 = vadd.f32 %v7849, %v8029
  %v8316 = vadd.f32 %v7850, %v8034
  %v8317 = vadd.f32 %v7851, %v8039
  %v8318 = vadd.f32 %v7852, %v8044
  %v8319 = vadd.f32 %v7853, %v8049
  %v8320 = vadd.f32 %v7854, %v8054
  %v8321 = vadd.f32 %v7855, %v8059
  %v8322 = vadd.f32 %v7856, %v8064
  %v8323 = vadd.f32 %v7857, %v8069
  %v8324 = vadd.f32 %v7858, %v8074
  %v8325 = vadd.f32 %v7859, %v8079
  %v8326 = vadd.f32 %v7860, %v8084
  %v8327 = vadd.f32 %v7861, %v8089
  %v8328 = vadd.f32 %v7862, %v8094
  %v8329 = vadd.f32 %v7863, %v8099
  %v8330 = vadd.f32 %v7864, %v8104
  %v8331 = vadd.f32 %v7865, %v8109
  %v8332 = vadd.f32 %v7866, %v8114
  %v8333 = vadd.f32 %v7867, %v8119
  %v8334 = vadd.f32 %v7868, %v8124
  %v8335 = vadd.f32 %v7869, %v8129
  %v8336 = vadd.f32 %v7870, %v8134
  %v8337 = vadd.f32 %v7871, %v8139
  %v8338 = vadd.f32 %v7872, %v8144
  %v8339 = vadd.f32 %v7873, %v8149
  %v8340 = vadd.f32 %v7874, %v8154
  %v8341 = vadd.f32 %v7875, %v8159
  %v8342 = vadd.f32 %v7876, %v8164
  %v8343 = vadd.f32 %v7877, %v8169
  %v8344 = vadd.f32 %v7878, %v8174
  %v8345 = vadd.f32 %v7879, %v8179
  %v8346 = vadd.f32 %v7880, %v8184
  %v8347 = vadd.f32 %v7881, %v8189
  %v8348 = vadd.f32 %v7882, %v8194
  %v8349 = vadd.f32 %v7883, %v8199
  %v8350 = vadd.f32 %v7884, %v8204
  %v8351 = vadd.f32 %v7885, %v8209
  %v8352 = vadd.f32 %v7886, %v8214
  %v8353 = vadd.f32 %v7887, %v8219
  %v8354 = vadd.f32 %v7888, %v8224
  %v8355 = vadd.f32 %v7889, %v8229
  %v8356 = vadd.f32 %v7890, %v8234
  %v8357 = vadd.f32 %v7891, %v8239
  %v8358 = vadd.f32 %v7892, %v8244
  %v8359 = vadd.f32 %v7893, %v8249
  %v8360 = vadd.f32 %v7894, %v8254
  %v8361 = vadd.f32 %v7895, %v8259
  %v8362 = vadd.f32 %v7896, %v8264
  %v8363 = vadd.f32 %v7897, %v8269
  %v8364 = vadd.f32 %v7898, %v8274
  %v8365 = vadd.f32 %v7899, %v8279
  %v8366 = vadd.f32 %v7900, %v8284
  %v8367 = vadd.f32 %v7901, %v8289
  %v8368 = vadd.f32 %v7902, %v8294
  %v8369 = vadd.f32 %v7903, %v8299
  %v8370 = vadd.f32 %v7904, %v8304
  %s8371 = scalar_lea.vmem %s2, 28
  %v8372 = vld [vmem:[%s8371] sm:$0xf]
  %v8374 = vsel %vm90, %v7221, 0
  %v8377 = vsel %vm90, %v7222, 0
  %v8380 = vsel %vm90, %v7257, 0
  %v8383 = vsel %vm90, %v7258, 0
  %v8386 = vsel %vm501, %v8372, 0
  %8388 = vmatprep.subr.mxu0 0.0
  %8389 = vmatpush1.msra.mxu0 %v8386
  %8390 = vmatprep.subr.mxu0 0.0
  %8391 = vmatpush1.msra.mxu0 0.0
  %8392 = vmatprep.subr.mxu0 0.0
  %8393 = vmatpush1.msra.mxu0 0.0
  %8394 = vmatprep.subr.mxu0 0.0
  %8395 = vmatpush1.msra.mxu0 0.0
  %8396 = vmatprep.subr.mxu0 0.0
  %8397 = vmatpush1.msra.mxu0 0.0
  %8398 = vmatprep.subr.mxu0 0.0
  %8399 = vmatpush1.msra.mxu0 0.0
  %8400 = vmatprep.subr.mxu0 0.0
  %8401 = vmatpush1.msra.mxu0 0.0
  %8402 = vmatprep.subr.mxu0 0.0
  %8403 = vmatpush1.msra.mxu0 0.0
  %8404 = vmatprep.subr.mxu0 0.0
  %8405 = vmatpush1.msra.mxu0 0.0
  %8406 = vmatprep.subr.mxu0 0.0
  %8407 = vmatpush1.msra.mxu0 0.0
  %8408 = vmatprep.subr.mxu0 0.0
  %8409 = vmatpush1.msra.mxu0 0.0
  %8410 = vmatprep.subr.mxu0 0.0
  %8411 = vmatpush1.msra.mxu0 0.0
  %8412 = vmatprep.subr.mxu0 0.0
  %8413 = vmatpush1.msra.mxu0 0.0
  %8414 = vmatprep.subr.mxu0 0.0
  %8415 = vmatpush1.msra.mxu0 0.0
  %8416 = vmatprep.subr.mxu0 0.0
  %8417 = vmatpush1.msra.mxu0 0.0
  %8418 = vmatprep.subr.mxu0 0.0
  %8419 = vmatpush1.msra.mxu0 0.0
  %8420 = vmatprep.subr.mxu0 0.0
  %8421 = vmatpush1.msra.mxu0 0.0
  %8422 = vmatprep.subr.mxu0 0.0
  %8423 = vmatpush1.msra.mxu0 0.0
  %8424 = vmatprep.subr.mxu0 0.0
  %8425 = vmatpush1.msra.mxu0 0.0
  %8426 = vmatprep.subr.mxu0 0.0
  %8427 = vmatpush1.msra.mxu0 0.0
  %8428 = vmatprep.subr.mxu0 0.0
  %8429 = vmatpush1.msra.mxu0 0.0
  %8430 = vmatprep.subr.mxu0 0.0
  %8431 = vmatpush1.msra.mxu0 0.0
  %8432 = vmatprep.subr.mxu0 0.0
  %8433 = vmatpush1.msra.mxu0 0.0
  %8434 = vmatprep.subr.mxu0 0.0
  %8435 = vmatpush1.msra.mxu0 0.0
  %8436 = vmatprep.subr.mxu0 0.0
  %8437 = vmatpush1.msra.mxu0 0.0
  %8438 = vmatprep.subr.mxu0 0.0
  %8439 = vmatpush1.msra.mxu0 0.0
  %8440 = vmatprep.subr.mxu0 0.0
  %8441 = vmatpush1.msra.mxu0 0.0
  %8442 = vmatprep.subr.mxu0 0.0
  %8443 = vmatpush1.msra.mxu0 0.0
  %8444 = vmatprep.subr.mxu0 0.0
  %8445 = vmatpush1.msra.mxu0 0.0
  %8446 = vmatprep.subr.mxu0 0.0
  %8447 = vmatpush1.msra.mxu0 0.0
  %8448 = vmatprep.subr.mxu0 0.0
  %8449 = vmatpush1.msra.mxu0 0.0
  %8450 = vmatprep.subr.mxu0 0.0
  %8451 = vmatpush1.msra.mxu0 0.0
  %8452 = vmatprep.mubr.f32.mxu0 0.0
  %8453 = vmatmul.mubr.f32.gmra.mrb[0].mxu0 %v7274
  %v8454 = vpop.f32.mrb[0].mxu0
  %v8455 = vadd.f32 0.0, %v8454
  %v8456 = vpop.f32.mrb[0].mxu0
  %8457 = vmatprep.mubr.f32.mxu0 0.0
  %8458 = vmatmul.mubr.f32.gmra.mrb[0].mxu0 %v7277
  %v8459 = vpop.f32.mrb[0].mxu0
  %v8460 = vadd.f32 0.0, %v8459
  %v8461 = vpop.f32.mrb[0].mxu0
  %8462 = vmatprep.mubr.f32.mxu0 0.0
  %8463 = vmatmul.mubr.f32.gmra.mrb[0].mxu0 %v7280
  %v8464 = vpop.f32.mrb[0].mxu0
  %v8465 = vadd.f32 0.0, %v8464
  %v8466 = vpop.f32.mrb[0].mxu0
  %8467 = vmatprep.mubr.f32.mxu0 0.0
  %8468 = vmatmul.mubr.f32.gmra.mrb[0].mxu0 %v7283
  %v8469 = vpop.f32.mrb[0].mxu0
  %v8470 = vadd.f32 0.0, %v8469
  %v8471 = vpop.f32.mrb[0].mxu0
  %8472 = vmatprep.mubr.f32.mxu0 0.0
  %8473 = vmatmul.mubr.f32.gmra.mrb[0].mxu0 %v7286
  %v8474 = vpop.f32.mrb[0].mxu0
  %v8475 = vadd.f32 0.0, %v8474
  %v8476 = vpop.f32.mrb[0].mxu0
  %8477 = vmatprep.mubr.f32.mxu0 0.0
  %8478 = vmatmul.mubr.f32.gmra.mrb[0].mxu0 %v7289
  %v8479 = vpop.f32.mrb[0].mxu0
  %v8480 = vadd.f32 0.0, %v8479
  %v8481 = vpop.f32.mrb[0].mxu0
  %8482 = vmatprep.mubr.f32.mxu0 0.0
  %8483 = vmatmul.mubr.f32.gmra.mrb[0].mxu0 %v7292
  %v8484 = vpop.f32.mrb[0].mxu0
  %v8485 = vadd.f32 0.0, %v8484
  %v8486 = vpop.f32.mrb[0].mxu0
  %8487 = vmatprep.mubr.f32.mxu0 0.0
  %8488 = vmatmul.mubr.f32.gmra.mrb[0].mxu0 %v7295
  %v8489 = vpop.f32.mrb[0].mxu0
  %v8490 = vadd.f32 0.0, %v8489
  %v8491 = vpop.f32.mrb[0].mxu0
  %8492 = vmatprep.mubr.f32.mxu0 0.0
  %8493 = vmatmul.mubr.f32.gmra.mrb[0].mxu0 %v7298
  %v8494 = vpop.f32.mrb[0].mxu0
  %v8495 = vadd.f32 0.0, %v8494
  %v8496 = vpop.f32.mrb[0].mxu0
  %8497 = vmatprep.mubr.f32.mxu0 0.0
  %8498 = vmatmul.mubr.f32.gmra.mrb[0].mxu0 %v7301
  %v8499 = vpop.f32.mrb[0].mxu0
  %v8500 = vadd.f32 0.0, %v8499
  %v8501 = vpop.f32.mrb[0].mxu0
  %8502 = vmatprep.mubr.f32.mxu0 0.0
  %8503 = vmatmul.mubr.f32.gmra.mrb[0].mxu0 %v7304
  %v8504 = vpop.f32.mrb[0].mxu0
  %v8505 = vadd.f32 0.0, %v8504
  %v8506 = vpop.f32.mrb[0].mxu0
  %8507 = vmatprep.mubr.f32.mxu0 0.0
  %8508 = vmatmul.mubr.f32.gmra.mrb[0].mxu0 %v7307
  %v8509 = vpop.f32.mrb[0].mxu0
  %v8510 = vadd.f32 0.0, %v8509
  %v8511 = vpop.f32.mrb[0].mxu0
  %8512 = vmatprep.mubr.f32.mxu0 0.0
  %8513 = vmatmul.mubr.f32.gmra.mrb[0].mxu0 %v7310
  %v8514 = vpop.f32.mrb[0].mxu0
  %v8515 = vadd.f32 0.0, %v8514
  %v8516 = vpop.f32.mrb[0].mxu0
  %8517 = vmatprep.mubr.f32.mxu0 0.0
  %8518 = vmatmul.mubr.f32.gmra.mrb[0].mxu0 %v7313
  %v8519 = vpop.f32.mrb[0].mxu0
  %v8520 = vadd.f32 0.0, %v8519
  %v8521 = vpop.f32.mrb[0].mxu0
  %8522 = vmatprep.mubr.f32.mxu0 0.0
  %8523 = vmatmul.mubr.f32.gmra.mrb[0].mxu0 %v7316
  %v8524 = vpop.f32.mrb[0].mxu0
  %v8525 = vadd.f32 0.0, %v8524
  %v8526 = vpop.f32.mrb[0].mxu0
  %8527 = vmatprep.mubr.f32.mxu0 0.0
  %8528 = vmatmul.mubr.f32.gmra.mrb[0].mxu0 %v7319
  %v8529 = vpop.f32.mrb[0].mxu0
  %v8530 = vadd.f32 0.0, %v8529
  %v8531 = vpop.f32.mrb[0].mxu0
  %8532 = vmatprep.mubr.f32.mxu0 0.0
  %8533 = vmatmul.mubr.f32.gmra.mrb[0].mxu0 %v7322
  %v8534 = vpop.f32.mrb[0].mxu0
  %v8535 = vadd.f32 0.0, %v8534
  %v8536 = vpop.f32.mrb[0].mxu0
  %8537 = vmatprep.mubr.f32.mxu0 0.0
  %8538 = vmatmul.mubr.f32.gmra.mrb[0].mxu0 %v7325
  %v8539 = vpop.f32.mrb[0].mxu0
  %v8540 = vadd.f32 0.0, %v8539
  %v8541 = vpop.f32.mrb[0].mxu0
  %8542 = vmatprep.mubr.f32.mxu0 0.0
  %8543 = vmatmul.mubr.f32.gmra.mrb[0].mxu0 %v7328
  %v8544 = vpop.f32.mrb[0].mxu0
  %v8545 = vadd.f32 0.0, %v8544
  %v8546 = vpop.f32.mrb[0].mxu0
  %8547 = vmatprep.mubr.f32.mxu0 0.0
  %8548 = vmatmul.mubr.f32.gmra.mrb[0].mxu0 %v7331
  %v8549 = vpop.f32.mrb[0].mxu0
  %v8550 = vadd.f32 0.0, %v8549
  %v8551 = vpop.f32.mrb[0].mxu0
  %8552 = vmatprep.mubr.f32.mxu0 0.0
  %8553 = vmatmul.mubr.f32.gmra.mrb[0].mxu0 %v7334
  %v8554 = vpop.f32.mrb[0].mxu0
  %v8555 = vadd.f32 0.0, %v8554
  %v8556 = vpop.f32.mrb[0].mxu0
  %8557 = vmatprep.mubr.f32.mxu0 0.0
  %8558 = vmatmul.mubr.f32.gmra.mrb[0].mxu0 %v7337
  %v8559 = vpop.f32.mrb[0].mxu0
  %v8560 = vadd.f32 0.0, %v8559
  %v8561 = vpop.f32.mrb[0].mxu0
  %8562 = vmatprep.mubr.f32.mxu0 0.0
  %8563 = vmatmul.mubr.f32.gmra.mrb[0].mxu0 %v7340
  %v8564 = vpop.f32.mrb[0].mxu0
  %v8565 = vadd.f32 0.0, %v8564
  %v8566 = vpop.f32.mrb[0].mxu0
  %8567 = vmatprep.mubr.f32.mxu0 0.0
  %8568 = vmatmul.mubr.f32.gmra.mrb[0].mxu0 %v7343
  %v8569 = vpop.f32.mrb[0].mxu0
  %v8570 = vadd.f32 0.0, %v8569
  %v8571 = vpop.f32.mrb[0].mxu0
  %8572 = vmatprep.mubr.f32.mxu0 0.0
  %8573 = vmatmul.mubr.f32.gmra.mrb[0].mxu0 %v7346
  %v8574 = vpop.f32.mrb[0].mxu0
  %v8575 = vadd.f32 0.0, %v8574
  %v8576 = vpop.f32.mrb[0].mxu0
  %8577 = vmatprep.mubr.f32.mxu0 0.0
  %8578 = vmatmul.mubr.f32.gmra.mrb[0].mxu0 %v7349
  %v8579 = vpop.f32.mrb[0].mxu0
  %v8580 = vadd.f32 0.0, %v8579
  %v8581 = vpop.f32.mrb[0].mxu0
  %8582 = vmatprep.mubr.f32.mxu0 0.0
  %8583 = vmatmul.mubr.f32.gmra.mrb[0].mxu0 %v7352
  %v8584 = vpop.f32.mrb[0].mxu0
  %v8585 = vadd.f32 0.0, %v8584
  %v8586 = vpop.f32.mrb[0].mxu0
  %8587 = vmatprep.mubr.f32.mxu0 0.0
  %8588 = vmatmul.mubr.f32.gmra.mrb[0].mxu0 %v7355
  %v8589 = vpop.f32.mrb[0].mxu0
  %v8590 = vadd.f32 0.0, %v8589
  %v8591 = vpop.f32.mrb[0].mxu0
  %8592 = vmatprep.mubr.f32.mxu0 0.0
  %8593 = vmatmul.mubr.f32.gmra.mrb[0].mxu0 %v7908
  %v8594 = vpop.f32.mrb[0].mxu0
  %v8595 = vadd.f32 0.0, %v8594
  %v8596 = vpop.f32.mrb[0].mxu0
  %8597 = vmatprep.mubr.f32.mxu0 0.0
  %8598 = vmatmul.mubr.f32.gmra.mrb[0].mxu0 %v7911
  %v8599 = vpop.f32.mrb[0].mxu0
  %v8600 = vadd.f32 0.0, %v8599
  %v8601 = vpop.f32.mrb[0].mxu0
  %8602 = vmatprep.mubr.f32.mxu0 0.0
  %8603 = vmatmul.mubr.f32.gmra.mrb[0].mxu0 %v8374
  %v8604 = vpop.f32.mrb[0].mxu0
  %v8605 = vadd.f32 0.0, %v8604
  %v8606 = vpop.f32.mrb[0].mxu0
  %8607 = vmatprep.mubr.f32.mxu0 0.0
  %8608 = vmatmul.mubr.f32.gmra.mrb[0].mxu0 %v8377
  %v8609 = vpop.f32.mrb[0].mxu0
  %v8610 = vadd.f32 0.0, %v8609
  %v8611 = vpop.f32.mrb[0].mxu0
  %8612 = vmatprep.mubr.f32.mxu0 0.0
  %8613 = vmatmul.mubr.f32.gmra.mrb[0].mxu0 %v7370
  %v8614 = vpop.f32.mrb[0].mxu0
  %v8615 = vadd.f32 0.0, %v8614
  %v8616 = vpop.f32.mrb[0].mxu0
  %8617 = vmatprep.mubr.f32.mxu0 0.0
  %8618 = vmatmul.mubr.f32.gmra.mrb[0].mxu0 %v7373
  %v8619 = vpop.f32.mrb[0].mxu0
  %v8620 = vadd.f32 0.0, %v8619
  %v8621 = vpop.f32.mrb[0].mxu0
  %8622 = vmatprep.mubr.f32.mxu0 0.0
  %8623 = vmatmul.mubr.f32.gmra.mrb[0].mxu0 %v7376
  %v8624 = vpop.f32.mrb[0].mxu0
  %v8625 = vadd.f32 0.0, %v8624
  %v8626 = vpop.f32.mrb[0].mxu0
  %8627 = vmatprep.mubr.f32.mxu0 0.0
  %8628 = vmatmul.mubr.f32.gmra.mrb[0].mxu0 %v7379
  %v8629 = vpop.f32.mrb[0].mxu0
  %v8630 = vadd.f32 0.0, %v8629
  %v8631 = vpop.f32.mrb[0].mxu0
  %8632 = vmatprep.mubr.f32.mxu0 0.0
  %8633 = vmatmul.mubr.f32.gmra.mrb[0].mxu0 %v7382
  %v8634 = vpop.f32.mrb[0].mxu0
  %v8635 = vadd.f32 0.0, %v8634
  %v8636 = vpop.f32.mrb[0].mxu0
  %8637 = vmatprep.mubr.f32.mxu0 0.0
  %8638 = vmatmul.mubr.f32.gmra.mrb[0].mxu0 %v7385
  %v8639 = vpop.f32.mrb[0].mxu0
  %v8640 = vadd.f32 0.0, %v8639
  %v8641 = vpop.f32.mrb[0].mxu0
  %8642 = vmatprep.mubr.f32.mxu0 0.0
  %8643 = vmatmul.mubr.f32.gmra.mrb[0].mxu0 %v7388
  %v8644 = vpop.f32.mrb[0].mxu0
  %v8645 = vadd.f32 0.0, %v8644
  %v8646 = vpop.f32.mrb[0].mxu0
  %8647 = vmatprep.mubr.f32.mxu0 0.0
  %8648 = vmatmul.mubr.f32.gmra.mrb[0].mxu0 %v7391
  %v8649 = vpop.f32.mrb[0].mxu0
  %v8650 = vadd.f32 0.0, %v8649
  %v8651 = vpop.f32.mrb[0].mxu0
  %8652 = vmatprep.mubr.f32.mxu0 0.0
  %8653 = vmatmul.mubr.f32.gmra.mrb[0].mxu0 %v7394
  %v8654 = vpop.f32.mrb[0].mxu0
  %v8655 = vadd.f32 0.0, %v8654
  %v8656 = vpop.f32.mrb[0].mxu0
  %8657 = vmatprep.mubr.f32.mxu0 0.0
  %8658 = vmatmul.mubr.f32.gmra.mrb[0].mxu0 %v7397
  %v8659 = vpop.f32.mrb[0].mxu0
  %v8660 = vadd.f32 0.0, %v8659
  %v8661 = vpop.f32.mrb[0].mxu0
  %8662 = vmatprep.mubr.f32.mxu0 0.0
  %8663 = vmatmul.mubr.f32.gmra.mrb[0].mxu0 %v7400
  %v8664 = vpop.f32.mrb[0].mxu0
  %v8665 = vadd.f32 0.0, %v8664
  %v8666 = vpop.f32.mrb[0].mxu0
  %8667 = vmatprep.mubr.f32.mxu0 0.0
  %8668 = vmatmul.mubr.f32.gmra.mrb[0].mxu0 %v7403
  %v8669 = vpop.f32.mrb[0].mxu0
  %v8670 = vadd.f32 0.0, %v8669
  %v8671 = vpop.f32.mrb[0].mxu0
  %8672 = vmatprep.mubr.f32.mxu0 0.0
  %8673 = vmatmul.mubr.f32.gmra.mrb[0].mxu0 %v7406
  %v8674 = vpop.f32.mrb[0].mxu0
  %v8675 = vadd.f32 0.0, %v8674
  %v8676 = vpop.f32.mrb[0].mxu0
  %8677 = vmatprep.mubr.f32.mxu0 0.0
  %8678 = vmatmul.mubr.f32.gmra.mrb[0].mxu0 %v7409
  %v8679 = vpop.f32.mrb[0].mxu0
  %v8680 = vadd.f32 0.0, %v8679
  %v8681 = vpop.f32.mrb[0].mxu0
  %8682 = vmatprep.mubr.f32.mxu0 0.0
  %8683 = vmatmul.mubr.f32.gmra.mrb[0].mxu0 %v7412
  %v8684 = vpop.f32.mrb[0].mxu0
  %v8685 = vadd.f32 0.0, %v8684
  %v8686 = vpop.f32.mrb[0].mxu0
  %8687 = vmatprep.mubr.f32.mxu0 0.0
  %8688 = vmatmul.mubr.f32.gmra.mrb[0].mxu0 %v7415
  %v8689 = vpop.f32.mrb[0].mxu0
  %v8690 = vadd.f32 0.0, %v8689
  %v8691 = vpop.f32.mrb[0].mxu0
  %8692 = vmatprep.mubr.f32.mxu0 0.0
  %8693 = vmatmul.mubr.f32.gmra.mrb[0].mxu0 %v7418
  %v8694 = vpop.f32.mrb[0].mxu0
  %v8695 = vadd.f32 0.0, %v8694
  %v8696 = vpop.f32.mrb[0].mxu0
  %8697 = vmatprep.mubr.f32.mxu0 0.0
  %8698 = vmatmul.mubr.f32.gmra.mrb[0].mxu0 %v7421
  %v8699 = vpop.f32.mrb[0].mxu0
  %v8700 = vadd.f32 0.0, %v8699
  %v8701 = vpop.f32.mrb[0].mxu0
  %8702 = vmatprep.mubr.f32.mxu0 0.0
  %8703 = vmatmul.mubr.f32.gmra.mrb[0].mxu0 %v7424
  %v8704 = vpop.f32.mrb[0].mxu0
  %v8705 = vadd.f32 0.0, %v8704
  %v8706 = vpop.f32.mrb[0].mxu0
  %8707 = vmatprep.mubr.f32.mxu0 0.0
  %8708 = vmatmul.mubr.f32.gmra.mrb[0].mxu0 %v7427
  %v8709 = vpop.f32.mrb[0].mxu0
  %v8710 = vadd.f32 0.0, %v8709
  %v8711 = vpop.f32.mrb[0].mxu0
  %8712 = vmatprep.mubr.f32.mxu0 0.0
  %8713 = vmatmul.mubr.f32.gmra.mrb[0].mxu0 %v7430
  %v8714 = vpop.f32.mrb[0].mxu0
  %v8715 = vadd.f32 0.0, %v8714
  %v8716 = vpop.f32.mrb[0].mxu0
  %8717 = vmatprep.mubr.f32.mxu0 0.0
  %8718 = vmatmul.mubr.f32.gmra.mrb[0].mxu0 %v7433
  %v8719 = vpop.f32.mrb[0].mxu0
  %v8720 = vadd.f32 0.0, %v8719
  %v8721 = vpop.f32.mrb[0].mxu0
  %8722 = vmatprep.mubr.f32.mxu0 0.0
  %8723 = vmatmul.mubr.f32.gmra.mrb[0].mxu0 %v7436
  %v8724 = vpop.f32.mrb[0].mxu0
  %v8725 = vadd.f32 0.0, %v8724
  %v8726 = vpop.f32.mrb[0].mxu0
  %8727 = vmatprep.mubr.f32.mxu0 0.0
  %8728 = vmatmul.mubr.f32.gmra.mrb[0].mxu0 %v7439
  %v8729 = vpop.f32.mrb[0].mxu0
  %v8730 = vadd.f32 0.0, %v8729
  %v8731 = vpop.f32.mrb[0].mxu0
  %8732 = vmatprep.mubr.f32.mxu0 0.0
  %8733 = vmatmul.mubr.f32.gmra.mrb[0].mxu0 %v7442
  %v8734 = vpop.f32.mrb[0].mxu0
  %v8735 = vadd.f32 0.0, %v8734
  %v8736 = vpop.f32.mrb[0].mxu0
  %8737 = vmatprep.mubr.f32.mxu0 0.0
  %8738 = vmatmul.mubr.f32.gmra.mrb[0].mxu0 %v7445
  %v8739 = vpop.f32.mrb[0].mxu0
  %v8740 = vadd.f32 0.0, %v8739
  %v8741 = vpop.f32.mrb[0].mxu0
  %8742 = vmatprep.mubr.f32.mxu0 0.0
  %8743 = vmatmul.mubr.f32.gmra.mrb[0].mxu0 %v7448
  %v8744 = vpop.f32.mrb[0].mxu0
  %v8745 = vadd.f32 0.0, %v8744
  %v8746 = vpop.f32.mrb[0].mxu0
  %8747 = vmatprep.mubr.f32.mxu0 0.0
  %8748 = vmatmul.mubr.f32.gmra.mrb[0].mxu0 %v7451
  %v8749 = vpop.f32.mrb[0].mxu0
  %v8750 = vadd.f32 0.0, %v8749
  %v8751 = vpop.f32.mrb[0].mxu0
  %8752 = vmatprep.mubr.f32.mxu0 0.0
  %8753 = vmatmul.mubr.f32.gmra.mrb[0].mxu0 %v7914
  %v8754 = vpop.f32.mrb[0].mxu0
  %v8755 = vadd.f32 0.0, %v8754
  %v8756 = vpop.f32.mrb[0].mxu0
  %8757 = vmatprep.mubr.f32.mxu0 0.0
  %8758 = vmatmul.mubr.f32.gmra.mrb[0].mxu0 %v7917
  %v8759 = vpop.f32.mrb[0].mxu0
  %v8760 = vadd.f32 0.0, %v8759
  %v8761 = vpop.f32.mrb[0].mxu0
  %8762 = vmatprep.mubr.f32.mxu0 0.0
  %8763 = vmatmul.mubr.f32.gmra.mrb[0].mxu0 %v8380
  %v8764 = vpop.f32.mrb[0].mxu0
  %v8765 = vadd.f32 0.0, %v8764
  %v8766 = vpop.f32.mrb[0].mxu0
  %8767 = vmatprep.mubr.f32.mxu0 0.0
  %8768 = vmatmul.mubr.f32.gmra.mrb[0].mxu0 %v8383
  %v8769 = vpop.f32.mrb[0].mxu0
  %v8770 = vadd.f32 0.0, %v8769
  %v8771 = vpop.f32.mrb[0].mxu0
  %8772 = vdwg.mxu0
  %v8773 = vadd.f32 %v8307, %v8455
  %v8774 = vadd.f32 %v8308, %v8460
  %v8775 = vadd.f32 %v8309, %v8465
  %v8776 = vadd.f32 %v8310, %v8470
  %v8777 = vadd.f32 %v8311, %v8475
  %v8778 = vadd.f32 %v8312, %v8480
  %v8779 = vadd.f32 %v8313, %v8485
  %v8780 = vadd.f32 %v8314, %v8490
  %v8781 = vadd.f32 %v8315, %v8495
  %v8782 = vadd.f32 %v8316, %v8500
  %v8783 = vadd.f32 %v8317, %v8505
  %v8784 = vadd.f32 %v8318, %v8510
  %v8785 = vadd.f32 %v8319, %v8515
  %v8786 = vadd.f32 %v8320, %v8520
  %v8787 = vadd.f32 %v8321, %v8525
  %v8788 = vadd.f32 %v8322, %v8530
  %v8789 = vadd.f32 %v8323, %v8535
  %v8790 = vadd.f32 %v8324, %v8540
  %v8791 = vadd.f32 %v8325, %v8545
  %v8792 = vadd.f32 %v8326, %v8550
  %v8793 = vadd.f32 %v8327, %v8555
  %v8794 = vadd.f32 %v8328, %v8560
  %v8795 = vadd.f32 %v8329, %v8565
  %v8796 = vadd.f32 %v8330, %v8570
  %v8797 = vadd.f32 %v8331, %v8575
  %v8798 = vadd.f32 %v8332, %v8580
  %v8799 = vadd.f32 %v8333, %v8585
  %v8800 = vadd.f32 %v8334, %v8590
  %v8801 = vadd.f32 %v8335, %v8595
  %v8802 = vadd.f32 %v8336, %v8600
  %v8803 = vadd.f32 %v8337, %v8605
  %v8804 = vadd.f32 %v8338, %v8610
  %v8805 = vadd.f32 %v8339, %v8615
  %v8806 = vadd.f32 %v8340, %v8620
  %v8807 = vadd.f32 %v8341, %v8625
  %v8808 = vadd.f32 %v8342, %v8630
  %v8809 = vadd.f32 %v8343, %v8635
  %v8810 = vadd.f32 %v8344, %v8640
  %v8811 = vadd.f32 %v8345, %v8645
  %v8812 = vadd.f32 %v8346, %v8650
  %v8813 = vadd.f32 %v8347, %v8655
  %v8814 = vadd.f32 %v8348, %v8660
  %v8815 = vadd.f32 %v8349, %v8665
  %v8816 = vadd.f32 %v8350, %v8670
  %v8817 = vadd.f32 %v8351, %v8675
  %v8818 = vadd.f32 %v8352, %v8680
  %v8819 = vadd.f32 %v8353, %v8685
  %v8820 = vadd.f32 %v8354, %v8690
  %v8821 = vadd.f32 %v8355, %v8695
  %v8822 = vadd.f32 %v8356, %v8700
  %v8823 = vadd.f32 %v8357, %v8705
  %v8824 = vadd.f32 %v8358, %v8710
  %v8825 = vadd.f32 %v8359, %v8715
  %v8826 = vadd.f32 %v8360, %v8720
  %v8827 = vadd.f32 %v8361, %v8725
  %v8828 = vadd.f32 %v8362, %v8730
  %v8829 = vadd.f32 %v8363, %v8735
  %v8830 = vadd.f32 %v8364, %v8740
  %v8831 = vadd.f32 %v8365, %v8745
  %v8832 = vadd.f32 %v8366, %v8750
  %v8833 = vadd.f32 %v8367, %v8755
  %v8834 = vadd.f32 %v8368, %v8760
  %v8835 = vadd.f32 %v8369, %v8765
  %v8836 = vadd.f32 %v8370, %v8770
  %v8837 = vld [vmem:[#allocation2 + $0x2] sm:$0xff]
  %v8838 = vld [vmem:[#allocation2 + $0xa] sm:$0xff]
  %v8839 = vld [vmem:[#allocation2 + $0x1a] sm:$0xff]
  %v8840 = vld [vmem:[#allocation2 + $0x22] sm:$0xff]
  %v8841 = vld [vmem:[#allocation2 + $0x32] sm:$0xff]
  %v8842 = vld [vmem:[#allocation2 + $0x3a] sm:$0xff]
  %v8843 = vld [vmem:[#allocation2 + $0x4a] sm:$0xff]
  %v8844 = vld [vmem:[#allocation2 + $0x52] sm:$0xff]
  %v8845 = vld [vmem:[#allocation2 + $0x62] sm:$0xff]
  %v8846 = vld [vmem:[#allocation2 + $0x6a] sm:$0xff]
  %v8847 = vld [vmem:[#allocation2 + $0x7a] sm:$0xff]
  %v8848 = vld [vmem:[#allocation2 + $0x82] sm:$0xff]
  %v8849 = vld [vmem:[#allocation2 + $0x92] sm:$0xff]
  %v8850 = vld [vmem:[#allocation2 + $0x9a] sm:$0xff]
  %v8851 = vld [vmem:[#allocation2 + $0xaa] sm:$0xff]
  %v8852 = vld [vmem:[#allocation2 + $0xb2] sm:$0xff]
  %v8853 = vld [vmem:[#allocation2 + $0xc2] sm:$0xff]
  %v8854 = vld [vmem:[#allocation2 + $0xca] sm:$0xff]
  %v8855 = vld [vmem:[#allocation2 + $0xda] sm:$0xff]
  %v8856 = vld [vmem:[#allocation2 + $0xe2] sm:$0xff]
  %v8857 = vld [vmem:[#allocation2 + $0xf2] sm:$0xff]
  %v8858 = vld [vmem:[#allocation2 + $0xfa] sm:$0xff]
  %v8859 = vld [vmem:[#allocation2 + $0x10a] sm:$0xff]
  %v8860 = vld [vmem:[#allocation2 + $0x112] sm:$0xff]
  %v8861 = vld [vmem:[#allocation2 + $0x122] sm:$0xff]
  %v8862 = vld [vmem:[#allocation2 + $0x12a] sm:$0xff]
  %v8863 = vld [vmem:[#allocation2 + $0x13a] sm:$0xff]
  %v8864 = vld [vmem:[#allocation2 + $0x142] sm:$0xff]
  %v8865 = vld [vmem:[#allocation2 + $0x152] sm:$0xff]
  %v8866 = vld [vmem:[#allocation2 + $0x15a] sm:$0xff]
  %v8867 = vld [vmem:[#allocation2 + $0x16a] sm:$0xff]
  %v8868 = vld [vmem:[#allocation2 + $0x172] sm:$0xff]
  %v8869 = vld [vmem:[#allocation2 + $0x182] sm:$0xff]
  %v8870 = vld [vmem:[#allocation2 + $0x18a] sm:$0xff]
  %v8871 = vld [vmem:[#allocation2 + $0x19a] sm:$0xff]
  %v8872 = vld [vmem:[#allocation2 + $0x1a2] sm:$0xff]
  %v8873 = vld [vmem:[#allocation2 + $0x1b2] sm:$0xff]
  %v8874 = vld [vmem:[#allocation2 + $0x1ba] sm:$0xff]
  %v8875 = vld [vmem:[#allocation2 + $0x1ca] sm:$0xff]
  %v8876 = vld [vmem:[#allocation2 + $0x1d2] sm:$0xff]
  %v8877 = vld [vmem:[#allocation2 + $0x1e2] sm:$0xff]
  %v8878 = vld [vmem:[#allocation2 + $0x1ea] sm:$0xff]
  %v8879 = vld [vmem:[#allocation2 + $0x1fa] sm:$0xff]
  %v8880 = vld [vmem:[#allocation2 + $0x202] sm:$0xff]
  %v8881 = vld [vmem:[#allocation2 + $0x212] sm:$0xff]
  %v8882 = vld [vmem:[#allocation2 + $0x21a] sm:$0xff]
  %v8883 = vld [vmem:[#allocation2 + $0x22a] sm:$0xff]
  %v8884 = vld [vmem:[#allocation2 + $0x232] sm:$0xff]
  %v8885 = vld [vmem:[#allocation2 + $0x242] sm:$0xff]
  %v8886 = vld [vmem:[#allocation2 + $0x24a] sm:$0xff]
  %v8887 = vld [vmem:[#allocation2 + $0x25a] sm:$0xff]
  %v8888 = vld [vmem:[#allocation2 + $0x262] sm:$0xff]
  %v8889 = vld [vmem:[#allocation2 + $0x272] sm:$0xff]
  %v8890 = vld [vmem:[#allocation2 + $0x27a] sm:$0xff]
  %v8891 = vld [vmem:[#allocation2 + $0x28a] sm:$0xff]
  %v8892 = vld [vmem:[#allocation2 + $0x292] sm:$0xff]
  %v8893 = vld [vmem:[#allocation2 + $0x2a2] sm:$0xff]
  %v8894 = vld [vmem:[#allocation2 + $0x2aa] sm:$0xff]
  %v8895 = vld [vmem:[#allocation2 + $0x2ba] sm:$0xff]
  %v8896 = vld [vmem:[#allocation2 + $0x2c2] sm:$0xff]
  %v8897 = vld [vmem:[#allocation2 + $0x2d2] sm:$0xff]
  %v8898 = vld [vmem:[#allocation2 + $0x2da] sm:$0xff]
  %v8899 = vld [vmem:[#allocation2 + $0x2ea] sm:$0xff]
  %v8900 = vld [vmem:[#allocation2 + $0x2f2] sm:$0xff]
  %v8901 = vld [vmem:[#allocation2 + $0x302] sm:$0xff]
  %v8902 = vld [vmem:[#allocation2 + $0x30a] sm:$0xff]
  %v8903 = vld [vmem:[#allocation2 + $0x31a] sm:$0xff]
  %v8904 = vld [vmem:[#allocation2 + $0x322] sm:$0xff]
  %v8905 = vld [vmem:[#allocation2 + $0x332] sm:$0xff]
  %v8906 = vld [vmem:[#allocation2 + $0x33a] sm:$0xff]
  %v8907 = vld [vmem:[#allocation2 + $0x34a] sm:$0xff]
  %v8908 = vld [vmem:[#allocation2 + $0x352] sm:$0xff]
  %s8909 = scalar_lea.vmem %s2, 8
  %v8910 = vld [vmem:[%s8909] sm:$0xf]
  %v8912 = vsel %vm90, %v8837, 0
  %v8915 = vsel %vm90, %v8838, 0
  %v8918 = vsel %vm90, %v8839, 0
  %v8921 = vsel %vm90, %v8840, 0
  %v8924 = vsel %vm90, %v8841, 0
  %v8927 = vsel %vm90, %v8842, 0
  %v8930 = vsel %vm90, %v8843, 0
  %v8933 = vsel %vm90, %v8844, 0
  %v8936 = vsel %vm90, %v8845, 0
  %v8939 = vsel %vm90, %v8846, 0
  %v8942 = vsel %vm90, %v8847, 0
  %v8945 = vsel %vm90, %v8848, 0
  %v8948 = vsel %vm90, %v8849, 0
  %v8951 = vsel %vm90, %v8850, 0
  %v8954 = vsel %vm90, %v8851, 0
  %v8957 = vsel %vm90, %v8852, 0
  %v8960 = vsel %vm90, %v8853, 0
  %v8963 = vsel %vm90, %v8854, 0
  %v8966 = vsel %vm90, %v8855, 0
  %v8969 = vsel %vm90, %v8856, 0
  %v8972 = vsel %vm90, %v8857, 0
  %v8975 = vsel %vm90, %v8858, 0
  %v8978 = vsel %vm90, %v8859, 0
  %v8981 = vsel %vm90, %v8860, 0
  %v8984 = vsel %vm90, %v8861, 0
  %v8987 = vsel %vm90, %v8862, 0
  %v8990 = vsel %vm90, %v8863, 0
  %v8993 = vsel %vm90, %v8864, 0
  %v8996 = vsel %vm90, %v8865, 0
  %v8999 = vsel %vm90, %v8866, 0
  %v9002 = vsel %vm90, %v8867, 0
  %v9005 = vsel %vm90, %v8868, 0
  %v9008 = vsel %vm90, %v8873, 0
  %v9011 = vsel %vm90, %v8874, 0
  %v9014 = vsel %vm90, %v8875, 0
  %v9017 = vsel %vm90, %v8876, 0
  %v9020 = vsel %vm90, %v8877, 0
  %v9023 = vsel %vm90, %v8878, 0
  %v9026 = vsel %vm90, %v8879, 0
  %v9029 = vsel %vm90, %v8880, 0
  %v9032 = vsel %vm90, %v8881, 0
  %v9035 = vsel %vm90, %v8882, 0
  %v9038 = vsel %vm90, %v8883, 0
  %v9041 = vsel %vm90, %v8884, 0
  %v9044 = vsel %vm90, %v8885, 0
  %v9047 = vsel %vm90, %v8886, 0
  %v9050 = vsel %vm90, %v8887, 0
  %v9053 = vsel %vm90, %v8888, 0
  %v9056 = vsel %vm90, %v8889, 0
  %v9059 = vsel %vm90, %v8890, 0
  %v9062 = vsel %vm90, %v8891, 0
  %v9065 = vsel %vm90, %v8892, 0
  %v9068 = vsel %vm90, %v8893, 0
  %v9071 = vsel %vm90, %v8894, 0
  %v9074 = vsel %vm90, %v8895, 0
  %v9077 = vsel %vm90, %v8896, 0
  %v9080 = vsel %vm90, %v8897, 0
  %v9083 = vsel %vm90, %v8898, 0
  %v9086 = vsel %vm90, %v8899, 0
  %v9089 = vsel %vm90, %v8900, 0
  %v9092 = vsel %vm90, %v8901, 0
  %v9095 = vsel %vm90, %v8902, 0
  %v9098 = vsel %vm90, %v8903, 0
  %v9101 = vsel %vm90, %v8904, 0
  %v9104 = vsel %vm501, %v8910, 0
  %9106 = vmatprep.subr.mxu0 0.0
  %9107 = vmatpush1.msra.mxu0 %v9104
  %9108 = vmatprep.subr.mxu0 0.0
  %9109 = vmatpush1.msra.mxu0 0.0
  %9110 = vmatprep.subr.mxu0 0.0
  %9111 = vmatpush1.msra.mxu0 0.0
  %9112 = vmatprep.subr.mxu0 0.0
  %9113 = vmatpush1.msra.mxu0 0.0
  %9114 = vmatprep.subr.mxu0 0.0
  %9115 = vmatpush1.msra.mxu0 0.0
  %9116 = vmatprep.subr.mxu0 0.0
  %9117 = vmatpush1.msra.mxu0 0.0
  %9118 = vmatprep.subr.mxu0 0.0
  %9119 = vmatpush1.msra.mxu0 0.0
  %9120 = vmatprep.subr.mxu0 0.0
  %9121 = vmatpush1.msra.mxu0 0.0
  %9122 = vmatprep.subr.mxu0 0.0
  %9123 = vmatpush1.msra.mxu0 0.0
  %9124 = vmatprep.subr.mxu0 0.0
  %9125 = vmatpush1.msra.mxu0 0.0
  %9126 = vmatprep.subr.mxu0 0.0
  %9127 = vmatpush1.msra.mxu0 0.0
  %9128 = vmatprep.subr.mxu0 0.0
  %9129 = vmatpush1.msra.mxu0 0.0
  %9130 = vmatprep.subr.mxu0 0.0
  %9131 = vmatpush1.msra.mxu0 0.0
  %9132 = vmatprep.subr.mxu0 0.0
  %9133 = vmatpush1.msra.mxu0 0.0
  %9134 = vmatprep.subr.mxu0 0.0
  %9135 = vmatpush1.msra.mxu0 0.0
  %9136 = vmatprep.subr.mxu0 0.0
  %9137 = vmatpush1.msra.mxu0 0.0
  %9138 = vmatprep.subr.mxu0 0.0
  %9139 = vmatpush1.msra.mxu0 0.0
  %9140 = vmatprep.subr.mxu0 0.0
  %9141 = vmatpush1.msra.mxu0 0.0
  %9142 = vmatprep.subr.mxu0 0.0
  %9143 = vmatpush1.msra.mxu0 0.0
  %9144 = vmatprep.subr.mxu0 0.0
  %9145 = vmatpush1.msra.mxu0 0.0
  %9146 = vmatprep.subr.mxu0 0.0
  %9147 = vmatpush1.msra.mxu0 0.0
  %9148 = vmatprep.subr.mxu0 0.0
  %9149 = vmatpush1.msra.mxu0 0.0
  %9150 = vmatprep.subr.mxu0 0.0
  %9151 = vmatpush1.msra.mxu0 0.0
  %9152 = vmatprep.subr.mxu0 0.0
  %9153 = vmatpush1.msra.mxu0 0.0
  %9154 = vmatprep.subr.mxu0 0.0
  %9155 = vmatpush1.msra.mxu0 0.0
  %9156 = vmatprep.subr.mxu0 0.0
  %9157 = vmatpush1.msra.mxu0 0.0
  %9158 = vmatprep.subr.mxu0 0.0
  %9159 = vmatpush1.msra.mxu0 0.0
  %9160 = vmatprep.subr.mxu0 0.0
  %9161 = vmatpush1.msra.mxu0 0.0
  %9162 = vmatprep.subr.mxu0 0.0
  %9163 = vmatpush1.msra.mxu0 0.0
  %9164 = vmatprep.subr.mxu0 0.0
  %9165 = vmatpush1.msra.mxu0 0.0
  %9166 = vmatprep.subr.mxu0 0.0
  %9167 = vmatpush1.msra.mxu0 0.0
  %9168 = vmatprep.subr.mxu0 0.0
  %9169 = vmatpush1.msra.mxu0 0.0
  %9170 = vmatprep.mubr.f32.mxu0 0.0
  %9171 = vmatmul.mubr.f32.gmra.mrb[0].mxu0 %v8912
  %v9172 = vpop.f32.mrb[0].mxu0
  %v9173 = vadd.f32 0.0, %v9172
  %v9174 = vpop.f32.mrb[0].mxu0
  %9175 = vmatprep.mubr.f32.mxu0 0.0
  %9176 = vmatmul.mubr.f32.gmra.mrb[0].mxu0 %v8915
  %v9177 = vpop.f32.mrb[0].mxu0
  %v9178 = vadd.f32 0.0, %v9177
  %v9179 = vpop.f32.mrb[0].mxu0
  %9180 = vmatprep.mubr.f32.mxu0 0.0
  %9181 = vmatmul.mubr.f32.gmra.mrb[0].mxu0 %v8918
  %v9182 = vpop.f32.mrb[0].mxu0
  %v9183 = vadd.f32 0.0, %v9182
  %v9184 = vpop.f32.mrb[0].mxu0
  %9185 = vmatprep.mubr.f32.mxu0 0.0
  %9186 = vmatmul.mubr.f32.gmra.mrb[0].mxu0 %v8921
  %v9187 = vpop.f32.mrb[0].mxu0
  %v9188 = vadd.f32 0.0, %v9187
  %v9189 = vpop.f32.mrb[0].mxu0
  %9190 = vmatprep.mubr.f32.mxu0 0.0
  %9191 = vmatmul.mubr.f32.gmra.mrb[0].mxu0 %v8924
  %v9192 = vpop.f32.mrb[0].mxu0
  %v9193 = vadd.f32 0.0, %v9192
  %v9194 = vpop.f32.mrb[0].mxu0
  %9195 = vmatprep.mubr.f32.mxu0 0.0
  %9196 = vmatmul.mubr.f32.gmra.mrb[0].mxu0 %v8927
  %v9197 = vpop.f32.mrb[0].mxu0
  %v9198 = vadd.f32 0.0, %v9197
  %v9199 = vpop.f32.mrb[0].mxu0
  %9200 = vmatprep.mubr.f32.mxu0 0.0
  %9201 = vmatmul.mubr.f32.gmra.mrb[0].mxu0 %v8930
  %v9202 = vpop.f32.mrb[0].mxu0
  %v9203 = vadd.f32 0.0, %v9202
  %v9204 = vpop.f32.mrb[0].mxu0
  %9205 = vmatprep.mubr.f32.mxu0 0.0
  %9206 = vmatmul.mubr.f32.gmra.mrb[0].mxu0 %v8933
  %v9207 = vpop.f32.mrb[0].mxu0
  %v9208 = vadd.f32 0.0, %v9207
  %v9209 = vpop.f32.mrb[0].mxu0
  %9210 = vmatprep.mubr.f32.mxu0 0.0
  %9211 = vmatmul.mubr.f32.gmra.mrb[0].mxu0 %v8936
  %v9212 = vpop.f32.mrb[0].mxu0
  %v9213 = vadd.f32 0.0, %v9212
  %v9214 = vpop.f32.mrb[0].mxu0
  %9215 = vmatprep.mubr.f32.mxu0 0.0
  %9216 = vmatmul.mubr.f32.gmra.mrb[0].mxu0 %v8939
  %v9217 = vpop.f32.mrb[0].mxu0
  %v9218 = vadd.f32 0.0, %v9217
  %v9219 = vpop.f32.mrb[0].mxu0
  %9220 = vmatprep.mubr.f32.mxu0 0.0
  %9221 = vmatmul.mubr.f32.gmra.mrb[0].mxu0 %v8942
  %v9222 = vpop.f32.mrb[0].mxu0
  %v9223 = vadd.f32 0.0, %v9222
  %v9224 = vpop.f32.mrb[0].mxu0
  %9225 = vmatprep.mubr.f32.mxu0 0.0
  %9226 = vmatmul.mubr.f32.gmra.mrb[0].mxu0 %v8945
  %v9227 = vpop.f32.mrb[0].mxu0
  %v9228 = vadd.f32 0.0, %v9227
  %v9229 = vpop.f32.mrb[0].mxu0
  %9230 = vmatprep.mubr.f32.mxu0 0.0
  %9231 = vmatmul.mubr.f32.gmra.mrb[0].mxu0 %v8948
  %v9232 = vpop.f32.mrb[0].mxu0
  %v9233 = vadd.f32 0.0, %v9232
  %v9234 = vpop.f32.mrb[0].mxu0
  %9235 = vmatprep.mubr.f32.mxu0 0.0
  %9236 = vmatmul.mubr.f32.gmra.mrb[0].mxu0 %v8951
  %v9237 = vpop.f32.mrb[0].mxu0
  %v9238 = vadd.f32 0.0, %v9237
  %v9239 = vpop.f32.mrb[0].mxu0
  %9240 = vmatprep.mubr.f32.mxu0 0.0
  %9241 = vmatmul.mubr.f32.gmra.mrb[0].mxu0 %v8954
  %v9242 = vpop.f32.mrb[0].mxu0
  %v9243 = vadd.f32 0.0, %v9242
  %v9244 = vpop.f32.mrb[0].mxu0
  %9245 = vmatprep.mubr.f32.mxu0 0.0
  %9246 = vmatmul.mubr.f32.gmra.mrb[0].mxu0 %v8957
  %v9247 = vpop.f32.mrb[0].mxu0
  %v9248 = vadd.f32 0.0, %v9247
  %v9249 = vpop.f32.mrb[0].mxu0
  %9250 = vmatprep.mubr.f32.mxu0 0.0
  %9251 = vmatmul.mubr.f32.gmra.mrb[0].mxu0 %v8960
  %v9252 = vpop.f32.mrb[0].mxu0
  %v9253 = vadd.f32 0.0, %v9252
  %v9254 = vpop.f32.mrb[0].mxu0
  %9255 = vmatprep.mubr.f32.mxu0 0.0
  %9256 = vmatmul.mubr.f32.gmra.mrb[0].mxu0 %v8963
  %v9257 = vpop.f32.mrb[0].mxu0
  %v9258 = vadd.f32 0.0, %v9257
  %v9259 = vpop.f32.mrb[0].mxu0
  %9260 = vmatprep.mubr.f32.mxu0 0.0
  %9261 = vmatmul.mubr.f32.gmra.mrb[0].mxu0 %v8966
  %v9262 = vpop.f32.mrb[0].mxu0
  %v9263 = vadd.f32 0.0, %v9262
  %v9264 = vpop.f32.mrb[0].mxu0
  %9265 = vmatprep.mubr.f32.mxu0 0.0
  %9266 = vmatmul.mubr.f32.gmra.mrb[0].mxu0 %v8969
  %v9267 = vpop.f32.mrb[0].mxu0
  %v9268 = vadd.f32 0.0, %v9267
  %v9269 = vpop.f32.mrb[0].mxu0
  %9270 = vmatprep.mubr.f32.mxu0 0.0
  %9271 = vmatmul.mubr.f32.gmra.mrb[0].mxu0 %v8972
  %v9272 = vpop.f32.mrb[0].mxu0
  %v9273 = vadd.f32 0.0, %v9272
  %v9274 = vpop.f32.mrb[0].mxu0
  %9275 = vmatprep.mubr.f32.mxu0 0.0
  %9276 = vmatmul.mubr.f32.gmra.mrb[0].mxu0 %v8975
  %v9277 = vpop.f32.mrb[0].mxu0
  %v9278 = vadd.f32 0.0, %v9277
  %v9279 = vpop.f32.mrb[0].mxu0
  %9280 = vmatprep.mubr.f32.mxu0 0.0
  %9281 = vmatmul.mubr.f32.gmra.mrb[0].mxu0 %v8978
  %v9282 = vpop.f32.mrb[0].mxu0
  %v9283 = vadd.f32 0.0, %v9282
  %v9284 = vpop.f32.mrb[0].mxu0
  %9285 = vmatprep.mubr.f32.mxu0 0.0
  %9286 = vmatmul.mubr.f32.gmra.mrb[0].mxu0 %v8981
  %v9287 = vpop.f32.mrb[0].mxu0
  %v9288 = vadd.f32 0.0, %v9287
  %v9289 = vpop.f32.mrb[0].mxu0
  %9290 = vmatprep.mubr.f32.mxu0 0.0
  %9291 = vmatmul.mubr.f32.gmra.mrb[0].mxu0 %v8984
  %v9292 = vpop.f32.mrb[0].mxu0
  %v9293 = vadd.f32 0.0, %v9292
  %v9294 = vpop.f32.mrb[0].mxu0
  %9295 = vmatprep.mubr.f32.mxu0 0.0
  %9296 = vmatmul.mubr.f32.gmra.mrb[0].mxu0 %v8987
  %v9297 = vpop.f32.mrb[0].mxu0
  %v9298 = vadd.f32 0.0, %v9297
  %v9299 = vpop.f32.mrb[0].mxu0
  %9300 = vmatprep.mubr.f32.mxu0 0.0
  %9301 = vmatmul.mubr.f32.gmra.mrb[0].mxu0 %v8990
  %v9302 = vpop.f32.mrb[0].mxu0
  %v9303 = vadd.f32 0.0, %v9302
  %v9304 = vpop.f32.mrb[0].mxu0
  %9305 = vmatprep.mubr.f32.mxu0 0.0
  %9306 = vmatmul.mubr.f32.gmra.mrb[0].mxu0 %v8993
  %v9307 = vpop.f32.mrb[0].mxu0
  %v9308 = vadd.f32 0.0, %v9307
  %v9309 = vpop.f32.mrb[0].mxu0
  %9310 = vmatprep.mubr.f32.mxu0 0.0
  %9311 = vmatmul.mubr.f32.gmra.mrb[0].mxu0 %v8996
  %v9312 = vpop.f32.mrb[0].mxu0
  %v9313 = vadd.f32 0.0, %v9312
  %v9314 = vpop.f32.mrb[0].mxu0
  %9315 = vmatprep.mubr.f32.mxu0 0.0
  %9316 = vmatmul.mubr.f32.gmra.mrb[0].mxu0 %v8999
  %v9317 = vpop.f32.mrb[0].mxu0
  %v9318 = vadd.f32 0.0, %v9317
  %v9319 = vpop.f32.mrb[0].mxu0
  %9320 = vmatprep.mubr.f32.mxu0 0.0
  %9321 = vmatmul.mubr.f32.gmra.mrb[0].mxu0 %v9002
  %v9322 = vpop.f32.mrb[0].mxu0
  %v9323 = vadd.f32 0.0, %v9322
  %v9324 = vpop.f32.mrb[0].mxu0
  %9325 = vmatprep.mubr.f32.mxu0 0.0
  %9326 = vmatmul.mubr.f32.gmra.mrb[0].mxu0 %v9005
  %v9327 = vpop.f32.mrb[0].mxu0
  %v9328 = vadd.f32 0.0, %v9327
  %v9329 = vpop.f32.mrb[0].mxu0
  %9330 = vmatprep.mubr.f32.mxu0 0.0
  %9331 = vmatmul.mubr.f32.gmra.mrb[0].mxu0 %v9008
  %v9332 = vpop.f32.mrb[0].mxu0
  %v9333 = vadd.f32 0.0, %v9332
  %v9334 = vpop.f32.mrb[0].mxu0
  %9335 = vmatprep.mubr.f32.mxu0 0.0
  %9336 = vmatmul.mubr.f32.gmra.mrb[0].mxu0 %v9011
  %v9337 = vpop.f32.mrb[0].mxu0
  %v9338 = vadd.f32 0.0, %v9337
  %v9339 = vpop.f32.mrb[0].mxu0
  %9340 = vmatprep.mubr.f32.mxu0 0.0
  %9341 = vmatmul.mubr.f32.gmra.mrb[0].mxu0 %v9014
  %v9342 = vpop.f32.mrb[0].mxu0
  %v9343 = vadd.f32 0.0, %v9342
  %v9344 = vpop.f32.mrb[0].mxu0
  %9345 = vmatprep.mubr.f32.mxu0 0.0
  %9346 = vmatmul.mubr.f32.gmra.mrb[0].mxu0 %v9017
  %v9347 = vpop.f32.mrb[0].mxu0
  %v9348 = vadd.f32 0.0, %v9347
  %v9349 = vpop.f32.mrb[0].mxu0
  %9350 = vmatprep.mubr.f32.mxu0 0.0
  %9351 = vmatmul.mubr.f32.gmra.mrb[0].mxu0 %v9020
  %v9352 = vpop.f32.mrb[0].mxu0
  %v9353 = vadd.f32 0.0, %v9352
  %v9354 = vpop.f32.mrb[0].mxu0
  %9355 = vmatprep.mubr.f32.mxu0 0.0
  %9356 = vmatmul.mubr.f32.gmra.mrb[0].mxu0 %v9023
  %v9357 = vpop.f32.mrb[0].mxu0
  %v9358 = vadd.f32 0.0, %v9357
  %v9359 = vpop.f32.mrb[0].mxu0
  %9360 = vmatprep.mubr.f32.mxu0 0.0
  %9361 = vmatmul.mubr.f32.gmra.mrb[0].mxu0 %v9026
  %v9362 = vpop.f32.mrb[0].mxu0
  %v9363 = vadd.f32 0.0, %v9362
  %v9364 = vpop.f32.mrb[0].mxu0
  %9365 = vmatprep.mubr.f32.mxu0 0.0
  %9366 = vmatmul.mubr.f32.gmra.mrb[0].mxu0 %v9029
  %v9367 = vpop.f32.mrb[0].mxu0
  %v9368 = vadd.f32 0.0, %v9367
  %v9369 = vpop.f32.mrb[0].mxu0
  %9370 = vmatprep.mubr.f32.mxu0 0.0
  %9371 = vmatmul.mubr.f32.gmra.mrb[0].mxu0 %v9032
  %v9372 = vpop.f32.mrb[0].mxu0
  %v9373 = vadd.f32 0.0, %v9372
  %v9374 = vpop.f32.mrb[0].mxu0
  %9375 = vmatprep.mubr.f32.mxu0 0.0
  %9376 = vmatmul.mubr.f32.gmra.mrb[0].mxu0 %v9035
  %v9377 = vpop.f32.mrb[0].mxu0
  %v9378 = vadd.f32 0.0, %v9377
  %v9379 = vpop.f32.mrb[0].mxu0
  %9380 = vmatprep.mubr.f32.mxu0 0.0
  %9381 = vmatmul.mubr.f32.gmra.mrb[0].mxu0 %v9038
  %v9382 = vpop.f32.mrb[0].mxu0
  %v9383 = vadd.f32 0.0, %v9382
  %v9384 = vpop.f32.mrb[0].mxu0
  %9385 = vmatprep.mubr.f32.mxu0 0.0
  %9386 = vmatmul.mubr.f32.gmra.mrb[0].mxu0 %v9041
  %v9387 = vpop.f32.mrb[0].mxu0
  %v9388 = vadd.f32 0.0, %v9387
  %v9389 = vpop.f32.mrb[0].mxu0
  %9390 = vmatprep.mubr.f32.mxu0 0.0
  %9391 = vmatmul.mubr.f32.gmra.mrb[0].mxu0 %v9044
  %v9392 = vpop.f32.mrb[0].mxu0
  %v9393 = vadd.f32 0.0, %v9392
  %v9394 = vpop.f32.mrb[0].mxu0
  %9395 = vmatprep.mubr.f32.mxu0 0.0
  %9396 = vmatmul.mubr.f32.gmra.mrb[0].mxu0 %v9047
  %v9397 = vpop.f32.mrb[0].mxu0
  %v9398 = vadd.f32 0.0, %v9397
  %v9399 = vpop.f32.mrb[0].mxu0
  %9400 = vmatprep.mubr.f32.mxu0 0.0
  %9401 = vmatmul.mubr.f32.gmra.mrb[0].mxu0 %v9050
  %v9402 = vpop.f32.mrb[0].mxu0
  %v9403 = vadd.f32 0.0, %v9402
  %v9404 = vpop.f32.mrb[0].mxu0
  %9405 = vmatprep.mubr.f32.mxu0 0.0
  %9406 = vmatmul.mubr.f32.gmra.mrb[0].mxu0 %v9053
  %v9407 = vpop.f32.mrb[0].mxu0
  %v9408 = vadd.f32 0.0, %v9407
  %v9409 = vpop.f32.mrb[0].mxu0
  %9410 = vmatprep.mubr.f32.mxu0 0.0
  %9411 = vmatmul.mubr.f32.gmra.mrb[0].mxu0 %v9056
  %v9412 = vpop.f32.mrb[0].mxu0
  %v9413 = vadd.f32 0.0, %v9412
  %v9414 = vpop.f32.mrb[0].mxu0
  %9415 = vmatprep.mubr.f32.mxu0 0.0
  %9416 = vmatmul.mubr.f32.gmra.mrb[0].mxu0 %v9059
  %v9417 = vpop.f32.mrb[0].mxu0
  %v9418 = vadd.f32 0.0, %v9417
  %v9419 = vpop.f32.mrb[0].mxu0
  %9420 = vmatprep.mubr.f32.mxu0 0.0
  %9421 = vmatmul.mubr.f32.gmra.mrb[0].mxu0 %v9062
  %v9422 = vpop.f32.mrb[0].mxu0
  %v9423 = vadd.f32 0.0, %v9422
  %v9424 = vpop.f32.mrb[0].mxu0
  %9425 = vmatprep.mubr.f32.mxu0 0.0
  %9426 = vmatmul.mubr.f32.gmra.mrb[0].mxu0 %v9065
  %v9427 = vpop.f32.mrb[0].mxu0
  %v9428 = vadd.f32 0.0, %v9427
  %v9429 = vpop.f32.mrb[0].mxu0
  %9430 = vmatprep.mubr.f32.mxu0 0.0
  %9431 = vmatmul.mubr.f32.gmra.mrb[0].mxu0 %v9068
  %v9432 = vpop.f32.mrb[0].mxu0
  %v9433 = vadd.f32 0.0, %v9432
  %v9434 = vpop.f32.mrb[0].mxu0
  %9435 = vmatprep.mubr.f32.mxu0 0.0
  %9436 = vmatmul.mubr.f32.gmra.mrb[0].mxu0 %v9071
  %v9437 = vpop.f32.mrb[0].mxu0
  %v9438 = vadd.f32 0.0, %v9437
  %v9439 = vpop.f32.mrb[0].mxu0
  %9440 = vmatprep.mubr.f32.mxu0 0.0
  %9441 = vmatmul.mubr.f32.gmra.mrb[0].mxu0 %v9074
  %v9442 = vpop.f32.mrb[0].mxu0
  %v9443 = vadd.f32 0.0, %v9442
  %v9444 = vpop.f32.mrb[0].mxu0
  %9445 = vmatprep.mubr.f32.mxu0 0.0
  %9446 = vmatmul.mubr.f32.gmra.mrb[0].mxu0 %v9077
  %v9447 = vpop.f32.mrb[0].mxu0
  %v9448 = vadd.f32 0.0, %v9447
  %v9449 = vpop.f32.mrb[0].mxu0
  %9450 = vmatprep.mubr.f32.mxu0 0.0
  %9451 = vmatmul.mubr.f32.gmra.mrb[0].mxu0 %v9080
  %v9452 = vpop.f32.mrb[0].mxu0
  %v9453 = vadd.f32 0.0, %v9452
  %v9454 = vpop.f32.mrb[0].mxu0
  %9455 = vmatprep.mubr.f32.mxu0 0.0
  %9456 = vmatmul.mubr.f32.gmra.mrb[0].mxu0 %v9083
  %v9457 = vpop.f32.mrb[0].mxu0
  %v9458 = vadd.f32 0.0, %v9457
  %v9459 = vpop.f32.mrb[0].mxu0
  %9460 = vmatprep.mubr.f32.mxu0 0.0
  %9461 = vmatmul.mubr.f32.gmra.mrb[0].mxu0 %v9086
  %v9462 = vpop.f32.mrb[0].mxu0
  %v9463 = vadd.f32 0.0, %v9462
  %v9464 = vpop.f32.mrb[0].mxu0
  %9465 = vmatprep.mubr.f32.mxu0 0.0
  %9466 = vmatmul.mubr.f32.gmra.mrb[0].mxu0 %v9089
  %v9467 = vpop.f32.mrb[0].mxu0
  %v9468 = vadd.f32 0.0, %v9467
  %v9469 = vpop.f32.mrb[0].mxu0
  %9470 = vmatprep.mubr.f32.mxu0 0.0
  %9471 = vmatmul.mubr.f32.gmra.mrb[0].mxu0 %v9092
  %v9472 = vpop.f32.mrb[0].mxu0
  %v9473 = vadd.f32 0.0, %v9472
  %v9474 = vpop.f32.mrb[0].mxu0
  %9475 = vmatprep.mubr.f32.mxu0 0.0
  %9476 = vmatmul.mubr.f32.gmra.mrb[0].mxu0 %v9095
  %v9477 = vpop.f32.mrb[0].mxu0
  %v9478 = vadd.f32 0.0, %v9477
  %v9479 = vpop.f32.mrb[0].mxu0
  %9480 = vmatprep.mubr.f32.mxu0 0.0
  %9481 = vmatmul.mubr.f32.gmra.mrb[0].mxu0 %v9098
  %v9482 = vpop.f32.mrb[0].mxu0
  %v9483 = vadd.f32 0.0, %v9482
  %v9484 = vpop.f32.mrb[0].mxu0
  %9485 = vmatprep.mubr.f32.mxu0 0.0
  %9486 = vmatmul.mubr.f32.gmra.mrb[0].mxu0 %v9101
  %v9487 = vpop.f32.mrb[0].mxu0
  %v9488 = vadd.f32 0.0, %v9487
  %v9489 = vpop.f32.mrb[0].mxu0
  %9490 = vdwg.mxu0
  %v9491 = vadd.f32 %v8773, %v9173
  %v9492 = vadd.f32 %v8774, %v9178
  %v9493 = vadd.f32 %v8775, %v9183
  %v9494 = vadd.f32 %v8776, %v9188
  %v9495 = vadd.f32 %v8777, %v9193
  %v9496 = vadd.f32 %v8778, %v9198
  %v9497 = vadd.f32 %v8779, %v9203
  %v9498 = vadd.f32 %v8780, %v9208
  %v9499 = vadd.f32 %v8781, %v9213
  %v9500 = vadd.f32 %v8782, %v9218
  %v9501 = vadd.f32 %v8783, %v9223
  %v9502 = vadd.f32 %v8784, %v9228
  %v9503 = vadd.f32 %v8785, %v9233
  %v9504 = vadd.f32 %v8786, %v9238
  %v9505 = vadd.f32 %v8787, %v9243
  %v9506 = vadd.f32 %v8788, %v9248
  %v9507 = vadd.f32 %v8789, %v9253
  %v9508 = vadd.f32 %v8790, %v9258
  %v9509 = vadd.f32 %v8791, %v9263
  %v9510 = vadd.f32 %v8792, %v9268
  %v9511 = vadd.f32 %v8793, %v9273
  %v9512 = vadd.f32 %v8794, %v9278
  %v9513 = vadd.f32 %v8795, %v9283
  %v9514 = vadd.f32 %v8796, %v9288
  %v9515 = vadd.f32 %v8797, %v9293
  %v9516 = vadd.f32 %v8798, %v9298
  %v9517 = vadd.f32 %v8799, %v9303
  %v9518 = vadd.f32 %v8800, %v9308
  %v9519 = vadd.f32 %v8801, %v9313
  %v9520 = vadd.f32 %v8802, %v9318
  %v9521 = vadd.f32 %v8803, %v9323
  %v9522 = vadd.f32 %v8804, %v9328
  %v9523 = vadd.f32 %v8805, %v9333
  %v9524 = vadd.f32 %v8806, %v9338
  %v9525 = vadd.f32 %v8807, %v9343
  %v9526 = vadd.f32 %v8808, %v9348
  %v9527 = vadd.f32 %v8809, %v9353
  %v9528 = vadd.f32 %v8810, %v9358
  %v9529 = vadd.f32 %v8811, %v9363
  %v9530 = vadd.f32 %v8812, %v9368
  %v9531 = vadd.f32 %v8813, %v9373
  %v9532 = vadd.f32 %v8814, %v9378
  %v9533 = vadd.f32 %v8815, %v9383
  %v9534 = vadd.f32 %v8816, %v9388
  %v9535 = vadd.f32 %v8817, %v9393
  %v9536 = vadd.f32 %v8818, %v9398
  %v9537 = vadd.f32 %v8819, %v9403
  %v9538 = vadd.f32 %v8820, %v9408
  %v9539 = vadd.f32 %v8821, %v9413
  %v9540 = vadd.f32 %v8822, %v9418
  %v9541 = vadd.f32 %v8823, %v9423
  %v9542 = vadd.f32 %v8824, %v9428
  %v9543 = vadd.f32 %v8825, %v9433
  %v9544 = vadd.f32 %v8826, %v9438
  %v9545 = vadd.f32 %v8827, %v9443
  %v9546 = vadd.f32 %v8828, %v9448
  %v9547 = vadd.f32 %v8829, %v9453
  %v9548 = vadd.f32 %v8830, %v9458
  %v9549 = vadd.f32 %v8831, %v9463
  %v9550 = vadd.f32 %v8832, %v9468
  %v9551 = vadd.f32 %v8833, %v9473
  %v9552 = vadd.f32 %v8834, %v9478
  %v9553 = vadd.f32 %v8835, %v9483
  %v9554 = vadd.f32 %v8836, %v9488
  %s9555 = scalar_lea.vmem %s2, 20
  %v9556 = vld [vmem:[%s9555] sm:$0xf]
  %v9558 = vsel %vm90, %v8869, 0
  %v9561 = vsel %vm90, %v8870, 0
  %v9564 = vsel %vm90, %v8905, 0
  %v9567 = vsel %vm90, %v8906, 0
  %v9570 = vsel %vm501, %v9556, 0
  %9572 = vmatprep.subr.mxu0 0.0
  %9573 = vmatpush1.msra.mxu0 %v9570
  %9574 = vmatprep.subr.mxu0 0.0
  %9575 = vmatpush1.msra.mxu0 0.0
  %9576 = vmatprep.subr.mxu0 0.0
  %9577 = vmatpush1.msra.mxu0 0.0
  %9578 = vmatprep.subr.mxu0 0.0
  %9579 = vmatpush1.msra.mxu0 0.0
  %9580 = vmatprep.subr.mxu0 0.0
  %9581 = vmatpush1.msra.mxu0 0.0
  %9582 = vmatprep.subr.mxu0 0.0
  %9583 = vmatpush1.msra.mxu0 0.0
  %9584 = vmatprep.subr.mxu0 0.0
  %9585 = vmatpush1.msra.mxu0 0.0
  %9586 = vmatprep.subr.mxu0 0.0
  %9587 = vmatpush1.msra.mxu0 0.0
  %9588 = vmatprep.subr.mxu0 0.0
  %9589 = vmatpush1.msra.mxu0 0.0
  %9590 = vmatprep.subr.mxu0 0.0
  %9591 = vmatpush1.msra.mxu0 0.0
  %9592 = vmatprep.subr.mxu0 0.0
  %9593 = vmatpush1.msra.mxu0 0.0
  %9594 = vmatprep.subr.mxu0 0.0
  %9595 = vmatpush1.msra.mxu0 0.0
  %9596 = vmatprep.subr.mxu0 0.0
  %9597 = vmatpush1.msra.mxu0 0.0
  %9598 = vmatprep.subr.mxu0 0.0
  %9599 = vmatpush1.msra.mxu0 0.0
  %9600 = vmatprep.subr.mxu0 0.0
  %9601 = vmatpush1.msra.mxu0 0.0
  %9602 = vmatprep.subr.mxu0 0.0
  %9603 = vmatpush1.msra.mxu0 0.0
  %9604 = vmatprep.subr.mxu0 0.0
  %9605 = vmatpush1.msra.mxu0 0.0
  %9606 = vmatprep.subr.mxu0 0.0
  %9607 = vmatpush1.msra.mxu0 0.0
  %9608 = vmatprep.subr.mxu0 0.0
  %9609 = vmatpush1.msra.mxu0 0.0
  %9610 = vmatprep.subr.mxu0 0.0
  %9611 = vmatpush1.msra.mxu0 0.0
  %9612 = vmatprep.subr.mxu0 0.0
  %9613 = vmatpush1.msra.mxu0 0.0
  %9614 = vmatprep.subr.mxu0 0.0
  %9615 = vmatpush1.msra.mxu0 0.0
  %9616 = vmatprep.subr.mxu0 0.0
  %9617 = vmatpush1.msra.mxu0 0.0
  %9618 = vmatprep.subr.mxu0 0.0
  %9619 = vmatpush1.msra.mxu0 0.0
  %9620 = vmatprep.subr.mxu0 0.0
  %9621 = vmatpush1.msra.mxu0 0.0
  %9622 = vmatprep.subr.mxu0 0.0
  %9623 = vmatpush1.msra.mxu0 0.0
  %9624 = vmatprep.subr.mxu0 0.0
  %9625 = vmatpush1.msra.mxu0 0.0
  %9626 = vmatprep.subr.mxu0 0.0
  %9627 = vmatpush1.msra.mxu0 0.0
  %9628 = vmatprep.subr.mxu0 0.0
  %9629 = vmatpush1.msra.mxu0 0.0
  %9630 = vmatprep.subr.mxu0 0.0
  %9631 = vmatpush1.msra.mxu0 0.0
  %9632 = vmatprep.subr.mxu0 0.0
  %9633 = vmatpush1.msra.mxu0 0.0
  %9634 = vmatprep.subr.mxu0 0.0
  %9635 = vmatpush1.msra.mxu0 0.0
  %9636 = vmatprep.mubr.f32.mxu0 0.0
  %9637 = vmatmul.mubr.f32.gmra.mrb[0].mxu0 %v8918
  %v9638 = vpop.f32.mrb[0].mxu0
  %v9639 = vadd.f32 0.0, %v9638
  %v9640 = vpop.f32.mrb[0].mxu0
  %9641 = vmatprep.mubr.f32.mxu0 0.0
  %9642 = vmatmul.mubr.f32.gmra.mrb[0].mxu0 %v8921
  %v9643 = vpop.f32.mrb[0].mxu0
  %v9644 = vadd.f32 0.0, %v9643
  %v9645 = vpop.f32.mrb[0].mxu0
  %9646 = vmatprep.mubr.f32.mxu0 0.0
  %9647 = vmatmul.mubr.f32.gmra.mrb[0].mxu0 %v8924
  %v9648 = vpop.f32.mrb[0].mxu0
  %v9649 = vadd.f32 0.0, %v9648
  %v9650 = vpop.f32.mrb[0].mxu0
  %9651 = vmatprep.mubr.f32.mxu0 0.0
  %9652 = vmatmul.mubr.f32.gmra.mrb[0].mxu0 %v8927
  %v9653 = vpop.f32.mrb[0].mxu0
  %v9654 = vadd.f32 0.0, %v9653
  %v9655 = vpop.f32.mrb[0].mxu0
  %9656 = vmatprep.mubr.f32.mxu0 0.0
  %9657 = vmatmul.mubr.f32.gmra.mrb[0].mxu0 %v8930
  %v9658 = vpop.f32.mrb[0].mxu0
  %v9659 = vadd.f32 0.0, %v9658
  %v9660 = vpop.f32.mrb[0].mxu0
  %9661 = vmatprep.mubr.f32.mxu0 0.0
  %9662 = vmatmul.mubr.f32.gmra.mrb[0].mxu0 %v8933
  %v9663 = vpop.f32.mrb[0].mxu0
  %v9664 = vadd.f32 0.0, %v9663
  %v9665 = vpop.f32.mrb[0].mxu0
  %9666 = vmatprep.mubr.f32.mxu0 0.0
  %9667 = vmatmul.mubr.f32.gmra.mrb[0].mxu0 %v8936
  %v9668 = vpop.f32.mrb[0].mxu0
  %v9669 = vadd.f32 0.0, %v9668
  %v9670 = vpop.f32.mrb[0].mxu0
  %9671 = vmatprep.mubr.f32.mxu0 0.0
  %9672 = vmatmul.mubr.f32.gmra.mrb[0].mxu0 %v8939
  %v9673 = vpop.f32.mrb[0].mxu0
  %v9674 = vadd.f32 0.0, %v9673
  %v9675 = vpop.f32.mrb[0].mxu0
  %9676 = vmatprep.mubr.f32.mxu0 0.0
  %9677 = vmatmul.mubr.f32.gmra.mrb[0].mxu0 %v8942
  %v9678 = vpop.f32.mrb[0].mxu0
  %v9679 = vadd.f32 0.0, %v9678
  %v9680 = vpop.f32.mrb[0].mxu0
  %9681 = vmatprep.mubr.f32.mxu0 0.0
  %9682 = vmatmul.mubr.f32.gmra.mrb[0].mxu0 %v8945
  %v9683 = vpop.f32.mrb[0].mxu0
  %v9684 = vadd.f32 0.0, %v9683
  %v9685 = vpop.f32.mrb[0].mxu0
  %9686 = vmatprep.mubr.f32.mxu0 0.0
  %9687 = vmatmul.mubr.f32.gmra.mrb[0].mxu0 %v8948
  %v9688 = vpop.f32.mrb[0].mxu0
  %v9689 = vadd.f32 0.0, %v9688
  %v9690 = vpop.f32.mrb[0].mxu0
  %9691 = vmatprep.mubr.f32.mxu0 0.0
  %9692 = vmatmul.mubr.f32.gmra.mrb[0].mxu0 %v8951
  %v9693 = vpop.f32.mrb[0].mxu0
  %v9694 = vadd.f32 0.0, %v9693
  %v9695 = vpop.f32.mrb[0].mxu0
  %9696 = vmatprep.mubr.f32.mxu0 0.0
  %9697 = vmatmul.mubr.f32.gmra.mrb[0].mxu0 %v8954
  %v9698 = vpop.f32.mrb[0].mxu0
  %v9699 = vadd.f32 0.0, %v9698
  %v9700 = vpop.f32.mrb[0].mxu0
  %9701 = vmatprep.mubr.f32.mxu0 0.0
  %9702 = vmatmul.mubr.f32.gmra.mrb[0].mxu0 %v8957
  %v9703 = vpop.f32.mrb[0].mxu0
  %v9704 = vadd.f32 0.0, %v9703
  %v9705 = vpop.f32.mrb[0].mxu0
  %9706 = vmatprep.mubr.f32.mxu0 0.0
  %9707 = vmatmul.mubr.f32.gmra.mrb[0].mxu0 %v8960
  %v9708 = vpop.f32.mrb[0].mxu0
  %v9709 = vadd.f32 0.0, %v9708
  %v9710 = vpop.f32.mrb[0].mxu0
  %9711 = vmatprep.mubr.f32.mxu0 0.0
  %9712 = vmatmul.mubr.f32.gmra.mrb[0].mxu0 %v8963
  %v9713 = vpop.f32.mrb[0].mxu0
  %v9714 = vadd.f32 0.0, %v9713
  %v9715 = vpop.f32.mrb[0].mxu0
  %9716 = vmatprep.mubr.f32.mxu0 0.0
  %9717 = vmatmul.mubr.f32.gmra.mrb[0].mxu0 %v8966
  %v9718 = vpop.f32.mrb[0].mxu0
  %v9719 = vadd.f32 0.0, %v9718
  %v9720 = vpop.f32.mrb[0].mxu0
  %9721 = vmatprep.mubr.f32.mxu0 0.0
  %9722 = vmatmul.mubr.f32.gmra.mrb[0].mxu0 %v8969
  %v9723 = vpop.f32.mrb[0].mxu0
  %v9724 = vadd.f32 0.0, %v9723
  %v9725 = vpop.f32.mrb[0].mxu0
  %9726 = vmatprep.mubr.f32.mxu0 0.0
  %9727 = vmatmul.mubr.f32.gmra.mrb[0].mxu0 %v8972
  %v9728 = vpop.f32.mrb[0].mxu0
  %v9729 = vadd.f32 0.0, %v9728
  %v9730 = vpop.f32.mrb[0].mxu0
  %9731 = vmatprep.mubr.f32.mxu0 0.0
  %9732 = vmatmul.mubr.f32.gmra.mrb[0].mxu0 %v8975
  %v9733 = vpop.f32.mrb[0].mxu0
  %v9734 = vadd.f32 0.0, %v9733
  %v9735 = vpop.f32.mrb[0].mxu0
  %9736 = vmatprep.mubr.f32.mxu0 0.0
  %9737 = vmatmul.mubr.f32.gmra.mrb[0].mxu0 %v8978
  %v9738 = vpop.f32.mrb[0].mxu0
  %v9739 = vadd.f32 0.0, %v9738
  %v9740 = vpop.f32.mrb[0].mxu0
  %9741 = vmatprep.mubr.f32.mxu0 0.0
  %9742 = vmatmul.mubr.f32.gmra.mrb[0].mxu0 %v8981
  %v9743 = vpop.f32.mrb[0].mxu0
  %v9744 = vadd.f32 0.0, %v9743
  %v9745 = vpop.f32.mrb[0].mxu0
  %9746 = vmatprep.mubr.f32.mxu0 0.0
  %9747 = vmatmul.mubr.f32.gmra.mrb[0].mxu0 %v8984
  %v9748 = vpop.f32.mrb[0].mxu0
  %v9749 = vadd.f32 0.0, %v9748
  %v9750 = vpop.f32.mrb[0].mxu0
  %9751 = vmatprep.mubr.f32.mxu0 0.0
  %9752 = vmatmul.mubr.f32.gmra.mrb[0].mxu0 %v8987
  %v9753 = vpop.f32.mrb[0].mxu0
  %v9754 = vadd.f32 0.0, %v9753
  %v9755 = vpop.f32.mrb[0].mxu0
  %9756 = vmatprep.mubr.f32.mxu0 0.0
  %9757 = vmatmul.mubr.f32.gmra.mrb[0].mxu0 %v8990
  %v9758 = vpop.f32.mrb[0].mxu0
  %v9759 = vadd.f32 0.0, %v9758
  %v9760 = vpop.f32.mrb[0].mxu0
  %9761 = vmatprep.mubr.f32.mxu0 0.0
  %9762 = vmatmul.mubr.f32.gmra.mrb[0].mxu0 %v8993
  %v9763 = vpop.f32.mrb[0].mxu0
  %v9764 = vadd.f32 0.0, %v9763
  %v9765 = vpop.f32.mrb[0].mxu0
  %9766 = vmatprep.mubr.f32.mxu0 0.0
  %9767 = vmatmul.mubr.f32.gmra.mrb[0].mxu0 %v8996
  %v9768 = vpop.f32.mrb[0].mxu0
  %v9769 = vadd.f32 0.0, %v9768
  %v9770 = vpop.f32.mrb[0].mxu0
  %9771 = vmatprep.mubr.f32.mxu0 0.0
  %9772 = vmatmul.mubr.f32.gmra.mrb[0].mxu0 %v8999
  %v9773 = vpop.f32.mrb[0].mxu0
  %v9774 = vadd.f32 0.0, %v9773
  %v9775 = vpop.f32.mrb[0].mxu0
  %9776 = vmatprep.mubr.f32.mxu0 0.0
  %9777 = vmatmul.mubr.f32.gmra.mrb[0].mxu0 %v9002
  %v9778 = vpop.f32.mrb[0].mxu0
  %v9779 = vadd.f32 0.0, %v9778
  %v9780 = vpop.f32.mrb[0].mxu0
  %9781 = vmatprep.mubr.f32.mxu0 0.0
  %9782 = vmatmul.mubr.f32.gmra.mrb[0].mxu0 %v9005
  %v9783 = vpop.f32.mrb[0].mxu0
  %v9784 = vadd.f32 0.0, %v9783
  %v9785 = vpop.f32.mrb[0].mxu0
  %9786 = vmatprep.mubr.f32.mxu0 0.0
  %9787 = vmatmul.mubr.f32.gmra.mrb[0].mxu0 %v9558
  %v9788 = vpop.f32.mrb[0].mxu0
  %v9789 = vadd.f32 0.0, %v9788
  %v9790 = vpop.f32.mrb[0].mxu0
  %9791 = vmatprep.mubr.f32.mxu0 0.0
  %9792 = vmatmul.mubr.f32.gmra.mrb[0].mxu0 %v9561
  %v9793 = vpop.f32.mrb[0].mxu0
  %v9794 = vadd.f32 0.0, %v9793
  %v9795 = vpop.f32.mrb[0].mxu0
  %9796 = vmatprep.mubr.f32.mxu0 0.0
  %9797 = vmatmul.mubr.f32.gmra.mrb[0].mxu0 %v9014
  %v9798 = vpop.f32.mrb[0].mxu0
  %v9799 = vadd.f32 0.0, %v9798
  %v9800 = vpop.f32.mrb[0].mxu0
  %9801 = vmatprep.mubr.f32.mxu0 0.0
  %9802 = vmatmul.mubr.f32.gmra.mrb[0].mxu0 %v9017
  %v9803 = vpop.f32.mrb[0].mxu0
  %v9804 = vadd.f32 0.0, %v9803
  %v9805 = vpop.f32.mrb[0].mxu0
  %9806 = vmatprep.mubr.f32.mxu0 0.0
  %9807 = vmatmul.mubr.f32.gmra.mrb[0].mxu0 %v9020
  %v9808 = vpop.f32.mrb[0].mxu0
  %v9809 = vadd.f32 0.0, %v9808
  %v9810 = vpop.f32.mrb[0].mxu0
  %9811 = vmatprep.mubr.f32.mxu0 0.0
  %9812 = vmatmul.mubr.f32.gmra.mrb[0].mxu0 %v9023
  %v9813 = vpop.f32.mrb[0].mxu0
  %v9814 = vadd.f32 0.0, %v9813
  %v9815 = vpop.f32.mrb[0].mxu0
  %9816 = vmatprep.mubr.f32.mxu0 0.0
  %9817 = vmatmul.mubr.f32.gmra.mrb[0].mxu0 %v9026
  %v9818 = vpop.f32.mrb[0].mxu0
  %v9819 = vadd.f32 0.0, %v9818
  %v9820 = vpop.f32.mrb[0].mxu0
  %9821 = vmatprep.mubr.f32.mxu0 0.0
  %9822 = vmatmul.mubr.f32.gmra.mrb[0].mxu0 %v9029
  %v9823 = vpop.f32.mrb[0].mxu0
  %v9824 = vadd.f32 0.0, %v9823
  %v9825 = vpop.f32.mrb[0].mxu0
  %9826 = vmatprep.mubr.f32.mxu0 0.0
  %9827 = vmatmul.mubr.f32.gmra.mrb[0].mxu0 %v9032
  %v9828 = vpop.f32.mrb[0].mxu0
  %v9829 = vadd.f32 0.0, %v9828
  %v9830 = vpop.f32.mrb[0].mxu0
  %9831 = vmatprep.mubr.f32.mxu0 0.0
  %9832 = vmatmul.mubr.f32.gmra.mrb[0].mxu0 %v9035
  %v9833 = vpop.f32.mrb[0].mxu0
  %v9834 = vadd.f32 0.0, %v9833
  %v9835 = vpop.f32.mrb[0].mxu0
  %9836 = vmatprep.mubr.f32.mxu0 0.0
  %9837 = vmatmul.mubr.f32.gmra.mrb[0].mxu0 %v9038
  %v9838 = vpop.f32.mrb[0].mxu0
  %v9839 = vadd.f32 0.0, %v9838
  %v9840 = vpop.f32.mrb[0].mxu0
  %9841 = vmatprep.mubr.f32.mxu0 0.0
  %9842 = vmatmul.mubr.f32.gmra.mrb[0].mxu0 %v9041
  %v9843 = vpop.f32.mrb[0].mxu0
  %v9844 = vadd.f32 0.0, %v9843
  %v9845 = vpop.f32.mrb[0].mxu0
  %9846 = vmatprep.mubr.f32.mxu0 0.0
  %9847 = vmatmul.mubr.f32.gmra.mrb[0].mxu0 %v9044
  %v9848 = vpop.f32.mrb[0].mxu0
  %v9849 = vadd.f32 0.0, %v9848
  %v9850 = vpop.f32.mrb[0].mxu0
  %9851 = vmatprep.mubr.f32.mxu0 0.0
  %9852 = vmatmul.mubr.f32.gmra.mrb[0].mxu0 %v9047
  %v9853 = vpop.f32.mrb[0].mxu0
  %v9854 = vadd.f32 0.0, %v9853
  %v9855 = vpop.f32.mrb[0].mxu0
  %9856 = vmatprep.mubr.f32.mxu0 0.0
  %9857 = vmatmul.mubr.f32.gmra.mrb[0].mxu0 %v9050
  %v9858 = vpop.f32.mrb[0].mxu0
  %v9859 = vadd.f32 0.0, %v9858
  %v9860 = vpop.f32.mrb[0].mxu0
  %9861 = vmatprep.mubr.f32.mxu0 0.0
  %9862 = vmatmul.mubr.f32.gmra.mrb[0].mxu0 %v9053
  %v9863 = vpop.f32.mrb[0].mxu0
  %v9864 = vadd.f32 0.0, %v9863
  %v9865 = vpop.f32.mrb[0].mxu0
  %9866 = vmatprep.mubr.f32.mxu0 0.0
  %9867 = vmatmul.mubr.f32.gmra.mrb[0].mxu0 %v9056
  %v9868 = vpop.f32.mrb[0].mxu0
  %v9869 = vadd.f32 0.0, %v9868
  %v9870 = vpop.f32.mrb[0].mxu0
  %9871 = vmatprep.mubr.f32.mxu0 0.0
  %9872 = vmatmul.mubr.f32.gmra.mrb[0].mxu0 %v9059
  %v9873 = vpop.f32.mrb[0].mxu0
  %v9874 = vadd.f32 0.0, %v9873
  %v9875 = vpop.f32.mrb[0].mxu0
  %9876 = vmatprep.mubr.f32.mxu0 0.0
  %9877 = vmatmul.mubr.f32.gmra.mrb[0].mxu0 %v9062
  %v9878 = vpop.f32.mrb[0].mxu0
  %v9879 = vadd.f32 0.0, %v9878
  %v9880 = vpop.f32.mrb[0].mxu0
  %9881 = vmatprep.mubr.f32.mxu0 0.0
  %9882 = vmatmul.mubr.f32.gmra.mrb[0].mxu0 %v9065
  %v9883 = vpop.f32.mrb[0].mxu0
  %v9884 = vadd.f32 0.0, %v9883
  %v9885 = vpop.f32.mrb[0].mxu0
  %9886 = vmatprep.mubr.f32.mxu0 0.0
  %9887 = vmatmul.mubr.f32.gmra.mrb[0].mxu0 %v9068
  %v9888 = vpop.f32.mrb[0].mxu0
  %v9889 = vadd.f32 0.0, %v9888
  %v9890 = vpop.f32.mrb[0].mxu0
  %9891 = vmatprep.mubr.f32.mxu0 0.0
  %9892 = vmatmul.mubr.f32.gmra.mrb[0].mxu0 %v9071
  %v9893 = vpop.f32.mrb[0].mxu0
  %v9894 = vadd.f32 0.0, %v9893
  %v9895 = vpop.f32.mrb[0].mxu0
  %9896 = vmatprep.mubr.f32.mxu0 0.0
  %9897 = vmatmul.mubr.f32.gmra.mrb[0].mxu0 %v9074
  %v9898 = vpop.f32.mrb[0].mxu0
  %v9899 = vadd.f32 0.0, %v9898
  %v9900 = vpop.f32.mrb[0].mxu0
  %9901 = vmatprep.mubr.f32.mxu0 0.0
  %9902 = vmatmul.mubr.f32.gmra.mrb[0].mxu0 %v9077
  %v9903 = vpop.f32.mrb[0].mxu0
  %v9904 = vadd.f32 0.0, %v9903
  %v9905 = vpop.f32.mrb[0].mxu0
  %9906 = vmatprep.mubr.f32.mxu0 0.0
  %9907 = vmatmul.mubr.f32.gmra.mrb[0].mxu0 %v9080
  %v9908 = vpop.f32.mrb[0].mxu0
  %v9909 = vadd.f32 0.0, %v9908
  %v9910 = vpop.f32.mrb[0].mxu0
  %9911 = vmatprep.mubr.f32.mxu0 0.0
  %9912 = vmatmul.mubr.f32.gmra.mrb[0].mxu0 %v9083
  %v9913 = vpop.f32.mrb[0].mxu0
  %v9914 = vadd.f32 0.0, %v9913
  %v9915 = vpop.f32.mrb[0].mxu0
  %9916 = vmatprep.mubr.f32.mxu0 0.0
  %9917 = vmatmul.mubr.f32.gmra.mrb[0].mxu0 %v9086
  %v9918 = vpop.f32.mrb[0].mxu0
  %v9919 = vadd.f32 0.0, %v9918
  %v9920 = vpop.f32.mrb[0].mxu0
  %9921 = vmatprep.mubr.f32.mxu0 0.0
  %9922 = vmatmul.mubr.f32.gmra.mrb[0].mxu0 %v9089
  %v9923 = vpop.f32.mrb[0].mxu0
  %v9924 = vadd.f32 0.0, %v9923
  %v9925 = vpop.f32.mrb[0].mxu0
  %9926 = vmatprep.mubr.f32.mxu0 0.0
  %9927 = vmatmul.mubr.f32.gmra.mrb[0].mxu0 %v9092
  %v9928 = vpop.f32.mrb[0].mxu0
  %v9929 = vadd.f32 0.0, %v9928
  %v9930 = vpop.f32.mrb[0].mxu0
  %9931 = vmatprep.mubr.f32.mxu0 0.0
  %9932 = vmatmul.mubr.f32.gmra.mrb[0].mxu0 %v9095
  %v9933 = vpop.f32.mrb[0].mxu0
  %v9934 = vadd.f32 0.0, %v9933
  %v9935 = vpop.f32.mrb[0].mxu0
  %9936 = vmatprep.mubr.f32.mxu0 0.0
  %9937 = vmatmul.mubr.f32.gmra.mrb[0].mxu0 %v9098
  %v9938 = vpop.f32.mrb[0].mxu0
  %v9939 = vadd.f32 0.0, %v9938
  %v9940 = vpop.f32.mrb[0].mxu0
  %9941 = vmatprep.mubr.f32.mxu0 0.0
  %9942 = vmatmul.mubr.f32.gmra.mrb[0].mxu0 %v9101
  %v9943 = vpop.f32.mrb[0].mxu0
  %v9944 = vadd.f32 0.0, %v9943
  %v9945 = vpop.f32.mrb[0].mxu0
  %9946 = vmatprep.mubr.f32.mxu0 0.0
  %9947 = vmatmul.mubr.f32.gmra.mrb[0].mxu0 %v9564
  %v9948 = vpop.f32.mrb[0].mxu0
  %v9949 = vadd.f32 0.0, %v9948
  %v9950 = vpop.f32.mrb[0].mxu0
  %9951 = vmatprep.mubr.f32.mxu0 0.0
  %9952 = vmatmul.mubr.f32.gmra.mrb[0].mxu0 %v9567
  %v9953 = vpop.f32.mrb[0].mxu0
  %v9954 = vadd.f32 0.0, %v9953
  %v9955 = vpop.f32.mrb[0].mxu0
  %9956 = vdwg.mxu0
  %v9957 = vadd.f32 %v9491, %v9639
  %v9958 = vadd.f32 %v9492, %v9644
  %v9959 = vadd.f32 %v9493, %v9649
  %v9960 = vadd.f32 %v9494, %v9654
  %v9961 = vadd.f32 %v9495, %v9659
  %v9962 = vadd.f32 %v9496, %v9664
  %v9963 = vadd.f32 %v9497, %v9669
  %v9964 = vadd.f32 %v9498, %v9674
  %v9965 = vadd.f32 %v9499, %v9679
  %v9966 = vadd.f32 %v9500, %v9684
  %v9967 = vadd.f32 %v9501, %v9689
  %v9968 = vadd.f32 %v9502, %v9694
  %v9969 = vadd.f32 %v9503, %v9699
  %v9970 = vadd.f32 %v9504, %v9704
  %v9971 = vadd.f32 %v9505, %v9709
  %v9972 = vadd.f32 %v9506, %v9714
  %v9973 = vadd.f32 %v9507, %v9719
  %v9974 = vadd.f32 %v9508, %v9724
  %v9975 = vadd.f32 %v9509, %v9729
  %v9976 = vadd.f32 %v9510, %v9734
  %v9977 = vadd.f32 %v9511, %v9739
  %v9978 = vadd.f32 %v9512, %v9744
  %v9979 = vadd.f32 %v9513, %v9749
  %v9980 = vadd.f32 %v9514, %v9754
  %v9981 = vadd.f32 %v9515, %v9759
  %v9982 = vadd.f32 %v9516, %v9764
  %v9983 = vadd.f32 %v9517, %v9769
  %v9984 = vadd.f32 %v9518, %v9774
  %v9985 = vadd.f32 %v9519, %v9779
  %v9986 = vadd.f32 %v9520, %v9784
  %v9987 = vadd.f32 %v9521, %v9789
  %v9988 = vadd.f32 %v9522, %v9794
  %v9989 = vadd.f32 %v9523, %v9799
  %v9990 = vadd.f32 %v9524, %v9804
  %v9991 = vadd.f32 %v9525, %v9809
  %v9992 = vadd.f32 %v9526, %v9814
  %v9993 = vadd.f32 %v9527, %v9819
  %v9994 = vadd.f32 %v9528, %v9824
  %v9995 = vadd.f32 %v9529, %v9829
  %v9996 = vadd.f32 %v9530, %v9834
  %v9997 = vadd.f32 %v9531, %v9839
  %v9998 = vadd.f32 %v9532, %v9844
  %v9999 = vadd.f32 %v9533, %v9849
  %v10000 = vadd.f32 %v9534, %v9854
  %v10001 = vadd.f32 %v9535, %v9859
  %v10002 = vadd.f32 %v9536, %v9864
  %v10003 = vadd.f32 %v9537, %v9869
  %v10004 = vadd.f32 %v9538, %v9874
  %v10005 = vadd.f32 %v9539, %v9879
  %v10006 = vadd.f32 %v9540, %v9884
  %v10007 = vadd.f32 %v9541, %v9889
  %v10008 = vadd.f32 %v9542, %v9894
  %v10009 = vadd.f32 %v9543, %v9899
  %v10010 = vadd.f32 %v9544, %v9904
  %v10011 = vadd.f32 %v9545, %v9909
  %v10012 = vadd.f32 %v9546, %v9914
  %v10013 = vadd.f32 %v9547, %v9919
  %v10014 = vadd.f32 %v9548, %v9924
  %v10015 = vadd.f32 %v9549, %v9929
  %v10016 = vadd.f32 %v9550, %v9934
  %v10017 = vadd.f32 %v9551, %v9939
  %v10018 = vadd.f32 %v9552, %v9944
  %v10019 = vadd.f32 %v9553, %v9949
  %v10020 = vadd.f32 %v9554, %v9954
  %s10021 = scalar_lea.vmem %s2, 32
  %v10022 = vld [vmem:[%s10021] sm:$0xf]
  %v10024 = vsel %vm90, %v8871, 0
  %v10027 = vsel %vm90, %v8872, 0
  %v10030 = vsel %vm90, %v8907, 0
  %v10033 = vsel %vm90, %v8908, 0
  %v10036 = vsel %vm501, %v10022, 0
  %10038 = vmatprep.subr.mxu0 0.0
  %10039 = vmatpush1.msra.mxu0 %v10036
  %10040 = vmatprep.subr.mxu0 0.0
  %10041 = vmatpush1.msra.mxu0 0.0
  %10042 = vmatprep.subr.mxu0 0.0
  %10043 = vmatpush1.msra.mxu0 0.0
  %10044 = vmatprep.subr.mxu0 0.0
  %10045 = vmatpush1.msra.mxu0 0.0
  %10046 = vmatprep.subr.mxu0 0.0
  %10047 = vmatpush1.msra.mxu0 0.0
  %10048 = vmatprep.subr.mxu0 0.0
  %10049 = vmatpush1.msra.mxu0 0.0
  %10050 = vmatprep.subr.mxu0 0.0
  %10051 = vmatpush1.msra.mxu0 0.0
  %10052 = vmatprep.subr.mxu0 0.0
  %10053 = vmatpush1.msra.mxu0 0.0
  %10054 = vmatprep.subr.mxu0 0.0
  %10055 = vmatpush1.msra.mxu0 0.0
  %10056 = vmatprep.subr.mxu0 0.0
  %10057 = vmatpush1.msra.mxu0 0.0
  %10058 = vmatprep.subr.mxu0 0.0
  %10059 = vmatpush1.msra.mxu0 0.0
  %10060 = vmatprep.subr.mxu0 0.0
  %10061 = vmatpush1.msra.mxu0 0.0
  %10062 = vmatprep.subr.mxu0 0.0
  %10063 = vmatpush1.msra.mxu0 0.0
  %10064 = vmatprep.subr.mxu0 0.0
  %10065 = vmatpush1.msra.mxu0 0.0
  %10066 = vmatprep.subr.mxu0 0.0
  %10067 = vmatpush1.msra.mxu0 0.0
  %10068 = vmatprep.subr.mxu0 0.0
  %10069 = vmatpush1.msra.mxu0 0.0
  %10070 = vmatprep.subr.mxu0 0.0
  %10071 = vmatpush1.msra.mxu0 0.0
  %10072 = vmatprep.subr.mxu0 0.0
  %10073 = vmatpush1.msra.mxu0 0.0
  %10074 = vmatprep.subr.mxu0 0.0
  %10075 = vmatpush1.msra.mxu0 0.0
  %10076 = vmatprep.subr.mxu0 0.0
  %10077 = vmatpush1.msra.mxu0 0.0
  %10078 = vmatprep.subr.mxu0 0.0
  %10079 = vmatpush1.msra.mxu0 0.0
  %10080 = vmatprep.subr.mxu0 0.0
  %10081 = vmatpush1.msra.mxu0 0.0
  %10082 = vmatprep.subr.mxu0 0.0
  %10083 = vmatpush1.msra.mxu0 0.0
  %10084 = vmatprep.subr.mxu0 0.0
  %10085 = vmatpush1.msra.mxu0 0.0
  %10086 = vmatprep.subr.mxu0 0.0
  %10087 = vmatpush1.msra.mxu0 0.0
  %10088 = vmatprep.subr.mxu0 0.0
  %10089 = vmatpush1.msra.mxu0 0.0
  %10090 = vmatprep.subr.mxu0 0.0
  %10091 = vmatpush1.msra.mxu0 0.0
  %10092 = vmatprep.subr.mxu0 0.0
  %10093 = vmatpush1.msra.mxu0 0.0
  %10094 = vmatprep.subr.mxu0 0.0
  %10095 = vmatpush1.msra.mxu0 0.0
  %10096 = vmatprep.subr.mxu0 0.0
  %10097 = vmatpush1.msra.mxu0 0.0
  %10098 = vmatprep.subr.mxu0 0.0
  %10099 = vmatpush1.msra.mxu0 0.0
  %10100 = vmatprep.subr.mxu0 0.0
  %10101 = vmatpush1.msra.mxu0 0.0
  %10102 = vmatprep.mubr.f32.mxu0 0.0
  %10103 = vmatmul.mubr.f32.gmra.mrb[0].mxu0 %v8924
  %v10104 = vpop.f32.mrb[0].mxu0
  %v10105 = vadd.f32 0.0, %v10104
  %v10106 = vpop.f32.mrb[0].mxu0
  %10107 = vmatprep.mubr.f32.mxu0 0.0
  %10108 = vmatmul.mubr.f32.gmra.mrb[0].mxu0 %v8927
  %v10109 = vpop.f32.mrb[0].mxu0
  %v10110 = vadd.f32 0.0, %v10109
  %v10111 = vpop.f32.mrb[0].mxu0
  %10112 = vmatprep.mubr.f32.mxu0 0.0
  %10113 = vmatmul.mubr.f32.gmra.mrb[0].mxu0 %v8930
  %v10114 = vpop.f32.mrb[0].mxu0
  %v10115 = vadd.f32 0.0, %v10114
  %v10116 = vpop.f32.mrb[0].mxu0
  %10117 = vmatprep.mubr.f32.mxu0 0.0
  %10118 = vmatmul.mubr.f32.gmra.mrb[0].mxu0 %v8933
  %v10119 = vpop.f32.mrb[0].mxu0
  %v10120 = vadd.f32 0.0, %v10119
  %v10121 = vpop.f32.mrb[0].mxu0
  %10122 = vmatprep.mubr.f32.mxu0 0.0
  %10123 = vmatmul.mubr.f32.gmra.mrb[0].mxu0 %v8936
  %v10124 = vpop.f32.mrb[0].mxu0
  %v10125 = vadd.f32 0.0, %v10124
  %v10126 = vpop.f32.mrb[0].mxu0
  %10127 = vmatprep.mubr.f32.mxu0 0.0
  %10128 = vmatmul.mubr.f32.gmra.mrb[0].mxu0 %v8939
  %v10129 = vpop.f32.mrb[0].mxu0
  %v10130 = vadd.f32 0.0, %v10129
  %v10131 = vpop.f32.mrb[0].mxu0
  %10132 = vmatprep.mubr.f32.mxu0 0.0
  %10133 = vmatmul.mubr.f32.gmra.mrb[0].mxu0 %v8942
  %v10134 = vpop.f32.mrb[0].mxu0
  %v10135 = vadd.f32 0.0, %v10134
  %v10136 = vpop.f32.mrb[0].mxu0
  %10137 = vmatprep.mubr.f32.mxu0 0.0
  %10138 = vmatmul.mubr.f32.gmra.mrb[0].mxu0 %v8945
  %v10139 = vpop.f32.mrb[0].mxu0
  %v10140 = vadd.f32 0.0, %v10139
  %v10141 = vpop.f32.mrb[0].mxu0
  %10142 = vmatprep.mubr.f32.mxu0 0.0
  %10143 = vmatmul.mubr.f32.gmra.mrb[0].mxu0 %v8948
  %v10144 = vpop.f32.mrb[0].mxu0
  %v10145 = vadd.f32 0.0, %v10144
  %v10146 = vpop.f32.mrb[0].mxu0
  %10147 = vmatprep.mubr.f32.mxu0 0.0
  %10148 = vmatmul.mubr.f32.gmra.mrb[0].mxu0 %v8951
  %v10149 = vpop.f32.mrb[0].mxu0
  %v10150 = vadd.f32 0.0, %v10149
  %v10151 = vpop.f32.mrb[0].mxu0
  %10152 = vmatprep.mubr.f32.mxu0 0.0
  %10153 = vmatmul.mubr.f32.gmra.mrb[0].mxu0 %v8954
  %v10154 = vpop.f32.mrb[0].mxu0
  %v10155 = vadd.f32 0.0, %v10154
  %v10156 = vpop.f32.mrb[0].mxu0
  %10157 = vmatprep.mubr.f32.mxu0 0.0
  %10158 = vmatmul.mubr.f32.gmra.mrb[0].mxu0 %v8957
  %v10159 = vpop.f32.mrb[0].mxu0
  %v10160 = vadd.f32 0.0, %v10159
  %v10161 = vpop.f32.mrb[0].mxu0
  %10162 = vmatprep.mubr.f32.mxu0 0.0
  %10163 = vmatmul.mubr.f32.gmra.mrb[0].mxu0 %v8960
  %v10164 = vpop.f32.mrb[0].mxu0
  %v10165 = vadd.f32 0.0, %v10164
  %v10166 = vpop.f32.mrb[0].mxu0
  %10167 = vmatprep.mubr.f32.mxu0 0.0
  %10168 = vmatmul.mubr.f32.gmra.mrb[0].mxu0 %v8963
  %v10169 = vpop.f32.mrb[0].mxu0
  %v10170 = vadd.f32 0.0, %v10169
  %v10171 = vpop.f32.mrb[0].mxu0
  %10172 = vmatprep.mubr.f32.mxu0 0.0
  %10173 = vmatmul.mubr.f32.gmra.mrb[0].mxu0 %v8966
  %v10174 = vpop.f32.mrb[0].mxu0
  %v10175 = vadd.f32 0.0, %v10174
  %v10176 = vpop.f32.mrb[0].mxu0
  %10177 = vmatprep.mubr.f32.mxu0 0.0
  %10178 = vmatmul.mubr.f32.gmra.mrb[0].mxu0 %v8969
  %v10179 = vpop.f32.mrb[0].mxu0
  %v10180 = vadd.f32 0.0, %v10179
  %v10181 = vpop.f32.mrb[0].mxu0
  %10182 = vmatprep.mubr.f32.mxu0 0.0
  %10183 = vmatmul.mubr.f32.gmra.mrb[0].mxu0 %v8972
  %v10184 = vpop.f32.mrb[0].mxu0
  %v10185 = vadd.f32 0.0, %v10184
  %v10186 = vpop.f32.mrb[0].mxu0
  %10187 = vmatprep.mubr.f32.mxu0 0.0
  %10188 = vmatmul.mubr.f32.gmra.mrb[0].mxu0 %v8975
  %v10189 = vpop.f32.mrb[0].mxu0
  %v10190 = vadd.f32 0.0, %v10189
  %v10191 = vpop.f32.mrb[0].mxu0
  %10192 = vmatprep.mubr.f32.mxu0 0.0
  %10193 = vmatmul.mubr.f32.gmra.mrb[0].mxu0 %v8978
  %v10194 = vpop.f32.mrb[0].mxu0
  %v10195 = vadd.f32 0.0, %v10194
  %v10196 = vpop.f32.mrb[0].mxu0
  %10197 = vmatprep.mubr.f32.mxu0 0.0
  %10198 = vmatmul.mubr.f32.gmra.mrb[0].mxu0 %v8981
  %v10199 = vpop.f32.mrb[0].mxu0
  %v10200 = vadd.f32 0.0, %v10199
  %v10201 = vpop.f32.mrb[0].mxu0
  %10202 = vmatprep.mubr.f32.mxu0 0.0
  %10203 = vmatmul.mubr.f32.gmra.mrb[0].mxu0 %v8984
  %v10204 = vpop.f32.mrb[0].mxu0
  %v10205 = vadd.f32 0.0, %v10204
  %v10206 = vpop.f32.mrb[0].mxu0
  %10207 = vmatprep.mubr.f32.mxu0 0.0
  %10208 = vmatmul.mubr.f32.gmra.mrb[0].mxu0 %v8987
  %v10209 = vpop.f32.mrb[0].mxu0
  %v10210 = vadd.f32 0.0, %v10209
  %v10211 = vpop.f32.mrb[0].mxu0
  %10212 = vmatprep.mubr.f32.mxu0 0.0
  %10213 = vmatmul.mubr.f32.gmra.mrb[0].mxu0 %v8990
  %v10214 = vpop.f32.mrb[0].mxu0
  %v10215 = vadd.f32 0.0, %v10214
  %v10216 = vpop.f32.mrb[0].mxu0
  %10217 = vmatprep.mubr.f32.mxu0 0.0
  %10218 = vmatmul.mubr.f32.gmra.mrb[0].mxu0 %v8993
  %v10219 = vpop.f32.mrb[0].mxu0
  %v10220 = vadd.f32 0.0, %v10219
  %v10221 = vpop.f32.mrb[0].mxu0
  %10222 = vmatprep.mubr.f32.mxu0 0.0
  %10223 = vmatmul.mubr.f32.gmra.mrb[0].mxu0 %v8996
  %v10224 = vpop.f32.mrb[0].mxu0
  %v10225 = vadd.f32 0.0, %v10224
  %v10226 = vpop.f32.mrb[0].mxu0
  %10227 = vmatprep.mubr.f32.mxu0 0.0
  %10228 = vmatmul.mubr.f32.gmra.mrb[0].mxu0 %v8999
  %v10229 = vpop.f32.mrb[0].mxu0
  %v10230 = vadd.f32 0.0, %v10229
  %v10231 = vpop.f32.mrb[0].mxu0
  %10232 = vmatprep.mubr.f32.mxu0 0.0
  %10233 = vmatmul.mubr.f32.gmra.mrb[0].mxu0 %v9002
  %v10234 = vpop.f32.mrb[0].mxu0
  %v10235 = vadd.f32 0.0, %v10234
  %v10236 = vpop.f32.mrb[0].mxu0
  %10237 = vmatprep.mubr.f32.mxu0 0.0
  %10238 = vmatmul.mubr.f32.gmra.mrb[0].mxu0 %v9005
  %v10239 = vpop.f32.mrb[0].mxu0
  %v10240 = vadd.f32 0.0, %v10239
  %v10241 = vpop.f32.mrb[0].mxu0
  %10242 = vmatprep.mubr.f32.mxu0 0.0
  %10243 = vmatmul.mubr.f32.gmra.mrb[0].mxu0 %v9558
  %v10244 = vpop.f32.mrb[0].mxu0
  %v10245 = vadd.f32 0.0, %v10244
  %v10246 = vpop.f32.mrb[0].mxu0
  %10247 = vmatprep.mubr.f32.mxu0 0.0
  %10248 = vmatmul.mubr.f32.gmra.mrb[0].mxu0 %v9561
  %v10249 = vpop.f32.mrb[0].mxu0
  %v10250 = vadd.f32 0.0, %v10249
  %v10251 = vpop.f32.mrb[0].mxu0
  %10252 = vmatprep.mubr.f32.mxu0 0.0
  %10253 = vmatmul.mubr.f32.gmra.mrb[0].mxu0 %v10024
  %v10254 = vpop.f32.mrb[0].mxu0
  %v10255 = vadd.f32 0.0, %v10254
  %v10256 = vpop.f32.mrb[0].mxu0
  %10257 = vmatprep.mubr.f32.mxu0 0.0
  %10258 = vmatmul.mubr.f32.gmra.mrb[0].mxu0 %v10027
  %v10259 = vpop.f32.mrb[0].mxu0
  %v10260 = vadd.f32 0.0, %v10259
  %v10261 = vpop.f32.mrb[0].mxu0
  %10262 = vmatprep.mubr.f32.mxu0 0.0
  %10263 = vmatmul.mubr.f32.gmra.mrb[0].mxu0 %v9020
  %v10264 = vpop.f32.mrb[0].mxu0
  %v10265 = vadd.f32 0.0, %v10264
  %v10266 = vpop.f32.mrb[0].mxu0
  %10267 = vmatprep.mubr.f32.mxu0 0.0
  %10268 = vmatmul.mubr.f32.gmra.mrb[0].mxu0 %v9023
  %v10269 = vpop.f32.mrb[0].mxu0
  %v10270 = vadd.f32 0.0, %v10269
  %v10271 = vpop.f32.mrb[0].mxu0
  %10272 = vmatprep.mubr.f32.mxu0 0.0
  %10273 = vmatmul.mubr.f32.gmra.mrb[0].mxu0 %v9026
  %v10274 = vpop.f32.mrb[0].mxu0
  %v10275 = vadd.f32 0.0, %v10274
  %v10276 = vpop.f32.mrb[0].mxu0
  %10277 = vmatprep.mubr.f32.mxu0 0.0
  %10278 = vmatmul.mubr.f32.gmra.mrb[0].mxu0 %v9029
  %v10279 = vpop.f32.mrb[0].mxu0
  %v10280 = vadd.f32 0.0, %v10279
  %v10281 = vpop.f32.mrb[0].mxu0
  %10282 = vmatprep.mubr.f32.mxu0 0.0
  %10283 = vmatmul.mubr.f32.gmra.mrb[0].mxu0 %v9032
  %v10284 = vpop.f32.mrb[0].mxu0
  %v10285 = vadd.f32 0.0, %v10284
  %v10286 = vpop.f32.mrb[0].mxu0
  %10287 = vmatprep.mubr.f32.mxu0 0.0
  %10288 = vmatmul.mubr.f32.gmra.mrb[0].mxu0 %v9035
  %v10289 = vpop.f32.mrb[0].mxu0
  %v10290 = vadd.f32 0.0, %v10289
  %v10291 = vpop.f32.mrb[0].mxu0
  %10292 = vmatprep.mubr.f32.mxu0 0.0
  %10293 = vmatmul.mubr.f32.gmra.mrb[0].mxu0 %v9038
  %v10294 = vpop.f32.mrb[0].mxu0
  %v10295 = vadd.f32 0.0, %v10294
  %v10296 = vpop.f32.mrb[0].mxu0
  %10297 = vmatprep.mubr.f32.mxu0 0.0
  %10298 = vmatmul.mubr.f32.gmra.mrb[0].mxu0 %v9041
  %v10299 = vpop.f32.mrb[0].mxu0
  %v10300 = vadd.f32 0.0, %v10299
  %v10301 = vpop.f32.mrb[0].mxu0
  %10302 = vmatprep.mubr.f32.mxu0 0.0
  %10303 = vmatmul.mubr.f32.gmra.mrb[0].mxu0 %v9044
  %v10304 = vpop.f32.mrb[0].mxu0
  %v10305 = vadd.f32 0.0, %v10304
  %v10306 = vpop.f32.mrb[0].mxu0
  %10307 = vmatprep.mubr.f32.mxu0 0.0
  %10308 = vmatmul.mubr.f32.gmra.mrb[0].mxu0 %v9047
  %v10309 = vpop.f32.mrb[0].mxu0
  %v10310 = vadd.f32 0.0, %v10309
  %v10311 = vpop.f32.mrb[0].mxu0
  %10312 = vmatprep.mubr.f32.mxu0 0.0
  %10313 = vmatmul.mubr.f32.gmra.mrb[0].mxu0 %v9050
  %v10314 = vpop.f32.mrb[0].mxu0
  %v10315 = vadd.f32 0.0, %v10314
  %v10316 = vpop.f32.mrb[0].mxu0
  %10317 = vmatprep.mubr.f32.mxu0 0.0
  %10318 = vmatmul.mubr.f32.gmra.mrb[0].mxu0 %v9053
  %v10319 = vpop.f32.mrb[0].mxu0
  %v10320 = vadd.f32 0.0, %v10319
  %v10321 = vpop.f32.mrb[0].mxu0
  %10322 = vmatprep.mubr.f32.mxu0 0.0
  %10323 = vmatmul.mubr.f32.gmra.mrb[0].mxu0 %v9056
  %v10324 = vpop.f32.mrb[0].mxu0
  %v10325 = vadd.f32 0.0, %v10324
  %v10326 = vpop.f32.mrb[0].mxu0
  %10327 = vmatprep.mubr.f32.mxu0 0.0
  %10328 = vmatmul.mubr.f32.gmra.mrb[0].mxu0 %v9059
  %v10329 = vpop.f32.mrb[0].mxu0
  %v10330 = vadd.f32 0.0, %v10329
  %v10331 = vpop.f32.mrb[0].mxu0
  %10332 = vmatprep.mubr.f32.mxu0 0.0
  %10333 = vmatmul.mubr.f32.gmra.mrb[0].mxu0 %v9062
  %v10334 = vpop.f32.mrb[0].mxu0
  %v10335 = vadd.f32 0.0, %v10334
  %v10336 = vpop.f32.mrb[0].mxu0
  %10337 = vmatprep.mubr.f32.mxu0 0.0
  %10338 = vmatmul.mubr.f32.gmra.mrb[0].mxu0 %v9065
  %v10339 = vpop.f32.mrb[0].mxu0
  %v10340 = vadd.f32 0.0, %v10339
  %v10341 = vpop.f32.mrb[0].mxu0
  %10342 = vmatprep.mubr.f32.mxu0 0.0
  %10343 = vmatmul.mubr.f32.gmra.mrb[0].mxu0 %v9068
  %v10344 = vpop.f32.mrb[0].mxu0
  %v10345 = vadd.f32 0.0, %v10344
  %v10346 = vpop.f32.mrb[0].mxu0
  %10347 = vmatprep.mubr.f32.mxu0 0.0
  %10348 = vmatmul.mubr.f32.gmra.mrb[0].mxu0 %v9071
  %v10349 = vpop.f32.mrb[0].mxu0
  %v10350 = vadd.f32 0.0, %v10349
  %v10351 = vpop.f32.mrb[0].mxu0
  %10352 = vmatprep.mubr.f32.mxu0 0.0
  %10353 = vmatmul.mubr.f32.gmra.mrb[0].mxu0 %v9074
  %v10354 = vpop.f32.mrb[0].mxu0
  %v10355 = vadd.f32 0.0, %v10354
  %v10356 = vpop.f32.mrb[0].mxu0
  %10357 = vmatprep.mubr.f32.mxu0 0.0
  %10358 = vmatmul.mubr.f32.gmra.mrb[0].mxu0 %v9077
  %v10359 = vpop.f32.mrb[0].mxu0
  %v10360 = vadd.f32 0.0, %v10359
  %v10361 = vpop.f32.mrb[0].mxu0
  %10362 = vmatprep.mubr.f32.mxu0 0.0
  %10363 = vmatmul.mubr.f32.gmra.mrb[0].mxu0 %v9080
  %v10364 = vpop.f32.mrb[0].mxu0
  %v10365 = vadd.f32 0.0, %v10364
  %v10366 = vpop.f32.mrb[0].mxu0
  %10367 = vmatprep.mubr.f32.mxu0 0.0
  %10368 = vmatmul.mubr.f32.gmra.mrb[0].mxu0 %v9083
  %v10369 = vpop.f32.mrb[0].mxu0
  %v10370 = vadd.f32 0.0, %v10369
  %v10371 = vpop.f32.mrb[0].mxu0
  %10372 = vmatprep.mubr.f32.mxu0 0.0
  %10373 = vmatmul.mubr.f32.gmra.mrb[0].mxu0 %v9086
  %v10374 = vpop.f32.mrb[0].mxu0
  %v10375 = vadd.f32 0.0, %v10374
  %v10376 = vpop.f32.mrb[0].mxu0
  %10377 = vmatprep.mubr.f32.mxu0 0.0
  %10378 = vmatmul.mubr.f32.gmra.mrb[0].mxu0 %v9089
  %v10379 = vpop.f32.mrb[0].mxu0
  %v10380 = vadd.f32 0.0, %v10379
  %v10381 = vpop.f32.mrb[0].mxu0
  %10382 = vmatprep.mubr.f32.mxu0 0.0
  %10383 = vmatmul.mubr.f32.gmra.mrb[0].mxu0 %v9092
  %v10384 = vpop.f32.mrb[0].mxu0
  %v10385 = vadd.f32 0.0, %v10384
  %v10386 = vpop.f32.mrb[0].mxu0
  %10387 = vmatprep.mubr.f32.mxu0 0.0
  %10388 = vmatmul.mubr.f32.gmra.mrb[0].mxu0 %v9095
  %v10389 = vpop.f32.mrb[0].mxu0
  %v10390 = vadd.f32 0.0, %v10389
  %v10391 = vpop.f32.mrb[0].mxu0
  %10392 = vmatprep.mubr.f32.mxu0 0.0
  %10393 = vmatmul.mubr.f32.gmra.mrb[0].mxu0 %v9098
  %v10394 = vpop.f32.mrb[0].mxu0
  %v10395 = vadd.f32 0.0, %v10394
  %v10396 = vpop.f32.mrb[0].mxu0
  %10397 = vmatprep.mubr.f32.mxu0 0.0
  %10398 = vmatmul.mubr.f32.gmra.mrb[0].mxu0 %v9101
  %v10399 = vpop.f32.mrb[0].mxu0
  %v10400 = vadd.f32 0.0, %v10399
  %v10401 = vpop.f32.mrb[0].mxu0
  %10402 = vmatprep.mubr.f32.mxu0 0.0
  %10403 = vmatmul.mubr.f32.gmra.mrb[0].mxu0 %v9564
  %v10404 = vpop.f32.mrb[0].mxu0
  %v10405 = vadd.f32 0.0, %v10404
  %v10406 = vpop.f32.mrb[0].mxu0
  %10407 = vmatprep.mubr.f32.mxu0 0.0
  %10408 = vmatmul.mubr.f32.gmra.mrb[0].mxu0 %v9567
  %v10409 = vpop.f32.mrb[0].mxu0
  %v10410 = vadd.f32 0.0, %v10409
  %v10411 = vpop.f32.mrb[0].mxu0
  %10412 = vmatprep.mubr.f32.mxu0 0.0
  %10413 = vmatmul.mubr.f32.gmra.mrb[0].mxu0 %v10030
  %v10414 = vpop.f32.mrb[0].mxu0
  %v10415 = vadd.f32 0.0, %v10414
  %v10416 = vpop.f32.mrb[0].mxu0
  %10417 = vmatprep.mubr.f32.mxu0 0.0
  %10418 = vmatmul.mubr.f32.gmra.mrb[0].mxu0 %v10033
  %v10419 = vpop.f32.mrb[0].mxu0
  %v10420 = vadd.f32 0.0, %v10419
  %v10421 = vpop.f32.mrb[0].mxu0
  %10422 = vdwg.mxu0
  %v10423 = vadd.f32 %v9957, %v10105
  %v10424 = vadd.f32 %v9958, %v10110
  %v10425 = vadd.f32 %v9959, %v10115
  %v10426 = vadd.f32 %v9960, %v10120
  %v10427 = vadd.f32 %v9961, %v10125
  %v10428 = vadd.f32 %v9962, %v10130
  %v10429 = vadd.f32 %v9963, %v10135
  %v10430 = vadd.f32 %v9964, %v10140
  %v10431 = vadd.f32 %v9965, %v10145
  %v10432 = vadd.f32 %v9966, %v10150
  %v10433 = vadd.f32 %v9967, %v10155
  %v10434 = vadd.f32 %v9968, %v10160
  %v10435 = vadd.f32 %v9969, %v10165
  %v10436 = vadd.f32 %v9970, %v10170
  %v10437 = vadd.f32 %v9971, %v10175
  %v10438 = vadd.f32 %v9972, %v10180
  %v10439 = vadd.f32 %v9973, %v10185
  %v10440 = vadd.f32 %v9974, %v10190
  %v10441 = vadd.f32 %v9975, %v10195
  %v10442 = vadd.f32 %v9976, %v10200
  %v10443 = vadd.f32 %v9977, %v10205
  %v10444 = vadd.f32 %v9978, %v10210
  %v10445 = vadd.f32 %v9979, %v10215
  %v10446 = vadd.f32 %v9980, %v10220
  %v10447 = vadd.f32 %v9981, %v10225
  %v10448 = vadd.f32 %v9982, %v10230
  %v10449 = vadd.f32 %v9983, %v10235
  %v10450 = vadd.f32 %v9984, %v10240
  %v10451 = vadd.f32 %v9985, %v10245
  %v10452 = vadd.f32 %v9986, %v10250
  %v10453 = vadd.f32 %v9987, %v10255
  %v10454 = vadd.f32 %v9988, %v10260
  %v10455 = vadd.f32 %v9989, %v10265
  %v10456 = vadd.f32 %v9990, %v10270
  %v10457 = vadd.f32 %v9991, %v10275
  %v10458 = vadd.f32 %v9992, %v10280
  %v10459 = vadd.f32 %v9993, %v10285
  %v10460 = vadd.f32 %v9994, %v10290
  %v10461 = vadd.f32 %v9995, %v10295
  %v10462 = vadd.f32 %v9996, %v10300
  %v10463 = vadd.f32 %v9997, %v10305
  %v10464 = vadd.f32 %v9998, %v10310
  %v10465 = vadd.f32 %v9999, %v10315
  %v10466 = vadd.f32 %v10000, %v10320
  %v10467 = vadd.f32 %v10001, %v10325
  %v10468 = vadd.f32 %v10002, %v10330
  %v10469 = vadd.f32 %v10003, %v10335
  %v10470 = vadd.f32 %v10004, %v10340
  %v10471 = vadd.f32 %v10005, %v10345
  %v10472 = vadd.f32 %v10006, %v10350
  %v10473 = vadd.f32 %v10007, %v10355
  %v10474 = vadd.f32 %v10008, %v10360
  %v10475 = vadd.f32 %v10009, %v10365
  %v10476 = vadd.f32 %v10010, %v10370
  %v10477 = vadd.f32 %v10011, %v10375
  %v10478 = vadd.f32 %v10012, %v10380
  %v10479 = vadd.f32 %v10013, %v10385
  %v10480 = vadd.f32 %v10014, %v10390
  %v10481 = vadd.f32 %v10015, %v10395
  %v10482 = vadd.f32 %v10016, %v10400
  %v10483 = vadd.f32 %v10017, %v10405
  %v10484 = vadd.f32 %v10018, %v10410
  %v10485 = vadd.f32 %v10019, %v10415
  %v10486 = vadd.f32 %v10020, %v10420
  %s10487 = scalar_lea.vmem %s3, 2
  %v10488 = vld [vmem:[%s10487] sm:$0x1]
  %s10489 = scalar_lea.vmem %s3, 3
  %v10490 = vld [vmem:[%s10489] sm:$0x1]
  %v10491 = vsel %vm90, %v10423, 0.0
  %v10492 = vsel %vm90, %v10424, 0.0
  %v10493 = vadd.f32 %v10491, %v10492
  %v10494 = vsel %vm90, %v10425, 0.0
  %v10495 = vadd.f32 %v10493, %v10494
  %v10496 = vsel %vm90, %v10426, 0.0
  %v10497 = vadd.f32 %v10495, %v10496
  %v10498 = vsel %vm90, %v10427, 0.0
  %v10499 = vadd.f32 %v10497, %v10498
  %v10500 = vsel %vm90, %v10428, 0.0
  %v10501 = vadd.f32 %v10499, %v10500
  %v10502 = vsel %vm90, %v10429, 0.0
  %v10503 = vadd.f32 %v10501, %v10502
  %v10504 = vsel %vm90, %v10430, 0.0
  %v10505 = vadd.f32 %v10503, %v10504
  %v10506 = vsel %vm90, %v10431, 0.0
  %v10507 = vadd.f32 %v10505, %v10506
  %v10508 = vsel %vm90, %v10432, 0.0
  %v10509 = vadd.f32 %v10507, %v10508
  %v10510 = vsel %vm90, %v10433, 0.0
  %v10511 = vadd.f32 %v10509, %v10510
  %v10512 = vsel %vm90, %v10434, 0.0
  %v10513 = vadd.f32 %v10511, %v10512
  %v10514 = vsel %vm90, %v10435, 0.0
  %v10515 = vadd.f32 %v10513, %v10514
  %v10516 = vsel %vm90, %v10436, 0.0
  %v10517 = vadd.f32 %v10515, %v10516
  %v10518 = vsel %vm90, %v10437, 0.0
  %v10519 = vadd.f32 %v10517, %v10518
  %v10520 = vsel %vm90, %v10438, 0.0
  %v10521 = vadd.f32 %v10519, %v10520
  %v10522 = vsel %vm90, %v10439, 0.0
  %v10523 = vadd.f32 %v10521, %v10522
  %v10524 = vsel %vm90, %v10440, 0.0
  %v10525 = vadd.f32 %v10523, %v10524
  %v10526 = vsel %vm90, %v10441, 0.0
  %v10527 = vadd.f32 %v10525, %v10526
  %v10528 = vsel %vm90, %v10442, 0.0
  %v10529 = vadd.f32 %v10527, %v10528
  %v10530 = vsel %vm90, %v10443, 0.0
  %v10531 = vadd.f32 %v10529, %v10530
  %v10532 = vsel %vm90, %v10444, 0.0
  %v10533 = vadd.f32 %v10531, %v10532
  %v10534 = vsel %vm90, %v10445, 0.0
  %v10535 = vadd.f32 %v10533, %v10534
  %v10536 = vsel %vm90, %v10446, 0.0
  %v10537 = vadd.f32 %v10535, %v10536
  %v10538 = vsel %vm90, %v10447, 0.0
  %v10539 = vadd.f32 %v10537, %v10538
  %v10540 = vsel %vm90, %v10448, 0.0
  %v10541 = vadd.f32 %v10539, %v10540
  %v10542 = vsel %vm90, %v10449, 0.0
  %v10543 = vadd.f32 %v10541, %v10542
  %v10544 = vsel %vm90, %v10450, 0.0
  %v10545 = vadd.f32 %v10543, %v10544
  %v10546 = vsel %vm90, %v10451, 0.0
  %v10547 = vadd.f32 %v10545, %v10546
  %v10548 = vsel %vm90, %v10452, 0.0
  %v10549 = vadd.f32 %v10547, %v10548
  %v10550 = vsel %vm90, %v10453, 0.0
  %v10551 = vadd.f32 %v10549, %v10550
  %v10552 = vsel %vm90, %v10454, 0.0
  %v10553 = vadd.f32 %v10551, %v10552
  %v10554 = vsel %vm90, %v10455, 0.0
  %v10555 = vadd.f32 %v10553, %v10554
  %v10556 = vsel %vm90, %v10456, 0.0
  %v10557 = vadd.f32 %v10555, %v10556
  %v10558 = vsel %vm90, %v10457, 0.0
  %v10559 = vadd.f32 %v10557, %v10558
  %v10560 = vsel %vm90, %v10458, 0.0
  %v10561 = vadd.f32 %v10559, %v10560
  %v10562 = vsel %vm90, %v10459, 0.0
  %v10563 = vadd.f32 %v10561, %v10562
  %v10564 = vsel %vm90, %v10460, 0.0
  %v10565 = vadd.f32 %v10563, %v10564
  %v10566 = vsel %vm90, %v10461, 0.0
  %v10567 = vadd.f32 %v10565, %v10566
  %v10568 = vsel %vm90, %v10462, 0.0
  %v10569 = vadd.f32 %v10567, %v10568
  %v10570 = vsel %vm90, %v10463, 0.0
  %v10571 = vadd.f32 %v10569, %v10570
  %v10572 = vsel %vm90, %v10464, 0.0
  %v10573 = vadd.f32 %v10571, %v10572
  %v10574 = vsel %vm90, %v10465, 0.0
  %v10575 = vadd.f32 %v10573, %v10574
  %v10576 = vsel %vm90, %v10466, 0.0
  %v10577 = vadd.f32 %v10575, %v10576
  %v10578 = vsel %vm90, %v10467, 0.0
  %v10579 = vadd.f32 %v10577, %v10578
  %v10580 = vsel %vm90, %v10468, 0.0
  %v10581 = vadd.f32 %v10579, %v10580
  %v10582 = vsel %vm90, %v10469, 0.0
  %v10583 = vadd.f32 %v10581, %v10582
  %v10584 = vsel %vm90, %v10470, 0.0
  %v10585 = vadd.f32 %v10583, %v10584
  %v10586 = vsel %vm90, %v10471, 0.0
  %v10587 = vadd.f32 %v10585, %v10586
  %v10588 = vsel %vm90, %v10472, 0.0
  %v10589 = vadd.f32 %v10587, %v10588
  %v10590 = vsel %vm90, %v10473, 0.0
  %v10591 = vadd.f32 %v10589, %v10590
  %v10592 = vsel %vm90, %v10474, 0.0
  %v10593 = vadd.f32 %v10591, %v10592
  %v10594 = vsel %vm90, %v10475, 0.0
  %v10595 = vadd.f32 %v10593, %v10594
  %v10596 = vsel %vm90, %v10476, 0.0
  %v10597 = vadd.f32 %v10595, %v10596
  %v10598 = vsel %vm90, %v10477, 0.0
  %v10599 = vadd.f32 %v10597, %v10598
  %v10600 = vsel %vm90, %v10478, 0.0
  %v10601 = vadd.f32 %v10599, %v10600
  %v10602 = vsel %vm90, %v10479, 0.0
  %v10603 = vadd.f32 %v10601, %v10602
  %v10604 = vsel %vm90, %v10480, 0.0
  %v10605 = vadd.f32 %v10603, %v10604
  %v10606 = vsel %vm90, %v10481, 0.0
  %v10607 = vadd.f32 %v10605, %v10606
  %v10608 = vsel %vm90, %v10482, 0.0
  %v10609 = vadd.f32 %v10607, %v10608
  %v10610 = vsel %vm90, %v10483, 0.0
  %v10611 = vadd.f32 %v10609, %v10610
  %v10612 = vsel %vm90, %v10484, 0.0
  %v10613 = vadd.f32 %v10611, %v10612
  %v10614 = vsel %vm90, %v10485, 0.0
  %v10615 = vadd.f32 %v10613, %v10614
  %v10616 = vsel %vm90, %v10486, 0.0
  %v10617 = vadd.f32 %v10615, %v10616
  %v10618 = vrot.slane %v10617, 4
  %v10619 = vadd.f32 %v10617, %v10618
  %v10620 = vrot.slane %v10619, 2
  %v10621 = vadd.f32 %v10619, %v10620
  %v10622 = vrot.slane %v10621, 1
  %v10623 = vadd.f32 %v10621, %v10622
  %v10624 = vmul.f32 %v10423, %v10423
  %v10625 = vmul.f32 %v10424, %v10424
  %v10626 = vmul.f32 %v10425, %v10425
  %v10627 = vmul.f32 %v10426, %v10426
  %v10628 = vmul.f32 %v10427, %v10427
  %v10629 = vmul.f32 %v10428, %v10428
  %v10630 = vmul.f32 %v10429, %v10429
  %v10631 = vmul.f32 %v10430, %v10430
  %v10632 = vmul.f32 %v10431, %v10431
  %v10633 = vmul.f32 %v10432, %v10432
  %v10634 = vmul.f32 %v10433, %v10433
  %v10635 = vmul.f32 %v10434, %v10434
  %v10636 = vmul.f32 %v10435, %v10435
  %v10637 = vmul.f32 %v10436, %v10436
  %v10638 = vmul.f32 %v10437, %v10437
  %v10639 = vmul.f32 %v10438, %v10438
  %v10640 = vmul.f32 %v10439, %v10439
  %v10641 = vmul.f32 %v10440, %v10440
  %v10642 = vmul.f32 %v10441, %v10441
  %v10643 = vmul.f32 %v10442, %v10442
  %v10644 = vmul.f32 %v10443, %v10443
  %v10645 = vmul.f32 %v10444, %v10444
  %v10646 = vmul.f32 %v10445, %v10445
  %v10647 = vmul.f32 %v10446, %v10446
  %v10648 = vmul.f32 %v10447, %v10447
  %v10649 = vmul.f32 %v10448, %v10448
  %v10650 = vmul.f32 %v10449, %v10449
  %v10651 = vmul.f32 %v10450, %v10450
  %v10652 = vmul.f32 %v10451, %v10451
  %v10653 = vmul.f32 %v10452, %v10452
  %v10654 = vmul.f32 %v10453, %v10453
  %v10655 = vmul.f32 %v10454, %v10454
  %v10656 = vmul.f32 %v10455, %v10455
  %v10657 = vmul.f32 %v10456, %v10456
  %v10658 = vmul.f32 %v10457, %v10457
  %v10659 = vmul.f32 %v10458, %v10458
  %v10660 = vmul.f32 %v10459, %v10459
  %v10661 = vmul.f32 %v10460, %v10460
  %v10662 = vmul.f32 %v10461, %v10461
  %v10663 = vmul.f32 %v10462, %v10462
  %v10664 = vmul.f32 %v10463, %v10463
  %v10665 = vmul.f32 %v10464, %v10464
  %v10666 = vmul.f32 %v10465, %v10465
  %v10667 = vmul.f32 %v10466, %v10466
  %v10668 = vmul.f32 %v10467, %v10467
  %v10669 = vmul.f32 %v10468, %v10468
  %v10670 = vmul.f32 %v10469, %v10469
  %v10671 = vmul.f32 %v10470, %v10470
  %v10672 = vmul.f32 %v10471, %v10471
  %v10673 = vmul.f32 %v10472, %v10472
  %v10674 = vmul.f32 %v10473, %v10473
  %v10675 = vmul.f32 %v10474, %v10474
  %v10676 = vmul.f32 %v10475, %v10475
  %v10677 = vmul.f32 %v10476, %v10476
  %v10678 = vmul.f32 %v10477, %v10477
  %v10679 = vmul.f32 %v10478, %v10478
  %v10680 = vmul.f32 %v10479, %v10479
  %v10681 = vmul.f32 %v10480, %v10480
  %v10682 = vmul.f32 %v10481, %v10481
  %v10683 = vmul.f32 %v10482, %v10482
  %v10684 = vmul.f32 %v10483, %v10483
  %v10685 = vmul.f32 %v10484, %v10484
  %v10686 = vmul.f32 %v10485, %v10485
  %v10687 = vmul.f32 %v10486, %v10486
  %v10688 = vsel %vm90, %v10624, 0.0
  %v10689 = vsel %vm90, %v10625, 0.0
  %v10690 = vadd.f32 %v10688, %v10689
  %v10691 = vsel %vm90, %v10626, 0.0
  %v10692 = vadd.f32 %v10690, %v10691
  %v10693 = vsel %vm90, %v10627, 0.0
  %v10694 = vadd.f32 %v10692, %v10693
  %v10695 = vsel %vm90, %v10628, 0.0
  %v10696 = vadd.f32 %v10694, %v10695
  %v10697 = vsel %vm90, %v10629, 0.0
  %v10698 = vadd.f32 %v10696, %v10697
  %v10699 = vsel %vm90, %v10630, 0.0
  %v10700 = vadd.f32 %v10698, %v10699
  %v10701 = vsel %vm90, %v10631, 0.0
  %v10702 = vadd.f32 %v10700, %v10701
  %v10703 = vsel %vm90, %v10632, 0.0
  %v10704 = vadd.f32 %v10702, %v10703
  %v10705 = vsel %vm90, %v10633, 0.0
  %v10706 = vadd.f32 %v10704, %v10705
  %v10707 = vsel %vm90, %v10634, 0.0
  %v10708 = vadd.f32 %v10706, %v10707
  %v10709 = vsel %vm90, %v10635, 0.0
  %v10710 = vadd.f32 %v10708, %v10709
  %v10711 = vsel %vm90, %v10636, 0.0
  %v10712 = vadd.f32 %v10710, %v10711
  %v10713 = vsel %vm90, %v10637, 0.0
  %v10714 = vadd.f32 %v10712, %v10713
  %v10715 = vsel %vm90, %v10638, 0.0
  %v10716 = vadd.f32 %v10714, %v10715
  %v10717 = vsel %vm90, %v10639, 0.0
  %v10718 = vadd.f32 %v10716, %v10717
  %v10719 = vsel %vm90, %v10640, 0.0
  %v10720 = vadd.f32 %v10718, %v10719
  %v10721 = vsel %vm90, %v10641, 0.0
  %v10722 = vadd.f32 %v10720, %v10721
  %v10723 = vsel %vm90, %v10642, 0.0
  %v10724 = vadd.f32 %v10722, %v10723
  %v10725 = vsel %vm90, %v10643, 0.0
  %v10726 = vadd.f32 %v10724, %v10725
  %v10727 = vsel %vm90, %v10644, 0.0
  %v10728 = vadd.f32 %v10726, %v10727
  %v10729 = vsel %vm90, %v10645, 0.0
  %v10730 = vadd.f32 %v10728, %v10729
  %v10731 = vsel %vm90, %v10646, 0.0
  %v10732 = vadd.f32 %v10730, %v10731
  %v10733 = vsel %vm90, %v10647, 0.0
  %v10734 = vadd.f32 %v10732, %v10733
  %v10735 = vsel %vm90, %v10648, 0.0
  %v10736 = vadd.f32 %v10734, %v10735
  %v10737 = vsel %vm90, %v10649, 0.0
  %v10738 = vadd.f32 %v10736, %v10737
  %v10739 = vsel %vm90, %v10650, 0.0
  %v10740 = vadd.f32 %v10738, %v10739
  %v10741 = vsel %vm90, %v10651, 0.0
  %v10742 = vadd.f32 %v10740, %v10741
  %v10743 = vsel %vm90, %v10652, 0.0
  %v10744 = vadd.f32 %v10742, %v10743
  %v10745 = vsel %vm90, %v10653, 0.0
  %v10746 = vadd.f32 %v10744, %v10745
  %v10747 = vsel %vm90, %v10654, 0.0
  %v10748 = vadd.f32 %v10746, %v10747
  %v10749 = vsel %vm90, %v10655, 0.0
  %v10750 = vadd.f32 %v10748, %v10749
  %v10751 = vsel %vm90, %v10656, 0.0
  %v10752 = vadd.f32 %v10750, %v10751
  %v10753 = vsel %vm90, %v10657, 0.0
  %v10754 = vadd.f32 %v10752, %v10753
  %v10755 = vsel %vm90, %v10658, 0.0
  %v10756 = vadd.f32 %v10754, %v10755
  %v10757 = vsel %vm90, %v10659, 0.0
  %v10758 = vadd.f32 %v10756, %v10757
  %v10759 = vsel %vm90, %v10660, 0.0
  %v10760 = vadd.f32 %v10758, %v10759
  %v10761 = vsel %vm90, %v10661, 0.0
  %v10762 = vadd.f32 %v10760, %v10761
  %v10763 = vsel %vm90, %v10662, 0.0
  %v10764 = vadd.f32 %v10762, %v10763
  %v10765 = vsel %vm90, %v10663, 0.0
  %v10766 = vadd.f32 %v10764, %v10765
  %v10767 = vsel %vm90, %v10664, 0.0
  %v10768 = vadd.f32 %v10766, %v10767
  %v10769 = vsel %vm90, %v10665, 0.0
  %v10770 = vadd.f32 %v10768, %v10769
  %v10771 = vsel %vm90, %v10666, 0.0
  %v10772 = vadd.f32 %v10770, %v10771
  %v10773 = vsel %vm90, %v10667, 0.0
  %v10774 = vadd.f32 %v10772, %v10773
  %v10775 = vsel %vm90, %v10668, 0.0
  %v10776 = vadd.f32 %v10774, %v10775
  %v10777 = vsel %vm90, %v10669, 0.0
  %v10778 = vadd.f32 %v10776, %v10777
  %v10779 = vsel %vm90, %v10670, 0.0
  %v10780 = vadd.f32 %v10778, %v10779
  %v10781 = vsel %vm90, %v10671, 0.0
  %v10782 = vadd.f32 %v10780, %v10781
  %v10783 = vsel %vm90, %v10672, 0.0
  %v10784 = vadd.f32 %v10782, %v10783
  %v10785 = vsel %vm90, %v10673, 0.0
  %v10786 = vadd.f32 %v10784, %v10785
  %v10787 = vsel %vm90, %v10674, 0.0
  %v10788 = vadd.f32 %v10786, %v10787
  %v10789 = vsel %vm90, %v10675, 0.0
  %v10790 = vadd.f32 %v10788, %v10789
  %v10791 = vsel %vm90, %v10676, 0.0
  %v10792 = vadd.f32 %v10790, %v10791
  %v10793 = vsel %vm90, %v10677, 0.0
  %v10794 = vadd.f32 %v10792, %v10793
  %v10795 = vsel %vm90, %v10678, 0.0
  %v10796 = vadd.f32 %v10794, %v10795
  %v10797 = vsel %vm90, %v10679, 0.0
  %v10798 = vadd.f32 %v10796, %v10797
  %v10799 = vsel %vm90, %v10680, 0.0
  %v10800 = vadd.f32 %v10798, %v10799
  %v10801 = vsel %vm90, %v10681, 0.0
  %v10802 = vadd.f32 %v10800, %v10801
  %v10803 = vsel %vm90, %v10682, 0.0
  %v10804 = vadd.f32 %v10802, %v10803
  %v10805 = vsel %vm90, %v10683, 0.0
  %v10806 = vadd.f32 %v10804, %v10805
  %v10807 = vsel %vm90, %v10684, 0.0
  %v10808 = vadd.f32 %v10806, %v10807
  %v10809 = vsel %vm90, %v10685, 0.0
  %v10810 = vadd.f32 %v10808, %v10809
  %v10811 = vsel %vm90, %v10686, 0.0
  %v10812 = vadd.f32 %v10810, %v10811
  %v10813 = vsel %vm90, %v10687, 0.0
  %v10814 = vadd.f32 %v10812, %v10813
  %v10815 = vrot.slane %v10814, 4
  %v10816 = vadd.f32 %v10814, %v10815
  %v10817 = vrot.slane %v10816, 2
  %v10818 = vadd.f32 %v10816, %v10817
  %v10819 = vrot.slane %v10818, 1
  %v10820 = vadd.f32 %v10818, %v10819
  %v10821 = vmul.f32 %v10623, 0.001953125
  %v10822 = vmul.f32 %v10820, 0.001953125
  %v10823 = vmul.f32 %v10821, %v10821
  %v10824 = vsub.f32 %v10822, %v10823
  %v10825 = vadd.f32 %v10824, 1e-05
  %v10826 = vrsqrt.pop %v10825
  %v10827 = vmul.f32 %v10488, %v10826
  %v10828 = vmul.f32 %v10821, %v10827
  %v10829 = vsub.f32 %v10490, %v10828
  %v10831 = vlaneseq
  %v10832 = vshrl.u32 %v10831, 7
  %v10833 = vsub.s32 0, %v10832
  %v10834 = vrot.slane %v10827, %v10833
  %v10836 = vmul.f32 %v10423, %v10834
  %v10837 = vmul.f32 %v10424, %v10834
  %v10838 = vmul.f32 %v10425, %v10834
  %v10839 = vmul.f32 %v10426, %v10834
  %v10840 = vmul.f32 %v10427, %v10834
  %v10841 = vmul.f32 %v10428, %v10834
  %v10842 = vmul.f32 %v10429, %v10834
  %v10843 = vmul.f32 %v10430, %v10834
  %v10844 = vmul.f32 %v10431, %v10834
  %v10845 = vmul.f32 %v10432, %v10834
  %v10846 = vmul.f32 %v10433, %v10834
  %v10847 = vmul.f32 %v10434, %v10834
  %v10848 = vmul.f32 %v10435, %v10834
  %v10849 = vmul.f32 %v10436, %v10834
  %v10850 = vmul.f32 %v10437, %v10834
  %v10851 = vmul.f32 %v10438, %v10834
  %v10852 = vmul.f32 %v10439, %v10834
  %v10853 = vmul.f32 %v10440, %v10834
  %v10854 = vmul.f32 %v10441, %v10834
  %v10855 = vmul.f32 %v10442, %v10834
  %v10856 = vmul.f32 %v10443, %v10834
  %v10857 = vmul.f32 %v10444, %v10834
  %v10858 = vmul.f32 %v10445, %v10834
  %v10859 = vmul.f32 %v10446, %v10834
  %v10860 = vmul.f32 %v10447, %v10834
  %v10861 = vmul.f32 %v10448, %v10834
  %v10862 = vmul.f32 %v10449, %v10834
  %v10863 = vmul.f32 %v10450, %v10834
  %v10864 = vmul.f32 %v10451, %v10834
  %v10865 = vmul.f32 %v10452, %v10834
  %v10866 = vmul.f32 %v10453, %v10834
  %v10867 = vmul.f32 %v10454, %v10834
  %v10868 = vmul.f32 %v10455, %v10834
  %v10869 = vmul.f32 %v10456, %v10834
  %v10870 = vmul.f32 %v10457, %v10834
  %v10871 = vmul.f32 %v10458, %v10834
  %v10872 = vmul.f32 %v10459, %v10834
  %v10873 = vmul.f32 %v10460, %v10834
  %v10874 = vmul.f32 %v10461, %v10834
  %v10875 = vmul.f32 %v10462, %v10834
  %v10876 = vmul.f32 %v10463, %v10834
  %v10877 = vmul.f32 %v10464, %v10834
  %v10878 = vmul.f32 %v10465, %v10834
  %v10879 = vmul.f32 %v10466, %v10834
  %v10880 = vmul.f32 %v10467, %v10834
  %v10881 = vmul.f32 %v10468, %v10834
  %v10882 = vmul.f32 %v10469, %v10834
  %v10883 = vmul.f32 %v10470, %v10834
  %v10884 = vmul.f32 %v10471, %v10834
  %v10885 = vmul.f32 %v10472, %v10834
  %v10886 = vmul.f32 %v10473, %v10834
  %v10887 = vmul.f32 %v10474, %v10834
  %v10888 = vmul.f32 %v10475, %v10834
  %v10889 = vmul.f32 %v10476, %v10834
  %v10890 = vmul.f32 %v10477, %v10834
  %v10891 = vmul.f32 %v10478, %v10834
  %v10892 = vmul.f32 %v10479, %v10834
  %v10893 = vmul.f32 %v10480, %v10834
  %v10894 = vmul.f32 %v10481, %v10834
  %v10895 = vmul.f32 %v10482, %v10834
  %v10896 = vmul.f32 %v10483, %v10834
  %v10897 = vmul.f32 %v10484, %v10834
  %v10898 = vmul.f32 %v10485, %v10834
  %v10899 = vmul.f32 %v10486, %v10834
  %v10901 = vlaneseq
  %v10902 = vshrl.u32 %v10901, 7
  %v10903 = vsub.s32 0, %v10902
  %v10904 = vrot.slane %v10829, %v10903
  %v10906 = vadd.f32 %v10836, %v10904
  %v10907 = vadd.f32 %v10837, %v10904
  %v10908 = vadd.f32 %v10838, %v10904
  %v10909 = vadd.f32 %v10839, %v10904
  %v10910 = vadd.f32 %v10840, %v10904
  %v10911 = vadd.f32 %v10841, %v10904
  %v10912 = vadd.f32 %v10842, %v10904
  %v10913 = vadd.f32 %v10843, %v10904
  %v10914 = vadd.f32 %v10844, %v10904
  %v10915 = vadd.f32 %v10845, %v10904
  %v10916 = vadd.f32 %v10846, %v10904
  %v10917 = vadd.f32 %v10847, %v10904
  %v10918 = vadd.f32 %v10848, %v10904
  %v10919 = vadd.f32 %v10849, %v10904
  %v10920 = vadd.f32 %v10850, %v10904
  %v10921 = vadd.f32 %v10851, %v10904
  %v10922 = vadd.f32 %v10852, %v10904
  %v10923 = vadd.f32 %v10853, %v10904
  %v10924 = vadd.f32 %v10854, %v10904
  %v10925 = vadd.f32 %v10855, %v10904
  %v10926 = vadd.f32 %v10856, %v10904
  %v10927 = vadd.f32 %v10857, %v10904
  %v10928 = vadd.f32 %v10858, %v10904
  %v10929 = vadd.f32 %v10859, %v10904
  %v10930 = vadd.f32 %v10860, %v10904
  %v10931 = vadd.f32 %v10861, %v10904
  %v10932 = vadd.f32 %v10862, %v10904
  %v10933 = vadd.f32 %v10863, %v10904
  %v10934 = vadd.f32 %v10864, %v10904
  %v10935 = vadd.f32 %v10865, %v10904
  %v10936 = vadd.f32 %v10866, %v10904
  %v10937 = vadd.f32 %v10867, %v10904
  %v10938 = vadd.f32 %v10868, %v10904
  %v10939 = vadd.f32 %v10869, %v10904
  %v10940 = vadd.f32 %v10870, %v10904
  %v10941 = vadd.f32 %v10871, %v10904
  %v10942 = vadd.f32 %v10872, %v10904
  %v10943 = vadd.f32 %v10873, %v10904
  %v10944 = vadd.f32 %v10874, %v10904
  %v10945 = vadd.f32 %v10875, %v10904
  %v10946 = vadd.f32 %v10876, %v10904
  %v10947 = vadd.f32 %v10877, %v10904
  %v10948 = vadd.f32 %v10878, %v10904
  %v10949 = vadd.f32 %v10879, %v10904
  %v10950 = vadd.f32 %v10880, %v10904
  %v10951 = vadd.f32 %v10881, %v10904
  %v10952 = vadd.f32 %v10882, %v10904
  %v10953 = vadd.f32 %v10883, %v10904
  %v10954 = vadd.f32 %v10884, %v10904
  %v10955 = vadd.f32 %v10885, %v10904
  %v10956 = vadd.f32 %v10886, %v10904
  %v10957 = vadd.f32 %v10887, %v10904
  %v10958 = vadd.f32 %v10888, %v10904
  %v10959 = vadd.f32 %v10889, %v10904
  %v10960 = vadd.f32 %v10890, %v10904
  %v10961 = vadd.f32 %v10891, %v10904
  %v10962 = vadd.f32 %v10892, %v10904
  %v10963 = vadd.f32 %v10893, %v10904
  %v10964 = vadd.f32 %v10894, %v10904
  %v10965 = vadd.f32 %v10895, %v10904
  %v10966 = vadd.f32 %v10896, %v10904
  %v10967 = vadd.f32 %v10897, %v10904
  %v10968 = vadd.f32 %v10898, %v10904
  %v10969 = vadd.f32 %v10899, %v10904
  %v10970 = vld [vmem:[%s0] sm:$0xff]
  %v10971 = vld [vmem:[%s0 + $0x8] sm:$0xff]
  %v10972 = vld [vmem:[%s0 + $0x10] sm:$0xff]
  %v10973 = vld [vmem:[%s0 + $0x18] sm:$0xff]
  %v10974 = vld [vmem:[%s0 + $0x20] sm:$0xff]
  %v10975 = vld [vmem:[%s0 + $0x28] sm:$0xff]
  %v10976 = vld [vmem:[%s0 + $0x30] sm:$0xff]
  %v10977 = vld [vmem:[%s0 + $0x38] sm:$0xff]
  %v10978 = vld [vmem:[%s0 + $0x40] sm:$0xff]
  %v10979 = vld [vmem:[%s0 + $0x48] sm:$0xff]
  %v10980 = vld [vmem:[%s0 + $0x50] sm:$0xff]
  %v10981 = vld [vmem:[%s0 + $0x58] sm:$0xff]
  %v10982 = vld [vmem:[%s0 + $0x60] sm:$0xff]
  %v10983 = vld [vmem:[%s0 + $0x68] sm:$0xff]
  %v10984 = vld [vmem:[%s0 + $0x70] sm:$0xff]
  %v10985 = vld [vmem:[%s0 + $0x78] sm:$0xff]
  %v10986 = vld [vmem:[%s0 + $0x80] sm:$0xff]
  %v10987 = vld [vmem:[%s0 + $0x88] sm:$0xff]
  %v10988 = vld [vmem:[%s0 + $0x90] sm:$0xff]
  %v10989 = vld [vmem:[%s0 + $0x98] sm:$0xff]
  %v10990 = vld [vmem:[%s0 + $0xa0] sm:$0xff]
  %v10991 = vld [vmem:[%s0 + $0xa8] sm:$0xff]
  %v10992 = vld [vmem:[%s0 + $0xb0] sm:$0xff]
  %v10993 = vld [vmem:[%s0 + $0xb8] sm:$0xff]
  %v10994 = vld [vmem:[%s0 + $0xc0] sm:$0xff]
  %v10995 = vld [vmem:[%s0 + $0xc8] sm:$0xff]
  %v10996 = vld [vmem:[%s0 + $0xd0] sm:$0xff]
  %v10997 = vld [vmem:[%s0 + $0xd8] sm:$0xff]
  %v10998 = vld [vmem:[%s0 + $0xe0] sm:$0xff]
  %v10999 = vld [vmem:[%s0 + $0xe8] sm:$0xff]
  %v11000 = vld [vmem:[%s0 + $0xf0] sm:$0xff]
  %v11001 = vld [vmem:[%s0 + $0xf8] sm:$0xff]
  %v11002 = vld [vmem:[%s0 + $0x100] sm:$0xff]
  %v11003 = vld [vmem:[%s0 + $0x108] sm:$0xff]
  %v11004 = vld [vmem:[%s0 + $0x110] sm:$0xff]
  %v11005 = vld [vmem:[%s0 + $0x118] sm:$0xff]
  %v11006 = vld [vmem:[%s0 + $0x120] sm:$0xff]
  %v11007 = vld [vmem:[%s0 + $0x128] sm:$0xff]
  %v11008 = vld [vmem:[%s0 + $0x130] sm:$0xff]
  %v11009 = vld [vmem:[%s0 + $0x138] sm:$0xff]
  %v11010 = vld [vmem:[%s0 + $0x140] sm:$0xff]
  %v11011 = vld [vmem:[%s0 + $0x148] sm:$0xff]
  %v11012 = vld [vmem:[%s0 + $0x150] sm:$0xff]
  %v11013 = vld [vmem:[%s0 + $0x158] sm:$0xff]
  %v11014 = vld [vmem:[%s0 + $0x160] sm:$0xff]
  %v11015 = vld [vmem:[%s0 + $0x168] sm:$0xff]
  %v11016 = vld [vmem:[%s0 + $0x170] sm:$0xff]
  %v11017 = vld [vmem:[%s0 + $0x178] sm:$0xff]
  %v11018 = vld [vmem:[%s0 + $0x180] sm:$0xff]
  %v11019 = vld [vmem:[%s0 + $0x188] sm:$0xff]
  %v11020 = vld [vmem:[%s0 + $0x190] sm:$0xff]
  %v11021 = vld [vmem:[%s0 + $0x198] sm:$0xff]
  %v11022 = vld [vmem:[%s0 + $0x1a0] sm:$0xff]
  %v11023 = vld [vmem:[%s0 + $0x1a8] sm:$0xff]
  %v11024 = vld [vmem:[%s0 + $0x1b0] sm:$0xff]
  %v11025 = vld [vmem:[%s0 + $0x1b8] sm:$0xff]
  %v11026 = vld [vmem:[%s0 + $0x1c0] sm:$0xff]
  %v11027 = vld [vmem:[%s0 + $0x1c8] sm:$0xff]
  %v11028 = vld [vmem:[%s0 + $0x1d0] sm:$0xff]
  %v11029 = vld [vmem:[%s0 + $0x1d8] sm:$0xff]
  %v11030 = vld [vmem:[%s0 + $0x1e0] sm:$0xff]
  %v11031 = vld [vmem:[%s0 + $0x1e8] sm:$0xff]
  %v11032 = vld [vmem:[%s0 + $0x1f0] sm:$0xff]
  %v11033 = vld [vmem:[%s0 + $0x1f8] sm:$0xff]
  %v11034 = vadd.f32 %v10970, %v10906
  %v11035 = vadd.f32 %v10971, %v10907
  %v11036 = vadd.f32 %v10972, %v10908
  %v11037 = vadd.f32 %v10973, %v10909
  %v11038 = vadd.f32 %v10974, %v10910
  %v11039 = vadd.f32 %v10975, %v10911
  %v11040 = vadd.f32 %v10976, %v10912
  %v11041 = vadd.f32 %v10977, %v10913
  %v11042 = vadd.f32 %v10978, %v10914
  %v11043 = vadd.f32 %v10979, %v10915
  %v11044 = vadd.f32 %v10980, %v10916
  %v11045 = vadd.f32 %v10981, %v10917
  %v11046 = vadd.f32 %v10982, %v10918
  %v11047 = vadd.f32 %v10983, %v10919
  %v11048 = vadd.f32 %v10984, %v10920
  %v11049 = vadd.f32 %v10985, %v10921
  %v11050 = vadd.f32 %v10986, %v10922
  %v11051 = vadd.f32 %v10987, %v10923
  %v11052 = vadd.f32 %v10988, %v10924
  %v11053 = vadd.f32 %v10989, %v10925
  %v11054 = vadd.f32 %v10990, %v10926
  %v11055 = vadd.f32 %v10991, %v10927
  %v11056 = vadd.f32 %v10992, %v10928
  %v11057 = vadd.f32 %v10993, %v10929
  %v11058 = vadd.f32 %v10994, %v10930
  %v11059 = vadd.f32 %v10995, %v10931
  %v11060 = vadd.f32 %v10996, %v10932
  %v11061 = vadd.f32 %v10997, %v10933
  %v11062 = vadd.f32 %v10998, %v10934
  %v11063 = vadd.f32 %v10999, %v10935
  %v11064 = vadd.f32 %v11000, %v10936
  %v11065 = vadd.f32 %v11001, %v10937
  %v11066 = vadd.f32 %v11002, %v10938
  %v11067 = vadd.f32 %v11003, %v10939
  %v11068 = vadd.f32 %v11004, %v10940
  %v11069 = vadd.f32 %v11005, %v10941
  %v11070 = vadd.f32 %v11006, %v10942
  %v11071 = vadd.f32 %v11007, %v10943
  %v11072 = vadd.f32 %v11008, %v10944
  %v11073 = vadd.f32 %v11009, %v10945
  %v11074 = vadd.f32 %v11010, %v10946
  %v11075 = vadd.f32 %v11011, %v10947
  %v11076 = vadd.f32 %v11012, %v10948
  %v11077 = vadd.f32 %v11013, %v10949
  %v11078 = vadd.f32 %v11014, %v10950
  %v11079 = vadd.f32 %v11015, %v10951
  %v11080 = vadd.f32 %v11016, %v10952
  %v11081 = vadd.f32 %v11017, %v10953
  %v11082 = vadd.f32 %v11018, %v10954
  %v11083 = vadd.f32 %v11019, %v10955
  %v11084 = vadd.f32 %v11020, %v10956
  %v11085 = vadd.f32 %v11021, %v10957
  %v11086 = vadd.f32 %v11022, %v10958
  %v11087 = vadd.f32 %v11023, %v10959
  %v11088 = vadd.f32 %v11024, %v10960
  %v11089 = vadd.f32 %v11025, %v10961
  %v11090 = vadd.f32 %v11026, %v10962
  %v11091 = vadd.f32 %v11027, %v10963
  %v11092 = vadd.f32 %v11028, %v10964
  %v11093 = vadd.f32 %v11029, %v10965
  %v11094 = vadd.f32 %v11030, %v10966
  %v11095 = vadd.f32 %v11031, %v10967
  %v11096 = vadd.f32 %v11032, %v10968
  %v11097 = vadd.f32 %v11033, %v10969
  %11098 = vst.msk [vmem:[%s4] sm:$0xff] %vm90, %v11034
  %11099 = vst.msk [vmem:[%s4 + $0x8] sm:$0xff] %vm90, %v11035
  %11100 = vst.msk [vmem:[%s4 + $0x10] sm:$0xff] %vm90, %v11036
  %11101 = vst.msk [vmem:[%s4 + $0x18] sm:$0xff] %vm90, %v11037
  %11102 = vst.msk [vmem:[%s4 + $0x20] sm:$0xff] %vm90, %v11038
  %11103 = vst.msk [vmem:[%s4 + $0x28] sm:$0xff] %vm90, %v11039
  %11104 = vst.msk [vmem:[%s4 + $0x30] sm:$0xff] %vm90, %v11040
  %11105 = vst.msk [vmem:[%s4 + $0x38] sm:$0xff] %vm90, %v11041
  %11106 = vst.msk [vmem:[%s4 + $0x40] sm:$0xff] %vm90, %v11042
  %11107 = vst.msk [vmem:[%s4 + $0x48] sm:$0xff] %vm90, %v11043
  %11108 = vst.msk [vmem:[%s4 + $0x50] sm:$0xff] %vm90, %v11044
  %11109 = vst.msk [vmem:[%s4 + $0x58] sm:$0xff] %vm90, %v11045
  %11110 = vst.msk [vmem:[%s4 + $0x60] sm:$0xff] %vm90, %v11046
  %11111 = vst.msk [vmem:[%s4 + $0x68] sm:$0xff] %vm90, %v11047
  %11112 = vst.msk [vmem:[%s4 + $0x70] sm:$0xff] %vm90, %v11048
  %11113 = vst.msk [vmem:[%s4 + $0x78] sm:$0xff] %vm90, %v11049
  %11114 = vst.msk [vmem:[%s4 + $0x80] sm:$0xff] %vm90, %v11050
  %11115 = vst.msk [vmem:[%s4 + $0x88] sm:$0xff] %vm90, %v11051
  %11116 = vst.msk [vmem:[%s4 + $0x90] sm:$0xff] %vm90, %v11052
  %11117 = vst.msk [vmem:[%s4 + $0x98] sm:$0xff] %vm90, %v11053
  %11118 = vst.msk [vmem:[%s4 + $0xa0] sm:$0xff] %vm90, %v11054
  %11119 = vst.msk [vmem:[%s4 + $0xa8] sm:$0xff] %vm90, %v11055
  %11120 = vst.msk [vmem:[%s4 + $0xb0] sm:$0xff] %vm90, %v11056
  %11121 = vst.msk [vmem:[%s4 + $0xb8] sm:$0xff] %vm90, %v11057
  %11122 = vst.msk [vmem:[%s4 + $0xc0] sm:$0xff] %vm90, %v11058
  %11123 = vst.msk [vmem:[%s4 + $0xc8] sm:$0xff] %vm90, %v11059
  %11124 = vst.msk [vmem:[%s4 + $0xd0] sm:$0xff] %vm90, %v11060
  %11125 = vst.msk [vmem:[%s4 + $0xd8] sm:$0xff] %vm90, %v11061
  %11126 = vst.msk [vmem:[%s4 + $0xe0] sm:$0xff] %vm90, %v11062
  %11127 = vst.msk [vmem:[%s4 + $0xe8] sm:$0xff] %vm90, %v11063
  %11128 = vst.msk [vmem:[%s4 + $0xf0] sm:$0xff] %vm90, %v11064
  %11129 = vst.msk [vmem:[%s4 + $0xf8] sm:$0xff] %vm90, %v11065
  %11130 = vst.msk [vmem:[%s4 + $0x100] sm:$0xff] %vm90, %v11066
  %11131 = vst.msk [vmem:[%s4 + $0x108] sm:$0xff] %vm90, %v11067
  %11132 = vst.msk [vmem:[%s4 + $0x110] sm:$0xff] %vm90, %v11068
  %11133 = vst.msk [vmem:[%s4 + $0x118] sm:$0xff] %vm90, %v11069
  %11134 = vst.msk [vmem:[%s4 + $0x120] sm:$0xff] %vm90, %v11070
  %11135 = vst.msk [vmem:[%s4 + $0x128] sm:$0xff] %vm90, %v11071
  %11136 = vst.msk [vmem:[%s4 + $0x130] sm:$0xff] %vm90, %v11072
  %11137 = vst.msk [vmem:[%s4 + $0x138] sm:$0xff] %vm90, %v11073
  %11138 = vst.msk [vmem:[%s4 + $0x140] sm:$0xff] %vm90, %v11074
  %11139 = vst.msk [vmem:[%s4 + $0x148] sm:$0xff] %vm90, %v11075
  %11140 = vst.msk [vmem:[%s4 + $0x150] sm:$0xff] %vm90, %v11076
  %11141 = vst.msk [vmem:[%s4 + $0x158] sm:$0xff] %vm90, %v11077
  %11142 = vst.msk [vmem:[%s4 + $0x160] sm:$0xff] %vm90, %v11078
  %11143 = vst.msk [vmem:[%s4 + $0x168] sm:$0xff] %vm90, %v11079
  %11144 = vst.msk [vmem:[%s4 + $0x170] sm:$0xff] %vm90, %v11080
  %11145 = vst.msk [vmem:[%s4 + $0x178] sm:$0xff] %vm90, %v11081
  %11146 = vst.msk [vmem:[%s4 + $0x180] sm:$0xff] %vm90, %v11082
  %11147 = vst.msk [vmem:[%s4 + $0x188] sm:$0xff] %vm90, %v11083
  %11148 = vst.msk [vmem:[%s4 + $0x190] sm:$0xff] %vm90, %v11084
  %11149 = vst.msk [vmem:[%s4 + $0x198] sm:$0xff] %vm90, %v11085
  %11150 = vst.msk [vmem:[%s4 + $0x1a0] sm:$0xff] %vm90, %v11086
  %11151 = vst.msk [vmem:[%s4 + $0x1a8] sm:$0xff] %vm90, %v11087
  %11152 = vst.msk [vmem:[%s4 + $0x1b0] sm:$0xff] %vm90, %v11088
  %11153 = vst.msk [vmem:[%s4 + $0x1b8] sm:$0xff] %vm90, %v11089
  %11154 = vst.msk [vmem:[%s4 + $0x1c0] sm:$0xff] %vm90, %v11090
  %11155 = vst.msk [vmem:[%s4 + $0x1c8] sm:$0xff] %vm90, %v11091
  %11156 = vst.msk [vmem:[%s4 + $0x1d0] sm:$0xff] %vm90, %v11092
  %11157 = vst.msk [vmem:[%s4 + $0x1d8] sm:$0xff] %vm90, %v11093
  %11158 = vst.msk [vmem:[%s4 + $0x1e0] sm:$0xff] %vm90, %v11094
  %11159 = vst.msk [vmem:[%s4 + $0x1e8] sm:$0xff] %vm90, %v11095
  %11160 = vst.msk [vmem:[%s4 + $0x1f0] sm:$0xff] %vm90, %v11096
  %11161 = vst.msk [vmem:[%s4 + $0x1f8] sm:$0xff] %vm90, %v11097
  // Predicated region
  $region18: #{tpu_custom_call.1} parent=0 // pred_check
    _
  $region19: #{tpu_custom_call.1} parent=0 // pred_check_branch
    %11163 = sbr.rel (0) target = $region21
  $region20: #{tpu_custom_call.1} parent=0 // pred_region
    _
  $region21: #{tpu_custom_call.1} parent=0 // pred_fallthru
    _
  // Predicated region
  $region22: #{tpu_custom_call.1} parent=0 // pred_check
    _
  $region23: #{tpu_custom_call.1} parent=0 // pred_check_branch
    %11165 = sbr.rel (0) target = $region25
  $region24: #{tpu_custom_call.1} parent=0 // pred_region
    _
  $region25: #{tpu_custom_call.1} parent=0 // pred_fallthru
    _

</llo_original>
